<compile_context>
chip_gen: v6e
topology: v6e:2x2x1
jax: 0.10.0
libtpu: 0.0.40
codegen_flags: <defaults>
</compile_context>

<pallas_src>
import functools

import jax
import jax.numpy as jnp
from jax.experimental import pallas as pl
from jax.experimental.pallas import tpu as pltpu

# MXU operand dtype: bf16 = ~4x MXU throughput on v6e/v7x + halved weight
# bytes; accumulation is always f32.  Use jnp.float32 for tight torch parity.
COMPUTE_DTYPE = jnp.bfloat16
_EPS = 1e-5
_NEG_INF = -1e30  # applied to f32 scores only (safe; see review note)


# ---------------------------------------------------------------------------
# small helpers
# ---------------------------------------------------------------------------

def _round_up(x, m):
    return ((x + m - 1) // m) * m


def _pad_to(x, shape):
    return jnp.pad(x, [(0, t - s) for s, t in zip(x.shape, shape)])


def _cparams(grid_nd):
    sem = ("parallel",) if grid_nd == 1 else ("parallel", "arbitrary")
    return pltpu.CompilerParams(
        dimension_semantics=sem,
        vmem_limit_bytes=48 * 1024 * 1024,
    )


def _const_idx(nd, grid_nd):
    """Index map that pins the whole (grid-invariant) array for every step."""
    if grid_nd == 1:
        return lambda i: (0,) * nd
    return lambda i, l: (0,) * nd


def _probe_single_buffer():
    """Return {'pipeline_mode': pl.Buffered(1)} if single-buffered specs are
    supported on this jax build, else {} (falls back to default buffering)."""
    try:
        mode = pl.Buffered(1)

        def _copy(x_ref, o_ref):
            o_ref[...] = x_ref[...]

        y = pl.pallas_call(
            _copy,
            out_shape=jax.ShapeDtypeStruct((8, 128), jnp.float32),
            grid=(1,),
            in_specs=[pl.BlockSpec((8, 128), lambda i: (0, 0),
                                   pipeline_mode=mode)],
            out_specs=pl.BlockSpec((8, 128), lambda i: (0, 0)),
        )(jnp.zeros((8, 128), jnp.float32))
        jax.block_until_ready(y)
        return {"pipeline_mode": mode}
    except Exception:   # pragma: no cover - older jax / non-TPU backend
        return {}


_SINGLE_BUF = _probe_single_buffer()


def _pick_s_tile(s, n_pad, target_tokens=512):
    """Sequences per grid step: ~512 packed tokens, >=2 parallel steps when
    there is more than one sequence (megacore on v7x), balanced tiles."""
    s_tile = max(1, min(s, target_tokens // max(1, n_pad)))
    if s_tile >= s and s >= 2:
        s_tile = (s + 1) // 2
    n_tiles = (s + s_tile - 1) // s_tile
    return (s + n_tiles - 1) // n_tiles


# ---------------------------------------------------------------------------
# in-kernel primitives
# ---------------------------------------------------------------------------

def _ln(x, g, b, d_real, eps=_EPS):
    """LayerNorm over a zero-padded last dim: E[x^2]-E[x]^2 with the real-dim
    divisor so padded (zero) lanes contribute nothing; padded gamma/beta are
    zero so padded output lanes stay zero."""
    s1 = jnp.sum(x, axis=-1, keepdims=True)
    s2 = jnp.sum(x * x, axis=-1, keepdims=True)
    mean = s1 / d_real
    var = s2 / d_real - mean * mean
    return (x - mean) * jax.lax.rsqrt(var + eps) * g + b


def _gelu_exact(x):
    # exact erf GELU (matches torch.nn.GELU default)
    return 0.5 * x * (1.0 + jax.lax.erf(x * 0.7071067811865476))


def _mm(a, b):
    return jnp.dot(a.astype(COMPUTE_DTYPE), b.astype(COMPUTE_DTYPE),
                   preferred_element_type=jnp.float32)


# ---------------------------------------------------------------------------
# Pallas kernels
# ---------------------------------------------------------------------------

def _transformer_kernel(x_ref,
                        ag_ref, ab_ref,            # attn pre-norm (1, Dp)
                        wq_ref, wk_ref, wv_ref,    # (Dp, inner) each (Wq scaled)
                        wo_ref, bo_ref,            # (inner, Dp), (1, Dp)
                        fg_ref, fb_ref,            # ff pre-norm (1, Dp)
                        w1_ref, b1_ref,            # (Dp, Hp), (1, Hp)
                        w2_ref, b2_ref,            # (Hp, Dp), (1, Dp)
                        lg_ref, lb_ref,            # transformer final norm
                        o_ref,
                        *, heads, dim_head, s_tile, n_pad, n_real, d_real):
    """One pre-norm transformer layer per depth grid step; the residual
    stream lives in the resident output block across the depth axis."""
    l = pl.program_id(1)
    last = pl.num_programs(1) - 1

    @pl.when(l == 0)
    def _():                                     # load residual stream once
        o_ref[...] = x_ref[...]

    x = o_ref[...].astype(jnp.float32)           # (T, Dp) residual stream

    # ------------------------- attention -------------------------
    h = _ln(x, ag_ref[...], ab_ref[...], d_real).astype(COMPUTE_DTYPE)
    q = _mm(h, wq_ref[...])                      # (T, inner) — scale folded in
    k = _mm(h, wk_ref[...])
    v = _mm(h, wv_ref[...])

    # mask padded key positions (token index within its sequence >= n_real)
    key_ok = jax.lax.broadcasted_iota(
        jnp.int32, (s_tile, n_pad, n_pad), 2) < n_real

    # small softmax(QK^T)V core stays per-head (batched over sequences);
    # NOTE: padded query rows compute garbage and are sliced off outside.
    outs = []
    for hd in range(heads):                      # static unroll, no matmuls here
        sl = slice(hd * dim_head, (hd + 1) * dim_head)
        q3 = q[:, sl].reshape(s_tile, n_pad, dim_head).astype(COMPUTE_DTYPE)
        k3 = k[:, sl].reshape(s_tile, n_pad, dim_head).astype(COMPUTE_DTYPE)
        v3 = v[:, sl].reshape(s_tile, n_pad, dim_head).astype(COMPUTE_DTYPE)
        s = jnp.einsum('bqd,bkd->bqk', q3, k3,
                       preferred_element_type=jnp.float32)        # f32 scores
        s = jnp.where(key_ok, s, _NEG_INF)
        s = s - jnp.max(s, axis=-1, keepdims=True)
        p = jnp.exp(s)
        p = p / jnp.sum(p, axis=-1, keepdims=True)                # exact divide
        o3 = jnp.einsum('bqk,bkd->bqd', p.astype(COMPUTE_DTYPE), v3,
                        preferred_element_type=jnp.float32)
        outs.append(o3.reshape(s_tile * n_pad, dim_head))
    attn = jnp.concatenate(outs, axis=-1)        # (T, inner), concat heads
    x = x + _mm(attn, wo_ref[...]) + bo_ref[...]  # ONE output projection

    # ------------------------- feed-forward -------------------------
    h = _ln(x, fg_ref[...], fb_ref[...], d_real).astype(COMPUTE_DTYPE)
    h = _gelu_exact(_mm(h, w1_ref[...]) + b1_ref[...])
    x = x + _mm(h, w2_ref[...]) + b2_ref[...]

    @pl.when(l < last)
    def _():
        o_ref[...] = x

    @pl.when(l == last)
    def _():                                     # fuse the final LayerNorm
        o_ref[...] = _ln(x, lg_ref[...], lb_ref[...], d_real)


def _patch_embed_kernel(x_ref, g1_ref, b1_ref, w_ref, b_ref, g2_ref, b2_ref,
                        o_ref, *, k_real, d_real):
    """Fused patch embedding: LayerNorm -> Linear -> LayerNorm."""
    h = _ln(x_ref[...].astype(jnp.float32), g1_ref[...], b1_ref[...], k_real)
    y = _mm(h, w_ref[...]) + b_ref[...]
    o_ref[...] = _ln(y, g2_ref[...], b2_ref[...], d_real).astype(o_ref.dtype)


# ---------------------------------------------------------------------------
# wrappers (pallas_call plumbing)
# ---------------------------------------------------------------------------

def patch_embed(tokens, params, d_real):
    """tokens: (M, patch_dim) -> (M, Dp) (last dim padded to 128-multiple)."""
    m, k_real = tokens.shape
    kp = params["pe_ln1_g"].shape[1]
    dp = params["pe_ln2_g"].shape[1]
    tm = min(_round_up(m, 8), 512)
    m_pad = _round_up(m, tm)
    xp = jnp.pad(tokens, ((0, m_pad - m), (0, kp - k_real)))
    ops = [params["pe_ln1_g"], params["pe_ln1_b"], params["pe_w"],
           params["pe_b"], params["pe_ln2_g"], params["pe_ln2_b"]]
    kernel = functools.partial(_patch_embed_kernel, k_real=k_real, d_real=d_real)
    out = pl.pallas_call(
        kernel,
        out_shape=jax.ShapeDtypeStruct((m_pad, dp), jnp.float32),
        grid=(m_pad // tm,),
        in_specs=[pl.BlockSpec((tm, kp), lambda i: (i, 0))]
                 + [pl.BlockSpec(a.shape, _const_idx(a.ndim, 1), **_SINGLE_BUF)
                    for a in ops],
        out_specs=pl.BlockSpec((tm, dp), lambda i: (i, 0)),
        compiler_params=_cparams(1),
    )(xp, *ops)
    return out[:m]


def transformer(x_seqs, tp, *, heads, dim_head, n_real, d_real):
    """x_seqs: (S, n_real, Dp) -> (S, n_real, Dp). One pallas_call for the
    whole depth (grid = token_tiles x depth, depth 'arbitrary')."""
    s, _, dp = x_seqs.shape
    n_pad = _round_up(n_real, 8)
    s_tile = _pick_s_tile(s, n_pad)
    s_pad = _round_up(s, s_tile)
    x = jnp.pad(x_seqs, ((0, s_pad - s), (0, n_pad - n_real), (0, 0)))
    x = x.reshape(s_pad * n_pad, dp)
    rows = s_tile * n_pad
    depth = tp["wq"].shape[0]

    depth_ops = [tp["ag"], tp["ab"], tp["wq"], tp["wk"], tp["wv"],
                 tp["wo"], tp["bo"], tp["fg"], tp["fb"],
                 tp["w1"], tp["b1"], tp["w2"], tp["b2"]]
    const_ops = [tp["lg"], tp["lb"]]

    kernel = functools.partial(
        _transformer_kernel, heads=heads, dim_head=dim_head,
        s_tile=s_tile, n_pad=n_pad, n_real=n_real, d_real=d_real)

    out = pl.pallas_call(
        kernel,
        out_shape=jax.ShapeDtypeStruct((s_pad * n_pad, dp), jnp.float32),
        grid=(s_pad // s_tile, depth),
        in_specs=[pl.BlockSpec((rows, dp), lambda i, l: (i, 0))]
                 + [pl.BlockSpec((None,) + a.shape[1:], lambda i, l: (l, 0, 0))
                    for a in depth_ops]
                 + [pl.BlockSpec(a.shape, _const_idx(a.ndim, 2), **_SINGLE_BUF)
                    for a in const_ops],
        out_specs=pl.BlockSpec((rows, dp), lambda i, l: (i, 0)),
        compiler_params=_cparams(2),
    )(x, *depth_ops, *const_ops)
    return out.reshape(s_pad, n_pad, dp)[:s, :n_real]


# ---------------------------------------------------------------------------
# ViViT forward (== ViVit_Model.forward)
# ---------------------------------------------------------------------------

def vivit_model_forward(x, params, cfg):
    # ViVit_Model.forward permutes (B, F, C, H, W) -> (B, C, F, H, W)
    x = jnp.transpose(x, (0, 2, 1, 3, 4))
    b, c, frames, hh, ww = x.shape
    pf = cfg["frame_patch_size"]
    p = cfg["image_patch_size"]
    f, hn, wn = frames // pf, hh // p, ww // p
    n = hn * wn
    dim = cfg["dim"]
    dp = params["pe_ln2_g"].shape[1]
    patch_dim = c * pf * p * p

    # einops: 'b c (f pf) (h p1) (w p2) -> b f (h w) (pf p1 p2 c)'
    x = x.reshape(b, c, f, pf, hn, p, wn, p)
    x = jnp.transpose(x, (0, 2, 4, 6, 3, 5, 7, 1))
    x = x.reshape(b * f * n, patch_dim)

    # fused patch embedding: LN -> Linear -> LN (lane-padded model dim)
    tok = patch_embed(x, params, dim).reshape(b, f, n, dp)
    tok = tok + params["pos_emb"][:, :f, :n]

    # spatial transformer over (CLS + patches) per frame
    sct = jnp.broadcast_to(params["spatial_cls"].reshape(1, 1, 1, dp), (b, f, 1, dp))
    xs = jnp.concatenate([sct, tok], axis=2).reshape(b * f, n + 1, dp)
    xs = transformer(xs, params["spatial_tf"], heads=cfg["heads"],
                     dim_head=cfg["dim_head"], n_real=n + 1, d_real=dim)
    xs = xs.reshape(b, f, n + 1, dp)[:, :, 0]            # spatial CLS tokens

    # temporal transformer over (CLS + frames)
    tct = jnp.broadcast_to(params["temporal_cls"].reshape(1, 1, dp), (b, 1, dp))
    xt = jnp.concatenate([tct, xs], axis=1)
    xt = transformer(xt, params["temporal_tf"], heads=cfg["heads"],
                     dim_head=cfg["dim_head"], n_real=f + 1, d_real=dim)
    cls = xt[:, 0, :dim]                                 # temporal CLS (real lanes)

    # mlp head: (B, dim) @ (dim, classes) is tiny -> plain XLA matmul
    return cls @ params["head_w"] + params["head_b"]


# ---------------------------------------------------------------------------
# deterministic parameter init (shapes follow the torch module; padded+stacked)
# ---------------------------------------------------------------------------

def _init_transformer(key, depth, dim, heads, dim_head, mlp_dim, dp, hp):
    inner = heads * dim_head
    scale = dim_head ** -0.5

    def rnd(k, shape):
        return 0.02 * jax.random.normal(k, shape, jnp.float32)

    stacks = {k: [] for k in ("ag", "ab", "wq", "wk", "wv", "wo", "bo",
                              "fg", "fb", "w1", "b1", "w2", "b2")}
    for _ in range(depth):
        keys = jax.random.split(key, 5)
        key = keys[0]
        # to_qkv: Linear(dim, 3*inner, bias=False); to_out: Linear(inner, dim)
        w_qkv = rnd(keys[1], (dim, 3 * inner))
        w_out = rnd(keys[2], (inner, dim))
        stacks["ag"].append(_pad_to(jnp.ones((1, dim), jnp.float32), (1, dp)))
        stacks["ab"].append(jnp.zeros((1, dp), jnp.float32))
        # attention scale folded into Wq (host side, once)
        stacks["wq"].append(_pad_to(w_qkv[:, :inner] * scale, (dp, inner)))
        stacks["wk"].append(_pad_to(w_qkv[:, inner:2 * inner], (dp, inner)))
        stacks["wv"].append(_pad_to(w_qkv[:, 2 * inner:], (dp, inner)))
        stacks["wo"].append(_pad_to(w_out, (inner, dp)))
        stacks["bo"].append(jnp.zeros((1, dp), jnp.float32))
        stacks["fg"].append(_pad_to(jnp.ones((1, dim), jnp.float32), (1, dp)))
        stacks["fb"].append(jnp.zeros((1, dp), jnp.float32))
        stacks["w1"].append(_pad_to(rnd(keys[3], (dim, mlp_dim)), (dp, hp)))
        stacks["b1"].append(jnp.zeros((1, hp), jnp.float32))
        stacks["w2"].append(_pad_to(rnd(keys[4], (mlp_dim, dim)), (hp, dp)))
        stacks["b2"].append(jnp.zeros((1, dp), jnp.float32))

    out = {k: jnp.stack(v, axis=0) for k, v in stacks.items()}
    for k in ("wq", "wk", "wv", "wo", "w1", "w2"):       # bf16 weights in HBM
        out[k] = out[k].astype(COMPUTE_DTYPE)
    out["lg"] = _pad_to(jnp.ones((1, dim), jnp.float32), (1, dp))
    out["lb"] = jnp.zeros((1, dp), jnp.float32)
    return out


def init_params(key, cfg):
    dim = cfg["dim"]
    dp = _round_up(dim, 128)
    hp = _round_up(cfg["mlp_dim"], 128)
    patch_dim = (cfg["channels"] * cfg["image_patch_size"] ** 2
                 * cfg["frame_patch_size"])
    kp = _round_up(patch_dim, 128)
    nfp = cfg["frames"] // cfg["frame_patch_size"]
    nip = (cfg["image_size"] // cfg["image_patch_size"]) ** 2
    k = jax.random.split(key, 8)

    def rnd(kk, shape):
        return 0.02 * jax.random.normal(kk, shape, jnp.float32)

    return {
        "pe_ln1_g": _pad_to(jnp.ones((1, patch_dim), jnp.float32), (1, kp)),
        "pe_ln1_b": jnp.zeros((1, kp), jnp.float32),
        "pe_w": _pad_to(rnd(k[0], (patch_dim, dim)), (kp, dp)).astype(COMPUTE_DTYPE),
        "pe_b": jnp.zeros((1, dp), jnp.float32),
        "pe_ln2_g": _pad_to(jnp.ones((1, dim), jnp.float32), (1, dp)),
        "pe_ln2_b": jnp.zeros((1, dp), jnp.float32),
        "pos_emb": _pad_to(rnd(k[1], (1, nfp, nip, dim)), (1, nfp, nip, dp)),
        "spatial_cls": _pad_to(rnd(k[2], (1, dim)), (1, dp)),
        "temporal_cls": _pad_to(rnd(k[3], (1, dim)), (1, dp)),
        "spatial_tf": _init_transformer(k[4], cfg["spatial_depth"], dim,
                                        cfg["heads"], cfg["dim_head"],
                                        cfg["mlp_dim"], dp, hp),
        "temporal_tf": _init_transformer(k[5], cfg["temporal_depth"], dim,
                                         cfg["heads"], cfg["dim_head"],
                                         cfg["mlp_dim"], dp, hp),
        "head_w": rnd(k[6], (dim, cfg["num_classes"])),
        "head_b": jnp.zeros((cfg["num_classes"],), jnp.float32),
    }


# ---------------------------------------------------------------------------

if __name__ == "__main__":
    # small configuration consistent with the module's constructor
    # (dim_head is the vit-pytorch default arg; shrunk with the other dims)
    cfg = dict(image_size=16, frames=8, image_patch_size=8, frame_patch_size=4,
               num_classes=6, dim=32, spatial_depth=2, temporal_depth=2,
               heads=4, dim_head=8, mlp_dim=48, channels=3)

    key = jax.random.PRNGKey(0)
    pkey, xkey = jax.random.split(key)
    params = init_params(pkey, cfg)

    # input: (B, F, C, H, W) -- exactly what ViVit_Model.forward expects
    x = jax.random.normal(
        xkey,
        (2, cfg["frames"], cfg["channels"], cfg["image_size"], cfg["image_size"]),
        jnp.float32)

    fwd = jax.jit(functools.partial(vivit_model_forward, cfg=cfg))
    out = jax.block_until_ready(fwd(x, params))
    assert out.shape == (2, cfg["num_classes"]), out.shape
    assert bool(jnp.all(jnp.isfinite(out)))
    print("KERNEL_OK")
</pallas_src>

<mosaic_0001>
module attributes {stable_mosaic.version = 11 : i64} {
  func.func @_copy(%arg0: i32, %arg1: memref<8x128xf32, #tpu.memory_space<vmem>>, %arg2: memref<8x128xf32, #tpu.memory_space<vmem>>) attributes {dimension_semantics = [#tpu.dimension_semantics<arbitrary>], iteration_bounds = array<i64: 1>, scalar_prefetch = 0 : i64, scratch_operands = 0 : i64, tpu.core_type = #tpu.core_type<tc>, window_params = [{pipeline_mode = #tpu.pipeline_mode<synchronous>, transform_indices = @transform_0, window_bounds = array<i64: 8, 128>}, {pipeline_mode = #tpu.pipeline_mode<synchronous>, transform_indices = @transform_1, window_bounds = array<i64: 8, 128>}]} {
    %c0 = arith.constant 0 : index
    %c0_0 = arith.constant 0 : index
    %0 = vector.load %arg1[%c0, %c0_0] : memref<8x128xf32, #tpu.memory_space<vmem>>, vector<8x128xf32>
    %c0_1 = arith.constant 0 : index
    %c0_2 = arith.constant 0 : index
    %1 = vector.load %arg2[%c0_1, %c0_2] : memref<8x128xf32, #tpu.memory_space<vmem>>, vector<8x128xf32>
    tpu.vector_store %arg2[%c0_1, %c0_2], %0 {strides = array<i32>} : memref<8x128xf32, #tpu.memory_space<vmem>>, vector<8x128xf32>,
    return
  }
  func.func @transform_0(%arg0: i32) -> (i32, i32) {
    %c0_i32 = arith.constant 0 : i32
    %c0_i32_0 = arith.constant 0 : i32
    %c0_i32_1 = arith.constant 0 : i32
    return %c0_i32, %c0_i32_0 : i32, i32
  }
  func.func @transform_1(%arg0: i32) -> (i32, i32) {
    %c0_i32 = arith.constant 0 : i32
    %c0_i32_0 = arith.constant 0 : i32
    %c0_i32_1 = arith.constant 0 : i32
    return %c0_i32, %c0_i32_0 : i32, i32
  }
}

module attributes {stable_mosaic.version = 11 : i64} {
  func.func @_patch_embed_kernel(%arg0: i32, %arg1: memref<16x768xf32, #tpu.memory_space<vmem>>, %arg2: memref<1x768xf32, #tpu.memory_space<vmem>>, %arg3: memref<1x768xf32, #tpu.memory_space<vmem>>, %arg4: memref<768x128xbf16, #tpu.memory_space<vmem>>, %arg5: memref<1x128xf32, #tpu.memory_space<vmem>>, %arg6: memref<1x128xf32, #tpu.memory_space<vmem>>, %arg7: memref<1x128xf32, #tpu.memory_space<vmem>>, %arg8: memref<16x128xf32, #tpu.memory_space<vmem>>) attributes {dimension_semantics = [#tpu.dimension_semantics<parallel>], iteration_bounds = array<i64: 1>, scalar_prefetch = 0 : i64, scratch_operands = 0 : i64, tpu.core_type = #tpu.core_type<tc>, window_params = [{transform_indices = @transform_0, window_bounds = array<i64: 16, 768>}, {pipeline_mode = #tpu.pipeline_mode<synchronous>, transform_indices = @transform_1, window_bounds = array<i64: 1, 768>}, {pipeline_mode = #tpu.pipeline_mode<synchronous>, transform_indices = @transform_2, window_bounds = array<i64: 1, 768>}, {pipeline_mode = #tpu.pipeline_mode<synchronous>, transform_indices = @transform_3, window_bounds = array<i64: 768, 128>}, {pipeline_mode = #tpu.pipeline_mode<synchronous>, transform_indices = @transform_4, window_bounds = array<i64: 1, 128>}, {pipeline_mode = #tpu.pipeline_mode<synchronous>, transform_indices = @transform_5, window_bounds = array<i64: 1, 128>}, {pipeline_mode = #tpu.pipeline_mode<synchronous>, transform_indices = @transform_6, window_bounds = array<i64: 1, 128>}, {transform_indices = @transform_7, window_bounds = array<i64: 16, 128>}]} {
    %c0 = arith.constant 0 : index
    %c0_0 = arith.constant 0 : index
    %0 = vector.load %arg1[%c0, %c0_0] : memref<16x768xf32, #tpu.memory_space<vmem>>, vector<16x768xf32>
    %c0_1 = arith.constant 0 : index
    %c0_2 = arith.constant 0 : index
    %1 = vector.load %arg2[%c0_1, %c0_2] : memref<1x768xf32, #tpu.memory_space<vmem>>, vector<1x768xf32>
    %c0_3 = arith.constant 0 : index
    %c0_4 = arith.constant 0 : index
    %2 = vector.load %arg3[%c0_3, %c0_4] : memref<1x768xf32, #tpu.memory_space<vmem>>, vector<1x768xf32>
    %cst = arith.constant dense<0.000000e+00> : vector<16xf32>
    %3 = vector.multi_reduction <add>, %0, %cst [1] : vector<16x768xf32> to vector<16xf32>
    %4 = vector.shape_cast %3 : vector<16xf32> to vector<16x1xf32>
    %5 = arith.mulf %0, %0 : vector<16x768xf32>
    %cst_5 = arith.constant dense<0.000000e+00> : vector<16xf32>
    %6 = vector.multi_reduction <add>, %5, %cst_5 [1] : vector<16x768xf32> to vector<16xf32>
    %7 = vector.shape_cast %6 : vector<16xf32> to vector<16x1xf32>
    %cst_6 = arith.constant 7.680000e+02 : f32
    %8 = vector.broadcast %cst_6 : f32 to vector<16x1xf32>
    %9 = arith.divf %4, %8 : vector<16x1xf32>
    %cst_7 = arith.constant 7.680000e+02 : f32
    %10 = vector.broadcast %cst_7 : f32 to vector<16x1xf32>
    %11 = arith.divf %7, %10 : vector<16x1xf32>
    %12 = arith.mulf %9, %9 : vector<16x1xf32>
    %13 = arith.subf %11, %12 : vector<16x1xf32>
    %14 = vector.broadcast %9 : vector<16x1xf32> to vector<16x768xf32>
    %15 = arith.subf %0, %14 : vector<16x768xf32>
    %cst_8 = arith.constant 9.99999974E-6 : f32
    %16 = vector.broadcast %cst_8 : f32 to vector<16x1xf32>
    %17 = arith.addf %13, %16 : vector<16x1xf32>
    %18 = math.rsqrt %17 : vector<16x1xf32>
    %19 = vector.broadcast %18 : vector<16x1xf32> to vector<16x768xf32>
    %20 = arith.mulf %15, %19 : vector<16x768xf32>
    %21 = vector.broadcast %1 : vector<1x768xf32> to vector<16x768xf32>
    %22 = arith.mulf %20, %21 : vector<16x768xf32>
    %23 = vector.broadcast %2 : vector<1x768xf32> to vector<16x768xf32>
    %24 = arith.addf %22, %23 : vector<16x768xf32>
    %c0_9 = arith.constant 0 : index
    %c0_10 = arith.constant 0 : index
    %25 = vector.load %arg4[%c0_9, %c0_10] : memref<768x128xbf16, #tpu.memory_space<vmem>>, vector<768x128xbf16>
    %26 = arith.truncf %24 : vector<16x768xf32> to vector<16x768xbf16>
    %cst_11 = arith.constant dense<0.000000e+00> : vector<16x128xf32>
    %27 = tpu.matmul %26, %25, %cst_11 {dimension_numbers = #tpu.dot_dimension_numbers<[1], [0], [0], [1], [0, 0, 1, 1], [], []>} : vector<16x768xbf16>, vector<768x128xbf16>, vector<16x128xf32> -> vector<16x128xf32>
    %c0_12 = arith.constant 0 : index
    %c0_13 = arith.constant 0 : index
    %28 = vector.load %arg5[%c0_12, %c0_13] : memref<1x128xf32, #tpu.memory_space<vmem>>, vector<1x128xf32>
    %29 = vector.broadcast %28 : vector<1x128xf32> to vector<16x128xf32>
    %30 = arith.addf %27, %29 : vector<16x128xf32>
    %c0_14 = arith.constant 0 : index
    %c0_15 = arith.constant 0 : index
    %31 = vector.load %arg6[%c0_14, %c0_15] : memref<1x128xf32, #tpu.memory_space<vmem>>, vector<1x128xf32>
    %c0_16 = arith.constant 0 : index
    %c0_17 = arith.constant 0 : index
    %32 = vector.load %arg7[%c0_16, %c0_17] : memref<1x128xf32, #tpu.memory_space<vmem>>, vector<1x128xf32>
    %cst_18 = arith.constant dense<0.000000e+00> : vector<16xf32>
    %33 = vector.multi_reduction <add>, %30, %cst_18 [1] : vector<16x128xf32> to vector<16xf32>
    %34 = vector.shape_cast %33 : vector<16xf32> to vector<16x1xf32>
    %35 = arith.mulf %30, %30 : vector<16x128xf32>
    %cst_19 = arith.constant dense<0.000000e+00> : vector<16xf32>
    %36 = vector.multi_reduction <add>, %35, %cst_19 [1] : vector<16x128xf32> to vector<16xf32>
    %37 = vector.shape_cast %36 : vector<16xf32> to vector<16x1xf32>
    %cst_20 = arith.constant 3.200000e+01 : f32
    %38 = vector.broadcast %cst_20 : f32 to vector<16x1xf32>
    %39 = arith.divf %34, %38 : vector<16x1xf32>
    %cst_21 = arith.constant 3.200000e+01 : f32
    %40 = vector.broadcast %cst_21 : f32 to vector<16x1xf32>
    %41 = arith.divf %37, %40 : vector<16x1xf32>
    %42 = arith.mulf %39, %39 : vector<16x1xf32>
    %43 = arith.subf %41, %42 : vector<16x1xf32>
    %44 = vector.broadcast %39 : vector<16x1xf32> to vector<16x128xf32>
    %45 = arith.subf %30, %44 : vector<16x128xf32>
    %cst_22 = arith.constant 9.99999974E-6 : f32
    %46 = vector.broadcast %cst_22 : f32 to vector<16x1xf32>
    %47 = arith.addf %43, %46 : vector<16x1xf32>
    %48 = math.rsqrt %47 : vector<16x1xf32>
    %49 = vector.broadcast %48 : vector<16x1xf32> to vector<16x128xf32>
    %50 = arith.mulf %45, %49 : vector<16x128xf32>
    %51 = vector.broadcast %31 : vector<1x128xf32> to vector<16x128xf32>
    %52 = arith.mulf %50, %51 : vector<16x128xf32>
    %53 = vector.broadcast %32 : vector<1x128xf32> to vector<16x128xf32>
    %54 = arith.addf %52, %53 : vector<16x128xf32>
    %c0_23 = arith.constant 0 : index
    %c0_24 = arith.constant 0 : index
    %55 = vector.load %arg8[%c0_23, %c0_24] : memref<16x128xf32, #tpu.memory_space<vmem>>, vector<16x128xf32>
    tpu.vector_store %arg8[%c0_23, %c0_24], %54 {strides = array<i32>} : memref<16x128xf32, #tpu.memory_space<vmem>>, vector<16x128xf32>,
    return
  }
  func.func @transform_0(%arg0: i32) -> (i32, i32) {
    %c0_i32 = arith.constant 0 : i32
    %c0_i32_0 = arith.constant 0 : i32
    return %arg0, %c0_i32 : i32, i32
  }
  func.func @transform_1(%arg0: i32) -> (i32, i32) {
    %c0_i32 = arith.constant 0 : i32
    %c0_i32_0 = arith.constant 0 : i32
    %c0_i32_1 = arith.constant 0 : i32
    return %c0_i32, %c0_i32_0 : i32, i32
  }
  func.func @transform_2(%arg0: i32) -> (i32, i32) {
    %c0_i32 = arith.constant 0 : i32
    %c0_i32_0 = arith.constant 0 : i32
    %c0_i32_1 = arith.constant 0 : i32
    return %c0_i32, %c0_i32_0 : i32, i32
  }
  func.func @transform_3(%arg0: i32) -> (i32, i32) {
    %c0_i32 = arith.constant 0 : i32
    %c0_i32_0 = arith.constant 0 : i32
    %c0_i32_1 = arith.constant 0 : i32
    return %c0_i32, %c0_i32_0 : i32, i32
  }
  func.func @transform_4(%arg0: i32) -> (i32, i32) {
    %c0_i32 = arith.constant 0 : i32
    %c0_i32_0 = arith.constant 0 : i32
    %c0_i32_1 = arith.constant 0 : i32
    return %c0_i32, %c0_i32_0 : i32, i32
  }
  func.func @transform_5(%arg0: i32) -> (i32, i32) {
    %c0_i32 = arith.constant 0 : i32
    %c0_i32_0 = arith.constant 0 : i32
    %c0_i32_1 = arith.constant 0 : i32
    return %c0_i32, %c0_i32_0 : i32, i32
  }
  func.func @transform_6(%arg0: i32) -> (i32, i32) {
    %c0_i32 = arith.constant 0 : i32
    %c0_i32_0 = arith.constant 0 : i32
    %c0_i32_1 = arith.constant 0 : i32
    return %c0_i32, %c0_i32_0 : i32, i32
  }
  func.func @transform_7(%arg0: i32) -> (i32, i32) {
    %c0_i32 = arith.constant 0 : i32
    %c0_i32_0 = arith.constant 0 : i32
    return %arg0, %c0_i32 : i32, i32
  }
}

module attributes {stable_mosaic.version = 11 : i64} {
  func.func @_transformer_kernel(%arg0: i32, %arg1: i32, %arg2: memref<16x128xf32, #tpu.memory_space<vmem>>, %arg3: memref<1x1x128xf32, #tpu.memory_space<vmem>>, %arg4: memref<1x1x128xf32, #tpu.memory_space<vmem>>, %arg5: memref<1x128x32xbf16, #tpu.memory_space<vmem>>, %arg6: memref<1x128x32xbf16, #tpu.memory_space<vmem>>, %arg7: memref<1x128x32xbf16, #tpu.memory_space<vmem>>, %arg8: memref<1x32x128xbf16, #tpu.memory_space<vmem>>, %arg9: memref<1x1x128xf32, #tpu.memory_space<vmem>>, %arg10: memref<1x1x128xf32, #tpu.memory_space<vmem>>, %arg11: memref<1x1x128xf32, #tpu.memory_space<vmem>>, %arg12: memref<1x128x128xbf16, #tpu.memory_space<vmem>>, %arg13: memref<1x1x128xf32, #tpu.memory_space<vmem>>, %arg14: memref<1x128x128xbf16, #tpu.memory_space<vmem>>, %arg15: memref<1x1x128xf32, #tpu.memory_space<vmem>>, %arg16: memref<1x128xf32, #tpu.memory_space<vmem>>, %arg17: memref<1x128xf32, #tpu.memory_space<vmem>>, %arg18: memref<16x128xf32, #tpu.memory_space<vmem>>) attributes {dimension_semantics = [#tpu.dimension_semantics<parallel>, #tpu.dimension_semantics<arbitrary>], iteration_bounds = array<i64: 2, 2>, scalar_prefetch = 0 : i64, scratch_operands = 0 : i64, tpu.core_type = #tpu.core_type<tc>, window_params = [{transform_indices = @transform_0, window_bounds = array<i64: 16, 128>}, {transform_indices = @transform_1, window_bounds = array<i64: 1, 1, 128>}, {transform_indices = @transform_2, window_bounds = array<i64: 1, 1, 128>}, {transform_indices = @transform_3, window_bounds = array<i64: 1, 128, 32>}, {transform_indices = @transform_4, window_bounds = array<i64: 1, 128, 32>}, {transform_indices = @transform_5, window_bounds = array<i64: 1, 128, 32>}, {transform_indices = @transform_6, window_bounds = array<i64: 1, 32, 128>}, {transform_indices = @transform_7, window_bounds = array<i64: 1, 1, 128>}, {transform_indices = @transform_8, window_bounds = array<i64: 1, 1, 128>}, {transform_indices = @transform_9, window_bounds = array<i64: 1, 1, 128>}, {transform_indices = @transform_10, window_bounds = array<i64: 1, 128, 128>}, {transform_indices = @transform_11, window_bounds = array<i64: 1, 1, 128>}, {transform_indices = @transform_12, window_bounds = array<i64: 1, 128, 128>}, {transform_indices = @transform_13, window_bounds = array<i64: 1, 1, 128>}, {pipeline_mode = #tpu.pipeline_mode<synchronous>, transform_indices = @transform_14, window_bounds = array<i64: 1, 128>}, {pipeline_mode = #tpu.pipeline_mode<synchronous>, transform_indices = @transform_15, window_bounds = array<i64: 1, 128>}, {transform_indices = @transform_16, window_bounds = array<i64: 16, 128>}]} {
    %c0_i32 = arith.constant 0 : i32
    %0 = arith.cmpi eq, %arg1, %c0_i32 : i32
    %1 = arith.extui %0 : i1 to i32
    %c0_i32_0 = arith.constant 0 : i32
    %2 = arith.cmpi ne, %1, %c0_i32_0 : i32
    scf.if %2 {
      %c0_82 = arith.constant 0 : index
      %c0_83 = arith.constant 0 : index
      %206 = vector.load %arg2[%c0_82, %c0_83] : memref<16x128xf32, #tpu.memory_space<vmem>>, vector<16x128xf32>
      %c0_84 = arith.constant 0 : index
      %c0_85 = arith.constant 0 : index
      %207 = vector.load %arg18[%c0_84, %c0_85] : memref<16x128xf32, #tpu.memory_space<vmem>>, vector<16x128xf32>
      tpu.vector_store %arg18[%c0_84, %c0_85], %206 {strides = array<i32>} : memref<16x128xf32, #tpu.memory_space<vmem>>, vector<16x128xf32>,
    } else {
    }
    %c0 = arith.constant 0 : index
    %c0_1 = arith.constant 0 : index
    %3 = vector.load %arg18[%c0, %c0_1] : memref<16x128xf32, #tpu.memory_space<vmem>>, vector<16x128xf32>
    %c0_2 = arith.constant 0 : index
    %c0_3 = arith.constant 0 : index
    %c0_4 = arith.constant 0 : index
    %4 = vector.load %arg3[%c0_2, %c0_3, %c0_4] : memref<1x1x128xf32, #tpu.memory_space<vmem>>, vector<1x1x128xf32>
    %5 = vector.shape_cast %4 : vector<1x1x128xf32> to vector<1x128xf32>
    %c0_5 = arith.constant 0 : index
    %c0_6 = arith.constant 0 : index
    %c0_7 = arith.constant 0 : index
    %6 = vector.load %arg4[%c0_5, %c0_6, %c0_7] : memref<1x1x128xf32, #tpu.memory_space<vmem>>, vector<1x1x128xf32>
    %7 = vector.shape_cast %6 : vector<1x1x128xf32> to vector<1x128xf32>
    %cst = arith.constant dense<0.000000e+00> : vector<16xf32>
    %8 = vector.multi_reduction <add>, %3, %cst [1] : vector<16x128xf32> to vector<16xf32>
    %9 = vector.shape_cast %8 : vector<16xf32> to vector<16x1xf32>
    %10 = arith.mulf %3, %3 : vector<16x128xf32>
    %cst_8 = arith.constant dense<0.000000e+00> : vector<16xf32>
    %11 = vector.multi_reduction <add>, %10, %cst_8 [1] : vector<16x128xf32> to vector<16xf32>
    %12 = vector.shape_cast %11 : vector<16xf32> to vector<16x1xf32>
    %cst_9 = arith.constant 3.200000e+01 : f32
    %13 = vector.broadcast %cst_9 : f32 to vector<16x1xf32>
    %14 = arith.divf %9, %13 : vector<16x1xf32>
    %cst_10 = arith.constant 3.200000e+01 : f32
    %15 = vector.broadcast %cst_10 : f32 to vector<16x1xf32>
    %16 = arith.divf %12, %15 : vector<16x1xf32>
    %17 = arith.mulf %14, %14 : vector<16x1xf32>
    %18 = arith.subf %16, %17 : vector<16x1xf32>
    %19 = vector.broadcast %14 : vector<16x1xf32> to vector<16x128xf32>
    %20 = arith.subf %3, %19 : vector<16x128xf32>
    %cst_11 = arith.constant 9.99999974E-6 : f32
    %21 = vector.broadcast %cst_11 : f32 to vector<16x1xf32>
    %22 = arith.addf %18, %21 : vector<16x1xf32>
    %23 = math.rsqrt %22 : vector<16x1xf32>
    %24 = vector.broadcast %23 : vector<16x1xf32> to vector<16x128xf32>
    %25 = arith.mulf %20, %24 : vector<16x128xf32>
    %26 = vector.broadcast %5 : vector<1x128xf32> to vector<16x128xf32>
    %27 = arith.mulf %25, %26 : vector<16x128xf32>
    %28 = vector.broadcast %7 : vector<1x128xf32> to vector<16x128xf32>
    %29 = arith.addf %27, %28 : vector<16x128xf32>
    %30 = arith.truncf %29 : vector<16x128xf32> to vector<16x128xbf16>
    %c0_12 = arith.constant 0 : index
    %c0_13 = arith.constant 0 : index
    %c0_14 = arith.constant 0 : index
    %31 = vector.load %arg5[%c0_12, %c0_13, %c0_14] : memref<1x128x32xbf16, #tpu.memory_space<vmem>>, vector<1x128x32xbf16>
    %32 = vector.shape_cast %31 : vector<1x128x32xbf16> to vector<128x32xbf16>
    %cst_15 = arith.constant dense<0.000000e+00> : vector<16x32xf32>
    %33 = tpu.matmul %30, %32, %cst_15 {dimension_numbers = #tpu.dot_dimension_numbers<[1], [0], [0], [1], [0, 0, 1, 1], [], []>} : vector<16x128xbf16>, vector<128x32xbf16>, vector<16x32xf32> -> vector<16x32xf32>
    %c0_16 = arith.constant 0 : index
    %c0_17 = arith.constant 0 : index
    %c0_18 = arith.constant 0 : index
    %34 = vector.load %arg6[%c0_16, %c0_17, %c0_18] : memref<1x128x32xbf16, #tpu.memory_space<vmem>>, vector<1x128x32xbf16>
    %35 = vector.shape_cast %34 : vector<1x128x32xbf16> to vector<128x32xbf16>
    %cst_19 = arith.constant dense<0.000000e+00> : vector<16x32xf32>
    %36 = tpu.matmul %30, %35, %cst_19 {dimension_numbers = #tpu.dot_dimension_numbers<[1], [0], [0], [1], [0, 0, 1, 1], [], []>} : vector<16x128xbf16>, vector<128x32xbf16>, vector<16x32xf32> -> vector<16x32xf32>
    %c0_20 = arith.constant 0 : index
    %c0_21 = arith.constant 0 : index
    %c0_22 = arith.constant 0 : index
    %37 = vector.load %arg7[%c0_20, %c0_21, %c0_22] : memref<1x128x32xbf16, #tpu.memory_space<vmem>>, vector<1x128x32xbf16>
    %38 = vector.shape_cast %37 : vector<1x128x32xbf16> to vector<128x32xbf16>
    %cst_23 = arith.constant dense<0.000000e+00> : vector<16x32xf32>
    %39 = tpu.matmul %30, %38, %cst_23 {dimension_numbers = #tpu.dot_dimension_numbers<[1], [0], [0], [1], [0, 0, 1, 1], [], []>} : vector<16x128xbf16>, vector<128x32xbf16>, vector<16x32xf32> -> vector<16x32xf32>
    %40 = tpu.iota {dimensions = array<i32: 2>} : vector<2x8x8xi32>
    %c5_i32 = arith.constant 5 : i32
    %41 = vector.broadcast %c5_i32 : i32 to vector<2x8x8xi32>
    %42 = arith.cmpi slt, %40, %41 : vector<2x8x8xi32>
    %43 = vector.extract_strided_slice %33 {offsets = [0, 0], sizes = [16, 8], strides = [1, 1]} : vector<16x32xf32> to vector<16x8xf32>
    %44 = vector.shape_cast %43 : vector<16x8xf32> to vector<2x8x8xf32>
    %45 = arith.truncf %44 : vector<2x8x8xf32> to vector<2x8x8xbf16>
    %46 = vector.extract_strided_slice %36 {offsets = [0, 0], sizes = [16, 8], strides = [1, 1]} : vector<16x32xf32> to vector<16x8xf32>
    %47 = vector.shape_cast %46 : vector<16x8xf32> to vector<2x8x8xf32>
    %48 = arith.truncf %47 : vector<2x8x8xf32> to vector<2x8x8xbf16>
    %49 = vector.extract_strided_slice %39 {offsets = [0, 0], sizes = [16, 8], strides = [1, 1]} : vector<16x32xf32> to vector<16x8xf32>
    %50 = vector.shape_cast %49 : vector<16x8xf32> to vector<2x8x8xf32>
    %51 = arith.truncf %50 : vector<2x8x8xf32> to vector<2x8x8xbf16>
    "tpu.trace_start"() <{level = 10 : i32, message = "bqd,bkd->bqk"}> : () -> ()
    %cst_24 = arith.constant dense<0.000000e+00> : vector<2x8x8xf32>
    %52 = tpu.matmul %45, %48, %cst_24 {dimension_numbers = #tpu.dot_dimension_numbers<[2], [2], [1], [1], [0, 0, 0, 1, 1, 1], [0], [0]>} : vector<2x8x8xbf16>, vector<2x8x8xbf16>, vector<2x8x8xf32> -> vector<2x8x8xf32>
    %cst_25 = arith.constant -1.000000e+30 : f32
    "tpu.trace_stop"() : () -> ()
    %53 = vector.broadcast %cst_25 : f32 to vector<2x8x8xf32>
    %54 = arith.select %42, %52, %53 : vector<2x8x8xi1>, vector<2x8x8xf32>
    %cst_26 = arith.constant dense<0xFF800000> : vector<2x8xf32>
    %55 = vector.multi_reduction <maximumf>, %54, %cst_26 [2] : vector<2x8x8xf32> to vector<2x8xf32>
    %56 = vector.shape_cast %55 : vector<2x8xf32> to vector<2x8x1xf32>
    %57 = vector.broadcast %56 : vector<2x8x1xf32> to vector<2x8x8xf32>
    %58 = arith.subf %54, %57 : vector<2x8x8xf32>
    %59 = math.exp %58 : vector<2x8x8xf32>
    %cst_27 = arith.constant dense<0.000000e+00> : vector<2x8xf32>
    %60 = vector.multi_reduction <add>, %59, %cst_27 [2] : vector<2x8x8xf32> to vector<2x8xf32>
    %61 = vector.shape_cast %60 : vector<2x8xf32> to vector<2x8x1xf32>
    %62 = vector.broadcast %61 : vector<2x8x1xf32> to vector<2x8x8xf32>
    %63 = arith.divf %59, %62 : vector<2x8x8xf32>
    %64 = arith.truncf %63 : vector<2x8x8xf32> to vector<2x8x8xbf16>
    "tpu.trace_start"() <{level = 10 : i32, message = "bqk,bkd->bqd"}> : () -> ()
    %cst_28 = arith.constant dense<0.000000e+00> : vector<2x8x8xf32>
    %65 = tpu.matmul %64, %51, %cst_28 {dimension_numbers = #tpu.dot_dimension_numbers<[2], [1], [1], [2], [0, 0, 0, 1, 1, 2], [0], [0]>} : vector<2x8x8xbf16>, vector<2x8x8xbf16>, vector<2x8x8xf32> -> vector<2x8x8xf32>
    "tpu.trace_stop"() : () -> ()
    %66 = vector.shape_cast %65 : vector<2x8x8xf32> to vector<16x8xf32>
    %67 = vector.extract_strided_slice %33 {offsets = [0, 8], sizes = [16, 8], strides = [1, 1]} : vector<16x32xf32> to vector<16x8xf32>
    %68 = vector.shape_cast %67 : vector<16x8xf32> to vector<2x8x8xf32>
    %69 = arith.truncf %68 : vector<2x8x8xf32> to vector<2x8x8xbf16>
    %70 = vector.extract_strided_slice %36 {offsets = [0, 8], sizes = [16, 8], strides = [1, 1]} : vector<16x32xf32> to vector<16x8xf32>
    %71 = vector.shape_cast %70 : vector<16x8xf32> to vector<2x8x8xf32>
    %72 = arith.truncf %71 : vector<2x8x8xf32> to vector<2x8x8xbf16>
    %73 = vector.extract_strided_slice %39 {offsets = [0, 8], sizes = [16, 8], strides = [1, 1]} : vector<16x32xf32> to vector<16x8xf32>
    %74 = vector.shape_cast %73 : vector<16x8xf32> to vector<2x8x8xf32>
    %75 = arith.truncf %74 : vector<2x8x8xf32> to vector<2x8x8xbf16>
    "tpu.trace_start"() <{level = 10 : i32, message = "bqd,bkd->bqk"}> : () -> ()
    %cst_29 = arith.constant dense<0.000000e+00> : vector<2x8x8xf32>
    %76 = tpu.matmul %69, %72, %cst_29 {dimension_numbers = #tpu.dot_dimension_numbers<[2], [2], [1], [1], [0, 0, 0, 1, 1, 1], [0], [0]>} : vector<2x8x8xbf16>, vector<2x8x8xbf16>, vector<2x8x8xf32> -> vector<2x8x8xf32>
    %cst_30 = arith.constant -1.000000e+30 : f32
    "tpu.trace_stop"() : () -> ()
    %77 = vector.broadcast %cst_30 : f32 to vector<2x8x8xf32>
    %78 = arith.select %42, %76, %77 : vector<2x8x8xi1>, vector<2x8x8xf32>
    %cst_31 = arith.constant dense<0xFF800000> : vector<2x8xf32>
    %79 = vector.multi_reduction <maximumf>, %78, %cst_31 [2] : vector<2x8x8xf32> to vector<2x8xf32>
    %80 = vector.shape_cast %79 : vector<2x8xf32> to vector<2x8x1xf32>
    %81 = vector.broadcast %80 : vector<2x8x1xf32> to vector<2x8x8xf32>
    %82 = arith.subf %78, %81 : vector<2x8x8xf32>
    %83 = math.exp %82 : vector<2x8x8xf32>
    %cst_32 = arith.constant dense<0.000000e+00> : vector<2x8xf32>
    %84 = vector.multi_reduction <add>, %83, %cst_32 [2] : vector<2x8x8xf32> to vector<2x8xf32>
    %85 = vector.shape_cast %84 : vector<2x8xf32> to vector<2x8x1xf32>
    %86 = vector.broadcast %85 : vector<2x8x1xf32> to vector<2x8x8xf32>
    %87 = arith.divf %83, %86 : vector<2x8x8xf32>
    %88 = arith.truncf %87 : vector<2x8x8xf32> to vector<2x8x8xbf16>
    "tpu.trace_start"() <{level = 10 : i32, message = "bqk,bkd->bqd"}> : () -> ()
    %cst_33 = arith.constant dense<0.000000e+00> : vector<2x8x8xf32>
    %89 = tpu.matmul %88, %75, %cst_33 {dimension_numbers = #tpu.dot_dimension_numbers<[2], [1], [1], [2], [0, 0, 0, 1, 1, 2], [0], [0]>} : vector<2x8x8xbf16>, vector<2x8x8xbf16>, vector<2x8x8xf32> -> vector<2x8x8xf32>
    "tpu.trace_stop"() : () -> ()
    %90 = vector.shape_cast %89 : vector<2x8x8xf32> to vector<16x8xf32>
    %91 = vector.extract_strided_slice %33 {offsets = [0, 16], sizes = [16, 8], strides = [1, 1]} : vector<16x32xf32> to vector<16x8xf32>
    %92 = vector.shape_cast %91 : vector<16x8xf32> to vector<2x8x8xf32>
    %93 = arith.truncf %92 : vector<2x8x8xf32> to vector<2x8x8xbf16>
    %94 = vector.extract_strided_slice %36 {offsets = [0, 16], sizes = [16, 8], strides = [1, 1]} : vector<16x32xf32> to vector<16x8xf32>
    %95 = vector.shape_cast %94 : vector<16x8xf32> to vector<2x8x8xf32>
    %96 = arith.truncf %95 : vector<2x8x8xf32> to vector<2x8x8xbf16>
    %97 = vector.extract_strided_slice %39 {offsets = [0, 16], sizes = [16, 8], strides = [1, 1]} : vector<16x32xf32> to vector<16x8xf32>
    %98 = vector.shape_cast %97 : vector<16x8xf32> to vector<2x8x8xf32>
    %99 = arith.truncf %98 : vector<2x8x8xf32> to vector<2x8x8xbf16>
    "tpu.trace_start"() <{level = 10 : i32, message = "bqd,bkd->bqk"}> : () -> ()
    %cst_34 = arith.constant dense<0.000000e+00> : vector<2x8x8xf32>
    %100 = tpu.matmul %93, %96, %cst_34 {dimension_numbers = #tpu.dot_dimension_numbers<[2], [2], [1], [1], [0, 0, 0, 1, 1, 1], [0], [0]>} : vector<2x8x8xbf16>, vector<2x8x8xbf16>, vector<2x8x8xf32> -> vector<2x8x8xf32>
    %cst_35 = arith.constant -1.000000e+30 : f32
    "tpu.trace_stop"() : () -> ()
    %101 = vector.broadcast %cst_35 : f32 to vector<2x8x8xf32>
    %102 = arith.select %42, %100, %101 : vector<2x8x8xi1>, vector<2x8x8xf32>
    %cst_36 = arith.constant dense<0xFF800000> : vector<2x8xf32>
    %103 = vector.multi_reduction <maximumf>, %102, %cst_36 [2] : vector<2x8x8xf32> to vector<2x8xf32>
    %104 = vector.shape_cast %103 : vector<2x8xf32> to vector<2x8x1xf32>
    %105 = vector.broadcast %104 : vector<2x8x1xf32> to vector<2x8x8xf32>
    %106 = arith.subf %102, %105 : vector<2x8x8xf32>
    %107 = math.exp %106 : vector<2x8x8xf32>
    %cst_37 = arith.constant dense<0.000000e+00> : vector<2x8xf32>
    %108 = vector.multi_reduction <add>, %107, %cst_37 [2] : vector<2x8x8xf32> to vector<2x8xf32>
    %109 = vector.shape_cast %108 : vector<2x8xf32> to vector<2x8x1xf32>
    %110 = vector.broadcast %109 : vector<2x8x1xf32> to vector<2x8x8xf32>
    %111 = arith.divf %107, %110 : vector<2x8x8xf32>
    %112 = arith.truncf %111 : vector<2x8x8xf32> to vector<2x8x8xbf16>
    "tpu.trace_start"() <{level = 10 : i32, message = "bqk,bkd->bqd"}> : () -> ()
    %cst_38 = arith.constant dense<0.000000e+00> : vector<2x8x8xf32>
    %113 = tpu.matmul %112, %99, %cst_38 {dimension_numbers = #tpu.dot_dimension_numbers<[2], [1], [1], [2], [0, 0, 0, 1, 1, 2], [0], [0]>} : vector<2x8x8xbf16>, vector<2x8x8xbf16>, vector<2x8x8xf32> -> vector<2x8x8xf32>
    "tpu.trace_stop"() : () -> ()
    %114 = vector.shape_cast %113 : vector<2x8x8xf32> to vector<16x8xf32>
    %115 = vector.extract_strided_slice %33 {offsets = [0, 24], sizes = [16, 8], strides = [1, 1]} : vector<16x32xf32> to vector<16x8xf32>
    %116 = vector.shape_cast %115 : vector<16x8xf32> to vector<2x8x8xf32>
    %117 = arith.truncf %116 : vector<2x8x8xf32> to vector<2x8x8xbf16>
    %118 = vector.extract_strided_slice %36 {offsets = [0, 24], sizes = [16, 8], strides = [1, 1]} : vector<16x32xf32> to vector<16x8xf32>
    %119 = vector.shape_cast %118 : vector<16x8xf32> to vector<2x8x8xf32>
    %120 = arith.truncf %119 : vector<2x8x8xf32> to vector<2x8x8xbf16>
    %121 = vector.extract_strided_slice %39 {offsets = [0, 24], sizes = [16, 8], strides = [1, 1]} : vector<16x32xf32> to vector<16x8xf32>
    %122 = vector.shape_cast %121 : vector<16x8xf32> to vector<2x8x8xf32>
    %123 = arith.truncf %122 : vector<2x8x8xf32> to vector<2x8x8xbf16>
    "tpu.trace_start"() <{level = 10 : i32, message = "bqd,bkd->bqk"}> : () -> ()
    %cst_39 = arith.constant dense<0.000000e+00> : vector<2x8x8xf32>
    %124 = tpu.matmul %117, %120, %cst_39 {dimension_numbers = #tpu.dot_dimension_numbers<[2], [2], [1], [1], [0, 0, 0, 1, 1, 1], [0], [0]>} : vector<2x8x8xbf16>, vector<2x8x8xbf16>, vector<2x8x8xf32> -> vector<2x8x8xf32>
    %cst_40 = arith.constant -1.000000e+30 : f32
    "tpu.trace_stop"() : () -> ()
    %125 = vector.broadcast %cst_40 : f32 to vector<2x8x8xf32>
    %126 = arith.select %42, %124, %125 : vector<2x8x8xi1>, vector<2x8x8xf32>
    %cst_41 = arith.constant dense<0xFF800000> : vector<2x8xf32>
    %127 = vector.multi_reduction <maximumf>, %126, %cst_41 [2] : vector<2x8x8xf32> to vector<2x8xf32>
    %128 = vector.shape_cast %127 : vector<2x8xf32> to vector<2x8x1xf32>
    %129 = vector.broadcast %128 : vector<2x8x1xf32> to vector<2x8x8xf32>
    %130 = arith.subf %126, %129 : vector<2x8x8xf32>
    %131 = math.exp %130 : vector<2x8x8xf32>
    %cst_42 = arith.constant dense<0.000000e+00> : vector<2x8xf32>
    %132 = vector.multi_reduction <add>, %131, %cst_42 [2] : vector<2x8x8xf32> to vector<2x8xf32>
    %133 = vector.shape_cast %132 : vector<2x8xf32> to vector<2x8x1xf32>
    %134 = vector.broadcast %133 : vector<2x8x1xf32> to vector<2x8x8xf32>
    %135 = arith.divf %131, %134 : vector<2x8x8xf32>
    %136 = arith.truncf %135 : vector<2x8x8xf32> to vector<2x8x8xbf16>
    "tpu.trace_start"() <{level = 10 : i32, message = "bqk,bkd->bqd"}> : () -> ()
    %cst_43 = arith.constant dense<0.000000e+00> : vector<2x8x8xf32>
    %137 = tpu.matmul %136, %123, %cst_43 {dimension_numbers = #tpu.dot_dimension_numbers<[2], [1], [1], [2], [0, 0, 0, 1, 1, 2], [0], [0]>} : vector<2x8x8xbf16>, vector<2x8x8xbf16>, vector<2x8x8xf32> -> vector<2x8x8xf32>
    "tpu.trace_stop"() : () -> ()
    %138 = vector.shape_cast %137 : vector<2x8x8xf32> to vector<16x8xf32>
    %139 = tpu.concatenate %66, %90, %114, %138 in 1 : vector<16x8xf32>, vector<16x8xf32>, vector<16x8xf32>, vector<16x8xf32> -> vector<16x32xf32>
    %c0_44 = arith.constant 0 : index
    %c0_45 = arith.constant 0 : index
    %c0_46 = arith.constant 0 : index
    %140 = vector.load %arg8[%c0_44, %c0_45, %c0_46] : memref<1x32x128xbf16, #tpu.memory_space<vmem>>, vector<1x32x128xbf16>
    %141 = vector.shape_cast %140 : vector<1x32x128xbf16> to vector<32x128xbf16>
    %142 = arith.truncf %139 : vector<16x32xf32> to vector<16x32xbf16>
    %cst_47 = arith.constant dense<0.000000e+00> : vector<16x128xf32>
    %143 = tpu.matmul %142, %141, %cst_47 {dimension_numbers = #tpu.dot_dimension_numbers<[1], [0], [0], [1], [0, 0, 1, 1], [], []>} : vector<16x32xbf16>, vector<32x128xbf16>, vector<16x128xf32> -> vector<16x128xf32>
    %144 = arith.addf %3, %143 : vector<16x128xf32>
    %c0_48 = arith.constant 0 : index
    %c0_49 = arith.constant 0 : index
    %c0_50 = arith.constant 0 : index
    %145 = vector.load %arg9[%c0_48, %c0_49, %c0_50] : memref<1x1x128xf32, #tpu.memory_space<vmem>>, vector<1x1x128xf32>
    %146 = vector.shape_cast %145 : vector<1x1x128xf32> to vector<1x128xf32>
    %147 = vector.broadcast %146 : vector<1x128xf32> to vector<16x128xf32>
    %148 = arith.addf %144, %147 : vector<16x128xf32>
    %c0_51 = arith.constant 0 : index
    %c0_52 = arith.constant 0 : index
    %c0_53 = arith.constant 0 : index
    %149 = vector.load %arg10[%c0_51, %c0_52, %c0_53] : memref<1x1x128xf32, #tpu.memory_space<vmem>>, vector<1x1x128xf32>
    %150 = vector.shape_cast %149 : vector<1x1x128xf32> to vector<1x128xf32>
    %c0_54 = arith.constant 0 : index
    %c0_55 = arith.constant 0 : index
    %c0_56 = arith.constant 0 : index
    %151 = vector.load %arg11[%c0_54, %c0_55, %c0_56] : memref<1x1x128xf32, #tpu.memory_space<vmem>>, vector<1x1x128xf32>
    %152 = vector.shape_cast %151 : vector<1x1x128xf32> to vector<1x128xf32>
    %cst_57 = arith.constant dense<0.000000e+00> : vector<16xf32>
    %153 = vector.multi_reduction <add>, %148, %cst_57 [1] : vector<16x128xf32> to vector<16xf32>
    %154 = vector.shape_cast %153 : vector<16xf32> to vector<16x1xf32>
    %155 = arith.mulf %148, %148 : vector<16x128xf32>
    %cst_58 = arith.constant dense<0.000000e+00> : vector<16xf32>
    %156 = vector.multi_reduction <add>, %155, %cst_58 [1] : vector<16x128xf32> to vector<16xf32>
    %157 = vector.shape_cast %156 : vector<16xf32> to vector<16x1xf32>
    %cst_59 = arith.constant 3.200000e+01 : f32
    %158 = vector.broadcast %cst_59 : f32 to vector<16x1xf32>
    %159 = arith.divf %154, %158 : vector<16x1xf32>
    %cst_60 = arith.constant 3.200000e+01 : f32
    %160 = vector.broadcast %cst_60 : f32 to vector<16x1xf32>
    %161 = arith.divf %157, %160 : vector<16x1xf32>
    %162 = arith.mulf %159, %159 : vector<16x1xf32>
    %163 = arith.subf %161, %162 : vector<16x1xf32>
    %164 = vector.broadcast %159 : vector<16x1xf32> to vector<16x128xf32>
    %165 = arith.subf %148, %164 : vector<16x128xf32>
    %cst_61 = arith.constant 9.99999974E-6 : f32
    %166 = vector.broadcast %cst_61 : f32 to vector<16x1xf32>
    %167 = arith.addf %163, %166 : vector<16x1xf32>
    %168 = math.rsqrt %167 : vector<16x1xf32>
    %169 = vector.broadcast %168 : vector<16x1xf32> to vector<16x128xf32>
    %170 = arith.mulf %165, %169 : vector<16x128xf32>
    %171 = vector.broadcast %150 : vector<1x128xf32> to vector<16x128xf32>
    %172 = arith.mulf %170, %171 : vector<16x128xf32>
    %173 = vector.broadcast %152 : vector<1x128xf32> to vector<16x128xf32>
    %174 = arith.addf %172, %173 : vector<16x128xf32>
    %175 = arith.truncf %174 : vector<16x128xf32> to vector<16x128xbf16>
    %c0_62 = arith.constant 0 : index
    %c0_63 = arith.constant 0 : index
    %c0_64 = arith.constant 0 : index
    %176 = vector.load %arg12[%c0_62, %c0_63, %c0_64] : memref<1x128x128xbf16, #tpu.memory_space<vmem>>, vector<1x128x128xbf16>
    %177 = vector.shape_cast %176 : vector<1x128x128xbf16> to vector<128x128xbf16>
    %cst_65 = arith.constant dense<0.000000e+00> : vector<16x128xf32>
    %178 = tpu.matmul %175, %177, %cst_65 {dimension_numbers = #tpu.dot_dimension_numbers<[1], [0], [0], [1], [0, 0, 1, 1], [], []>} : vector<16x128xbf16>, vector<128x128xbf16>, vector<16x128xf32> -> vector<16x128xf32>
    %c0_66 = arith.constant 0 : index
    %c0_67 = arith.constant 0 : index
    %c0_68 = arith.constant 0 : index
    %179 = vector.load %arg13[%c0_66, %c0_67, %c0_68] : memref<1x1x128xf32, #tpu.memory_space<vmem>>, vector<1x1x128xf32>
    %180 = vector.shape_cast %179 : vector<1x1x128xf32> to vector<1x128xf32>
    %181 = vector.broadcast %180 : vector<1x128xf32> to vector<16x128xf32>
    %182 = arith.addf %178, %181 : vector<16x128xf32>
    %cst_69 = arith.constant 5.000000e-01 : f32
    %183 = vector.broadcast %cst_69 : f32 to vector<16x128xf32>
    %184 = arith.mulf %183, %182 : vector<16x128xf32>
    %cst_70 = arith.constant 0.707106769 : f32
    %185 = vector.broadcast %cst_70 : f32 to vector<16x128xf32>
    %186 = arith.mulf %182, %185 : vector<16x128xf32>
    %187 = math.erf %186 : vector<16x128xf32>
    %cst_71 = arith.constant 1.000000e+00 : f32
    %188 = vector.broadcast %cst_71 : f32 to vector<16x128xf32>
    %189 = arith.addf %188, %187 : vector<16x128xf32>
    %190 = arith.mulf %184, %189 : vector<16x128xf32>
    %c0_72 = arith.constant 0 : index
    %c0_73 = arith.constant 0 : index
    %c0_74 = arith.constant 0 : index
    %191 = vector.load %arg14[%c0_72, %c0_73, %c0_74] : memref<1x128x128xbf16, #tpu.memory_space<vmem>>, vector<1x128x128xbf16>
    %192 = vector.shape_cast %191 : vector<1x128x128xbf16> to vector<128x128xbf16>
    %193 = arith.truncf %190 : vector<16x128xf32> to vector<16x128xbf16>
    %cst_75 = arith.constant dense<0.000000e+00> : vector<16x128xf32>
    %194 = tpu.matmul %193, %192, %cst_75 {dimension_numbers = #tpu.dot_dimension_numbers<[1], [0], [0], [1], [0, 0, 1, 1], [], []>} : vector<16x128xbf16>, vector<128x128xbf16>, vector<16x128xf32> -> vector<16x128xf32>
    %195 = arith.addf %148, %194 : vector<16x128xf32>
    %c0_76 = arith.constant 0 : index
    %c0_77 = arith.constant 0 : index
    %c0_78 = arith.constant 0 : index
    %196 = vector.load %arg15[%c0_76, %c0_77, %c0_78] : memref<1x1x128xf32, #tpu.memory_space<vmem>>, vector<1x1x128xf32>
    %197 = vector.shape_cast %196 : vector<1x1x128xf32> to vector<1x128xf32>
    %198 = vector.broadcast %197 : vector<1x128xf32> to vector<16x128xf32>
    %199 = arith.addf %195, %198 : vector<16x128xf32>
    %c1_i32 = arith.constant 1 : i32
    %200 = arith.cmpi slt, %arg1, %c1_i32 : i32
    %201 = arith.extui %200 : i1 to i32
    %c0_i32_79 = arith.constant 0 : i32
    %202 = arith.cmpi ne, %201, %c0_i32_79 : i32
    scf.if %202 {
      %c0_82 = arith.constant 0 : index
      %c0_83 = arith.constant 0 : index
      %206 = vector.load %arg18[%c0_82, %c0_83] : memref<16x128xf32, #tpu.memory_space<vmem>>, vector<16x128xf32>
      tpu.vector_store %arg18[%c0_82, %c0_83], %199 {strides = array<i32>} : memref<16x128xf32, #tpu.memory_space<vmem>>, vector<16x128xf32>,
    } else {
    }
    %c1_i32_80 = arith.constant 1 : i32
    %203 = arith.cmpi eq, %arg1, %c1_i32_80 : i32
    %204 = arith.extui %203 : i1 to i32
    %c0_i32_81 = arith.constant 0 : i32
    %205 = arith.cmpi ne, %204, %c0_i32_81 : i32
    scf.if %205 {
      %c0_82 = arith.constant 0 : index
      %c0_83 = arith.constant 0 : index
      %206 = vector.load %arg16[%c0_82, %c0_83] : memref<1x128xf32, #tpu.memory_space<vmem>>, vector<1x128xf32>
      %c0_84 = arith.constant 0 : index
      %c0_85 = arith.constant 0 : index
      %207 = vector.load %arg17[%c0_84, %c0_85] : memref<1x128xf32, #tpu.memory_space<vmem>>, vector<1x128xf32>
      %cst_86 = arith.constant dense<0.000000e+00> : vector<16xf32>
      %208 = vector.multi_reduction <add>, %199, %cst_86 [1] : vector<16x128xf32> to vector<16xf32>
      %209 = vector.shape_cast %208 : vector<16xf32> to vector<16x1xf32>
      %210 = arith.mulf %199, %199 : vector<16x128xf32>
      %cst_87 = arith.constant dense<0.000000e+00> : vector<16xf32>
      %211 = vector.multi_reduction <add>, %210, %cst_87 [1] : vector<16x128xf32> to vector<16xf32>
      %212 = vector.shape_cast %211 : vector<16xf32> to vector<16x1xf32>
      %cst_88 = arith.constant 3.200000e+01 : f32
      %213 = vector.broadcast %cst_88 : f32 to vector<16x1xf32>
      %214 = arith.divf %209, %213 : vector<16x1xf32>
      %cst_89 = arith.constant 3.200000e+01 : f32
      %215 = vector.broadcast %cst_89 : f32 to vector<16x1xf32>
      %216 = arith.divf %212, %215 : vector<16x1xf32>
      %217 = arith.mulf %214, %214 : vector<16x1xf32>
      %218 = arith.subf %216, %217 : vector<16x1xf32>
      %219 = vector.broadcast %214 : vector<16x1xf32> to vector<16x128xf32>
      %220 = arith.subf %199, %219 : vector<16x128xf32>
      %cst_90 = arith.constant 9.99999974E-6 : f32
      %221 = vector.broadcast %cst_90 : f32 to vector<16x1xf32>
      %222 = arith.addf %218, %221 : vector<16x1xf32>
      %223 = math.rsqrt %222 : vector<16x1xf32>
      %224 = vector.broadcast %223 : vector<16x1xf32> to vector<16x128xf32>
      %225 = arith.mulf %220, %224 : vector<16x128xf32>
      %226 = vector.broadcast %206 : vector<1x128xf32> to vector<16x128xf32>
      %227 = arith.mulf %225, %226 : vector<16x128xf32>
      %228 = vector.broadcast %207 : vector<1x128xf32> to vector<16x128xf32>
      %229 = arith.addf %227, %228 : vector<16x128xf32>
      %c0_91 = arith.constant 0 : index
      %c0_92 = arith.constant 0 : index
      %230 = vector.load %arg18[%c0_91, %c0_92] : memref<16x128xf32, #tpu.memory_space<vmem>>, vector<16x128xf32>
      tpu.vector_store %arg18[%c0_91, %c0_92], %229 {strides = array<i32>} : memref<16x128xf32, #tpu.memory_space<vmem>>, vector<16x128xf32>,
    } else {
    }
    return
  }
  func.func @transform_0(%arg0: i32, %arg1: i32) -> (i32, i32) {
    %c0_i32 = arith.constant 0 : i32
    %c0_i32_0 = arith.constant 0 : i32
    return %arg0, %c0_i32 : i32, i32
  }
  func.func @transform_1(%arg0: i32, %arg1: i32) -> (i32, i32, i32) {
    %c0_i32 = arith.constant 0 : i32
    %c0_i32_0 = arith.constant 0 : i32
    %c0_i32_1 = arith.constant 0 : i32
    return %arg1, %c0_i32, %c0_i32_0 : i32, i32, i32
  }
  func.func @transform_2(%arg0: i32, %arg1: i32) -> (i32, i32, i32) {
    %c0_i32 = arith.constant 0 : i32
    %c0_i32_0 = arith.constant 0 : i32
    %c0_i32_1 = arith.constant 0 : i32
    return %arg1, %c0_i32, %c0_i32_0 : i32, i32, i32
  }
  func.func @transform_3(%arg0: i32, %arg1: i32) -> (i32, i32, i32) {
    %c0_i32 = arith.constant 0 : i32
    %c0_i32_0 = arith.constant 0 : i32
    %c0_i32_1 = arith.constant 0 : i32
    return %arg1, %c0_i32, %c0_i32_0 : i32, i32, i32
  }
  func.func @transform_4(%arg0: i32, %arg1: i32) -> (i32, i32, i32) {
    %c0_i32 = arith.constant 0 : i32
    %c0_i32_0 = arith.constant 0 : i32
    %c0_i32_1 = arith.constant 0 : i32
    return %arg1, %c0_i32, %c0_i32_0 : i32, i32, i32
  }
  func.func @transform_5(%arg0: i32, %arg1: i32) -> (i32, i32, i32) {
    %c0_i32 = arith.constant 0 : i32
    %c0_i32_0 = arith.constant 0 : i32
    %c0_i32_1 = arith.constant 0 : i32
    return %arg1, %c0_i32, %c0_i32_0 : i32, i32, i32
  }
  func.func @transform_6(%arg0: i32, %arg1: i32) -> (i32, i32, i32) {
    %c0_i32 = arith.constant 0 : i32
    %c0_i32_0 = arith.constant 0 : i32
    %c0_i32_1 = arith.constant 0 : i32
    return %arg1, %c0_i32, %c0_i32_0 : i32, i32, i32
  }
  func.func @transform_7(%arg0: i32, %arg1: i32) -> (i32, i32, i32) {
    %c0_i32 = arith.constant 0 : i32
    %c0_i32_0 = arith.constant 0 : i32
    %c0_i32_1 = arith.constant 0 : i32
    return %arg1, %c0_i32, %c0_i32_0 : i32, i32, i32
  }
  func.func @transform_8(%arg0: i32, %arg1: i32) -> (i32, i32, i32) {
    %c0_i32 = arith.constant 0 : i32
    %c0_i32_0 = arith.constant 0 : i32
    %c0_i32_1 = arith.constant 0 : i32
    return %arg1, %c0_i32, %c0_i32_0 : i32, i32, i32
  }
  func.func @transform_9(%arg0: i32, %arg1: i32) -> (i32, i32, i32) {
    %c0_i32 = arith.constant 0 : i32
    %c0_i32_0 = arith.constant 0 : i32
    %c0_i32_1 = arith.constant 0 : i32
    return %arg1, %c0_i32, %c0_i32_0 : i32, i32, i32
  }
  func.func @transform_10(%arg0: i32, %arg1: i32) -> (i32, i32, i32) {
    %c0_i32 = arith.constant 0 : i32
    %c0_i32_0 = arith.constant 0 : i32
    %c0_i32_1 = arith.constant 0 : i32
    return %arg1, %c0_i32, %c0_i32_0 : i32, i32, i32
  }
  func.func @transform_11(%arg0: i32, %arg1: i32) -> (i32, i32, i32) {
    %c0_i32 = arith.constant 0 : i32
    %c0_i32_0 = arith.constant 0 : i32
    %c0_i32_1 = arith.constant 0 : i32
    return %arg1, %c0_i32, %c0_i32_0 : i32, i32, i32
  }
  func.func @transform_12(%arg0: i32, %arg1: i32) -> (i32, i32, i32) {
    %c0_i32 = arith.constant 0 : i32
    %c0_i32_0 = arith.constant 0 : i32
    %c0_i32_1 = arith.constant 0 : i32
    return %arg1, %c0_i32, %c0_i32_0 : i32, i32, i32
  }
  func.func @transform_13(%arg0: i32, %arg1: i32) -> (i32, i32, i32) {
    %c0_i32 = arith.constant 0 : i32
    %c0_i32_0 = arith.constant 0 : i32
    %c0_i32_1 = arith.constant 0 : i32
    return %arg1, %c0_i32, %c0_i32_0 : i32, i32, i32
  }
  func.func @transform_14(%arg0: i32, %arg1: i32) -> (i32, i32) {
    %c0_i32 = arith.constant 0 : i32
    %c0_i32_0 = arith.constant 0 : i32
    %c0_i32_1 = arith.constant 0 : i32
    return %c0_i32, %c0_i32_0 : i32, i32
  }
  func.func @transform_15(%arg0: i32, %arg1: i32) -> (i32, i32) {
    %c0_i32 = arith.constant 0 : i32
    %c0_i32_0 = arith.constant 0 : i32
    %c0_i32_1 = arith.constant 0 : i32
    return %c0_i32, %c0_i32_0 : i32, i32
  }
  func.func @transform_16(%arg0: i32, %arg1: i32) -> (i32, i32) {
    %c0_i32 = arith.constant 0 : i32
    %c0_i32_0 = arith.constant 0 : i32
    return %arg0, %c0_i32 : i32, i32
  }
}

module attributes {stable_mosaic.version = 11 : i64} {
  func.func @_transformer_kernel(%arg0: i32, %arg1: i32, %arg2: memref<8x128xf32, #tpu.memory_space<vmem>>, %arg3: memref<1x1x128xf32, #tpu.memory_space<vmem>>, %arg4: memref<1x1x128xf32, #tpu.memory_space<vmem>>, %arg5: memref<1x128x32xbf16, #tpu.memory_space<vmem>>, %arg6: memref<1x128x32xbf16, #tpu.memory_space<vmem>>, %arg7: memref<1x128x32xbf16, #tpu.memory_space<vmem>>, %arg8: memref<1x32x128xbf16, #tpu.memory_space<vmem>>, %arg9: memref<1x1x128xf32, #tpu.memory_space<vmem>>, %arg10: memref<1x1x128xf32, #tpu.memory_space<vmem>>, %arg11: memref<1x1x128xf32, #tpu.memory_space<vmem>>, %arg12: memref<1x128x128xbf16, #tpu.memory_space<vmem>>, %arg13: memref<1x1x128xf32, #tpu.memory_space<vmem>>, %arg14: memref<1x128x128xbf16, #tpu.memory_space<vmem>>, %arg15: memref<1x1x128xf32, #tpu.memory_space<vmem>>, %arg16: memref<1x128xf32, #tpu.memory_space<vmem>>, %arg17: memref<1x128xf32, #tpu.memory_space<vmem>>, %arg18: memref<8x128xf32, #tpu.memory_space<vmem>>) attributes {dimension_semantics = [#tpu.dimension_semantics<parallel>, #tpu.dimension_semantics<arbitrary>], iteration_bounds = array<i64: 2, 2>, scalar_prefetch = 0 : i64, scratch_operands = 0 : i64, tpu.core_type = #tpu.core_type<tc>, window_params = [{transform_indices = @transform_0, window_bounds = array<i64: 8, 128>}, {transform_indices = @transform_1, window_bounds = array<i64: 1, 1, 128>}, {transform_indices = @transform_2, window_bounds = array<i64: 1, 1, 128>}, {transform_indices = @transform_3, window_bounds = array<i64: 1, 128, 32>}, {transform_indices = @transform_4, window_bounds = array<i64: 1, 128, 32>}, {transform_indices = @transform_5, window_bounds = array<i64: 1, 128, 32>}, {transform_indices = @transform_6, window_bounds = array<i64: 1, 32, 128>}, {transform_indices = @transform_7, window_bounds = array<i64: 1, 1, 128>}, {transform_indices = @transform_8, window_bounds = array<i64: 1, 1, 128>}, {transform_indices = @transform_9, window_bounds = array<i64: 1, 1, 128>}, {transform_indices = @transform_10, window_bounds = array<i64: 1, 128, 128>}, {transform_indices = @transform_11, window_bounds = array<i64: 1, 1, 128>}, {transform_indices = @transform_12, window_bounds = array<i64: 1, 128, 128>}, {transform_indices = @transform_13, window_bounds = array<i64: 1, 1, 128>}, {pipeline_mode = #tpu.pipeline_mode<synchronous>, transform_indices = @transform_14, window_bounds = array<i64: 1, 128>}, {pipeline_mode = #tpu.pipeline_mode<synchronous>, transform_indices = @transform_15, window_bounds = array<i64: 1, 128>}, {transform_indices = @transform_16, window_bounds = array<i64: 8, 128>}]} {
    %c0_i32 = arith.constant 0 : i32
    %0 = arith.cmpi eq, %arg1, %c0_i32 : i32
    %1 = arith.extui %0 : i1 to i32
    %c0_i32_0 = arith.constant 0 : i32
    %2 = arith.cmpi ne, %1, %c0_i32_0 : i32
    scf.if %2 {
      %c0_82 = arith.constant 0 : index
      %c0_83 = arith.constant 0 : index
      %206 = vector.load %arg2[%c0_82, %c0_83] : memref<8x128xf32, #tpu.memory_space<vmem>>, vector<8x128xf32>
      %c0_84 = arith.constant 0 : index
      %c0_85 = arith.constant 0 : index
      %207 = vector.load %arg18[%c0_84, %c0_85] : memref<8x128xf32, #tpu.memory_space<vmem>>, vector<8x128xf32>
      tpu.vector_store %arg18[%c0_84, %c0_85], %206 {strides = array<i32>} : memref<8x128xf32, #tpu.memory_space<vmem>>, vector<8x128xf32>,
    } else {
    }
    %c0 = arith.constant 0 : index
    %c0_1 = arith.constant 0 : index
    %3 = vector.load %arg18[%c0, %c0_1] : memref<8x128xf32, #tpu.memory_space<vmem>>, vector<8x128xf32>
    %c0_2 = arith.constant 0 : index
    %c0_3 = arith.constant 0 : index
    %c0_4 = arith.constant 0 : index
    %4 = vector.load %arg3[%c0_2, %c0_3, %c0_4] : memref<1x1x128xf32, #tpu.memory_space<vmem>>, vector<1x1x128xf32>
    %5 = vector.shape_cast %4 : vector<1x1x128xf32> to vector<1x128xf32>
    %c0_5 = arith.constant 0 : index
    %c0_6 = arith.constant 0 : index
    %c0_7 = arith.constant 0 : index
    %6 = vector.load %arg4[%c0_5, %c0_6, %c0_7] : memref<1x1x128xf32, #tpu.memory_space<vmem>>, vector<1x1x128xf32>
    %7 = vector.shape_cast %6 : vector<1x1x128xf32> to vector<1x128xf32>
    %cst = arith.constant dense<0.000000e+00> : vector<8xf32>
    %8 = vector.multi_reduction <add>, %3, %cst [1] : vector<8x128xf32> to vector<8xf32>
    %9 = vector.shape_cast %8 : vector<8xf32> to vector<8x1xf32>
    %10 = arith.mulf %3, %3 : vector<8x128xf32>
    %cst_8 = arith.constant dense<0.000000e+00> : vector<8xf32>
    %11 = vector.multi_reduction <add>, %10, %cst_8 [1] : vector<8x128xf32> to vector<8xf32>
    %12 = vector.shape_cast %11 : vector<8xf32> to vector<8x1xf32>
    %cst_9 = arith.constant 3.200000e+01 : f32
    %13 = vector.broadcast %cst_9 : f32 to vector<8x1xf32>
    %14 = arith.divf %9, %13 : vector<8x1xf32>
    %cst_10 = arith.constant 3.200000e+01 : f32
    %15 = vector.broadcast %cst_10 : f32 to vector<8x1xf32>
    %16 = arith.divf %12, %15 : vector<8x1xf32>
    %17 = arith.mulf %14, %14 : vector<8x1xf32>
    %18 = arith.subf %16, %17 : vector<8x1xf32>
    %19 = vector.broadcast %14 : vector<8x1xf32> to vector<8x128xf32>
    %20 = arith.subf %3, %19 : vector<8x128xf32>
    %cst_11 = arith.constant 9.99999974E-6 : f32
    %21 = vector.broadcast %cst_11 : f32 to vector<8x1xf32>
    %22 = arith.addf %18, %21 : vector<8x1xf32>
    %23 = math.rsqrt %22 : vector<8x1xf32>
    %24 = vector.broadcast %23 : vector<8x1xf32> to vector<8x128xf32>
    %25 = arith.mulf %20, %24 : vector<8x128xf32>
    %26 = vector.broadcast %5 : vector<1x128xf32> to vector<8x128xf32>
    %27 = arith.mulf %25, %26 : vector<8x128xf32>
    %28 = vector.broadcast %7 : vector<1x128xf32> to vector<8x128xf32>
    %29 = arith.addf %27, %28 : vector<8x128xf32>
    %30 = arith.truncf %29 : vector<8x128xf32> to vector<8x128xbf16>
    %c0_12 = arith.constant 0 : index
    %c0_13 = arith.constant 0 : index
    %c0_14 = arith.constant 0 : index
    %31 = vector.load %arg5[%c0_12, %c0_13, %c0_14] : memref<1x128x32xbf16, #tpu.memory_space<vmem>>, vector<1x128x32xbf16>
    %32 = vector.shape_cast %31 : vector<1x128x32xbf16> to vector<128x32xbf16>
    %cst_15 = arith.constant dense<0.000000e+00> : vector<8x32xf32>
    %33 = tpu.matmul %30, %32, %cst_15 {dimension_numbers = #tpu.dot_dimension_numbers<[1], [0], [0], [1], [0, 0, 1, 1], [], []>} : vector<8x128xbf16>, vector<128x32xbf16>, vector<8x32xf32> -> vector<8x32xf32>
    %c0_16 = arith.constant 0 : index
    %c0_17 = arith.constant 0 : index
    %c0_18 = arith.constant 0 : index
    %34 = vector.load %arg6[%c0_16, %c0_17, %c0_18] : memref<1x128x32xbf16, #tpu.memory_space<vmem>>, vector<1x128x32xbf16>
    %35 = vector.shape_cast %34 : vector<1x128x32xbf16> to vector<128x32xbf16>
    %cst_19 = arith.constant dense<0.000000e+00> : vector<8x32xf32>
    %36 = tpu.matmul %30, %35, %cst_19 {dimension_numbers = #tpu.dot_dimension_numbers<[1], [0], [0], [1], [0, 0, 1, 1], [], []>} : vector<8x128xbf16>, vector<128x32xbf16>, vector<8x32xf32> -> vector<8x32xf32>
    %c0_20 = arith.constant 0 : index
    %c0_21 = arith.constant 0 : index
    %c0_22 = arith.constant 0 : index
    %37 = vector.load %arg7[%c0_20, %c0_21, %c0_22] : memref<1x128x32xbf16, #tpu.memory_space<vmem>>, vector<1x128x32xbf16>
    %38 = vector.shape_cast %37 : vector<1x128x32xbf16> to vector<128x32xbf16>
    %cst_23 = arith.constant dense<0.000000e+00> : vector<8x32xf32>
    %39 = tpu.matmul %30, %38, %cst_23 {dimension_numbers = #tpu.dot_dimension_numbers<[1], [0], [0], [1], [0, 0, 1, 1], [], []>} : vector<8x128xbf16>, vector<128x32xbf16>, vector<8x32xf32> -> vector<8x32xf32>
    %40 = tpu.iota {dimensions = array<i32: 2>} : vector<1x8x8xi32>
    %c3_i32 = arith.constant 3 : i32
    %41 = vector.broadcast %c3_i32 : i32 to vector<1x8x8xi32>
    %42 = arith.cmpi slt, %40, %41 : vector<1x8x8xi32>
    %43 = vector.extract_strided_slice %33 {offsets = [0, 0], sizes = [8, 8], strides = [1, 1]} : vector<8x32xf32> to vector<8x8xf32>
    %44 = vector.shape_cast %43 : vector<8x8xf32> to vector<1x8x8xf32>
    %45 = arith.truncf %44 : vector<1x8x8xf32> to vector<1x8x8xbf16>
    %46 = vector.extract_strided_slice %36 {offsets = [0, 0], sizes = [8, 8], strides = [1, 1]} : vector<8x32xf32> to vector<8x8xf32>
    %47 = vector.shape_cast %46 : vector<8x8xf32> to vector<1x8x8xf32>
    %48 = arith.truncf %47 : vector<1x8x8xf32> to vector<1x8x8xbf16>
    %49 = vector.extract_strided_slice %39 {offsets = [0, 0], sizes = [8, 8], strides = [1, 1]} : vector<8x32xf32> to vector<8x8xf32>
    %50 = vector.shape_cast %49 : vector<8x8xf32> to vector<1x8x8xf32>
    %51 = arith.truncf %50 : vector<1x8x8xf32> to vector<1x8x8xbf16>
    "tpu.trace_start"() <{level = 10 : i32, message = "bqd,bkd->bqk"}> : () -> ()
    %cst_24 = arith.constant dense<0.000000e+00> : vector<1x8x8xf32>
    %52 = tpu.matmul %45, %48, %cst_24 {dimension_numbers = #tpu.dot_dimension_numbers<[2], [2], [1], [1], [0, 0, 0, 1, 1, 1], [0], [0]>} : vector<1x8x8xbf16>, vector<1x8x8xbf16>, vector<1x8x8xf32> -> vector<1x8x8xf32>
    %cst_25 = arith.constant -1.000000e+30 : f32
    "tpu.trace_stop"() : () -> ()
    %53 = vector.broadcast %cst_25 : f32 to vector<1x8x8xf32>
    %54 = arith.select %42, %52, %53 : vector<1x8x8xi1>, vector<1x8x8xf32>
    %cst_26 = arith.constant dense<0xFF800000> : vector<1x8xf32>
    %55 = vector.multi_reduction <maximumf>, %54, %cst_26 [2] : vector<1x8x8xf32> to vector<1x8xf32>
    %56 = vector.shape_cast %55 : vector<1x8xf32> to vector<1x8x1xf32>
    %57 = vector.broadcast %56 : vector<1x8x1xf32> to vector<1x8x8xf32>
    %58 = arith.subf %54, %57 : vector<1x8x8xf32>
    %59 = math.exp %58 : vector<1x8x8xf32>
    %cst_27 = arith.constant dense<0.000000e+00> : vector<1x8xf32>
    %60 = vector.multi_reduction <add>, %59, %cst_27 [2] : vector<1x8x8xf32> to vector<1x8xf32>
    %61 = vector.shape_cast %60 : vector<1x8xf32> to vector<1x8x1xf32>
    %62 = vector.broadcast %61 : vector<1x8x1xf32> to vector<1x8x8xf32>
    %63 = arith.divf %59, %62 : vector<1x8x8xf32>
    %64 = arith.truncf %63 : vector<1x8x8xf32> to vector<1x8x8xbf16>
    "tpu.trace_start"() <{level = 10 : i32, message = "bqk,bkd->bqd"}> : () -> ()
    %cst_28 = arith.constant dense<0.000000e+00> : vector<1x8x8xf32>
    %65 = tpu.matmul %64, %51, %cst_28 {dimension_numbers = #tpu.dot_dimension_numbers<[2], [1], [1], [2], [0, 0, 0, 1, 1, 2], [0], [0]>} : vector<1x8x8xbf16>, vector<1x8x8xbf16>, vector<1x8x8xf32> -> vector<1x8x8xf32>
    "tpu.trace_stop"() : () -> ()
    %66 = vector.shape_cast %65 : vector<1x8x8xf32> to vector<8x8xf32>
    %67 = vector.extract_strided_slice %33 {offsets = [0, 8], sizes = [8, 8], strides = [1, 1]} : vector<8x32xf32> to vector<8x8xf32>
    %68 = vector.shape_cast %67 : vector<8x8xf32> to vector<1x8x8xf32>
    %69 = arith.truncf %68 : vector<1x8x8xf32> to vector<1x8x8xbf16>
    %70 = vector.extract_strided_slice %36 {offsets = [0, 8], sizes = [8, 8], strides = [1, 1]} : vector<8x32xf32> to vector<8x8xf32>
    %71 = vector.shape_cast %70 : vector<8x8xf32> to vector<1x8x8xf32>
    %72 = arith.truncf %71 : vector<1x8x8xf32> to vector<1x8x8xbf16>
    %73 = vector.extract_strided_slice %39 {offsets = [0, 8], sizes = [8, 8], strides = [1, 1]} : vector<8x32xf32> to vector<8x8xf32>
    %74 = vector.shape_cast %73 : vector<8x8xf32> to vector<1x8x8xf32>
    %75 = arith.truncf %74 : vector<1x8x8xf32> to vector<1x8x8xbf16>
    "tpu.trace_start"() <{level = 10 : i32, message = "bqd,bkd->bqk"}> : () -> ()
    %cst_29 = arith.constant dense<0.000000e+00> : vector<1x8x8xf32>
    %76 = tpu.matmul %69, %72, %cst_29 {dimension_numbers = #tpu.dot_dimension_numbers<[2], [2], [1], [1], [0, 0, 0, 1, 1, 1], [0], [0]>} : vector<1x8x8xbf16>, vector<1x8x8xbf16>, vector<1x8x8xf32> -> vector<1x8x8xf32>
    %cst_30 = arith.constant -1.000000e+30 : f32
    "tpu.trace_stop"() : () -> ()
    %77 = vector.broadcast %cst_30 : f32 to vector<1x8x8xf32>
    %78 = arith.select %42, %76, %77 : vector<1x8x8xi1>, vector<1x8x8xf32>
    %cst_31 = arith.constant dense<0xFF800000> : vector<1x8xf32>
    %79 = vector.multi_reduction <maximumf>, %78, %cst_31 [2] : vector<1x8x8xf32> to vector<1x8xf32>
    %80 = vector.shape_cast %79 : vector<1x8xf32> to vector<1x8x1xf32>
    %81 = vector.broadcast %80 : vector<1x8x1xf32> to vector<1x8x8xf32>
    %82 = arith.subf %78, %81 : vector<1x8x8xf32>
    %83 = math.exp %82 : vector<1x8x8xf32>
    %cst_32 = arith.constant dense<0.000000e+00> : vector<1x8xf32>
    %84 = vector.multi_reduction <add>, %83, %cst_32 [2] : vector<1x8x8xf32> to vector<1x8xf32>
    %85 = vector.shape_cast %84 : vector<1x8xf32> to vector<1x8x1xf32>
    %86 = vector.broadcast %85 : vector<1x8x1xf32> to vector<1x8x8xf32>
    %87 = arith.divf %83, %86 : vector<1x8x8xf32>
    %88 = arith.truncf %87 : vector<1x8x8xf32> to vector<1x8x8xbf16>
    "tpu.trace_start"() <{level = 10 : i32, message = "bqk,bkd->bqd"}> : () -> ()
    %cst_33 = arith.constant dense<0.000000e+00> : vector<1x8x8xf32>
    %89 = tpu.matmul %88, %75, %cst_33 {dimension_numbers = #tpu.dot_dimension_numbers<[2], [1], [1], [2], [0, 0, 0, 1, 1, 2], [0], [0]>} : vector<1x8x8xbf16>, vector<1x8x8xbf16>, vector<1x8x8xf32> -> vector<1x8x8xf32>
    "tpu.trace_stop"() : () -> ()
    %90 = vector.shape_cast %89 : vector<1x8x8xf32> to vector<8x8xf32>
    %91 = vector.extract_strided_slice %33 {offsets = [0, 16], sizes = [8, 8], strides = [1, 1]} : vector<8x32xf32> to vector<8x8xf32>
    %92 = vector.shape_cast %91 : vector<8x8xf32> to vector<1x8x8xf32>
    %93 = arith.truncf %92 : vector<1x8x8xf32> to vector<1x8x8xbf16>
    %94 = vector.extract_strided_slice %36 {offsets = [0, 16], sizes = [8, 8], strides = [1, 1]} : vector<8x32xf32> to vector<8x8xf32>
    %95 = vector.shape_cast %94 : vector<8x8xf32> to vector<1x8x8xf32>
    %96 = arith.truncf %95 : vector<1x8x8xf32> to vector<1x8x8xbf16>
    %97 = vector.extract_strided_slice %39 {offsets = [0, 16], sizes = [8, 8], strides = [1, 1]} : vector<8x32xf32> to vector<8x8xf32>
    %98 = vector.shape_cast %97 : vector<8x8xf32> to vector<1x8x8xf32>
    %99 = arith.truncf %98 : vector<1x8x8xf32> to vector<1x8x8xbf16>
    "tpu.trace_start"() <{level = 10 : i32, message = "bqd,bkd->bqk"}> : () -> ()
    %cst_34 = arith.constant dense<0.000000e+00> : vector<1x8x8xf32>
    %100 = tpu.matmul %93, %96, %cst_34 {dimension_numbers = #tpu.dot_dimension_numbers<[2], [2], [1], [1], [0, 0, 0, 1, 1, 1], [0], [0]>} : vector<1x8x8xbf16>, vector<1x8x8xbf16>, vector<1x8x8xf32> -> vector<1x8x8xf32>
    %cst_35 = arith.constant -1.000000e+30 : f32
    "tpu.trace_stop"() : () -> ()
    %101 = vector.broadcast %cst_35 : f32 to vector<1x8x8xf32>
    %102 = arith.select %42, %100, %101 : vector<1x8x8xi1>, vector<1x8x8xf32>
    %cst_36 = arith.constant dense<0xFF800000> : vector<1x8xf32>
    %103 = vector.multi_reduction <maximumf>, %102, %cst_36 [2] : vector<1x8x8xf32> to vector<1x8xf32>
    %104 = vector.shape_cast %103 : vector<1x8xf32> to vector<1x8x1xf32>
    %105 = vector.broadcast %104 : vector<1x8x1xf32> to vector<1x8x8xf32>
    %106 = arith.subf %102, %105 : vector<1x8x8xf32>
    %107 = math.exp %106 : vector<1x8x8xf32>
    %cst_37 = arith.constant dense<0.000000e+00> : vector<1x8xf32>
    %108 = vector.multi_reduction <add>, %107, %cst_37 [2] : vector<1x8x8xf32> to vector<1x8xf32>
    %109 = vector.shape_cast %108 : vector<1x8xf32> to vector<1x8x1xf32>
    %110 = vector.broadcast %109 : vector<1x8x1xf32> to vector<1x8x8xf32>
    %111 = arith.divf %107, %110 : vector<1x8x8xf32>
    %112 = arith.truncf %111 : vector<1x8x8xf32> to vector<1x8x8xbf16>
    "tpu.trace_start"() <{level = 10 : i32, message = "bqk,bkd->bqd"}> : () -> ()
    %cst_38 = arith.constant dense<0.000000e+00> : vector<1x8x8xf32>
    %113 = tpu.matmul %112, %99, %cst_38 {dimension_numbers = #tpu.dot_dimension_numbers<[2], [1], [1], [2], [0, 0, 0, 1, 1, 2], [0], [0]>} : vector<1x8x8xbf16>, vector<1x8x8xbf16>, vector<1x8x8xf32> -> vector<1x8x8xf32>
    "tpu.trace_stop"() : () -> ()
    %114 = vector.shape_cast %113 : vector<1x8x8xf32> to vector<8x8xf32>
    %115 = vector.extract_strided_slice %33 {offsets = [0, 24], sizes = [8, 8], strides = [1, 1]} : vector<8x32xf32> to vector<8x8xf32>
    %116 = vector.shape_cast %115 : vector<8x8xf32> to vector<1x8x8xf32>
    %117 = arith.truncf %116 : vector<1x8x8xf32> to vector<1x8x8xbf16>
    %118 = vector.extract_strided_slice %36 {offsets = [0, 24], sizes = [8, 8], strides = [1, 1]} : vector<8x32xf32> to vector<8x8xf32>
    %119 = vector.shape_cast %118 : vector<8x8xf32> to vector<1x8x8xf32>
    %120 = arith.truncf %119 : vector<1x8x8xf32> to vector<1x8x8xbf16>
    %121 = vector.extract_strided_slice %39 {offsets = [0, 24], sizes = [8, 8], strides = [1, 1]} : vector<8x32xf32> to vector<8x8xf32>
    %122 = vector.shape_cast %121 : vector<8x8xf32> to vector<1x8x8xf32>
    %123 = arith.truncf %122 : vector<1x8x8xf32> to vector<1x8x8xbf16>
    "tpu.trace_start"() <{level = 10 : i32, message = "bqd,bkd->bqk"}> : () -> ()
    %cst_39 = arith.constant dense<0.000000e+00> : vector<1x8x8xf32>
    %124 = tpu.matmul %117, %120, %cst_39 {dimension_numbers = #tpu.dot_dimension_numbers<[2], [2], [1], [1], [0, 0, 0, 1, 1, 1], [0], [0]>} : vector<1x8x8xbf16>, vector<1x8x8xbf16>, vector<1x8x8xf32> -> vector<1x8x8xf32>
    %cst_40 = arith.constant -1.000000e+30 : f32
    "tpu.trace_stop"() : () -> ()
    %125 = vector.broadcast %cst_40 : f32 to vector<1x8x8xf32>
    %126 = arith.select %42, %124, %125 : vector<1x8x8xi1>, vector<1x8x8xf32>
    %cst_41 = arith.constant dense<0xFF800000> : vector<1x8xf32>
    %127 = vector.multi_reduction <maximumf>, %126, %cst_41 [2] : vector<1x8x8xf32> to vector<1x8xf32>
    %128 = vector.shape_cast %127 : vector<1x8xf32> to vector<1x8x1xf32>
    %129 = vector.broadcast %128 : vector<1x8x1xf32> to vector<1x8x8xf32>
    %130 = arith.subf %126, %129 : vector<1x8x8xf32>
    %131 = math.exp %130 : vector<1x8x8xf32>
    %cst_42 = arith.constant dense<0.000000e+00> : vector<1x8xf32>
    %132 = vector.multi_reduction <add>, %131, %cst_42 [2] : vector<1x8x8xf32> to vector<1x8xf32>
    %133 = vector.shape_cast %132 : vector<1x8xf32> to vector<1x8x1xf32>
    %134 = vector.broadcast %133 : vector<1x8x1xf32> to vector<1x8x8xf32>
    %135 = arith.divf %131, %134 : vector<1x8x8xf32>
    %136 = arith.truncf %135 : vector<1x8x8xf32> to vector<1x8x8xbf16>
    "tpu.trace_start"() <{level = 10 : i32, message = "bqk,bkd->bqd"}> : () -> ()
    %cst_43 = arith.constant dense<0.000000e+00> : vector<1x8x8xf32>
    %137 = tpu.matmul %136, %123, %cst_43 {dimension_numbers = #tpu.dot_dimension_numbers<[2], [1], [1], [2], [0, 0, 0, 1, 1, 2], [0], [0]>} : vector<1x8x8xbf16>, vector<1x8x8xbf16>, vector<1x8x8xf32> -> vector<1x8x8xf32>
    "tpu.trace_stop"() : () -> ()
    %138 = vector.shape_cast %137 : vector<1x8x8xf32> to vector<8x8xf32>
    %139 = tpu.concatenate %66, %90, %114, %138 in 1 : vector<8x8xf32>, vector<8x8xf32>, vector<8x8xf32>, vector<8x8xf32> -> vector<8x32xf32>
    %c0_44 = arith.constant 0 : index
    %c0_45 = arith.constant 0 : index
    %c0_46 = arith.constant 0 : index
    %140 = vector.load %arg8[%c0_44, %c0_45, %c0_46] : memref<1x32x128xbf16, #tpu.memory_space<vmem>>, vector<1x32x128xbf16>
    %141 = vector.shape_cast %140 : vector<1x32x128xbf16> to vector<32x128xbf16>
    %142 = arith.truncf %139 : vector<8x32xf32> to vector<8x32xbf16>
    %cst_47 = arith.constant dense<0.000000e+00> : vector<8x128xf32>
    %143 = tpu.matmul %142, %141, %cst_47 {dimension_numbers = #tpu.dot_dimension_numbers<[1], [0], [0], [1], [0, 0, 1, 1], [], []>} : vector<8x32xbf16>, vector<32x128xbf16>, vector<8x128xf32> -> vector<8x128xf32>
    %144 = arith.addf %3, %143 : vector<8x128xf32>
    %c0_48 = arith.constant 0 : index
    %c0_49 = arith.constant 0 : index
    %c0_50 = arith.constant 0 : index
    %145 = vector.load %arg9[%c0_48, %c0_49, %c0_50] : memref<1x1x128xf32, #tpu.memory_space<vmem>>, vector<1x1x128xf32>
    %146 = vector.shape_cast %145 : vector<1x1x128xf32> to vector<1x128xf32>
    %147 = vector.broadcast %146 : vector<1x128xf32> to vector<8x128xf32>
    %148 = arith.addf %144, %147 : vector<8x128xf32>
    %c0_51 = arith.constant 0 : index
    %c0_52 = arith.constant 0 : index
    %c0_53 = arith.constant 0 : index
    %149 = vector.load %arg10[%c0_51, %c0_52, %c0_53] : memref<1x1x128xf32, #tpu.memory_space<vmem>>, vector<1x1x128xf32>
    %150 = vector.shape_cast %149 : vector<1x1x128xf32> to vector<1x128xf32>
    %c0_54 = arith.constant 0 : index
    %c0_55 = arith.constant 0 : index
    %c0_56 = arith.constant 0 : index
    %151 = vector.load %arg11[%c0_54, %c0_55, %c0_56] : memref<1x1x128xf32, #tpu.memory_space<vmem>>, vector<1x1x128xf32>
    %152 = vector.shape_cast %151 : vector<1x1x128xf32> to vector<1x128xf32>
    %cst_57 = arith.constant dense<0.000000e+00> : vector<8xf32>
    %153 = vector.multi_reduction <add>, %148, %cst_57 [1] : vector<8x128xf32> to vector<8xf32>
    %154 = vector.shape_cast %153 : vector<8xf32> to vector<8x1xf32>
    %155 = arith.mulf %148, %148 : vector<8x128xf32>
    %cst_58 = arith.constant dense<0.000000e+00> : vector<8xf32>
    %156 = vector.multi_reduction <add>, %155, %cst_58 [1] : vector<8x128xf32> to vector<8xf32>
    %157 = vector.shape_cast %156 : vector<8xf32> to vector<8x1xf32>
    %cst_59 = arith.constant 3.200000e+01 : f32
    %158 = vector.broadcast %cst_59 : f32 to vector<8x1xf32>
    %159 = arith.divf %154, %158 : vector<8x1xf32>
    %cst_60 = arith.constant 3.200000e+01 : f32
    %160 = vector.broadcast %cst_60 : f32 to vector<8x1xf32>
    %161 = arith.divf %157, %160 : vector<8x1xf32>
    %162 = arith.mulf %159, %159 : vector<8x1xf32>
    %163 = arith.subf %161, %162 : vector<8x1xf32>
    %164 = vector.broadcast %159 : vector<8x1xf32> to vector<8x128xf32>
    %165 = arith.subf %148, %164 : vector<8x128xf32>
    %cst_61 = arith.constant 9.99999974E-6 : f32
    %166 = vector.broadcast %cst_61 : f32 to vector<8x1xf32>
    %167 = arith.addf %163, %166 : vector<8x1xf32>
    %168 = math.rsqrt %167 : vector<8x1xf32>
    %169 = vector.broadcast %168 : vector<8x1xf32> to vector<8x128xf32>
    %170 = arith.mulf %165, %169 : vector<8x128xf32>
    %171 = vector.broadcast %150 : vector<1x128xf32> to vector<8x128xf32>
    %172 = arith.mulf %170, %171 : vector<8x128xf32>
    %173 = vector.broadcast %152 : vector<1x128xf32> to vector<8x128xf32>
    %174 = arith.addf %172, %173 : vector<8x128xf32>
    %175 = arith.truncf %174 : vector<8x128xf32> to vector<8x128xbf16>
    %c0_62 = arith.constant 0 : index
    %c0_63 = arith.constant 0 : index
    %c0_64 = arith.constant 0 : index
    %176 = vector.load %arg12[%c0_62, %c0_63, %c0_64] : memref<1x128x128xbf16, #tpu.memory_space<vmem>>, vector<1x128x128xbf16>
    %177 = vector.shape_cast %176 : vector<1x128x128xbf16> to vector<128x128xbf16>
    %cst_65 = arith.constant dense<0.000000e+00> : vector<8x128xf32>
    %178 = tpu.matmul %175, %177, %cst_65 {dimension_numbers = #tpu.dot_dimension_numbers<[1], [0], [0], [1], [0, 0, 1, 1], [], []>} : vector<8x128xbf16>, vector<128x128xbf16>, vector<8x128xf32> -> vector<8x128xf32>
    %c0_66 = arith.constant 0 : index
    %c0_67 = arith.constant 0 : index
    %c0_68 = arith.constant 0 : index
    %179 = vector.load %arg13[%c0_66, %c0_67, %c0_68] : memref<1x1x128xf32, #tpu.memory_space<vmem>>, vector<1x1x128xf32>
    %180 = vector.shape_cast %179 : vector<1x1x128xf32> to vector<1x128xf32>
    %181 = vector.broadcast %180 : vector<1x128xf32> to vector<8x128xf32>
    %182 = arith.addf %178, %181 : vector<8x128xf32>
    %cst_69 = arith.constant 5.000000e-01 : f32
    %183 = vector.broadcast %cst_69 : f32 to vector<8x128xf32>
    %184 = arith.mulf %183, %182 : vector<8x128xf32>
    %cst_70 = arith.constant 0.707106769 : f32
    %185 = vector.broadcast %cst_70 : f32 to vector<8x128xf32>
    %186 = arith.mulf %182, %185 : vector<8x128xf32>
    %187 = math.erf %186 : vector<8x128xf32>
    %cst_71 = arith.constant 1.000000e+00 : f32
    %188 = vector.broadcast %cst_71 : f32 to vector<8x128xf32>
    %189 = arith.addf %188, %187 : vector<8x128xf32>
    %190 = arith.mulf %184, %189 : vector<8x128xf32>
    %c0_72 = arith.constant 0 : index
    %c0_73 = arith.constant 0 : index
    %c0_74 = arith.constant 0 : index
    %191 = vector.load %arg14[%c0_72, %c0_73, %c0_74] : memref<1x128x128xbf16, #tpu.memory_space<vmem>>, vector<1x128x128xbf16>
    %192 = vector.shape_cast %191 : vector<1x128x128xbf16> to vector<128x128xbf16>
    %193 = arith.truncf %190 : vector<8x128xf32> to vector<8x128xbf16>
    %cst_75 = arith.constant dense<0.000000e+00> : vector<8x128xf32>
    %194 = tpu.matmul %193, %192, %cst_75 {dimension_numbers = #tpu.dot_dimension_numbers<[1], [0], [0], [1], [0, 0, 1, 1], [], []>} : vector<8x128xbf16>, vector<128x128xbf16>, vector<8x128xf32> -> vector<8x128xf32>
    %195 = arith.addf %148, %194 : vector<8x128xf32>
    %c0_76 = arith.constant 0 : index
    %c0_77 = arith.constant 0 : index
    %c0_78 = arith.constant 0 : index
    %196 = vector.load %arg15[%c0_76, %c0_77, %c0_78] : memref<1x1x128xf32, #tpu.memory_space<vmem>>, vector<1x1x128xf32>
    %197 = vector.shape_cast %196 : vector<1x1x128xf32> to vector<1x128xf32>
    %198 = vector.broadcast %197 : vector<1x128xf32> to vector<8x128xf32>
    %199 = arith.addf %195, %198 : vector<8x128xf32>
    %c1_i32 = arith.constant 1 : i32
    %200 = arith.cmpi slt, %arg1, %c1_i32 : i32
    %201 = arith.extui %200 : i1 to i32
    %c0_i32_79 = arith.constant 0 : i32
    %202 = arith.cmpi ne, %201, %c0_i32_79 : i32
    scf.if %202 {
      %c0_82 = arith.constant 0 : index
      %c0_83 = arith.constant 0 : index
      %206 = vector.load %arg18[%c0_82, %c0_83] : memref<8x128xf32, #tpu.memory_space<vmem>>, vector<8x128xf32>
      tpu.vector_store %arg18[%c0_82, %c0_83], %199 {strides = array<i32>} : memref<8x128xf32, #tpu.memory_space<vmem>>, vector<8x128xf32>,
    } else {
    }
    %c1_i32_80 = arith.constant 1 : i32
    %203 = arith.cmpi eq, %arg1, %c1_i32_80 : i32
    %204 = arith.extui %203 : i1 to i32
    %c0_i32_81 = arith.constant 0 : i32
    %205 = arith.cmpi ne, %204, %c0_i32_81 : i32
    scf.if %205 {
      %c0_82 = arith.constant 0 : index
      %c0_83 = arith.constant 0 : index
      %206 = vector.load %arg16[%c0_82, %c0_83] : memref<1x128xf32, #tpu.memory_space<vmem>>, vector<1x128xf32>
      %c0_84 = arith.constant 0 : index
      %c0_85 = arith.constant 0 : index
      %207 = vector.load %arg17[%c0_84, %c0_85] : memref<1x128xf32, #tpu.memory_space<vmem>>, vector<1x128xf32>
      %cst_86 = arith.constant dense<0.000000e+00> : vector<8xf32>
      %208 = vector.multi_reduction <add>, %199, %cst_86 [1] : vector<8x128xf32> to vector<8xf32>
      %209 = vector.shape_cast %208 : vector<8xf32> to vector<8x1xf32>
      %210 = arith.mulf %199, %199 : vector<8x128xf32>
      %cst_87 = arith.constant dense<0.000000e+00> : vector<8xf32>
      %211 = vector.multi_reduction <add>, %210, %cst_87 [1] : vector<8x128xf32> to vector<8xf32>
      %212 = vector.shape_cast %211 : vector<8xf32> to vector<8x1xf32>
      %cst_88 = arith.constant 3.200000e+01 : f32
      %213 = vector.broadcast %cst_88 : f32 to vector<8x1xf32>
      %214 = arith.divf %209, %213 : vector<8x1xf32>
      %cst_89 = arith.constant 3.200000e+01 : f32
      %215 = vector.broadcast %cst_89 : f32 to vector<8x1xf32>
      %216 = arith.divf %212, %215 : vector<8x1xf32>
      %217 = arith.mulf %214, %214 : vector<8x1xf32>
      %218 = arith.subf %216, %217 : vector<8x1xf32>
      %219 = vector.broadcast %214 : vector<8x1xf32> to vector<8x128xf32>
      %220 = arith.subf %199, %219 : vector<8x128xf32>
      %cst_90 = arith.constant 9.99999974E-6 : f32
      %221 = vector.broadcast %cst_90 : f32 to vector<8x1xf32>
      %222 = arith.addf %218, %221 : vector<8x1xf32>
      %223 = math.rsqrt %222 : vector<8x1xf32>
      %224 = vector.broadcast %223 : vector<8x1xf32> to vector<8x128xf32>
      %225 = arith.mulf %220, %224 : vector<8x128xf32>
      %226 = vector.broadcast %206 : vector<1x128xf32> to vector<8x128xf32>
      %227 = arith.mulf %225, %226 : vector<8x128xf32>
      %228 = vector.broadcast %207 : vector<1x128xf32> to vector<8x128xf32>
      %229 = arith.addf %227, %228 : vector<8x128xf32>
      %c0_91 = arith.constant 0 : index
      %c0_92 = arith.constant 0 : index
      %230 = vector.load %arg18[%c0_91, %c0_92] : memref<8x128xf32, #tpu.memory_space<vmem>>, vector<8x128xf32>
      tpu.vector_store %arg18[%c0_91, %c0_92], %229 {strides = array<i32>} : memref<8x128xf32, #tpu.memory_space<vmem>>, vector<8x128xf32>,
    } else {
    }
    return
  }
  func.func @transform_0(%arg0: i32, %arg1: i32) -> (i32, i32) {
    %c0_i32 = arith.constant 0 : i32
    %c0_i32_0 = arith.constant 0 : i32
    return %arg0, %c0_i32 : i32, i32
  }
  func.func @transform_1(%arg0: i32, %arg1: i32) -> (i32, i32, i32) {
    %c0_i32 = arith.constant 0 : i32
    %c0_i32_0 = arith.constant 0 : i32
    %c0_i32_1 = arith.constant 0 : i32
    return %arg1, %c0_i32, %c0_i32_0 : i32, i32, i32
  }
  func.func @transform_2(%arg0: i32, %arg1: i32) -> (i32, i32, i32) {
    %c0_i32 = arith.constant 0 : i32
    %c0_i32_0 = arith.constant 0 : i32
    %c0_i32_1 = arith.constant 0 : i32
    return %arg1, %c0_i32, %c0_i32_0 : i32, i32, i32
  }
  func.func @transform_3(%arg0: i32, %arg1: i32) -> (i32, i32, i32) {
    %c0_i32 = arith.constant 0 : i32
    %c0_i32_0 = arith.constant 0 : i32
    %c0_i32_1 = arith.constant 0 : i32
    return %arg1, %c0_i32, %c0_i32_0 : i32, i32, i32
  }
  func.func @transform_4(%arg0: i32, %arg1: i32) -> (i32, i32, i32) {
    %c0_i32 = arith.constant 0 : i32
    %c0_i32_0 = arith.constant 0 : i32
    %c0_i32_1 = arith.constant 0 : i32
    return %arg1, %c0_i32, %c0_i32_0 : i32, i32, i32
  }
  func.func @transform_5(%arg0: i32, %arg1: i32) -> (i32, i32, i32) {
    %c0_i32 = arith.constant 0 : i32
    %c0_i32_0 = arith.constant 0 : i32
    %c0_i32_1 = arith.constant 0 : i32
    return %arg1, %c0_i32, %c0_i32_0 : i32, i32, i32
  }
  func.func @transform_6(%arg0: i32, %arg1: i32) -> (i32, i32, i32) {
    %c0_i32 = arith.constant 0 : i32
    %c0_i32_0 = arith.constant 0 : i32
    %c0_i32_1 = arith.constant 0 : i32
    return %arg1, %c0_i32, %c0_i32_0 : i32, i32, i32
  }
  func.func @transform_7(%arg0: i32, %arg1: i32) -> (i32, i32, i32) {
    %c0_i32 = arith.constant 0 : i32
    %c0_i32_0 = arith.constant 0 : i32
    %c0_i32_1 = arith.constant 0 : i32
    return %arg1, %c0_i32, %c0_i32_0 : i32, i32, i32
  }
  func.func @transform_8(%arg0: i32, %arg1: i32) -> (i32, i32, i32) {
    %c0_i32 = arith.constant 0 : i32
    %c0_i32_0 = arith.constant 0 : i32
    %c0_i32_1 = arith.constant 0 : i32
    return %arg1, %c0_i32, %c0_i32_0 : i32, i32, i32
  }
  func.func @transform_9(%arg0: i32, %arg1: i32) -> (i32, i32, i32) {
    %c0_i32 = arith.constant 0 : i32
    %c0_i32_0 = arith.constant 0 : i32
    %c0_i32_1 = arith.constant 0 : i32
    return %arg1, %c0_i32, %c0_i32_0 : i32, i32, i32
  }
  func.func @transform_10(%arg0: i32, %arg1: i32) -> (i32, i32, i32) {
    %c0_i32 = arith.constant 0 : i32
    %c0_i32_0 = arith.constant 0 : i32
    %c0_i32_1 = arith.constant 0 : i32
    return %arg1, %c0_i32, %c0_i32_0 : i32, i32, i32
  }
  func.func @transform_11(%arg0: i32, %arg1: i32) -> (i32, i32, i32) {
    %c0_i32 = arith.constant 0 : i32
    %c0_i32_0 = arith.constant 0 : i32
    %c0_i32_1 = arith.constant 0 : i32
    return %arg1, %c0_i32, %c0_i32_0 : i32, i32, i32
  }
  func.func @transform_12(%arg0: i32, %arg1: i32) -> (i32, i32, i32) {
    %c0_i32 = arith.constant 0 : i32
    %c0_i32_0 = arith.constant 0 : i32
    %c0_i32_1 = arith.constant 0 : i32
    return %arg1, %c0_i32, %c0_i32_0 : i32, i32, i32
  }
  func.func @transform_13(%arg0: i32, %arg1: i32) -> (i32, i32, i32) {
    %c0_i32 = arith.constant 0 : i32
    %c0_i32_0 = arith.constant 0 : i32
    %c0_i32_1 = arith.constant 0 : i32
    return %arg1, %c0_i32, %c0_i32_0 : i32, i32, i32
  }
  func.func @transform_14(%arg0: i32, %arg1: i32) -> (i32, i32) {
    %c0_i32 = arith.constant 0 : i32
    %c0_i32_0 = arith.constant 0 : i32
    %c0_i32_1 = arith.constant 0 : i32
    return %c0_i32, %c0_i32_0 : i32, i32
  }
  func.func @transform_15(%arg0: i32, %arg1: i32) -> (i32, i32) {
    %c0_i32 = arith.constant 0 : i32
    %c0_i32_0 = arith.constant 0 : i32
    %c0_i32_1 = arith.constant 0 : i32
    return %c0_i32, %c0_i32_0 : i32, i32
  }
  func.func @transform_16(%arg0: i32, %arg1: i32) -> (i32, i32) {
    %c0_i32 = arith.constant 0 : i32
    %c0_i32_0 = arith.constant 0 : i32
    return %arg0, %c0_i32 : i32, i32
  }
}

</mosaic_0001>

<llo_original>
// kernel: tpu_custom_call.1
$region0: #{tpu_custom_call.1}
  #allocation0 [shape = 'u32[]', space=smem, size = 0x4, offset = 0x4, fixed_abs, tag = 'smem constant byte address 0x4 - core index']
  #allocation1 [shape = 'u32[144,128]{1,0:T(1,128)}', space=vmem, size = 0x12000, scoped, tag = 'internal scratch']
  %s0 = inlined_call_operand.hbm [shape: f32[8,128], index: 0, kind: input, shape index: {}]
  %s1 = inlined_call_operand.hbm [shape: f32[8,128], index: 1, kind: output, shape index: {}]
  %s2 = sld [smem:[#allocation0]]
  $region18: #{tpu_custom_call.1} parent=0
    _
  %s4 = ssub.s32 1, %s2
  %s5 = scalar_select 0, %s4, %s2
  $region1: #{tpu_custom_call.1} parent=0
    #allocation2 [shape = 'u8[4096]{0}', space=vmem, size = 0x1000, scoped, tag = 'input window, operand 0, single buffered']
    #allocation3 [shape = 's32[1]{0}', space=sflag, size = 0x4, scoped, tag = 'scoped memory for tpu_custom_call.1']
    #allocation4 [shape = 's32[1]{0}', space=sflag, size = 0x4, scoped, tag = 'scoped memory for tpu_custom_call.1']
    #allocation5 [shape = 'u8[4096]{0}', space=vmem, size = 0x1000, scoped, tag = 'output window, operand 0, single buffered']
    %6 = vsyncpa [#allocation3], 0
    %7 = vsyncpa [#allocation4], 0
    // Predicated region
    $region2: #{tpu_custom_call.1} parent=1 // pred_check
      _
    $region3: #{tpu_custom_call.1} parent=1 // pred_check_branch
      %9 = sbr.rel (0) target = $region5
    $region4: #{tpu_custom_call.1} parent=1 // pred_region
      %s11 = ssub.s32 128, 128
      %12 = vsyncadd [#allocation3], %s11
      %s14 = sshll.u32 [#allocation2], 4
      %s15 = int_to_ptr.vmem [resolvable:$true] %s14
      %17 = dma.hbm_to_vmem [thread:$0]  %s0, 128, %s15, [#allocation3]
    $region5: #{tpu_custom_call.1} parent=1 // pred_fallthru
      _
    // Predicated region
    $region6: #{tpu_custom_call.1} parent=1 // pred_check
      _
    $region7: #{tpu_custom_call.1} parent=1 // pred_check_branch
      %19 = sbr.rel (0) target = $region9
    $region8: #{tpu_custom_call.1} parent=1 // pred_region
      %20 = dma.done [#allocation3], 128
    $region9: #{tpu_custom_call.1} parent=1 // pred_fallthru
      _
    %v21 = vld [vmem:[#allocation2] sm:$0xff]
    %22 = vst [vmem:[#allocation5] sm:$0xff] %v21
    // Predicated region
    $region10: #{tpu_custom_call.1} parent=1 // pred_check
      _
    $region11: #{tpu_custom_call.1} parent=1 // pred_check_branch
      %24 = sbr.rel (0) target = $region13
    $region12: #{tpu_custom_call.1} parent=1 // pred_region
      %s26 = ssub.s32 128, 128
      %27 = vsyncadd [#allocation4], %s26
      %s29 = sshll.u32 [#allocation5], 4
      %s30 = int_to_ptr.vmem [resolvable:$true] %s29
      %32 = dma.vmem_to_hbm [thread:$0]  %s30, 128, %s1, [#allocation4]
    $region13: #{tpu_custom_call.1} parent=1 // pred_fallthru
      _
    // Predicated region
    $region14: #{tpu_custom_call.1} parent=1 // pred_check
      _
    $region15: #{tpu_custom_call.1} parent=1 // pred_check_branch
      %34 = sbr.rel (0) target = $region17
    $region16: #{tpu_custom_call.1} parent=1 // pred_region
      %35 = dma.done [#allocation4], 128
    $region17: #{tpu_custom_call.1} parent=1 // pred_fallthru
      _
    %36 = vsyncpa [#allocation3], 1
    %37 = vsyncpa [#allocation4], 1

// kernel: vivit_model_forward.3
$region0: #{vivit_model_forward.3}
  #allocation0 [shape = 'u32[]', space=smem, size = 0x4, offset = 0x4, fixed_abs, tag = 'smem constant byte address 0x4 - core index']
  #allocation1 [shape = 'u32[144,128]{1,0:T(1,128)}', space=vmem, size = 0x12000, scoped, tag = 'internal scratch']
  %s0 = inlined_call_operand.vmem [shape: f32[16,768], index: 0, kind: input, shape index: {}]
  %s1 = inlined_call_operand.vmem [shape: f32[1,768], index: 1, kind: input, shape index: {}]
  %s2 = inlined_call_operand.vmem [shape: f32[1,768], index: 2, kind: input, shape index: {}]
  %s3 = inlined_call_operand.vmem [shape: bf16[768,128], index: 3, kind: input, shape index: {}]
  %s4 = inlined_call_operand.vmem [shape: f32[1,128], index: 4, kind: input, shape index: {}]
  %s5 = inlined_call_operand.vmem [shape: f32[1,128], index: 5, kind: input, shape index: {}]
  %s6 = inlined_call_operand.vmem [shape: f32[1,128], index: 6, kind: input, shape index: {}]
  %s7 = inlined_call_operand.vmem [shape: f32[16,128], index: 7, kind: output, shape index: {}]
  %s8 = sld [smem:[#allocation0]]
  $region38: #{vivit_model_forward.3} parent=0
    _
  %s10 = ssub.s32 1, %s8
  %s11 = scalar_select 0, %s10, %s8
  // Predicated region
  $region2: #{vivit_model_forward.3} parent=0 // pred_check
    _
  $region3: #{vivit_model_forward.3} parent=0 // pred_check_branch
    %13 = sbr.rel (0) target = $region5
  $region4: #{vivit_model_forward.3} parent=0 // pred_region
    _
  $region5: #{vivit_model_forward.3} parent=0 // pred_fallthru
    _
  // Predicated region
  $region6: #{vivit_model_forward.3} parent=0 // pred_check
    _
  $region7: #{vivit_model_forward.3} parent=0 // pred_check_branch
    %15 = sbr.rel (0) target = $region9
  $region8: #{vivit_model_forward.3} parent=0 // pred_region
    _
  $region9: #{vivit_model_forward.3} parent=0 // pred_fallthru
    _
  // Predicated region
  $region10: #{vivit_model_forward.3} parent=0 // pred_check
    _
  $region11: #{vivit_model_forward.3} parent=0 // pred_check_branch
    %17 = sbr.rel (0) target = $region13
  $region12: #{vivit_model_forward.3} parent=0 // pred_region
    _
  $region13: #{vivit_model_forward.3} parent=0 // pred_fallthru
    _
  // Predicated region
  $region14: #{vivit_model_forward.3} parent=0 // pred_check
    _
  $region15: #{vivit_model_forward.3} parent=0 // pred_check_branch
    %19 = sbr.rel (0) target = $region17
  $region16: #{vivit_model_forward.3} parent=0 // pred_region
    _
  $region17: #{vivit_model_forward.3} parent=0 // pred_fallthru
    _
  // Predicated region
  $region18: #{vivit_model_forward.3} parent=0 // pred_check
    _
  $region19: #{vivit_model_forward.3} parent=0 // pred_check_branch
    %21 = sbr.rel (0) target = $region21
  $region20: #{vivit_model_forward.3} parent=0 // pred_region
    _
  $region21: #{vivit_model_forward.3} parent=0 // pred_fallthru
    _
  // Predicated region
  $region22: #{vivit_model_forward.3} parent=0 // pred_check
    _
  $region23: #{vivit_model_forward.3} parent=0 // pred_check_branch
    %23 = sbr.rel (0) target = $region25
  $region24: #{vivit_model_forward.3} parent=0 // pred_region
    _
  $region25: #{vivit_model_forward.3} parent=0 // pred_fallthru
    _
  // Predicated region
  $region26: #{vivit_model_forward.3} parent=0 // pred_check
    _
  $region27: #{vivit_model_forward.3} parent=0 // pred_check_branch
    %25 = sbr.rel (0) target = $region29
  $region28: #{vivit_model_forward.3} parent=0 // pred_region
    _
  $region29: #{vivit_model_forward.3} parent=0 // pred_fallthru
    _
  %v27 = vld [vmem:[%s0] sm:$0xff]
  %v28 = vld [vmem:[%s0 + $0x8] sm:$0xff]
  %v29 = vld [vmem:[%s0 + $0x10] sm:$0xff]
  %v30 = vld [vmem:[%s0 + $0x18] sm:$0xff]
  %v31 = vld [vmem:[%s0 + $0x20] sm:$0xff]
  %v32 = vld [vmem:[%s0 + $0x28] sm:$0xff]
  %v33 = vld [vmem:[%s0 + $0x30] sm:$0xff]
  %v34 = vld [vmem:[%s0 + $0x38] sm:$0xff]
  %v35 = vld [vmem:[%s0 + $0x40] sm:$0xff]
  %v36 = vld [vmem:[%s0 + $0x48] sm:$0xff]
  %v37 = vld [vmem:[%s0 + $0x50] sm:$0xff]
  %v38 = vld [vmem:[%s0 + $0x58] sm:$0xff]
  %v39 = vld [vmem:[%s1] sm:$0x3f]
  %v40 = vld [vmem:[%s2] sm:$0x3f]
  %v41 = vadd.f32 %v27, %v28
  %v42 = vadd.f32 %v41, %v29
  %v43 = vadd.f32 %v42, %v30
  %v44 = vadd.f32 %v43, %v31
  %v45 = vadd.f32 %v44, %v32
  %46 = vadd.xlane.f32.xlu0 %v45
  %v47 = vpop.xlane.xlu0 %46
  %v48 = vadd.f32 %v33, %v34
  %v49 = vadd.f32 %v48, %v35
  %v50 = vadd.f32 %v49, %v36
  %v51 = vadd.f32 %v50, %v37
  %v52 = vadd.f32 %v51, %v38
  %53 = vadd.xlane.f32.xlu0 %v52
  %v54 = vpop.xlane.xlu0 %53
  %v55 = vmul.f32 %v27, %v27
  %v56 = vmul.f32 %v28, %v28
  %v57 = vmul.f32 %v29, %v29
  %v58 = vmul.f32 %v30, %v30
  %v59 = vmul.f32 %v31, %v31
  %v60 = vmul.f32 %v32, %v32
  %v61 = vmul.f32 %v33, %v33
  %v62 = vmul.f32 %v34, %v34
  %v63 = vmul.f32 %v35, %v35
  %v64 = vmul.f32 %v36, %v36
  %v65 = vmul.f32 %v37, %v37
  %v66 = vmul.f32 %v38, %v38
  %v67 = vadd.f32 %v55, %v56
  %v68 = vadd.f32 %v67, %v57
  %v69 = vadd.f32 %v68, %v58
  %v70 = vadd.f32 %v69, %v59
  %v71 = vadd.f32 %v70, %v60
  %72 = vadd.xlane.f32.xlu0 %v71
  %v73 = vpop.xlane.xlu0 %72
  %v74 = vadd.f32 %v61, %v62
  %v75 = vadd.f32 %v74, %v63
  %v76 = vadd.f32 %v75, %v64
  %v77 = vadd.f32 %v76, %v65
  %v78 = vadd.f32 %v77, %v66
  %79 = vadd.xlane.f32.xlu0 %v78
  %v80 = vpop.xlane.xlu0 %79
  %v81 = vrcp.pop 768.0
  %v82 = vmul.f32 %v47, %v81
  %v83 = vmul.f32 %v54, %v81
  %v84 = vmul.f32 %v73, %v81
  %v85 = vmul.f32 %v80, %v81
  %v86 = vmul.f32 %v82, %v82
  %v87 = vmul.f32 %v83, %v83
  %v88 = vsub.f32 %v84, %v86
  %v89 = vsub.f32 %v85, %v87
  %v90 = vsub.f32 %v27, %v82
  %v91 = vsub.f32 %v28, %v82
  %v92 = vsub.f32 %v29, %v82
  %v93 = vsub.f32 %v30, %v82
  %v94 = vsub.f32 %v31, %v82
  %v95 = vsub.f32 %v32, %v82
  %v96 = vsub.f32 %v33, %v83
  %v97 = vsub.f32 %v34, %v83
  %v98 = vsub.f32 %v35, %v83
  %v99 = vsub.f32 %v36, %v83
  %v100 = vsub.f32 %v37, %v83
  %v101 = vsub.f32 %v38, %v83
  %v102 = vadd.f32 %v88, 1e-05
  %v103 = vadd.f32 %v89, 1e-05
  %v104 = vrsqrt.pop %v102
  %v105 = vrsqrt.pop %v103
  %v106 = vmul.f32 %v90, %v104
  %v107 = vmul.f32 %v91, %v104
  %v108 = vmul.f32 %v92, %v104
  %v109 = vmul.f32 %v93, %v104
  %v110 = vmul.f32 %v94, %v104
  %v111 = vmul.f32 %v95, %v104
  %v112 = vmul.f32 %v96, %v105
  %v113 = vmul.f32 %v97, %v105
  %v114 = vmul.f32 %v98, %v105
  %v115 = vmul.f32 %v99, %v105
  %v116 = vmul.f32 %v100, %v105
  %v117 = vmul.f32 %v101, %v105
  %v119 = vlaneseq
  %v120 = vshrl.u32 %v119, 7
  %v121 = vsub.s32 0, %v120
  %v122 = vrot.slane %v39, %v121
  %v123 = vlaneseq
  %v124 = vshrl.u32 %v123, 7
  %v125 = vsub.s32 1, %v124
  %v126 = vrot.slane %v39, %v125
  %v127 = vlaneseq
  %v128 = vshrl.u32 %v127, 7
  %v129 = vsub.s32 2, %v128
  %v130 = vrot.slane %v39, %v129
  %v131 = vlaneseq
  %v132 = vshrl.u32 %v131, 7
  %v133 = vsub.s32 3, %v132
  %v134 = vrot.slane %v39, %v133
  %v135 = vlaneseq
  %v136 = vshrl.u32 %v135, 7
  %v137 = vsub.s32 4, %v136
  %v138 = vrot.slane %v39, %v137
  %v139 = vlaneseq
  %v140 = vshrl.u32 %v139, 7
  %v141 = vsub.s32 5, %v140
  %v142 = vrot.slane %v39, %v141
  %v149 = vmul.f32 %v106, %v122
  %v150 = vmul.f32 %v107, %v126
  %v151 = vmul.f32 %v108, %v130
  %v152 = vmul.f32 %v109, %v134
  %v153 = vmul.f32 %v110, %v138
  %v154 = vmul.f32 %v111, %v142
  %v155 = vmul.f32 %v112, %v122
  %v156 = vmul.f32 %v113, %v126
  %v157 = vmul.f32 %v114, %v130
  %v158 = vmul.f32 %v115, %v134
  %v159 = vmul.f32 %v116, %v138
  %v160 = vmul.f32 %v117, %v142
  %v162 = vlaneseq
  %v163 = vshrl.u32 %v162, 7
  %v164 = vsub.s32 0, %v163
  %v165 = vrot.slane %v40, %v164
  %v166 = vlaneseq
  %v167 = vshrl.u32 %v166, 7
  %v168 = vsub.s32 1, %v167
  %v169 = vrot.slane %v40, %v168
  %v170 = vlaneseq
  %v171 = vshrl.u32 %v170, 7
  %v172 = vsub.s32 2, %v171
  %v173 = vrot.slane %v40, %v172
  %v174 = vlaneseq
  %v175 = vshrl.u32 %v174, 7
  %v176 = vsub.s32 3, %v175
  %v177 = vrot.slane %v40, %v176
  %v178 = vlaneseq
  %v179 = vshrl.u32 %v178, 7
  %v180 = vsub.s32 4, %v179
  %v181 = vrot.slane %v40, %v180
  %v182 = vlaneseq
  %v183 = vshrl.u32 %v182, 7
  %v184 = vsub.s32 5, %v183
  %v185 = vrot.slane %v40, %v184
  %v192 = vadd.f32 %v149, %v165
  %v193 = vadd.f32 %v150, %v169
  %v194 = vadd.f32 %v151, %v173
  %v195 = vadd.f32 %v152, %v177
  %v196 = vadd.f32 %v153, %v181
  %v197 = vadd.f32 %v154, %v185
  %v198 = vadd.f32 %v155, %v165
  %v199 = vadd.f32 %v156, %v169
  %v200 = vadd.f32 %v157, %v173
  %v201 = vadd.f32 %v158, %v177
  %v202 = vadd.f32 %v159, %v181
  %v203 = vadd.f32 %v160, %v185
  %v204 = vld [vmem:[%s3] sm:$0xf]
  %v205 = vld [vmem:[%s3 + $0x4] sm:$0xf]
  %v206 = vld [vmem:[%s3 + $0x8] sm:$0xf]
  %v207 = vld [vmem:[%s3 + $0xc] sm:$0xf]
  %v208 = vld [vmem:[%s3 + $0x10] sm:$0xf]
  %v209 = vld [vmem:[%s3 + $0x14] sm:$0xf]
  %v210 = vld [vmem:[%s3 + $0x18] sm:$0xf]
  %v211 = vld [vmem:[%s3 + $0x1c] sm:$0xf]
  %v212 = vld [vmem:[%s3 + $0x20] sm:$0xf]
  %v213 = vld [vmem:[%s3 + $0x24] sm:$0xf]
  %v214 = vld [vmem:[%s3 + $0x28] sm:$0xf]
  %v215 = vld [vmem:[%s3 + $0x2c] sm:$0xf]
  %v216 = vld [vmem:[%s3 + $0x30] sm:$0xf]
  %v217 = vld [vmem:[%s3 + $0x34] sm:$0xf]
  %v218 = vld [vmem:[%s3 + $0x38] sm:$0xf]
  %v219 = vld [vmem:[%s3 + $0x3c] sm:$0xf]
  %v220 = vld [vmem:[%s3 + $0x40] sm:$0xf]
  %v221 = vld [vmem:[%s3 + $0x44] sm:$0xf]
  %v222 = vld [vmem:[%s3 + $0x48] sm:$0xf]
  %v223 = vld [vmem:[%s3 + $0x4c] sm:$0xf]
  %v224 = vld [vmem:[%s3 + $0x50] sm:$0xf]
  %v225 = vld [vmem:[%s3 + $0x54] sm:$0xf]
  %v226 = vld [vmem:[%s3 + $0x58] sm:$0xf]
  %v227 = vld [vmem:[%s3 + $0x5c] sm:$0xf]
  %v228 = vld [vmem:[%s3 + $0x60] sm:$0xf]
  %v229 = vld [vmem:[%s3 + $0x64] sm:$0xf]
  %v230 = vld [vmem:[%s3 + $0x68] sm:$0xf]
  %v231 = vld [vmem:[%s3 + $0x6c] sm:$0xf]
  %v232 = vld [vmem:[%s3 + $0x70] sm:$0xf]
  %v233 = vld [vmem:[%s3 + $0x74] sm:$0xf]
  %v234 = vld [vmem:[%s3 + $0x78] sm:$0xf]
  %v235 = vld [vmem:[%s3 + $0x7c] sm:$0xf]
  %v236 = vld [vmem:[%s3 + $0x80] sm:$0xf]
  %v237 = vld [vmem:[%s3 + $0x84] sm:$0xf]
  %v238 = vld [vmem:[%s3 + $0x88] sm:$0xf]
  %v239 = vld [vmem:[%s3 + $0x8c] sm:$0xf]
  %v240 = vld [vmem:[%s3 + $0x90] sm:$0xf]
  %v241 = vld [vmem:[%s3 + $0x94] sm:$0xf]
  %v242 = vld [vmem:[%s3 + $0x98] sm:$0xf]
  %v243 = vld [vmem:[%s3 + $0x9c] sm:$0xf]
  %v244 = vld [vmem:[%s3 + $0xa0] sm:$0xf]
  %v245 = vld [vmem:[%s3 + $0xa4] sm:$0xf]
  %v246 = vld [vmem:[%s3 + $0xa8] sm:$0xf]
  %v247 = vld [vmem:[%s3 + $0xac] sm:$0xf]
  %v248 = vld [vmem:[%s3 + $0xb0] sm:$0xf]
  %v249 = vld [vmem:[%s3 + $0xb4] sm:$0xf]
  %v250 = vld [vmem:[%s3 + $0xb8] sm:$0xf]
  %v251 = vld [vmem:[%s3 + $0xbc] sm:$0xf]
  %v252 = vld [vmem:[%s3 + $0xc0] sm:$0xf]
  %v253 = vld [vmem:[%s3 + $0xc4] sm:$0xf]
  %v254 = vld [vmem:[%s3 + $0xc8] sm:$0xf]
  %v255 = vld [vmem:[%s3 + $0xcc] sm:$0xf]
  %v256 = vld [vmem:[%s3 + $0xd0] sm:$0xf]
  %v257 = vld [vmem:[%s3 + $0xd4] sm:$0xf]
  %v258 = vld [vmem:[%s3 + $0xd8] sm:$0xf]
  %v259 = vld [vmem:[%s3 + $0xdc] sm:$0xf]
  %v260 = vld [vmem:[%s3 + $0xe0] sm:$0xf]
  %v261 = vld [vmem:[%s3 + $0xe4] sm:$0xf]
  %v262 = vld [vmem:[%s3 + $0xe8] sm:$0xf]
  %v263 = vld [vmem:[%s3 + $0xec] sm:$0xf]
  %v264 = vld [vmem:[%s3 + $0xf0] sm:$0xf]
  %v265 = vld [vmem:[%s3 + $0xf4] sm:$0xf]
  %v266 = vld [vmem:[%s3 + $0xf8] sm:$0xf]
  %v267 = vld [vmem:[%s3 + $0xfc] sm:$0xf]
  %v268 = vld [vmem:[%s3 + $0x100] sm:$0xf]
  %v269 = vld [vmem:[%s3 + $0x104] sm:$0xf]
  %v270 = vld [vmem:[%s3 + $0x108] sm:$0xf]
  %v271 = vld [vmem:[%s3 + $0x10c] sm:$0xf]
  %v272 = vld [vmem:[%s3 + $0x110] sm:$0xf]
  %v273 = vld [vmem:[%s3 + $0x114] sm:$0xf]
  %v274 = vld [vmem:[%s3 + $0x118] sm:$0xf]
  %v275 = vld [vmem:[%s3 + $0x11c] sm:$0xf]
  %v276 = vld [vmem:[%s3 + $0x120] sm:$0xf]
  %v277 = vld [vmem:[%s3 + $0x124] sm:$0xf]
  %v278 = vld [vmem:[%s3 + $0x128] sm:$0xf]
  %v279 = vld [vmem:[%s3 + $0x12c] sm:$0xf]
  %v280 = vld [vmem:[%s3 + $0x130] sm:$0xf]
  %v281 = vld [vmem:[%s3 + $0x134] sm:$0xf]
  %v282 = vld [vmem:[%s3 + $0x138] sm:$0xf]
  %v283 = vld [vmem:[%s3 + $0x13c] sm:$0xf]
  %v284 = vld [vmem:[%s3 + $0x140] sm:$0xf]
  %v285 = vld [vmem:[%s3 + $0x144] sm:$0xf]
  %v286 = vld [vmem:[%s3 + $0x148] sm:$0xf]
  %v287 = vld [vmem:[%s3 + $0x14c] sm:$0xf]
  %v288 = vld [vmem:[%s3 + $0x150] sm:$0xf]
  %v289 = vld [vmem:[%s3 + $0x154] sm:$0xf]
  %v290 = vld [vmem:[%s3 + $0x158] sm:$0xf]
  %v291 = vld [vmem:[%s3 + $0x15c] sm:$0xf]
  %v292 = vld [vmem:[%s3 + $0x160] sm:$0xf]
  %v293 = vld [vmem:[%s3 + $0x164] sm:$0xf]
  %v294 = vld [vmem:[%s3 + $0x168] sm:$0xf]
  %v295 = vld [vmem:[%s3 + $0x16c] sm:$0xf]
  %v296 = vld [vmem:[%s3 + $0x170] sm:$0xf]
  %v297 = vld [vmem:[%s3 + $0x174] sm:$0xf]
  %v298 = vld [vmem:[%s3 + $0x178] sm:$0xf]
  %v299 = vld [vmem:[%s3 + $0x17c] sm:$0xf]
  %v300 = vpack.c.bf16 %v198, %v192
  %v301 = vpack.c.bf16 %v199, %v193
  %v302 = vpack.c.bf16 %v200, %v194
  %v303 = vpack.c.bf16 %v201, %v195
  %v304 = vpack.c.bf16 %v202, %v196
  %v305 = vpack.c.bf16 %v203, %v197
  %v306 = vld [vmem:[%s4] sm:$0x1]
  %v308 = vlaneseq
  %v309 = vshrl.u32 %v308, 7
  %v310 = vsub.s32 0, %v309
  %v311 = vrot.slane %v306, %v310
  %v409 = vunpack.c.l.b16 %v204
  %v410 = vunpack.c.l.b16 %v205
  %v411 = vunpack.c.l.b16 %v206
  %v412 = vunpack.c.l.b16 %v207
  %v413 = vunpack.c.l.b16 %v208
  %v414 = vunpack.c.l.b16 %v209
  %v415 = vunpack.c.l.b16 %v210
  %v416 = vunpack.c.l.b16 %v211
  %v417 = vunpack.c.l.b16 %v212
  %v418 = vunpack.c.l.b16 %v213
  %v419 = vunpack.c.l.b16 %v214
  %v420 = vunpack.c.l.b16 %v215
  %v421 = vunpack.c.l.b16 %v216
  %v422 = vunpack.c.l.b16 %v217
  %v423 = vunpack.c.l.b16 %v218
  %v424 = vunpack.c.l.b16 %v219
  %v425 = vunpack.c.l.b16 %v220
  %v426 = vunpack.c.l.b16 %v221
  %v427 = vunpack.c.l.b16 %v222
  %v428 = vunpack.c.l.b16 %v223
  %v429 = vunpack.c.l.b16 %v224
  %v430 = vunpack.c.l.b16 %v225
  %v431 = vunpack.c.l.b16 %v226
  %v432 = vunpack.c.l.b16 %v227
  %v433 = vunpack.c.l.b16 %v228
  %v434 = vunpack.c.l.b16 %v229
  %v435 = vunpack.c.l.b16 %v230
  %v436 = vunpack.c.l.b16 %v231
  %v437 = vunpack.c.l.b16 %v232
  %v438 = vunpack.c.l.b16 %v233
  %v439 = vunpack.c.l.b16 %v234
  %v440 = vunpack.c.l.b16 %v235
  %v441 = vunpack.c.l.b16 %v236
  %v442 = vunpack.c.l.b16 %v237
  %v443 = vunpack.c.l.b16 %v238
  %v444 = vunpack.c.l.b16 %v239
  %v445 = vunpack.c.l.b16 %v240
  %v446 = vunpack.c.l.b16 %v241
  %v447 = vunpack.c.l.b16 %v242
  %v448 = vunpack.c.l.b16 %v243
  %v449 = vunpack.c.l.b16 %v244
  %v450 = vunpack.c.l.b16 %v245
  %v451 = vunpack.c.l.b16 %v246
  %v452 = vunpack.c.l.b16 %v247
  %v453 = vunpack.c.l.b16 %v248
  %v454 = vunpack.c.l.b16 %v249
  %v455 = vunpack.c.l.b16 %v250
  %v456 = vunpack.c.l.b16 %v251
  %v457 = vunpack.c.l.b16 %v252
  %v458 = vunpack.c.l.b16 %v253
  %v459 = vunpack.c.l.b16 %v254
  %v460 = vunpack.c.l.b16 %v255
  %v461 = vunpack.c.l.b16 %v256
  %v462 = vunpack.c.l.b16 %v257
  %v463 = vunpack.c.l.b16 %v258
  %v464 = vunpack.c.l.b16 %v259
  %v465 = vunpack.c.l.b16 %v260
  %v466 = vunpack.c.l.b16 %v261
  %v467 = vunpack.c.l.b16 %v262
  %v468 = vunpack.c.l.b16 %v263
  %v469 = vunpack.c.l.b16 %v264
  %v470 = vunpack.c.l.b16 %v265
  %v471 = vunpack.c.l.b16 %v266
  %v472 = vunpack.c.l.b16 %v267
  %v473 = vunpack.c.l.b16 %v268
  %v474 = vunpack.c.l.b16 %v269
  %v475 = vunpack.c.l.b16 %v270
  %v476 = vunpack.c.l.b16 %v271
  %v477 = vunpack.c.l.b16 %v272
  %v478 = vunpack.c.l.b16 %v273
  %v479 = vunpack.c.l.b16 %v274
  %v480 = vunpack.c.l.b16 %v275
  %v481 = vunpack.c.l.b16 %v276
  %v482 = vunpack.c.l.b16 %v277
  %v483 = vunpack.c.l.b16 %v278
  %v484 = vunpack.c.l.b16 %v279
  %v485 = vunpack.c.l.b16 %v280
  %v486 = vunpack.c.l.b16 %v281
  %v487 = vunpack.c.l.b16 %v282
  %v488 = vunpack.c.l.b16 %v283
  %v489 = vunpack.c.l.b16 %v284
  %v490 = vunpack.c.l.b16 %v285
  %v491 = vunpack.c.l.b16 %v286
  %v492 = vunpack.c.l.b16 %v287
  %v493 = vunpack.c.l.b16 %v288
  %v494 = vunpack.c.l.b16 %v289
  %v495 = vunpack.c.l.b16 %v290
  %v496 = vunpack.c.l.b16 %v291
  %v497 = vunpack.c.l.b16 %v292
  %v498 = vunpack.c.l.b16 %v293
  %v499 = vunpack.c.l.b16 %v294
  %v500 = vunpack.c.l.b16 %v295
  %v501 = vunpack.c.l.b16 %v296
  %v502 = vunpack.c.l.b16 %v297
  %v503 = vunpack.c.l.b16 %v298
  %v504 = vunpack.c.l.b16 %v299
  %v505 = vpack.c.b16 %v410, %v409
  %v506 = vpack.c.b16 %v412, %v411
  %v507 = vpack.c.b16 %v414, %v413
  %v508 = vpack.c.b16 %v416, %v415
  %v509 = vpack.c.b16 %v418, %v417
  %v510 = vpack.c.b16 %v420, %v419
  %v511 = vpack.c.b16 %v422, %v421
  %v512 = vpack.c.b16 %v424, %v423
  %v513 = vpack.c.b16 %v426, %v425
  %v514 = vpack.c.b16 %v428, %v427
  %v515 = vpack.c.b16 %v430, %v429
  %v516 = vpack.c.b16 %v432, %v431
  %v517 = vpack.c.b16 %v434, %v433
  %v518 = vpack.c.b16 %v436, %v435
  %v519 = vpack.c.b16 %v438, %v437
  %v520 = vpack.c.b16 %v440, %v439
  %v521 = vpack.c.b16 %v442, %v441
  %v522 = vpack.c.b16 %v444, %v443
  %v523 = vpack.c.b16 %v446, %v445
  %v524 = vpack.c.b16 %v448, %v447
  %v525 = vpack.c.b16 %v450, %v449
  %v526 = vpack.c.b16 %v452, %v451
  %v527 = vpack.c.b16 %v454, %v453
  %v528 = vpack.c.b16 %v456, %v455
  %v529 = vpack.c.b16 %v458, %v457
  %v530 = vpack.c.b16 %v460, %v459
  %v531 = vpack.c.b16 %v462, %v461
  %v532 = vpack.c.b16 %v464, %v463
  %v533 = vpack.c.b16 %v466, %v465
  %v534 = vpack.c.b16 %v468, %v467
  %v535 = vpack.c.b16 %v470, %v469
  %v536 = vpack.c.b16 %v472, %v471
  %v537 = vpack.c.b16 %v474, %v473
  %v538 = vpack.c.b16 %v476, %v475
  %v539 = vpack.c.b16 %v478, %v477
  %v540 = vpack.c.b16 %v480, %v479
  %v541 = vpack.c.b16 %v482, %v481
  %v542 = vpack.c.b16 %v484, %v483
  %v543 = vpack.c.b16 %v486, %v485
  %v544 = vpack.c.b16 %v488, %v487
  %v545 = vpack.c.b16 %v490, %v489
  %v546 = vpack.c.b16 %v492, %v491
  %v547 = vpack.c.b16 %v494, %v493
  %v548 = vpack.c.b16 %v496, %v495
  %v549 = vpack.c.b16 %v498, %v497
  %v550 = vpack.c.b16 %v500, %v499
  %v551 = vpack.c.b16 %v502, %v501
  %v552 = vpack.c.b16 %v504, %v503
  %601 = vmatprep.subr.bf16.mxu0 0
  %602 = vmatpush1.bf16.msra.mxu0 %v512
  %603 = vmatprep.subr.bf16.mxu0 0
  %604 = vmatpush1.bf16.msra.mxu0 %v511
  %605 = vmatprep.subr.bf16.mxu0 0
  %606 = vmatpush1.bf16.msra.mxu0 %v510
  %607 = vmatprep.subr.bf16.mxu0 0
  %608 = vmatpush1.bf16.msra.mxu0 %v509
  %609 = vmatprep.subr.bf16.mxu0 0
  %610 = vmatpush1.bf16.msra.mxu0 %v508
  %611 = vmatprep.subr.bf16.mxu0 0
  %612 = vmatpush1.bf16.msra.mxu0 %v507
  %613 = vmatprep.subr.bf16.mxu0 0
  %614 = vmatpush1.bf16.msra.mxu0 %v506
  %615 = vmatprep.subr.bf16.mxu0 0
  %616 = vmatpush1.bf16.msra.mxu0 %v505
  %617 = vmatprep.subr.bf16.mxu0 0
  %618 = vmatpush2.bf16.msra.mxu0 %v520
  %619 = vmatprep.subr.bf16.mxu0 0
  %620 = vmatpush2.bf16.msra.mxu0 %v519
  %621 = vmatprep.subr.bf16.mxu0 0
  %622 = vmatpush2.bf16.msra.mxu0 %v518
  %623 = vmatprep.subr.bf16.mxu0 0
  %624 = vmatpush2.bf16.msra.mxu0 %v517
  %625 = vmatprep.subr.bf16.mxu0 0
  %626 = vmatpush2.bf16.msra.mxu0 %v516
  %627 = vmatprep.subr.bf16.mxu0 0
  %628 = vmatpush2.bf16.msra.mxu0 %v515
  %629 = vmatprep.subr.bf16.mxu0 0
  %630 = vmatpush2.bf16.msra.mxu0 %v514
  %631 = vmatprep.subr.bf16.mxu0 0
  %632 = vmatpush2.bf16.msra.mxu0 %v513
  %633 = vmatprep.mubr.bf16.mxu0 %v301
  %634 = vmatmul.mubr.bf16.gmra.mxu0 %v300
  %v635 = vpop.f32.mrf.mxu0
  %v636 = vadd.f32 %v311, %v635
  %v637 = vpop.f32.mrf.mxu0
  %v638 = vpop.f32.mrf.mxu0
  %v639 = vadd.f32 %v311, %v638
  %v640 = vpop.f32.mrf.mxu0
  %641 = vdwg.mxu0
  %642 = vmatprep.subr.bf16.mxu0 0
  %643 = vmatpush1.bf16.msra.mxu0 %v528
  %644 = vmatprep.subr.bf16.mxu0 0
  %645 = vmatpush1.bf16.msra.mxu0 %v527
  %646 = vmatprep.subr.bf16.mxu0 0
  %647 = vmatpush1.bf16.msra.mxu0 %v526
  %648 = vmatprep.subr.bf16.mxu0 0
  %649 = vmatpush1.bf16.msra.mxu0 %v525
  %650 = vmatprep.subr.bf16.mxu0 0
  %651 = vmatpush1.bf16.msra.mxu0 %v524
  %652 = vmatprep.subr.bf16.mxu0 0
  %653 = vmatpush1.bf16.msra.mxu0 %v523
  %654 = vmatprep.subr.bf16.mxu0 0
  %655 = vmatpush1.bf16.msra.mxu0 %v522
  %656 = vmatprep.subr.bf16.mxu0 0
  %657 = vmatpush1.bf16.msra.mxu0 %v521
  %658 = vmatprep.subr.bf16.mxu0 0
  %659 = vmatpush2.bf16.msra.mxu0 %v536
  %660 = vmatprep.subr.bf16.mxu0 0
  %661 = vmatpush2.bf16.msra.mxu0 %v535
  %662 = vmatprep.subr.bf16.mxu0 0
  %663 = vmatpush2.bf16.msra.mxu0 %v534
  %664 = vmatprep.subr.bf16.mxu0 0
  %665 = vmatpush2.bf16.msra.mxu0 %v533
  %666 = vmatprep.subr.bf16.mxu0 0
  %667 = vmatpush2.bf16.msra.mxu0 %v532
  %668 = vmatprep.subr.bf16.mxu0 0
  %669 = vmatpush2.bf16.msra.mxu0 %v531
  %670 = vmatprep.subr.bf16.mxu0 0
  %671 = vmatpush2.bf16.msra.mxu0 %v530
  %672 = vmatprep.subr.bf16.mxu0 0
  %673 = vmatpush2.bf16.msra.mxu0 %v529
  %674 = vmatprep.mubr.bf16.mxu0 %v303
  %675 = vmatmul.mubr.bf16.gmra.mxu0 %v302
  %v676 = vpop.f32.mrf.mxu0
  %v677 = vadd.f32 %v636, %v676
  %v678 = vpop.f32.mrf.mxu0
  %v679 = vpop.f32.mrf.mxu0
  %v680 = vadd.f32 %v639, %v679
  %v681 = vpop.f32.mrf.mxu0
  %682 = vdwg.mxu0
  %683 = vmatprep.subr.bf16.mxu0 0
  %684 = vmatpush1.bf16.msra.mxu0 %v544
  %685 = vmatprep.subr.bf16.mxu0 0
  %686 = vmatpush1.bf16.msra.mxu0 %v543
  %687 = vmatprep.subr.bf16.mxu0 0
  %688 = vmatpush1.bf16.msra.mxu0 %v542
  %689 = vmatprep.subr.bf16.mxu0 0
  %690 = vmatpush1.bf16.msra.mxu0 %v541
  %691 = vmatprep.subr.bf16.mxu0 0
  %692 = vmatpush1.bf16.msra.mxu0 %v540
  %693 = vmatprep.subr.bf16.mxu0 0
  %694 = vmatpush1.bf16.msra.mxu0 %v539
  %695 = vmatprep.subr.bf16.mxu0 0
  %696 = vmatpush1.bf16.msra.mxu0 %v538
  %697 = vmatprep.subr.bf16.mxu0 0
  %698 = vmatpush1.bf16.msra.mxu0 %v537
  %699 = vmatprep.subr.bf16.mxu0 0
  %700 = vmatpush2.bf16.msra.mxu0 %v552
  %701 = vmatprep.subr.bf16.mxu0 0
  %702 = vmatpush2.bf16.msra.mxu0 %v551
  %703 = vmatprep.subr.bf16.mxu0 0
  %704 = vmatpush2.bf16.msra.mxu0 %v550
  %705 = vmatprep.subr.bf16.mxu0 0
  %706 = vmatpush2.bf16.msra.mxu0 %v549
  %707 = vmatprep.subr.bf16.mxu0 0
  %708 = vmatpush2.bf16.msra.mxu0 %v548
  %709 = vmatprep.subr.bf16.mxu0 0
  %710 = vmatpush2.bf16.msra.mxu0 %v547
  %711 = vmatprep.subr.bf16.mxu0 0
  %712 = vmatpush2.bf16.msra.mxu0 %v546
  %713 = vmatprep.subr.bf16.mxu0 0
  %714 = vmatpush2.bf16.msra.mxu0 %v545
  %715 = vmatprep.mubr.bf16.mxu0 %v305
  %716 = vmatmul.mubr.bf16.gmra.mxu0 %v304
  %v717 = vpop.f32.mrf.mxu0
  %v718 = vadd.f32 %v677, %v717
  %v719 = vpop.f32.mrf.mxu0
  %v720 = vpop.f32.mrf.mxu0
  %v721 = vadd.f32 %v680, %v720
  %v722 = vpop.f32.mrf.mxu0
  %723 = vdwg.mxu0
  %v724 = vld [vmem:[%s5] sm:$0x1]
  %v725 = vld [vmem:[%s6] sm:$0x1]
  %726 = vadd.xlane.f32.xlu0 %v718
  %v727 = vpop.xlane.xlu0 %726
  %728 = vadd.xlane.f32.xlu0 %v721
  %v729 = vpop.xlane.xlu0 %728
  %v730 = vmul.f32 %v718, %v718
  %v731 = vmul.f32 %v721, %v721
  %732 = vadd.xlane.f32.xlu0 %v730
  %v733 = vpop.xlane.xlu0 %732
  %734 = vadd.xlane.f32.xlu0 %v731
  %v735 = vpop.xlane.xlu0 %734
  %v736 = vrcp.pop 32.0
  %v737 = vmul.f32 %v727, %v736
  %v738 = vmul.f32 %v729, %v736
  %v739 = vmul.f32 %v733, %v736
  %v740 = vmul.f32 %v735, %v736
  %v741 = vmul.f32 %v737, %v737
  %v742 = vmul.f32 %v738, %v738
  %v743 = vsub.f32 %v739, %v741
  %v744 = vsub.f32 %v740, %v742
  %v745 = vsub.f32 %v718, %v737
  %v746 = vsub.f32 %v721, %v738
  %v747 = vadd.f32 %v743, 1e-05
  %v748 = vadd.f32 %v744, 1e-05
  %v749 = vrsqrt.pop %v747
  %v750 = vrsqrt.pop %v748
  %v751 = vmul.f32 %v745, %v749
  %v752 = vmul.f32 %v746, %v750
  %v754 = vlaneseq
  %v755 = vshrl.u32 %v754, 7
  %v756 = vsub.s32 0, %v755
  %v757 = vrot.slane %v724, %v756
  %v759 = vmul.f32 %v751, %v757
  %v760 = vmul.f32 %v752, %v757
  %v762 = vlaneseq
  %v763 = vshrl.u32 %v762, 7
  %v764 = vsub.s32 0, %v763
  %v765 = vrot.slane %v725, %v764
  %v767 = vadd.f32 %v759, %v765
  %v768 = vadd.f32 %v760, %v765
  %769 = vst [vmem:[%s7] sm:$0xff] %v767
  %770 = vst [vmem:[%s7 + $0x8] sm:$0xff] %v768
  // Predicated region
  $region30: #{vivit_model_forward.3} parent=0 // pred_check
    _
  $region31: #{vivit_model_forward.3} parent=0 // pred_check_branch
    %772 = sbr.rel (0) target = $region33
  $region32: #{vivit_model_forward.3} parent=0 // pred_region
    _
  $region33: #{vivit_model_forward.3} parent=0 // pred_fallthru
    _
  // Predicated region
  $region34: #{vivit_model_forward.3} parent=0 // pred_check
    _
  $region35: #{vivit_model_forward.3} parent=0 // pred_check_branch
    %774 = sbr.rel (0) target = $region37
  $region36: #{vivit_model_forward.3} parent=0 // pred_region
    _
  $region37: #{vivit_model_forward.3} parent=0 // pred_fallthru
    _

// kernel: vivit_model_forward.4
$region0: #{vivit_model_forward.4}
  #allocation0 [shape = 'u32[]', space=smem, size = 0x4, offset = 0x4, fixed_abs, tag = 'smem constant byte address 0x4 - core index']
  #allocation1 [shape = 'u32[144,128]{1,0:T(1,128)}', space=vmem, size = 0x12000, scoped, tag = 'internal scratch']
  %s0 = inlined_call_operand.vmem [shape: f32[32,128], index: 0, kind: input, shape index: {}]
  %s1 = inlined_call_operand.vmem [shape: f32[2,1,128], index: 1, kind: input, shape index: {}]
  %s2 = inlined_call_operand.vmem [shape: f32[2,1,128], index: 2, kind: input, shape index: {}]
  %s3 = inlined_call_operand.vmem [shape: bf16[2,128,32], index: 3, kind: input, shape index: {}]
  %s4 = inlined_call_operand.vmem [shape: bf16[2,128,32], index: 4, kind: input, shape index: {}]
  %s5 = inlined_call_operand.vmem [shape: bf16[2,128,32], index: 5, kind: input, shape index: {}]
  %s6 = inlined_call_operand.vmem [shape: bf16[2,32,128], index: 6, kind: input, shape index: {}]
  %s7 = inlined_call_operand.vmem [shape: f32[2,1,128], index: 7, kind: input, shape index: {}]
  %s8 = inlined_call_operand.vmem [shape: f32[2,1,128], index: 8, kind: input, shape index: {}]
  %s9 = inlined_call_operand.vmem [shape: f32[2,1,128], index: 9, kind: input, shape index: {}]
  %s10 = inlined_call_operand.vmem [shape: bf16[2,128,128], index: 10, kind: input, shape index: {}]
  %s11 = inlined_call_operand.vmem [shape: f32[2,1,128], index: 11, kind: input, shape index: {}]
  %s12 = inlined_call_operand.vmem [shape: bf16[2,128,128], index: 12, kind: input, shape index: {}]
  %s13 = inlined_call_operand.vmem [shape: f32[2,1,128], index: 13, kind: input, shape index: {}]
  %s14 = inlined_call_operand.vmem [shape: f32[1,128], index: 14, kind: input, shape index: {}]
  %s15 = inlined_call_operand.hbm [shape: f32[1,128], index: 15, kind: input, shape index: {}]
  %s16 = inlined_call_operand.vmem [shape: f32[32,128], index: 16, kind: output, shape index: {}]
  %s17 = sld [smem:[#allocation0]]
  $region113: #{vivit_model_forward.4} parent=0
    _
  %s19 = ssub.s32 1, %s17
  %s20 = scalar_select 0, %s19, %s17
  $region1: #{vivit_model_forward.4} parent=0
    #allocation2 [shape = 'u8[512]{0}', space=vmem, size = 0x400, scoped, tag = 'input window, operand 15, single buffered']
    #allocation3 [shape = 's32[2]{0}', space=sflag, size = 0x8, scoped, tag = 'scoped memory for vivit_model_forward.4']
    %21 = vsyncpa [#allocation3], 0
    loop: start=0, step=1, limit=6
    $region2: #{vivit_model_forward.4} parent=1 // loop_pre_header
      _
    $region3: #{vivit_model_forward.4} parent=1 // loop_header
      %s23 = sphi 0, %s27
      %p24 = scmp.ge.s32.totalorder %s23, 6
      %s30 = sphi 0, %s42
      %s31 = sphi 0, %s38
      %s32 = sphi 0, %s30
      %s33 = sphi 0, %s31
      %s34 = sphi 0, %s32
      %s35 = sphi 0, %s33
      %s45 = sphi 0, %s47
      %s48 = sphi 0, %s45
      %s49 = sphi 0, %s48
      %s65 = sphi 0, %s49
      %s71 = sphi 0, %s73
      %s74 = sphi 0, %s71
      %s75 = sphi 0, %s74
      %s91 = sphi 0, %s75
      %s97 = sphi 0, %s99
      %s100 = sphi 0, %s97
      %s101 = sphi 0, %s100
      %s117 = sphi 0, %s101
      %s123 = sphi 0, %s125
      %s126 = sphi 0, %s123
      %s127 = sphi 0, %s126
      %s143 = sphi 0, %s127
      %s149 = sphi 0, %s151
      %s152 = sphi 0, %s149
      %s153 = sphi 0, %s152
      %s169 = sphi 0, %s153
      %s175 = sphi 0, %s177
      %s178 = sphi 0, %s175
      %s179 = sphi 0, %s178
      %s195 = sphi 0, %s179
      %s201 = sphi 0, %s203
      %s204 = sphi 0, %s201
      %s205 = sphi 0, %s204
      %s221 = sphi 0, %s205
      %s227 = sphi 0, %s229
      %s230 = sphi 0, %s227
      %s231 = sphi 0, %s230
      %s247 = sphi 0, %s231
      %s253 = sphi 0, %s255
      %s256 = sphi 0, %s253
      %s257 = sphi 0, %s256
      %s273 = sphi 0, %s257
      %s279 = sphi 0, %s281
      %s282 = sphi 0, %s279
      %s283 = sphi 0, %s282
      %s299 = sphi 0, %s283
      %s305 = sphi 0, %s307
      %s308 = sphi 0, %s305
      %s309 = sphi 0, %s308
      %s325 = sphi 0, %s309
      %s331 = sphi 0, %s333
      %s334 = sphi 0, %s331
      %s335 = sphi 0, %s334
      %s351 = sphi 0, %s335
      %s357 = sphi 0, %s359
      %s360 = sphi 0, %s357
      %s361 = sphi 0, %s360
      %s377 = sphi 0, %s361
      %s383 = sphi 0, %s385
      %s386 = sphi 0, %s383
      %s387 = sphi 0, %s386
      %s403 = sphi 0, %s387
      %s407 = sphi 0, %s407
      %s409 = sphi 0, %s407
      %s410 = sphi 0, %s409
      %s424 = sphi 0, %s410
      %s428 = sphi 0, %s428
      %s430 = sphi 0, %s428
      %s431 = sphi 0, %s430
      %s445 = sphi 0, %s431
      %s451 = sphi 0, %s453
      %s454 = sphi 0, %s451
      %s455 = sphi 0, %s454
      %s471 = sphi 0, %s455
    $region4: #{vivit_model_forward.4} parent=1 // loop_header_branch
      %26 = sbr.rel (%p24) target = $region8
    $region5: #{vivit_model_forward.4} parent=1 // loop_body
      %s28 = ssub.s32 %s23, 1
      %s29 = ssub.s32 %s23, 2
      %s36 = sadd.s32 1, %s31
      %p37 = scmp.ge.s32.totalorder %s36, 2
      %s38 = scalar_select %p37, 0, %s36
      %s39 = sadd.s32 1, %s30
      %s40 = scalar_select %p37, %s39, %s30
      %p41 = scmp.ge.s32.totalorder %s40, 2
      %s42 = scalar_select %p41, 0, %s40
      %s43 = ssub.s32 %s30, %s42
      %p44 = scmp.eq.s32.totalorder %s43, 0
      %s46 = sadd.s32 %s45, 1
      %s47 = scalar_select %p44, %s45, %s46
      %p50 = pneg %p44
      %p51 = scmp.eq.s32.totalorder %s23, 3
      %p52 = por %p50, %p51
      %p53 = scmp.ne.s32.totalorder %s45, %s48
      %p54 = scmp.eq.s32.totalorder %s23, 0
      %p55 = por %p53, %p54
      %p56 = scmp.ne.s32.totalorder %s45, %s48
      %p57 = scmp.eq.s32.totalorder %s28, 3
      %p58 = por %p56, %p57
      %p59 = scmp.ne.s32.totalorder %s48, %s49
      %p60 = scmp.eq.s32.totalorder %s28, 0
      %p61 = por %p59, %p60
      %p62 = scmp.ne.s32.totalorder %s48, %s49
      %p63 = scmp.eq.s32.totalorder %s29, 3
      %p64 = por %p62, %p63
      %p66 = scmp.ne.s32.totalorder %s49, %s65
      %p67 = scmp.eq.s32.totalorder %s29, 0
      %p68 = por %p66, %p67
      %s69 = ssub.s32 %s31, %s38
      %p70 = scmp.eq.s32.totalorder %s69, 0
      %s72 = sadd.s32 %s71, 1
      %s73 = scalar_select %p70, %s71, %s72
      %p76 = pneg %p70
      %p77 = scmp.eq.s32.totalorder %s23, 3
      %p78 = por %p76, %p77
      %p79 = scmp.ne.s32.totalorder %s71, %s74
      %p80 = scmp.eq.s32.totalorder %s23, 0
      %p81 = por %p79, %p80
      %p82 = scmp.ne.s32.totalorder %s71, %s74
      %p83 = scmp.eq.s32.totalorder %s28, 3
      %p84 = por %p82, %p83
      %p85 = scmp.ne.s32.totalorder %s74, %s75
      %p86 = scmp.eq.s32.totalorder %s28, 0
      %p87 = por %p85, %p86
      %p88 = scmp.ne.s32.totalorder %s74, %s75
      %p89 = scmp.eq.s32.totalorder %s29, 3
      %p90 = por %p88, %p89
      %p92 = scmp.ne.s32.totalorder %s75, %s91
      %p93 = scmp.eq.s32.totalorder %s29, 0
      %p94 = por %p92, %p93
      %s95 = ssub.s32 %s31, %s38
      %p96 = scmp.eq.s32.totalorder %s95, 0
      %s98 = sadd.s32 %s97, 1
      %s99 = scalar_select %p96, %s97, %s98
      %p102 = pneg %p96
      %p103 = scmp.eq.s32.totalorder %s23, 3
      %p104 = por %p102, %p103
      %p105 = scmp.ne.s32.totalorder %s97, %s100
      %p106 = scmp.eq.s32.totalorder %s23, 0
      %p107 = por %p105, %p106
      %p108 = scmp.ne.s32.totalorder %s97, %s100
      %p109 = scmp.eq.s32.totalorder %s28, 3
      %p110 = por %p108, %p109
      %p111 = scmp.ne.s32.totalorder %s100, %s101
      %p112 = scmp.eq.s32.totalorder %s28, 0
      %p113 = por %p111, %p112
      %p114 = scmp.ne.s32.totalorder %s100, %s101
      %p115 = scmp.eq.s32.totalorder %s29, 3
      %p116 = por %p114, %p115
      %p118 = scmp.ne.s32.totalorder %s101, %s117
      %p119 = scmp.eq.s32.totalorder %s29, 0
      %p120 = por %p118, %p119
      %s121 = ssub.s32 %s31, %s38
      %p122 = scmp.eq.s32.totalorder %s121, 0
      %s124 = sadd.s32 %s123, 1
      %s125 = scalar_select %p122, %s123, %s124
      %p128 = pneg %p122
      %p129 = scmp.eq.s32.totalorder %s23, 3
      %p130 = por %p128, %p129
      %p131 = scmp.ne.s32.totalorder %s123, %s126
      %p132 = scmp.eq.s32.totalorder %s23, 0
      %p133 = por %p131, %p132
      %p134 = scmp.ne.s32.totalorder %s123, %s126
      %p135 = scmp.eq.s32.totalorder %s28, 3
      %p136 = por %p134, %p135
      %p137 = scmp.ne.s32.totalorder %s126, %s127
      %p138 = scmp.eq.s32.totalorder %s28, 0
      %p139 = por %p137, %p138
      %p140 = scmp.ne.s32.totalorder %s126, %s127
      %p141 = scmp.eq.s32.totalorder %s29, 3
      %p142 = por %p140, %p141
      %p144 = scmp.ne.s32.totalorder %s127, %s143
      %p145 = scmp.eq.s32.totalorder %s29, 0
      %p146 = por %p144, %p145
      %s147 = ssub.s32 %s31, %s38
      %p148 = scmp.eq.s32.totalorder %s147, 0
      %s150 = sadd.s32 %s149, 1
      %s151 = scalar_select %p148, %s149, %s150
      %p154 = pneg %p148
      %p155 = scmp.eq.s32.totalorder %s23, 3
      %p156 = por %p154, %p155
      %p157 = scmp.ne.s32.totalorder %s149, %s152
      %p158 = scmp.eq.s32.totalorder %s23, 0
      %p159 = por %p157, %p158
      %p160 = scmp.ne.s32.totalorder %s149, %s152
      %p161 = scmp.eq.s32.totalorder %s28, 3
      %p162 = por %p160, %p161
      %p163 = scmp.ne.s32.totalorder %s152, %s153
      %p164 = scmp.eq.s32.totalorder %s28, 0
      %p165 = por %p163, %p164
      %p166 = scmp.ne.s32.totalorder %s152, %s153
      %p167 = scmp.eq.s32.totalorder %s29, 3
      %p168 = por %p166, %p167
      %p170 = scmp.ne.s32.totalorder %s153, %s169
      %p171 = scmp.eq.s32.totalorder %s29, 0
      %p172 = por %p170, %p171
      %s173 = ssub.s32 %s31, %s38
      %p174 = scmp.eq.s32.totalorder %s173, 0
      %s176 = sadd.s32 %s175, 1
      %s177 = scalar_select %p174, %s175, %s176
      %p180 = pneg %p174
      %p181 = scmp.eq.s32.totalorder %s23, 3
      %p182 = por %p180, %p181
      %p183 = scmp.ne.s32.totalorder %s175, %s178
      %p184 = scmp.eq.s32.totalorder %s23, 0
      %p185 = por %p183, %p184
      %p186 = scmp.ne.s32.totalorder %s175, %s178
      %p187 = scmp.eq.s32.totalorder %s28, 3
      %p188 = por %p186, %p187
      %p189 = scmp.ne.s32.totalorder %s178, %s179
      %p190 = scmp.eq.s32.totalorder %s28, 0
      %p191 = por %p189, %p190
      %p192 = scmp.ne.s32.totalorder %s178, %s179
      %p193 = scmp.eq.s32.totalorder %s29, 3
      %p194 = por %p192, %p193
      %p196 = scmp.ne.s32.totalorder %s179, %s195
      %p197 = scmp.eq.s32.totalorder %s29, 0
      %p198 = por %p196, %p197
      %s199 = ssub.s32 %s31, %s38
      %p200 = scmp.eq.s32.totalorder %s199, 0
      %s202 = sadd.s32 %s201, 1
      %s203 = scalar_select %p200, %s201, %s202
      %p206 = pneg %p200
      %p207 = scmp.eq.s32.totalorder %s23, 3
      %p208 = por %p206, %p207
      %p209 = scmp.ne.s32.totalorder %s201, %s204
      %p210 = scmp.eq.s32.totalorder %s23, 0
      %p211 = por %p209, %p210
      %p212 = scmp.ne.s32.totalorder %s201, %s204
      %p213 = scmp.eq.s32.totalorder %s28, 3
      %p214 = por %p212, %p213
      %p215 = scmp.ne.s32.totalorder %s204, %s205
      %p216 = scmp.eq.s32.totalorder %s28, 0
      %p217 = por %p215, %p216
      %p218 = scmp.ne.s32.totalorder %s204, %s205
      %p219 = scmp.eq.s32.totalorder %s29, 3
      %p220 = por %p218, %p219
      %p222 = scmp.ne.s32.totalorder %s205, %s221
      %p223 = scmp.eq.s32.totalorder %s29, 0
      %p224 = por %p222, %p223
      %s225 = ssub.s32 %s31, %s38
      %p226 = scmp.eq.s32.totalorder %s225, 0
      %s228 = sadd.s32 %s227, 1
      %s229 = scalar_select %p226, %s227, %s228
      %p232 = pneg %p226
      %p233 = scmp.eq.s32.totalorder %s23, 3
      %p234 = por %p232, %p233
      %p235 = scmp.ne.s32.totalorder %s227, %s230
      %p236 = scmp.eq.s32.totalorder %s23, 0
      %p237 = por %p235, %p236
      %p238 = scmp.ne.s32.totalorder %s227, %s230
      %p239 = scmp.eq.s32.totalorder %s28, 3
      %p240 = por %p238, %p239
      %p241 = scmp.ne.s32.totalorder %s230, %s231
      %p242 = scmp.eq.s32.totalorder %s28, 0
      %p243 = por %p241, %p242
      %p244 = scmp.ne.s32.totalorder %s230, %s231
      %p245 = scmp.eq.s32.totalorder %s29, 3
      %p246 = por %p244, %p245
      %p248 = scmp.ne.s32.totalorder %s231, %s247
      %p249 = scmp.eq.s32.totalorder %s29, 0
      %p250 = por %p248, %p249
      %s251 = ssub.s32 %s31, %s38
      %p252 = scmp.eq.s32.totalorder %s251, 0
      %s254 = sadd.s32 %s253, 1
      %s255 = scalar_select %p252, %s253, %s254
      %p258 = pneg %p252
      %p259 = scmp.eq.s32.totalorder %s23, 3
      %p260 = por %p258, %p259
      %p261 = scmp.ne.s32.totalorder %s253, %s256
      %p262 = scmp.eq.s32.totalorder %s23, 0
      %p263 = por %p261, %p262
      %p264 = scmp.ne.s32.totalorder %s253, %s256
      %p265 = scmp.eq.s32.totalorder %s28, 3
      %p266 = por %p264, %p265
      %p267 = scmp.ne.s32.totalorder %s256, %s257
      %p268 = scmp.eq.s32.totalorder %s28, 0
      %p269 = por %p267, %p268
      %p270 = scmp.ne.s32.totalorder %s256, %s257
      %p271 = scmp.eq.s32.totalorder %s29, 3
      %p272 = por %p270, %p271
      %p274 = scmp.ne.s32.totalorder %s257, %s273
      %p275 = scmp.eq.s32.totalorder %s29, 0
      %p276 = por %p274, %p275
      %s277 = ssub.s32 %s31, %s38
      %p278 = scmp.eq.s32.totalorder %s277, 0
      %s280 = sadd.s32 %s279, 1
      %s281 = scalar_select %p278, %s279, %s280
      %p284 = pneg %p278
      %p285 = scmp.eq.s32.totalorder %s23, 3
      %p286 = por %p284, %p285
      %p287 = scmp.ne.s32.totalorder %s279, %s282
      %p288 = scmp.eq.s32.totalorder %s23, 0
      %p289 = por %p287, %p288
      %p290 = scmp.ne.s32.totalorder %s279, %s282
      %p291 = scmp.eq.s32.totalorder %s28, 3
      %p292 = por %p290, %p291
      %p293 = scmp.ne.s32.totalorder %s282, %s283
      %p294 = scmp.eq.s32.totalorder %s28, 0
      %p295 = por %p293, %p294
      %p296 = scmp.ne.s32.totalorder %s282, %s283
      %p297 = scmp.eq.s32.totalorder %s29, 3
      %p298 = por %p296, %p297
      %p300 = scmp.ne.s32.totalorder %s283, %s299
      %p301 = scmp.eq.s32.totalorder %s29, 0
      %p302 = por %p300, %p301
      %s303 = ssub.s32 %s31, %s38
      %p304 = scmp.eq.s32.totalorder %s303, 0
      %s306 = sadd.s32 %s305, 1
      %s307 = scalar_select %p304, %s305, %s306
      %p310 = pneg %p304
      %p311 = scmp.eq.s32.totalorder %s23, 3
      %p312 = por %p310, %p311
      %p313 = scmp.ne.s32.totalorder %s305, %s308
      %p314 = scmp.eq.s32.totalorder %s23, 0
      %p315 = por %p313, %p314
      %p316 = scmp.ne.s32.totalorder %s305, %s308
      %p317 = scmp.eq.s32.totalorder %s28, 3
      %p318 = por %p316, %p317
      %p319 = scmp.ne.s32.totalorder %s308, %s309
      %p320 = scmp.eq.s32.totalorder %s28, 0
      %p321 = por %p319, %p320
      %p322 = scmp.ne.s32.totalorder %s308, %s309
      %p323 = scmp.eq.s32.totalorder %s29, 3
      %p324 = por %p322, %p323
      %p326 = scmp.ne.s32.totalorder %s309, %s325
      %p327 = scmp.eq.s32.totalorder %s29, 0
      %p328 = por %p326, %p327
      %s329 = ssub.s32 %s31, %s38
      %p330 = scmp.eq.s32.totalorder %s329, 0
      %s332 = sadd.s32 %s331, 1
      %s333 = scalar_select %p330, %s331, %s332
      %p336 = pneg %p330
      %p337 = scmp.eq.s32.totalorder %s23, 3
      %p338 = por %p336, %p337
      %p339 = scmp.ne.s32.totalorder %s331, %s334
      %p340 = scmp.eq.s32.totalorder %s23, 0
      %p341 = por %p339, %p340
      %p342 = scmp.ne.s32.totalorder %s331, %s334
      %p343 = scmp.eq.s32.totalorder %s28, 3
      %p344 = por %p342, %p343
      %p345 = scmp.ne.s32.totalorder %s334, %s335
      %p346 = scmp.eq.s32.totalorder %s28, 0
      %p347 = por %p345, %p346
      %p348 = scmp.ne.s32.totalorder %s334, %s335
      %p349 = scmp.eq.s32.totalorder %s29, 3
      %p350 = por %p348, %p349
      %p352 = scmp.ne.s32.totalorder %s335, %s351
      %p353 = scmp.eq.s32.totalorder %s29, 0
      %p354 = por %p352, %p353
      %s355 = ssub.s32 %s31, %s38
      %p356 = scmp.eq.s32.totalorder %s355, 0
      %s358 = sadd.s32 %s357, 1
      %s359 = scalar_select %p356, %s357, %s358
      %p362 = pneg %p356
      %p363 = scmp.eq.s32.totalorder %s23, 3
      %p364 = por %p362, %p363
      %p365 = scmp.ne.s32.totalorder %s357, %s360
      %p366 = scmp.eq.s32.totalorder %s23, 0
      %p367 = por %p365, %p366
      %p368 = scmp.ne.s32.totalorder %s357, %s360
      %p369 = scmp.eq.s32.totalorder %s28, 3
      %p370 = por %p368, %p369
      %p371 = scmp.ne.s32.totalorder %s360, %s361
      %p372 = scmp.eq.s32.totalorder %s28, 0
      %p373 = por %p371, %p372
      %p374 = scmp.ne.s32.totalorder %s360, %s361
      %p375 = scmp.eq.s32.totalorder %s29, 3
      %p376 = por %p374, %p375
      %p378 = scmp.ne.s32.totalorder %s361, %s377
      %p379 = scmp.eq.s32.totalorder %s29, 0
      %p380 = por %p378, %p379
      %s381 = ssub.s32 %s31, %s38
      %p382 = scmp.eq.s32.totalorder %s381, 0
      %s384 = sadd.s32 %s383, 1
      %s385 = scalar_select %p382, %s383, %s384
      %p388 = pneg %p382
      %p389 = scmp.eq.s32.totalorder %s23, 3
      %p390 = por %p388, %p389
      %p391 = scmp.ne.s32.totalorder %s383, %s386
      %p392 = scmp.eq.s32.totalorder %s23, 0
      %p393 = por %p391, %p392
      %p394 = scmp.ne.s32.totalorder %s383, %s386
      %p395 = scmp.eq.s32.totalorder %s28, 3
      %p396 = por %p394, %p395
      %p397 = scmp.ne.s32.totalorder %s386, %s387
      %p398 = scmp.eq.s32.totalorder %s28, 0
      %p399 = por %p397, %p398
      %p400 = scmp.ne.s32.totalorder %s386, %s387
      %p401 = scmp.eq.s32.totalorder %s29, 3
      %p402 = por %p400, %p401
      %p404 = scmp.ne.s32.totalorder %s387, %s403
      %p405 = scmp.eq.s32.totalorder %s29, 0
      %p406 = por %p404, %p405
      %s408 = sadd.s32 %s407, 1
      %p411 = scmp.eq.s32.totalorder %s23, 3
      %p412 = scmp.ne.s32.totalorder %s407, %s409
      %p413 = scmp.eq.s32.totalorder %s23, 0
      %p414 = por %p412, %p413
      %p415 = scmp.ne.s32.totalorder %s407, %s409
      %p416 = scmp.eq.s32.totalorder %s28, 3
      %p417 = por %p415, %p416
      %p418 = scmp.ne.s32.totalorder %s409, %s410
      %p419 = scmp.eq.s32.totalorder %s28, 0
      %p420 = por %p418, %p419
      %p421 = scmp.ne.s32.totalorder %s409, %s410
      %p422 = scmp.eq.s32.totalorder %s29, 3
      %p423 = por %p421, %p422
      %p425 = scmp.ne.s32.totalorder %s410, %s424
      %p426 = scmp.eq.s32.totalorder %s29, 0
      %p427 = por %p425, %p426
      %s429 = sadd.s32 %s428, 1
      %p432 = scmp.eq.s32.totalorder %s23, 3
      %p433 = scmp.ne.s32.totalorder %s428, %s430
      %p434 = scmp.eq.s32.totalorder %s23, 0
      %p435 = por %p433, %p434
      %p436 = scmp.ne.s32.totalorder %s428, %s430
      %p437 = scmp.eq.s32.totalorder %s28, 3
      %p438 = por %p436, %p437
      %p439 = scmp.ne.s32.totalorder %s430, %s431
      %p440 = scmp.eq.s32.totalorder %s28, 0
      %p441 = por %p439, %p440
      %p442 = scmp.ne.s32.totalorder %s430, %s431
      %p443 = scmp.eq.s32.totalorder %s29, 3
      %p444 = por %p442, %p443
      %p446 = scmp.ne.s32.totalorder %s431, %s445
      %p447 = scmp.eq.s32.totalorder %s29, 0
      %p448 = por %p446, %p447
      %s449 = ssub.s32 %s30, %s42
      %p450 = scmp.eq.s32.totalorder %s449, 0
      %s452 = sadd.s32 %s451, 1
      %s453 = scalar_select %p450, %s451, %s452
      %p456 = pneg %p450
      %p457 = scmp.eq.s32.totalorder %s23, 3
      %p458 = por %p456, %p457
      %p459 = scmp.ne.s32.totalorder %s451, %s454
      %p460 = scmp.eq.s32.totalorder %s23, 0
      %p461 = por %p459, %p460
      %p462 = scmp.ne.s32.totalorder %s451, %s454
      %p463 = scmp.eq.s32.totalorder %s28, 3
      %p464 = por %p462, %p463
      %p465 = scmp.ne.s32.totalorder %s454, %s455
      %p466 = scmp.eq.s32.totalorder %s28, 0
      %p467 = por %p465, %p466
      %p468 = scmp.ne.s32.totalorder %s454, %s455
      %p469 = scmp.eq.s32.totalorder %s29, 3
      %p470 = por %p468, %p469
      %p472 = scmp.ne.s32.totalorder %s455, %s471
      %p473 = scmp.eq.s32.totalorder %s29, 0
      %p474 = por %p472, %p473
      %p475 = scmp.le.s32.totalorder 1, %s23
      %p476 = scmp.lt.s32.totalorder %s23, 5
      %p477 = pnand %p475, %p476
      %p478 = pneg %p477
      // Predicated region
      $region9: #{vivit_model_forward.4} parent=5 // pred_check
        _
      $region10: #{vivit_model_forward.4} parent=5 // pred_check_branch
        %480 = sbr.rel (%p477) target = $region12
      $region11: #{vivit_model_forward.4} parent=5 // pred_region
        %s481 = ssub.s32 %s23, 1
        // Predicated region
        $region13: #{vivit_model_forward.4} parent=11 // pred_check
          %p482 = pneg %p420
        $region14: #{vivit_model_forward.4} parent=11 // pred_check_branch
          %484 = sbr.rel (%p482) target = $region16
        $region15: #{vivit_model_forward.4} parent=11 // pred_region
          _
        $region16: #{vivit_model_forward.4} parent=11 // pred_fallthru
          _
        // Predicated region
        $region17: #{vivit_model_forward.4} parent=11 // pred_check
          %p485 = pneg %p441
        $region18: #{vivit_model_forward.4} parent=11 // pred_check_branch
          %487 = sbr.rel (%p485) target = $region20
        $region19: #{vivit_model_forward.4} parent=11 // pred_region
          %s489 = ssub.s32 16, 16
          %490 = vsyncadd [#allocation3], %s489
          %s492 = sshll.u32 [#allocation2], 4
          %s493 = int_to_ptr.vmem [resolvable:$true] %s492
          %495 = dma.hbm_to_vmem [thread:$0]  %s15, 16, %s493, [#allocation3]
        $region20: #{vivit_model_forward.4} parent=11 // pred_fallthru
          _
      $region12: #{vivit_model_forward.4} parent=5 // pred_fallthru
        _
      %p496 = scmp.lt.s32.totalorder %s23, 4
      // Predicated region
      $region21: #{vivit_model_forward.4} parent=5 // pred_check
        %p497 = pneg %p496
      $region22: #{vivit_model_forward.4} parent=5 // pred_check_branch
        %499 = sbr.rel (%p497) target = $region24
      $region23: #{vivit_model_forward.4} parent=5 // pred_region
        // Predicated region
        $region25: #{vivit_model_forward.4} parent=23 // pred_check
          %p500 = pneg %p55
        $region26: #{vivit_model_forward.4} parent=23 // pred_check_branch
          %502 = sbr.rel (%p500) target = $region28
        $region27: #{vivit_model_forward.4} parent=23 // pred_region
          %s503 = smul.u32 2, %s30
          %p504 = scmp.lt.s32.totalorder %s503, 3
          %s505 = scalar_select %p504, %s503, 3
          %s506 = smul.addr %s505, 8
          %s507 = scalar_lea.vmem %s0, %s506
          %s508 = smul.u32 2, %s30
        $region28: #{vivit_model_forward.4} parent=23 // pred_fallthru
          _
        // Predicated region
        $region29: #{vivit_model_forward.4} parent=23 // pred_check
          %p509 = pneg %p81
        $region30: #{vivit_model_forward.4} parent=23 // pred_check_branch
          %511 = sbr.rel (%p509) target = $region32
        $region31: #{vivit_model_forward.4} parent=23 // pred_region
          %p512 = scmp.lt.s32.totalorder %s31, 1
          %s513 = scalar_select %p512, %s31, 1
          %s514 = scalar_lea.vmem %s1, %s513
        $region32: #{vivit_model_forward.4} parent=23 // pred_fallthru
          _
        // Predicated region
        $region33: #{vivit_model_forward.4} parent=23 // pred_check
          %p515 = pneg %p107
        $region34: #{vivit_model_forward.4} parent=23 // pred_check_branch
          %517 = sbr.rel (%p515) target = $region36
        $region35: #{vivit_model_forward.4} parent=23 // pred_region
          %p518 = scmp.lt.s32.totalorder %s31, 1
          %s519 = scalar_select %p518, %s31, 1
          %s520 = scalar_lea.vmem %s2, %s519
        $region36: #{vivit_model_forward.4} parent=23 // pred_fallthru
          _
        // Predicated region
        $region37: #{vivit_model_forward.4} parent=23 // pred_check
          %p521 = pneg %p133
        $region38: #{vivit_model_forward.4} parent=23 // pred_check_branch
          %523 = sbr.rel (%p521) target = $region40
        $region39: #{vivit_model_forward.4} parent=23 // pred_region
          %p524 = scmp.lt.s32.totalorder %s31, 1
          %s525 = scalar_select %p524, %s31, 1
          %s526 = smul.addr %s525, 16
          %s527 = smul.addr %s526, 4
          %s528 = scalar_lea.vmem %s3, %s527
        $region40: #{vivit_model_forward.4} parent=23 // pred_fallthru
          _
        // Predicated region
        $region41: #{vivit_model_forward.4} parent=23 // pred_check
          %p529 = pneg %p159
        $region42: #{vivit_model_forward.4} parent=23 // pred_check_branch
          %531 = sbr.rel (%p529) target = $region44
        $region43: #{vivit_model_forward.4} parent=23 // pred_region
          %p532 = scmp.lt.s32.totalorder %s31, 1
          %s533 = scalar_select %p532, %s31, 1
          %s534 = smul.addr %s533, 16
          %s535 = smul.addr %s534, 4
          %s536 = scalar_lea.vmem %s4, %s535
        $region44: #{vivit_model_forward.4} parent=23 // pred_fallthru
          _
        // Predicated region
        $region45: #{vivit_model_forward.4} parent=23 // pred_check
          %p537 = pneg %p185
        $region46: #{vivit_model_forward.4} parent=23 // pred_check_branch
          %539 = sbr.rel (%p537) target = $region48
        $region47: #{vivit_model_forward.4} parent=23 // pred_region
          %p540 = scmp.lt.s32.totalorder %s31, 1
          %s541 = scalar_select %p540, %s31, 1
          %s542 = smul.addr %s541, 16
          %s543 = smul.addr %s542, 4
          %s544 = scalar_lea.vmem %s5, %s543
        $region48: #{vivit_model_forward.4} parent=23 // pred_fallthru
          _
        // Predicated region
        $region49: #{vivit_model_forward.4} parent=23 // pred_check
          %p545 = pneg %p211
        $region50: #{vivit_model_forward.4} parent=23 // pred_check_branch
          %547 = sbr.rel (%p545) target = $region52
        $region51: #{vivit_model_forward.4} parent=23 // pred_region
          %p548 = scmp.lt.s32.totalorder %s31, 1
          %s549 = scalar_select %p548, %s31, 1
          %s550 = smul.addr %s549, 4
          %s551 = smul.addr %s550, 4
          %s552 = scalar_lea.vmem %s6, %s551
        $region52: #{vivit_model_forward.4} parent=23 // pred_fallthru
          _
        // Predicated region
        $region53: #{vivit_model_forward.4} parent=23 // pred_check
          %p553 = pneg %p237
        $region54: #{vivit_model_forward.4} parent=23 // pred_check_branch
          %555 = sbr.rel (%p553) target = $region56
        $region55: #{vivit_model_forward.4} parent=23 // pred_region
          %p556 = scmp.lt.s32.totalorder %s31, 1
          %s557 = scalar_select %p556, %s31, 1
          %s558 = scalar_lea.vmem %s7, %s557
        $region56: #{vivit_model_forward.4} parent=23 // pred_fallthru
          _
        // Predicated region
        $region57: #{vivit_model_forward.4} parent=23 // pred_check
          %p559 = pneg %p263
        $region58: #{vivit_model_forward.4} parent=23 // pred_check_branch
          %561 = sbr.rel (%p559) target = $region60
        $region59: #{vivit_model_forward.4} parent=23 // pred_region
          %p562 = scmp.lt.s32.totalorder %s31, 1
          %s563 = scalar_select %p562, %s31, 1
          %s564 = scalar_lea.vmem %s8, %s563
        $region60: #{vivit_model_forward.4} parent=23 // pred_fallthru
          _
        // Predicated region
        $region61: #{vivit_model_forward.4} parent=23 // pred_check
          %p565 = pneg %p289
        $region62: #{vivit_model_forward.4} parent=23 // pred_check_branch
          %567 = sbr.rel (%p565) target = $region64
        $region63: #{vivit_model_forward.4} parent=23 // pred_region
          %p568 = scmp.lt.s32.totalorder %s31, 1
          %s569 = scalar_select %p568, %s31, 1
          %s570 = scalar_lea.vmem %s9, %s569
        $region64: #{vivit_model_forward.4} parent=23 // pred_fallthru
          _
        // Predicated region
        $region65: #{vivit_model_forward.4} parent=23 // pred_check
          %p571 = pneg %p315
        $region66: #{vivit_model_forward.4} parent=23 // pred_check_branch
          %573 = sbr.rel (%p571) target = $region68
        $region67: #{vivit_model_forward.4} parent=23 // pred_region
          %p574 = scmp.lt.s32.totalorder %s31, 1
          %s575 = scalar_select %p574, %s31, 1
          %s576 = smul.addr %s575, 16
          %s577 = smul.addr %s576, 4
          %s578 = scalar_lea.vmem %s10, %s577
        $region68: #{vivit_model_forward.4} parent=23 // pred_fallthru
          _
        // Predicated region
        $region69: #{vivit_model_forward.4} parent=23 // pred_check
          %p579 = pneg %p341
        $region70: #{vivit_model_forward.4} parent=23 // pred_check_branch
          %581 = sbr.rel (%p579) target = $region72
        $region71: #{vivit_model_forward.4} parent=23 // pred_region
          %p582 = scmp.lt.s32.totalorder %s31, 1
          %s583 = scalar_select %p582, %s31, 1
          %s584 = scalar_lea.vmem %s11, %s583
        $region72: #{vivit_model_forward.4} parent=23 // pred_fallthru
          _
        // Predicated region
        $region73: #{vivit_model_forward.4} parent=23 // pred_check
          %p585 = pneg %p367
        $region74: #{vivit_model_forward.4} parent=23 // pred_check_branch
          %587 = sbr.rel (%p585) target = $region76
        $region75: #{vivit_model_forward.4} parent=23 // pred_region
          %p588 = scmp.lt.s32.totalorder %s31, 1
          %s589 = scalar_select %p588, %s31, 1
          %s590 = smul.addr %s589, 16
          %s591 = smul.addr %s590, 4
          %s592 = scalar_lea.vmem %s12, %s591
        $region76: #{vivit_model_forward.4} parent=23 // pred_fallthru
          _
        // Predicated region
        $region77: #{vivit_model_forward.4} parent=23 // pred_check
          %p593 = pneg %p393
        $region78: #{vivit_model_forward.4} parent=23 // pred_check_branch
          %595 = sbr.rel (%p593) target = $region80
        $region79: #{vivit_model_forward.4} parent=23 // pred_region
          %p596 = scmp.lt.s32.totalorder %s31, 1
          %s597 = scalar_select %p596, %s31, 1
          %s598 = scalar_lea.vmem %s13, %s597
        $region80: #{vivit_model_forward.4} parent=23 // pred_fallthru
          _
      $region24: #{vivit_model_forward.4} parent=5 // pred_fallthru
        _
      %p599 = scmp.le.s32.totalorder 1, %s23
      %p600 = scmp.lt.s32.totalorder %s23, 5
      %p601 = pnand %p599, %p600
      %p602 = pneg %p601
      // Predicated region
      $region81: #{vivit_model_forward.4} parent=5 // pred_check
        _
      $region82: #{vivit_model_forward.4} parent=5 // pred_check_branch
        %604 = sbr.rel (%p601) target = $region84
      $region83: #{vivit_model_forward.4} parent=5 // pred_region
        %s605 = ssub.s32 %s23, 1
        // Predicated region
        $region85: #{vivit_model_forward.4} parent=83 // pred_check
          %p606 = pneg %p441
        $region86: #{vivit_model_forward.4} parent=83 // pred_check_branch
          %608 = sbr.rel (%p606) target = $region88
        $region87: #{vivit_model_forward.4} parent=83 // pred_region
          %609 = dma.done [#allocation3], 16
        $region88: #{vivit_model_forward.4} parent=83 // pred_fallthru
          _
        %s610 = smul.u32 2, %s32
        %p611 = scmp.lt.s32.totalorder %s610, 3
        %s612 = scalar_select %p611, %s610, 3
        %s613 = smul.addr %s612, 8
        %s614 = scalar_lea.vmem %s0, %s613
        %p615 = pneg %p61
        %p616 = pneg %p58
        %p617 = scmp.lt.s32.totalorder %s33, 1
        %s618 = scalar_select %p617, %s33, 1
        %s619 = scalar_lea.vmem %s1, %s618
        %p620 = pneg %p87
        %p621 = pneg %p84
        %p622 = scmp.lt.s32.totalorder %s33, 1
        %s623 = scalar_select %p622, %s33, 1
        %s624 = scalar_lea.vmem %s2, %s623
        %p625 = pneg %p113
        %p626 = pneg %p110
        %p627 = scmp.lt.s32.totalorder %s33, 1
        %s628 = scalar_select %p627, %s33, 1
        %s629 = smul.addr %s628, 16
        %s630 = smul.addr %s629, 4
        %s631 = scalar_lea.vmem %s3, %s630
        %p632 = pneg %p139
        %p633 = pneg %p136
        %p634 = scmp.lt.s32.totalorder %s33, 1
        %s635 = scalar_select %p634, %s33, 1
        %s636 = smul.addr %s635, 16
        %s637 = smul.addr %s636, 4
        %s638 = scalar_lea.vmem %s4, %s637
        %p639 = pneg %p165
        %p640 = pneg %p162
        %p641 = scmp.lt.s32.totalorder %s33, 1
        %s642 = scalar_select %p641, %s33, 1
        %s643 = smul.addr %s642, 16
        %s644 = smul.addr %s643, 4
        %s645 = scalar_lea.vmem %s5, %s644
        %p646 = pneg %p191
        %p647 = pneg %p188
        %p648 = scmp.lt.s32.totalorder %s33, 1
        %s649 = scalar_select %p648, %s33, 1
        %s650 = smul.addr %s649, 4
        %s651 = smul.addr %s650, 4
        %s652 = scalar_lea.vmem %s6, %s651
        %p653 = pneg %p217
        %p654 = pneg %p214
        %p655 = scmp.lt.s32.totalorder %s33, 1
        %s656 = scalar_select %p655, %s33, 1
        %s657 = scalar_lea.vmem %s7, %s656
        %p658 = pneg %p243
        %p659 = pneg %p240
        %p660 = scmp.lt.s32.totalorder %s33, 1
        %s661 = scalar_select %p660, %s33, 1
        %s662 = scalar_lea.vmem %s8, %s661
        %p663 = pneg %p269
        %p664 = pneg %p266
        %p665 = scmp.lt.s32.totalorder %s33, 1
        %s666 = scalar_select %p665, %s33, 1
        %s667 = scalar_lea.vmem %s9, %s666
        %p668 = pneg %p295
        %p669 = pneg %p292
        %p670 = scmp.lt.s32.totalorder %s33, 1
        %s671 = scalar_select %p670, %s33, 1
        %s672 = smul.addr %s671, 16
        %s673 = smul.addr %s672, 4
        %s674 = scalar_lea.vmem %s10, %s673
        %p675 = pneg %p321
        %p676 = pneg %p318
        %p677 = scmp.lt.s32.totalorder %s33, 1
        %s678 = scalar_select %p677, %s33, 1
        %s679 = scalar_lea.vmem %s11, %s678
        %p680 = pneg %p347
        %p681 = pneg %p344
        %p682 = scmp.lt.s32.totalorder %s33, 1
        %s683 = scalar_select %p682, %s33, 1
        %s684 = smul.addr %s683, 16
        %s685 = smul.addr %s684, 4
        %s686 = scalar_lea.vmem %s12, %s685
        %p687 = pneg %p373
        %p688 = pneg %p370
        %p689 = scmp.lt.s32.totalorder %s33, 1
        %s690 = scalar_select %p689, %s33, 1
        %s691 = scalar_lea.vmem %s13, %s690
        %p692 = pneg %p399
        %p693 = pneg %p396
        %p694 = pneg %p420
        %p695 = pneg %p417
        %p696 = pneg %p441
        %p697 = pneg %p438
        %p698 = pneg %p467
        %p699 = pneg %p464
        %s700 = smul.u32 2, %s32
        %p701 = scmp.lt.s32.totalorder %s700, 3
        %s702 = scalar_select %p701, %s700, 3
        %s703 = smul.addr %s702, 8
        %s704 = scalar_lea.vmem %s16, %s703
        %s705 = smul.u32 2, %s32
        %p706 = scmp.lt.s32.totalorder %s705, 3
        %s707 = scalar_select %p706, %s705, 3
        %s708 = smul.addr %s707, 8
        %s709 = scalar_lea.vmem %s0, %s708
        %s710 = smul.u32 2, %s32
        %p711 = scmp.lt.s32.totalorder %s33, 1
        %s712 = scalar_select %p711, %s33, 1
        %s713 = scalar_lea.vmem %s1, %s712
        %p714 = scmp.lt.s32.totalorder %s33, 1
        %s715 = scalar_select %p714, %s33, 1
        %s716 = scalar_lea.vmem %s2, %s715
        %p717 = scmp.lt.s32.totalorder %s33, 1
        %s718 = scalar_select %p717, %s33, 1
        %s719 = smul.addr %s718, 16
        %s720 = smul.addr %s719, 4
        %s721 = scalar_lea.vmem %s3, %s720
        %p722 = scmp.lt.s32.totalorder %s33, 1
        %s723 = scalar_select %p722, %s33, 1
        %s724 = smul.addr %s723, 16
        %s725 = smul.addr %s724, 4
        %s726 = scalar_lea.vmem %s4, %s725
        %p727 = scmp.lt.s32.totalorder %s33, 1
        %s728 = scalar_select %p727, %s33, 1
        %s729 = smul.addr %s728, 16
        %s730 = smul.addr %s729, 4
        %s731 = scalar_lea.vmem %s5, %s730
        %p732 = scmp.lt.s32.totalorder %s33, 1
        %s733 = scalar_select %p732, %s33, 1
        %s734 = smul.addr %s733, 4
        %s735 = smul.addr %s734, 4
        %s736 = scalar_lea.vmem %s6, %s735
        %p737 = scmp.lt.s32.totalorder %s33, 1
        %s738 = scalar_select %p737, %s33, 1
        %s739 = scalar_lea.vmem %s7, %s738
        %p740 = scmp.lt.s32.totalorder %s33, 1
        %s741 = scalar_select %p740, %s33, 1
        %s742 = scalar_lea.vmem %s8, %s741
        %p743 = scmp.lt.s32.totalorder %s33, 1
        %s744 = scalar_select %p743, %s33, 1
        %s745 = scalar_lea.vmem %s9, %s744
        %p746 = scmp.lt.s32.totalorder %s33, 1
        %s747 = scalar_select %p746, %s33, 1
        %s748 = smul.addr %s747, 16
        %s749 = smul.addr %s748, 4
        %s750 = scalar_lea.vmem %s10, %s749
        %p751 = scmp.lt.s32.totalorder %s33, 1
        %s752 = scalar_select %p751, %s33, 1
        %s753 = scalar_lea.vmem %s11, %s752
        %p754 = scmp.lt.s32.totalorder %s33, 1
        %s755 = scalar_select %p754, %s33, 1
        %s756 = smul.addr %s755, 16
        %s757 = smul.addr %s756, 4
        %s758 = scalar_lea.vmem %s12, %s757
        %p759 = scmp.lt.s32.totalorder %s33, 1
        %s760 = scalar_select %p759, %s33, 1
        %s761 = scalar_lea.vmem %s13, %s760
        %s762 = smul.u32 2, %s32
        %p763 = scmp.lt.s32.totalorder %s762, 3
        %s764 = scalar_select %p763, %s762, 3
        %s765 = smul.addr %s764, 8
        %s766 = scalar_lea.vmem %s16, %s765
        %s767 = smul.u32 2, %s32
        %p769 = scmp.eq.s32.totalorder %s33, 0
        // Predicated region
        $region89: #{vivit_model_forward.4} parent=83 // pred_check
          %p770 = pneg %p769
        $region90: #{vivit_model_forward.4} parent=83 // pred_check_branch
          %772 = sbr.rel (%p770) target = $region92
        $region91: #{vivit_model_forward.4} parent=83 // pred_region
          %v773 = vld [vmem:[%s709] sm:$0xff]
          %v774 = vld [vmem:[%s709 + $0x8] sm:$0xff]
          %775 = vst [vmem:[%s766] sm:$0xff] %v773
          %776 = vst [vmem:[%s766 + $0x8] sm:$0xff] %v774
        $region92: #{vivit_model_forward.4} parent=83 // pred_fallthru
          _
        %v777 = vld [vmem:[%s766] sm:$0xff]
        %v778 = vld [vmem:[%s766 + $0x8] sm:$0xff]
        %v779 = vld [vmem:[%s713] sm:$0x1]
        %v780 = vld [vmem:[%s716] sm:$0x1]
        %781 = vadd.xlane.f32.xlu0 %v777
        %v782 = vpop.xlane.xlu0 %781
        %783 = vadd.xlane.f32.xlu0 %v778
        %v784 = vpop.xlane.xlu0 %783
        %v785 = vmul.f32 %v777, %v777
        %v786 = vmul.f32 %v778, %v778
        %787 = vadd.xlane.f32.xlu0 %v785
        %v788 = vpop.xlane.xlu0 %787
        %789 = vadd.xlane.f32.xlu0 %v786
        %v790 = vpop.xlane.xlu0 %789
        %v791 = vrcp.pop 32.0
        %v792 = vmul.f32 %v782, %v791
        %v793 = vmul.f32 %v784, %v791
        %v794 = vmul.f32 %v788, %v791
        %v795 = vmul.f32 %v790, %v791
        %v796 = vmul.f32 %v792, %v792
        %v797 = vmul.f32 %v793, %v793
        %v798 = vsub.f32 %v794, %v796
        %v799 = vsub.f32 %v795, %v797
        %v800 = vsub.f32 %v777, %v792
        %v801 = vsub.f32 %v778, %v793
        %v802 = vadd.f32 %v798, 1e-05
        %v803 = vadd.f32 %v799, 1e-05
        %v804 = vrsqrt.pop %v802
        %v805 = vrsqrt.pop %v803
        %v806 = vmul.f32 %v800, %v804
        %v807 = vmul.f32 %v801, %v805
        %v809 = vlaneseq
        %v810 = vshrl.u32 %v809, 7
        %v811 = vsub.s32 0, %v810
        %v812 = vrot.slane %v779, %v811
        %v814 = vmul.f32 %v806, %v812
        %v815 = vmul.f32 %v807, %v812
        %v817 = vlaneseq
        %v818 = vshrl.u32 %v817, 7
        %v819 = vsub.s32 0, %v818
        %v820 = vrot.slane %v780, %v819
        %v822 = vadd.f32 %v814, %v820
        %v823 = vadd.f32 %v815, %v820
        %v824 = vpack.c.bf16 %v823, %v822
        %v825 = vld [vmem:[%s721] sm:$0xf]
        %v826 = vld [vmem:[%s721 + $0x4] sm:$0xf]
        %v827 = vld [vmem:[%s721 + $0x8] sm:$0xf]
        %v828 = vld [vmem:[%s721 + $0xc] sm:$0xf]
        %v829 = vld [vmem:[%s721 + $0x10] sm:$0xf]
        %v830 = vld [vmem:[%s721 + $0x14] sm:$0xf]
        %v831 = vld [vmem:[%s721 + $0x18] sm:$0xf]
        %v832 = vld [vmem:[%s721 + $0x1c] sm:$0xf]
        %v833 = vld [vmem:[%s721 + $0x20] sm:$0xf]
        %v834 = vld [vmem:[%s721 + $0x24] sm:$0xf]
        %v835 = vld [vmem:[%s721 + $0x28] sm:$0xf]
        %v836 = vld [vmem:[%s721 + $0x2c] sm:$0xf]
        %v837 = vld [vmem:[%s721 + $0x30] sm:$0xf]
        %v838 = vld [vmem:[%s721 + $0x34] sm:$0xf]
        %v839 = vld [vmem:[%s721 + $0x38] sm:$0xf]
        %v840 = vld [vmem:[%s721 + $0x3c] sm:$0xf]
        %v857 = vunpack.c.l.b16 %v825
        %v858 = vunpack.c.l.b16 %v826
        %v859 = vunpack.c.l.b16 %v827
        %v860 = vunpack.c.l.b16 %v828
        %v861 = vunpack.c.l.b16 %v829
        %v862 = vunpack.c.l.b16 %v830
        %v863 = vunpack.c.l.b16 %v831
        %v864 = vunpack.c.l.b16 %v832
        %v865 = vunpack.c.l.b16 %v833
        %v866 = vunpack.c.l.b16 %v834
        %v867 = vunpack.c.l.b16 %v835
        %v868 = vunpack.c.l.b16 %v836
        %v869 = vunpack.c.l.b16 %v837
        %v870 = vunpack.c.l.b16 %v838
        %v871 = vunpack.c.l.b16 %v839
        %v872 = vunpack.c.l.b16 %v840
        %v873 = vpack.c.b16 %v858, %v857
        %v874 = vpack.c.b16 %v860, %v859
        %v875 = vpack.c.b16 %v862, %v861
        %v876 = vpack.c.b16 %v864, %v863
        %v877 = vpack.c.b16 %v866, %v865
        %v878 = vpack.c.b16 %v868, %v867
        %v879 = vpack.c.b16 %v870, %v869
        %v880 = vpack.c.b16 %v872, %v871
        %889 = vmatprep.subr.bf16.mxu0 0
        %890 = vmatpush1.bf16.msra.mxu0 %v880
        %891 = vmatprep.subr.bf16.mxu0 0
        %892 = vmatpush1.bf16.msra.mxu0 %v879
        %893 = vmatprep.subr.bf16.mxu0 0
        %894 = vmatpush1.bf16.msra.mxu0 %v878
        %895 = vmatprep.subr.bf16.mxu0 0
        %896 = vmatpush1.bf16.msra.mxu0 %v877
        %897 = vmatprep.subr.bf16.mxu0 0
        %898 = vmatpush1.bf16.msra.mxu0 %v876
        %899 = vmatprep.subr.bf16.mxu0 0
        %900 = vmatpush1.bf16.msra.mxu0 %v875
        %901 = vmatprep.subr.bf16.mxu0 0
        %902 = vmatpush1.bf16.msra.mxu0 %v874
        %903 = vmatprep.subr.bf16.mxu0 0
        %904 = vmatpush1.bf16.msra.mxu0 %v873
        %905 = vmatprep.subr.bf16.mxu0 0
        %906 = vmatpush2.bf16.msra.mxu0 0
        %907 = vmatprep.subr.bf16.mxu0 0
        %908 = vmatpush2.bf16.msra.mxu0 0
        %909 = vmatprep.subr.bf16.mxu0 0
        %910 = vmatpush2.bf16.msra.mxu0 0
        %911 = vmatprep.subr.bf16.mxu0 0
        %912 = vmatpush2.bf16.msra.mxu0 0
        %913 = vmatprep.subr.bf16.mxu0 0
        %914 = vmatpush2.bf16.msra.mxu0 0
        %915 = vmatprep.subr.bf16.mxu0 0
        %916 = vmatpush2.bf16.msra.mxu0 0
        %917 = vmatprep.subr.bf16.mxu0 0
        %918 = vmatpush2.bf16.msra.mxu0 0
        %919 = vmatprep.subr.bf16.mxu0 0
        %920 = vmatpush2.bf16.msra.mxu0 0
        %921 = vmatprep.mubr.bf16.mxu0 0
        %922 = vmatmul.mubr.bf16.gmra.mxu0 %v824
        %v923 = vpop.f32.mrf.mxu0
        %v924 = vadd.f32 0.0, %v923
        %v925 = vpop.f32.mrf.mxu0
        %v926 = vpop.f32.mrf.mxu0
        %v927 = vadd.f32 0.0, %v926
        %v928 = vpop.f32.mrf.mxu0
        %929 = vdwg.mxu0
        %v930 = vld [vmem:[%s726] sm:$0xf]
        %v931 = vld [vmem:[%s726 + $0x4] sm:$0xf]
        %v932 = vld [vmem:[%s726 + $0x8] sm:$0xf]
        %v933 = vld [vmem:[%s726 + $0xc] sm:$0xf]
        %v934 = vld [vmem:[%s726 + $0x10] sm:$0xf]
        %v935 = vld [vmem:[%s726 + $0x14] sm:$0xf]
        %v936 = vld [vmem:[%s726 + $0x18] sm:$0xf]
        %v937 = vld [vmem:[%s726 + $0x1c] sm:$0xf]
        %v938 = vld [vmem:[%s726 + $0x20] sm:$0xf]
        %v939 = vld [vmem:[%s726 + $0x24] sm:$0xf]
        %v940 = vld [vmem:[%s726 + $0x28] sm:$0xf]
        %v941 = vld [vmem:[%s726 + $0x2c] sm:$0xf]
        %v942 = vld [vmem:[%s726 + $0x30] sm:$0xf]
        %v943 = vld [vmem:[%s726 + $0x34] sm:$0xf]
        %v944 = vld [vmem:[%s726 + $0x38] sm:$0xf]
        %v945 = vld [vmem:[%s726 + $0x3c] sm:$0xf]
        %v962 = vunpack.c.l.b16 %v930
        %v963 = vunpack.c.l.b16 %v931
        %v964 = vunpack.c.l.b16 %v932
        %v965 = vunpack.c.l.b16 %v933
        %v966 = vunpack.c.l.b16 %v934
        %v967 = vunpack.c.l.b16 %v935
        %v968 = vunpack.c.l.b16 %v936
        %v969 = vunpack.c.l.b16 %v937
        %v970 = vunpack.c.l.b16 %v938
        %v971 = vunpack.c.l.b16 %v939
        %v972 = vunpack.c.l.b16 %v940
        %v973 = vunpack.c.l.b16 %v941
        %v974 = vunpack.c.l.b16 %v942
        %v975 = vunpack.c.l.b16 %v943
        %v976 = vunpack.c.l.b16 %v944
        %v977 = vunpack.c.l.b16 %v945
        %v978 = vpack.c.b16 %v963, %v962
        %v979 = vpack.c.b16 %v965, %v964
        %v980 = vpack.c.b16 %v967, %v966
        %v981 = vpack.c.b16 %v969, %v968
        %v982 = vpack.c.b16 %v971, %v970
        %v983 = vpack.c.b16 %v973, %v972
        %v984 = vpack.c.b16 %v975, %v974
        %v985 = vpack.c.b16 %v977, %v976
        %994 = vmatprep.subr.bf16.mxu0 0
        %995 = vmatpush1.bf16.msra.mxu0 %v985
        %996 = vmatprep.subr.bf16.mxu0 0
        %997 = vmatpush1.bf16.msra.mxu0 %v984
        %998 = vmatprep.subr.bf16.mxu0 0
        %999 = vmatpush1.bf16.msra.mxu0 %v983
        %1000 = vmatprep.subr.bf16.mxu0 0
        %1001 = vmatpush1.bf16.msra.mxu0 %v982
        %1002 = vmatprep.subr.bf16.mxu0 0
        %1003 = vmatpush1.bf16.msra.mxu0 %v981
        %1004 = vmatprep.subr.bf16.mxu0 0
        %1005 = vmatpush1.bf16.msra.mxu0 %v980
        %1006 = vmatprep.subr.bf16.mxu0 0
        %1007 = vmatpush1.bf16.msra.mxu0 %v979
        %1008 = vmatprep.subr.bf16.mxu0 0
        %1009 = vmatpush1.bf16.msra.mxu0 %v978
        %1010 = vmatprep.subr.bf16.mxu0 0
        %1011 = vmatpush2.bf16.msra.mxu0 0
        %1012 = vmatprep.subr.bf16.mxu0 0
        %1013 = vmatpush2.bf16.msra.mxu0 0
        %1014 = vmatprep.subr.bf16.mxu0 0
        %1015 = vmatpush2.bf16.msra.mxu0 0
        %1016 = vmatprep.subr.bf16.mxu0 0
        %1017 = vmatpush2.bf16.msra.mxu0 0
        %1018 = vmatprep.subr.bf16.mxu0 0
        %1019 = vmatpush2.bf16.msra.mxu0 0
        %1020 = vmatprep.subr.bf16.mxu0 0
        %1021 = vmatpush2.bf16.msra.mxu0 0
        %1022 = vmatprep.subr.bf16.mxu0 0
        %1023 = vmatpush2.bf16.msra.mxu0 0
        %1024 = vmatprep.subr.bf16.mxu0 0
        %1025 = vmatpush2.bf16.msra.mxu0 0
        %1026 = vmatprep.mubr.bf16.mxu0 0
        %1027 = vmatmul.mubr.bf16.gmra.mxu0 %v824
        %v1028 = vpop.f32.mrf.mxu0
        %v1029 = vadd.f32 0.0, %v1028
        %v1030 = vpop.f32.mrf.mxu0
        %v1031 = vpop.f32.mrf.mxu0
        %v1032 = vadd.f32 0.0, %v1031
        %v1033 = vpop.f32.mrf.mxu0
        %1034 = vdwg.mxu0
        %v1035 = vld [vmem:[%s731] sm:$0xf]
        %v1036 = vld [vmem:[%s731 + $0x4] sm:$0xf]
        %v1037 = vld [vmem:[%s731 + $0x8] sm:$0xf]
        %v1038 = vld [vmem:[%s731 + $0xc] sm:$0xf]
        %v1039 = vld [vmem:[%s731 + $0x10] sm:$0xf]
        %v1040 = vld [vmem:[%s731 + $0x14] sm:$0xf]
        %v1041 = vld [vmem:[%s731 + $0x18] sm:$0xf]
        %v1042 = vld [vmem:[%s731 + $0x1c] sm:$0xf]
        %v1043 = vld [vmem:[%s731 + $0x20] sm:$0xf]
        %v1044 = vld [vmem:[%s731 + $0x24] sm:$0xf]
        %v1045 = vld [vmem:[%s731 + $0x28] sm:$0xf]
        %v1046 = vld [vmem:[%s731 + $0x2c] sm:$0xf]
        %v1047 = vld [vmem:[%s731 + $0x30] sm:$0xf]
        %v1048 = vld [vmem:[%s731 + $0x34] sm:$0xf]
        %v1049 = vld [vmem:[%s731 + $0x38] sm:$0xf]
        %v1050 = vld [vmem:[%s731 + $0x3c] sm:$0xf]
        %v1067 = vunpack.c.l.b16 %v1035
        %v1068 = vunpack.c.l.b16 %v1036
        %v1069 = vunpack.c.l.b16 %v1037
        %v1070 = vunpack.c.l.b16 %v1038
        %v1071 = vunpack.c.l.b16 %v1039
        %v1072 = vunpack.c.l.b16 %v1040
        %v1073 = vunpack.c.l.b16 %v1041
        %v1074 = vunpack.c.l.b16 %v1042
        %v1075 = vunpack.c.l.b16 %v1043
        %v1076 = vunpack.c.l.b16 %v1044
        %v1077 = vunpack.c.l.b16 %v1045
        %v1078 = vunpack.c.l.b16 %v1046
        %v1079 = vunpack.c.l.b16 %v1047
        %v1080 = vunpack.c.l.b16 %v1048
        %v1081 = vunpack.c.l.b16 %v1049
        %v1082 = vunpack.c.l.b16 %v1050
        %v1083 = vpack.c.b16 %v1068, %v1067
        %v1084 = vpack.c.b16 %v1070, %v1069
        %v1085 = vpack.c.b16 %v1072, %v1071
        %v1086 = vpack.c.b16 %v1074, %v1073
        %v1087 = vpack.c.b16 %v1076, %v1075
        %v1088 = vpack.c.b16 %v1078, %v1077
        %v1089 = vpack.c.b16 %v1080, %v1079
        %v1090 = vpack.c.b16 %v1082, %v1081
        %1099 = vmatprep.subr.bf16.mxu0 0
        %1100 = vmatpush1.bf16.msra.mxu0 %v1090
        %1101 = vmatprep.subr.bf16.mxu0 0
        %1102 = vmatpush1.bf16.msra.mxu0 %v1089
        %1103 = vmatprep.subr.bf16.mxu0 0
        %1104 = vmatpush1.bf16.msra.mxu0 %v1088
        %1105 = vmatprep.subr.bf16.mxu0 0
        %1106 = vmatpush1.bf16.msra.mxu0 %v1087
        %1107 = vmatprep.subr.bf16.mxu0 0
        %1108 = vmatpush1.bf16.msra.mxu0 %v1086
        %1109 = vmatprep.subr.bf16.mxu0 0
        %1110 = vmatpush1.bf16.msra.mxu0 %v1085
        %1111 = vmatprep.subr.bf16.mxu0 0
        %1112 = vmatpush1.bf16.msra.mxu0 %v1084
        %1113 = vmatprep.subr.bf16.mxu0 0
        %1114 = vmatpush1.bf16.msra.mxu0 %v1083
        %1115 = vmatprep.subr.bf16.mxu0 0
        %1116 = vmatpush2.bf16.msra.mxu0 0
        %1117 = vmatprep.subr.bf16.mxu0 0
        %1118 = vmatpush2.bf16.msra.mxu0 0
        %1119 = vmatprep.subr.bf16.mxu0 0
        %1120 = vmatpush2.bf16.msra.mxu0 0
        %1121 = vmatprep.subr.bf16.mxu0 0
        %1122 = vmatpush2.bf16.msra.mxu0 0
        %1123 = vmatprep.subr.bf16.mxu0 0
        %1124 = vmatpush2.bf16.msra.mxu0 0
        %1125 = vmatprep.subr.bf16.mxu0 0
        %1126 = vmatpush2.bf16.msra.mxu0 0
        %1127 = vmatprep.subr.bf16.mxu0 0
        %1128 = vmatpush2.bf16.msra.mxu0 0
        %1129 = vmatprep.subr.bf16.mxu0 0
        %1130 = vmatpush2.bf16.msra.mxu0 0
        %1131 = vmatprep.mubr.bf16.mxu0 0
        %1132 = vmatmul.mubr.bf16.gmra.mxu0 %v824
        %v1133 = vpop.f32.mrf.mxu0
        %v1134 = vadd.f32 0.0, %v1133
        %v1135 = vpop.f32.mrf.mxu0
        %v1136 = vpop.f32.mrf.mxu0
        %v1137 = vadd.f32 0.0, %v1136
        %v1138 = vpop.f32.mrf.mxu0
        %1139 = vdwg.mxu0
        %v1140 = vlaneseq
        %v1141 = vand.u32 %v1140, 127
        %vm1142 = vcmp.lt.s32.totalorder %v1141, 5
        %v1143 = vpack.c.bf16 %v924, %v924
        %v1144 = vpack.c.bf16 %v927, %v927
        %v1145 = vpack.c.bf16 %v1029, %v1029
        %v1146 = vpack.c.bf16 %v1032, %v1032
        %v1147 = vpack.c.bf16 %v1134, %v1134
        %v1148 = vpack.c.bf16 %v1137, %v1137
        %vm1149 = vcmask 64512
        %v1151 = vsel %vm1149, %v1143, 0
        %v1154 = vsel %vm1149, %v1145, 0
        %1156 = vmatprep.subr.bf16.mxu0 0
        %1157 = vmatpush1.bf16.xpose.msra.mxu0 0
        %1158 = vmatprep.subr.bf16.mxu0 0
        %1159 = vmatpush1.bf16.xpose.msra.mxu0 0
        %1160 = vmatprep.subr.bf16.mxu0 0
        %1161 = vmatpush1.bf16.xpose.msra.mxu0 0
        %1162 = vmatprep.subr.bf16.mxu0 0
        %1163 = vmatpush1.bf16.xpose.msra.mxu0 0
        %1164 = vmatprep.subr.bf16.mxu0 0
        %1165 = vmatpush1.bf16.xpose.msra.mxu0 0
        %1166 = vmatprep.subr.bf16.mxu0 0
        %1167 = vmatpush1.bf16.xpose.msra.mxu0 0
        %1168 = vmatprep.subr.bf16.mxu0 0
        %1169 = vmatpush1.bf16.xpose.msra.mxu0 0
        %1170 = vmatprep.subr.bf16.mxu0 0
        %1171 = vmatpush1.bf16.xpose.msra.mxu0 %v1154
        %1172 = vmatprep.subr.bf16.mxu0 0
        %1173 = vmatpush2.bf16.xpose.msra.mxu0 0
        %1174 = vmatprep.subr.bf16.mxu0 0
        %1175 = vmatpush2.bf16.xpose.msra.mxu0 0
        %1176 = vmatprep.subr.bf16.mxu0 0
        %1177 = vmatpush2.bf16.xpose.msra.mxu0 0
        %1178 = vmatprep.subr.bf16.mxu0 0
        %1179 = vmatpush2.bf16.xpose.msra.mxu0 0
        %1180 = vmatprep.subr.bf16.mxu0 0
        %1181 = vmatpush2.bf16.xpose.msra.mxu0 0
        %1182 = vmatprep.subr.bf16.mxu0 0
        %1183 = vmatpush2.bf16.xpose.msra.mxu0 0
        %1184 = vmatprep.subr.bf16.mxu0 0
        %1185 = vmatpush2.bf16.xpose.msra.mxu0 0
        %1186 = vmatprep.subr.bf16.mxu0 0
        %1187 = vmatpush2.bf16.xpose.msra.mxu0 0
        %1188 = vmatprep.mubr.bf16.mxu0 0
        %1189 = vmatmul.mubr.bf16.gmra.mxu0 %v1151
        %v1190 = vpop.f32.mrf.mxu0
        %v1191 = vadd.f32 0.0, %v1190
        %v1192 = vpop.f32.mrf.mxu0
        %v1193 = vpop.f32.mrf.mxu0
        %v1194 = vpop.f32.mrf.mxu0
        %1195 = vdwg.mxu0
        %v1197 = vsel %vm1149, %v1144, 0
        %v1200 = vsel %vm1149, %v1146, 0
        %1202 = vmatprep.subr.bf16.mxu0 0
        %1203 = vmatpush1.bf16.xpose.msra.mxu0 0
        %1204 = vmatprep.subr.bf16.mxu0 0
        %1205 = vmatpush1.bf16.xpose.msra.mxu0 0
        %1206 = vmatprep.subr.bf16.mxu0 0
        %1207 = vmatpush1.bf16.xpose.msra.mxu0 0
        %1208 = vmatprep.subr.bf16.mxu0 0
        %1209 = vmatpush1.bf16.xpose.msra.mxu0 0
        %1210 = vmatprep.subr.bf16.mxu0 0
        %1211 = vmatpush1.bf16.xpose.msra.mxu0 0
        %1212 = vmatprep.subr.bf16.mxu0 0
        %1213 = vmatpush1.bf16.xpose.msra.mxu0 0
        %1214 = vmatprep.subr.bf16.mxu0 0
        %1215 = vmatpush1.bf16.xpose.msra.mxu0 0
        %1216 = vmatprep.subr.bf16.mxu0 0
        %1217 = vmatpush1.bf16.xpose.msra.mxu0 %v1200
        %1218 = vmatprep.subr.bf16.mxu0 0
        %1219 = vmatpush2.bf16.xpose.msra.mxu0 0
        %1220 = vmatprep.subr.bf16.mxu0 0
        %1221 = vmatpush2.bf16.xpose.msra.mxu0 0
        %1222 = vmatprep.subr.bf16.mxu0 0
        %1223 = vmatpush2.bf16.xpose.msra.mxu0 0
        %1224 = vmatprep.subr.bf16.mxu0 0
        %1225 = vmatpush2.bf16.xpose.msra.mxu0 0
        %1226 = vmatprep.subr.bf16.mxu0 0
        %1227 = vmatpush2.bf16.xpose.msra.mxu0 0
        %1228 = vmatprep.subr.bf16.mxu0 0
        %1229 = vmatpush2.bf16.xpose.msra.mxu0 0
        %1230 = vmatprep.subr.bf16.mxu0 0
        %1231 = vmatpush2.bf16.xpose.msra.mxu0 0
        %1232 = vmatprep.subr.bf16.mxu0 0
        %1233 = vmatpush2.bf16.xpose.msra.mxu0 0
        %1234 = vmatprep.mubr.bf16.mxu0 0
        %1235 = vmatmul.mubr.bf16.gmra.mxu0 %v1197
        %v1236 = vpop.f32.mrf.mxu0
        %v1237 = vadd.f32 0.0, %v1236
        %v1238 = vpop.f32.mrf.mxu0
        %v1239 = vpop.f32.mrf.mxu0
        %v1240 = vpop.f32.mrf.mxu0
        %1241 = vdwg.mxu0
        %v1242 = vsel %vm1142, %v1191, -1e+30
        %v1243 = vsel %vm1142, %v1237, -1e+30
        %v1244 = vsel %vm1149, %v1242, -inf
        %1245 = vmax.xlane.f32.xlu0 %v1244
        %v1246 = vpop.xlane.xlu0 %1245
        %v1247 = vsel %vm1149, %v1243, -inf
        %1248 = vmax.xlane.f32.xlu0 %v1247
        %v1249 = vpop.xlane.xlu0 %1248
        %v1250 = vsub.f32 %v1242, %v1246
        %v1251 = vsub.f32 %v1243, %v1249
        %v1252 = vmul.f32 %v1250, 1.442695
        %v1253 = vpow.pop %v1252
        %v1254 = vmul.f32 %v1251, 1.442695
        %v1255 = vpow.pop %v1254
        %v1256 = vsel %vm1149, %v1253, 0.0
        %1257 = vadd.xlane.f32.xlu0 %v1256
        %v1258 = vpop.xlane.xlu0 %1257
        %v1259 = vsel %vm1149, %v1255, 0.0
        %1260 = vadd.xlane.f32.xlu0 %v1259
        %v1261 = vpop.xlane.xlu0 %1260
        %v1262 = vrcp.pop %v1258
        %v1263 = vmul.f32 %v1253, %v1262
        %v1264 = vrcp.pop %v1261
        %v1265 = vmul.f32 %v1255, %v1264
        %v1266 = vpack.c.bf16 %v1263, %v1263
        %v1267 = vpack.c.bf16 %v1265, %v1265
        %v1269 = vsel %vm1149, %v1266, 0
        %vm1271 = vcmask 1043456
        %v1273 = vsel %vm1271, %v1147, 0
        %1275 = vmatprep.subr.bf16.mxu0 0
        %1276 = vmatpush1.bf16.msra.mxu0 0
        %1277 = vmatprep.subr.bf16.mxu0 0
        %1278 = vmatpush1.bf16.msra.mxu0 0
        %1279 = vmatprep.subr.bf16.mxu0 0
        %1280 = vmatpush1.bf16.msra.mxu0 0
        %1281 = vmatprep.subr.bf16.mxu0 0
        %1282 = vmatpush1.bf16.msra.mxu0 0
        %1283 = vmatprep.subr.bf16.mxu0 0
        %1284 = vmatpush1.bf16.msra.mxu0 0
        %1285 = vmatprep.subr.bf16.mxu0 0
        %1286 = vmatpush1.bf16.msra.mxu0 0
        %1287 = vmatprep.subr.bf16.mxu0 0
        %1288 = vmatpush1.bf16.msra.mxu0 0
        %1289 = vmatprep.subr.bf16.mxu0 0
        %1290 = vmatpush1.bf16.msra.mxu0 %v1273
        %1291 = vmatprep.subr.bf16.mxu0 0
        %1292 = vmatpush2.bf16.msra.mxu0 0
        %1293 = vmatprep.subr.bf16.mxu0 0
        %1294 = vmatpush2.bf16.msra.mxu0 0
        %1295 = vmatprep.subr.bf16.mxu0 0
        %1296 = vmatpush2.bf16.msra.mxu0 0
        %1297 = vmatprep.subr.bf16.mxu0 0
        %1298 = vmatpush2.bf16.msra.mxu0 0
        %1299 = vmatprep.subr.bf16.mxu0 0
        %1300 = vmatpush2.bf16.msra.mxu0 0
        %1301 = vmatprep.subr.bf16.mxu0 0
        %1302 = vmatpush2.bf16.msra.mxu0 0
        %1303 = vmatprep.subr.bf16.mxu0 0
        %1304 = vmatpush2.bf16.msra.mxu0 0
        %1305 = vmatprep.subr.bf16.mxu0 0
        %1306 = vmatpush2.bf16.msra.mxu0 0
        %1307 = vmatprep.mubr.bf16.mxu0 0
        %1308 = vmatmul.mubr.bf16.gmra.mxu0 %v1269
        %v1309 = vpop.f32.mrf.mxu0
        %v1310 = vadd.f32 0.0, %v1309
        %v1311 = vpop.f32.mrf.mxu0
        %v1312 = vpop.f32.mrf.mxu0
        %v1313 = vpop.f32.mrf.mxu0
        %1314 = vdwg.mxu0
        %v1316 = vsel %vm1149, %v1267, 0
        %v1319 = vsel %vm1271, %v1148, 0
        %1321 = vmatprep.subr.bf16.mxu0 0
        %1322 = vmatpush1.bf16.msra.mxu0 0
        %1323 = vmatprep.subr.bf16.mxu0 0
        %1324 = vmatpush1.bf16.msra.mxu0 0
        %1325 = vmatprep.subr.bf16.mxu0 0
        %1326 = vmatpush1.bf16.msra.mxu0 0
        %1327 = vmatprep.subr.bf16.mxu0 0
        %1328 = vmatpush1.bf16.msra.mxu0 0
        %1329 = vmatprep.subr.bf16.mxu0 0
        %1330 = vmatpush1.bf16.msra.mxu0 0
        %1331 = vmatprep.subr.bf16.mxu0 0
        %1332 = vmatpush1.bf16.msra.mxu0 0
        %1333 = vmatprep.subr.bf16.mxu0 0
        %1334 = vmatpush1.bf16.msra.mxu0 0
        %1335 = vmatprep.subr.bf16.mxu0 0
        %1336 = vmatpush1.bf16.msra.mxu0 %v1319
        %1337 = vmatprep.subr.bf16.mxu0 0
        %1338 = vmatpush2.bf16.msra.mxu0 0
        %1339 = vmatprep.subr.bf16.mxu0 0
        %1340 = vmatpush2.bf16.msra.mxu0 0
        %1341 = vmatprep.subr.bf16.mxu0 0
        %1342 = vmatpush2.bf16.msra.mxu0 0
        %1343 = vmatprep.subr.bf16.mxu0 0
        %1344 = vmatpush2.bf16.msra.mxu0 0
        %1345 = vmatprep.subr.bf16.mxu0 0
        %1346 = vmatpush2.bf16.msra.mxu0 0
        %1347 = vmatprep.subr.bf16.mxu0 0
        %1348 = vmatpush2.bf16.msra.mxu0 0
        %1349 = vmatprep.subr.bf16.mxu0 0
        %1350 = vmatpush2.bf16.msra.mxu0 0
        %1351 = vmatprep.subr.bf16.mxu0 0
        %1352 = vmatpush2.bf16.msra.mxu0 0
        %1353 = vmatprep.mubr.bf16.mxu0 0
        %1354 = vmatmul.mubr.bf16.gmra.mxu0 %v1316
        %v1355 = vpop.f32.mrf.mxu0
        %v1356 = vadd.f32 0.0, %v1355
        %v1357 = vpop.f32.mrf.mxu0
        %v1358 = vpop.f32.mrf.mxu0
        %v1359 = vpop.f32.mrf.mxu0
        %1360 = vdwg.mxu0
        %1362 = vrot.lane.b32.xlu0 %v1143, 120
        %v1363 = vpop.permute.xlu0 %1362
        %1365 = vrot.lane.b32.xlu0 %v1145, 120
        %v1366 = vpop.permute.xlu0 %1365
        %v1368 = vsel %vm1149, %v1363, 0
        %v1371 = vsel %vm1149, %v1366, 0
        %1373 = vmatprep.subr.bf16.mxu0 0
        %1374 = vmatpush1.bf16.xpose.msra.mxu0 0
        %1375 = vmatprep.subr.bf16.mxu0 0
        %1376 = vmatpush1.bf16.xpose.msra.mxu0 0
        %1377 = vmatprep.subr.bf16.mxu0 0
        %1378 = vmatpush1.bf16.xpose.msra.mxu0 0
        %1379 = vmatprep.subr.bf16.mxu0 0
        %1380 = vmatpush1.bf16.xpose.msra.mxu0 0
        %1381 = vmatprep.subr.bf16.mxu0 0
        %1382 = vmatpush1.bf16.xpose.msra.mxu0 0
        %1383 = vmatprep.subr.bf16.mxu0 0
        %1384 = vmatpush1.bf16.xpose.msra.mxu0 0
        %1385 = vmatprep.subr.bf16.mxu0 0
        %1386 = vmatpush1.bf16.xpose.msra.mxu0 0
        %1387 = vmatprep.subr.bf16.mxu0 0
        %1388 = vmatpush1.bf16.xpose.msra.mxu0 %v1371
        %1389 = vmatprep.subr.bf16.mxu0 0
        %1390 = vmatpush2.bf16.xpose.msra.mxu0 0
        %1391 = vmatprep.subr.bf16.mxu0 0
        %1392 = vmatpush2.bf16.xpose.msra.mxu0 0
        %1393 = vmatprep.subr.bf16.mxu0 0
        %1394 = vmatpush2.bf16.xpose.msra.mxu0 0
        %1395 = vmatprep.subr.bf16.mxu0 0
        %1396 = vmatpush2.bf16.xpose.msra.mxu0 0
        %1397 = vmatprep.subr.bf16.mxu0 0
        %1398 = vmatpush2.bf16.xpose.msra.mxu0 0
        %1399 = vmatprep.subr.bf16.mxu0 0
        %1400 = vmatpush2.bf16.xpose.msra.mxu0 0
        %1401 = vmatprep.subr.bf16.mxu0 0
        %1402 = vmatpush2.bf16.xpose.msra.mxu0 0
        %1403 = vmatprep.subr.bf16.mxu0 0
        %1404 = vmatpush2.bf16.xpose.msra.mxu0 0
        %1405 = vmatprep.mubr.bf16.mxu0 0
        %1406 = vmatmul.mubr.bf16.gmra.mxu0 %v1368
        %v1407 = vpop.f32.mrf.mxu0
        %v1408 = vadd.f32 0.0, %v1407
        %v1409 = vpop.f32.mrf.mxu0
        %v1410 = vpop.f32.mrf.mxu0
        %v1411 = vpop.f32.mrf.mxu0
        %1412 = vdwg.mxu0
        %1414 = vrot.lane.b32.xlu0 %v1144, 120
        %v1415 = vpop.permute.xlu0 %1414
        %1417 = vrot.lane.b32.xlu0 %v1146, 120
        %v1418 = vpop.permute.xlu0 %1417
        %v1420 = vsel %vm1149, %v1415, 0
        %v1423 = vsel %vm1149, %v1418, 0
        %1425 = vmatprep.subr.bf16.mxu0 0
        %1426 = vmatpush1.bf16.xpose.msra.mxu0 0
        %1427 = vmatprep.subr.bf16.mxu0 0
        %1428 = vmatpush1.bf16.xpose.msra.mxu0 0
        %1429 = vmatprep.subr.bf16.mxu0 0
        %1430 = vmatpush1.bf16.xpose.msra.mxu0 0
        %1431 = vmatprep.subr.bf16.mxu0 0
        %1432 = vmatpush1.bf16.xpose.msra.mxu0 0
        %1433 = vmatprep.subr.bf16.mxu0 0
        %1434 = vmatpush1.bf16.xpose.msra.mxu0 0
        %1435 = vmatprep.subr.bf16.mxu0 0
        %1436 = vmatpush1.bf16.xpose.msra.mxu0 0
        %1437 = vmatprep.subr.bf16.mxu0 0
        %1438 = vmatpush1.bf16.xpose.msra.mxu0 0
        %1439 = vmatprep.subr.bf16.mxu0 0
        %1440 = vmatpush1.bf16.xpose.msra.mxu0 %v1423
        %1441 = vmatprep.subr.bf16.mxu0 0
        %1442 = vmatpush2.bf16.xpose.msra.mxu0 0
        %1443 = vmatprep.subr.bf16.mxu0 0
        %1444 = vmatpush2.bf16.xpose.msra.mxu0 0
        %1445 = vmatprep.subr.bf16.mxu0 0
        %1446 = vmatpush2.bf16.xpose.msra.mxu0 0
        %1447 = vmatprep.subr.bf16.mxu0 0
        %1448 = vmatpush2.bf16.xpose.msra.mxu0 0
        %1449 = vmatprep.subr.bf16.mxu0 0
        %1450 = vmatpush2.bf16.xpose.msra.mxu0 0
        %1451 = vmatprep.subr.bf16.mxu0 0
        %1452 = vmatpush2.bf16.xpose.msra.mxu0 0
        %1453 = vmatprep.subr.bf16.mxu0 0
        %1454 = vmatpush2.bf16.xpose.msra.mxu0 0
        %1455 = vmatprep.subr.bf16.mxu0 0
        %1456 = vmatpush2.bf16.xpose.msra.mxu0 0
        %1457 = vmatprep.mubr.bf16.mxu0 0
        %1458 = vmatmul.mubr.bf16.gmra.mxu0 %v1420
        %v1459 = vpop.f32.mrf.mxu0
        %v1460 = vadd.f32 0.0, %v1459
        %v1461 = vpop.f32.mrf.mxu0
        %v1462 = vpop.f32.mrf.mxu0
        %v1463 = vpop.f32.mrf.mxu0
        %1464 = vdwg.mxu0
        %v1465 = vsel %vm1142, %v1408, -1e+30
        %v1466 = vsel %vm1142, %v1460, -1e+30
        %v1467 = vsel %vm1149, %v1465, -inf
        %1468 = vmax.xlane.f32.xlu0 %v1467
        %v1469 = vpop.xlane.xlu0 %1468
        %v1470 = vsel %vm1149, %v1466, -inf
        %1471 = vmax.xlane.f32.xlu0 %v1470
        %v1472 = vpop.xlane.xlu0 %1471
        %v1473 = vsub.f32 %v1465, %v1469
        %v1474 = vsub.f32 %v1466, %v1472
        %v1475 = vmul.f32 %v1473, 1.442695
        %v1476 = vpow.pop %v1475
        %v1477 = vmul.f32 %v1474, 1.442695
        %v1478 = vpow.pop %v1477
        %v1479 = vsel %vm1149, %v1476, 0.0
        %1480 = vadd.xlane.f32.xlu0 %v1479
        %v1481 = vpop.xlane.xlu0 %1480
        %v1482 = vsel %vm1149, %v1478, 0.0
        %1483 = vadd.xlane.f32.xlu0 %v1482
        %v1484 = vpop.xlane.xlu0 %1483
        %v1485 = vrcp.pop %v1481
        %v1486 = vmul.f32 %v1476, %v1485
        %v1487 = vrcp.pop %v1484
        %v1488 = vmul.f32 %v1478, %v1487
        %v1489 = vpack.c.bf16 %v1486, %v1486
        %v1490 = vpack.c.bf16 %v1488, %v1488
        %1492 = vrot.lane.b32.xlu0 %v1147, 120
        %v1493 = vpop.permute.xlu0 %1492
        %v1495 = vsel %vm1149, %v1489, 0
        %v1498 = vsel %vm1271, %v1493, 0
        %1500 = vmatprep.subr.bf16.mxu0 0
        %1501 = vmatpush1.bf16.msra.mxu0 0
        %1502 = vmatprep.subr.bf16.mxu0 0
        %1503 = vmatpush1.bf16.msra.mxu0 0
        %1504 = vmatprep.subr.bf16.mxu0 0
        %1505 = vmatpush1.bf16.msra.mxu0 0
        %1506 = vmatprep.subr.bf16.mxu0 0
        %1507 = vmatpush1.bf16.msra.mxu0 0
        %1508 = vmatprep.subr.bf16.mxu0 0
        %1509 = vmatpush1.bf16.msra.mxu0 0
        %1510 = vmatprep.subr.bf16.mxu0 0
        %1511 = vmatpush1.bf16.msra.mxu0 0
        %1512 = vmatprep.subr.bf16.mxu0 0
        %1513 = vmatpush1.bf16.msra.mxu0 0
        %1514 = vmatprep.subr.bf16.mxu0 0
        %1515 = vmatpush1.bf16.msra.mxu0 %v1498
        %1516 = vmatprep.subr.bf16.mxu0 0
        %1517 = vmatpush2.bf16.msra.mxu0 0
        %1518 = vmatprep.subr.bf16.mxu0 0
        %1519 = vmatpush2.bf16.msra.mxu0 0
        %1520 = vmatprep.subr.bf16.mxu0 0
        %1521 = vmatpush2.bf16.msra.mxu0 0
        %1522 = vmatprep.subr.bf16.mxu0 0
        %1523 = vmatpush2.bf16.msra.mxu0 0
        %1524 = vmatprep.subr.bf16.mxu0 0
        %1525 = vmatpush2.bf16.msra.mxu0 0
        %1526 = vmatprep.subr.bf16.mxu0 0
        %1527 = vmatpush2.bf16.msra.mxu0 0
        %1528 = vmatprep.subr.bf16.mxu0 0
        %1529 = vmatpush2.bf16.msra.mxu0 0
        %1530 = vmatprep.subr.bf16.mxu0 0
        %1531 = vmatpush2.bf16.msra.mxu0 0
        %1532 = vmatprep.mubr.bf16.mxu0 0
        %1533 = vmatmul.mubr.bf16.gmra.mxu0 %v1495
        %v1534 = vpop.f32.mrf.mxu0
        %v1535 = vadd.f32 0.0, %v1534
        %v1536 = vpop.f32.mrf.mxu0
        %v1537 = vpop.f32.mrf.mxu0
        %v1538 = vpop.f32.mrf.mxu0
        %1539 = vdwg.mxu0
        %1541 = vrot.lane.b32.xlu0 %v1148, 120
        %v1542 = vpop.permute.xlu0 %1541
        %v1544 = vsel %vm1149, %v1490, 0
        %v1547 = vsel %vm1271, %v1542, 0
        %1549 = vmatprep.subr.bf16.mxu0 0
        %1550 = vmatpush1.bf16.msra.mxu0 0
        %1551 = vmatprep.subr.bf16.mxu0 0
        %1552 = vmatpush1.bf16.msra.mxu0 0
        %1553 = vmatprep.subr.bf16.mxu0 0
        %1554 = vmatpush1.bf16.msra.mxu0 0
        %1555 = vmatprep.subr.bf16.mxu0 0
        %1556 = vmatpush1.bf16.msra.mxu0 0
        %1557 = vmatprep.subr.bf16.mxu0 0
        %1558 = vmatpush1.bf16.msra.mxu0 0
        %1559 = vmatprep.subr.bf16.mxu0 0
        %1560 = vmatpush1.bf16.msra.mxu0 0
        %1561 = vmatprep.subr.bf16.mxu0 0
        %1562 = vmatpush1.bf16.msra.mxu0 0
        %1563 = vmatprep.subr.bf16.mxu0 0
        %1564 = vmatpush1.bf16.msra.mxu0 %v1547
        %1565 = vmatprep.subr.bf16.mxu0 0
        %1566 = vmatpush2.bf16.msra.mxu0 0
        %1567 = vmatprep.subr.bf16.mxu0 0
        %1568 = vmatpush2.bf16.msra.mxu0 0
        %1569 = vmatprep.subr.bf16.mxu0 0
        %1570 = vmatpush2.bf16.msra.mxu0 0
        %1571 = vmatprep.subr.bf16.mxu0 0
        %1572 = vmatpush2.bf16.msra.mxu0 0
        %1573 = vmatprep.subr.bf16.mxu0 0
        %1574 = vmatpush2.bf16.msra.mxu0 0
        %1575 = vmatprep.subr.bf16.mxu0 0
        %1576 = vmatpush2.bf16.msra.mxu0 0
        %1577 = vmatprep.subr.bf16.mxu0 0
        %1578 = vmatpush2.bf16.msra.mxu0 0
        %1579 = vmatprep.subr.bf16.mxu0 0
        %1580 = vmatpush2.bf16.msra.mxu0 0
        %1581 = vmatprep.mubr.bf16.mxu0 0
        %1582 = vmatmul.mubr.bf16.gmra.mxu0 %v1544
        %v1583 = vpop.f32.mrf.mxu0
        %v1584 = vadd.f32 0.0, %v1583
        %v1585 = vpop.f32.mrf.mxu0
        %v1586 = vpop.f32.mrf.mxu0
        %v1587 = vpop.f32.mrf.mxu0
        %1588 = vdwg.mxu0
        %1589 = vrot.lane.b32.xlu0 %v1143, 112
        %v1590 = vpop.permute.xlu0 %1589
        %1591 = vrot.lane.b32.xlu0 %v1145, 112
        %v1592 = vpop.permute.xlu0 %1591
        %v1594 = vsel %vm1149, %v1590, 0
        %v1597 = vsel %vm1149, %v1592, 0
        %1599 = vmatprep.subr.bf16.mxu0 0
        %1600 = vmatpush1.bf16.xpose.msra.mxu0 0
        %1601 = vmatprep.subr.bf16.mxu0 0
        %1602 = vmatpush1.bf16.xpose.msra.mxu0 0
        %1603 = vmatprep.subr.bf16.mxu0 0
        %1604 = vmatpush1.bf16.xpose.msra.mxu0 0
        %1605 = vmatprep.subr.bf16.mxu0 0
        %1606 = vmatpush1.bf16.xpose.msra.mxu0 0
        %1607 = vmatprep.subr.bf16.mxu0 0
        %1608 = vmatpush1.bf16.xpose.msra.mxu0 0
        %1609 = vmatprep.subr.bf16.mxu0 0
        %1610 = vmatpush1.bf16.xpose.msra.mxu0 0
        %1611 = vmatprep.subr.bf16.mxu0 0
        %1612 = vmatpush1.bf16.xpose.msra.mxu0 0
        %1613 = vmatprep.subr.bf16.mxu0 0
        %1614 = vmatpush1.bf16.xpose.msra.mxu0 %v1597
        %1615 = vmatprep.subr.bf16.mxu0 0
        %1616 = vmatpush2.bf16.xpose.msra.mxu0 0
        %1617 = vmatprep.subr.bf16.mxu0 0
        %1618 = vmatpush2.bf16.xpose.msra.mxu0 0
        %1619 = vmatprep.subr.bf16.mxu0 0
        %1620 = vmatpush2.bf16.xpose.msra.mxu0 0
        %1621 = vmatprep.subr.bf16.mxu0 0
        %1622 = vmatpush2.bf16.xpose.msra.mxu0 0
        %1623 = vmatprep.subr.bf16.mxu0 0
        %1624 = vmatpush2.bf16.xpose.msra.mxu0 0
        %1625 = vmatprep.subr.bf16.mxu0 0
        %1626 = vmatpush2.bf16.xpose.msra.mxu0 0
        %1627 = vmatprep.subr.bf16.mxu0 0
        %1628 = vmatpush2.bf16.xpose.msra.mxu0 0
        %1629 = vmatprep.subr.bf16.mxu0 0
        %1630 = vmatpush2.bf16.xpose.msra.mxu0 0
        %1631 = vmatprep.mubr.bf16.mxu0 0
        %1632 = vmatmul.mubr.bf16.gmra.mxu0 %v1594
        %v1633 = vpop.f32.mrf.mxu0
        %v1634 = vadd.f32 0.0, %v1633
        %v1635 = vpop.f32.mrf.mxu0
        %v1636 = vpop.f32.mrf.mxu0
        %v1637 = vpop.f32.mrf.mxu0
        %1638 = vdwg.mxu0
        %1639 = vrot.lane.b32.xlu0 %v1144, 112
        %v1640 = vpop.permute.xlu0 %1639
        %1641 = vrot.lane.b32.xlu0 %v1146, 112
        %v1642 = vpop.permute.xlu0 %1641
        %v1644 = vsel %vm1149, %v1640, 0
        %v1647 = vsel %vm1149, %v1642, 0
        %1649 = vmatprep.subr.bf16.mxu0 0
        %1650 = vmatpush1.bf16.xpose.msra.mxu0 0
        %1651 = vmatprep.subr.bf16.mxu0 0
        %1652 = vmatpush1.bf16.xpose.msra.mxu0 0
        %1653 = vmatprep.subr.bf16.mxu0 0
        %1654 = vmatpush1.bf16.xpose.msra.mxu0 0
        %1655 = vmatprep.subr.bf16.mxu0 0
        %1656 = vmatpush1.bf16.xpose.msra.mxu0 0
        %1657 = vmatprep.subr.bf16.mxu0 0
        %1658 = vmatpush1.bf16.xpose.msra.mxu0 0
        %1659 = vmatprep.subr.bf16.mxu0 0
        %1660 = vmatpush1.bf16.xpose.msra.mxu0 0
        %1661 = vmatprep.subr.bf16.mxu0 0
        %1662 = vmatpush1.bf16.xpose.msra.mxu0 0
        %1663 = vmatprep.subr.bf16.mxu0 0
        %1664 = vmatpush1.bf16.xpose.msra.mxu0 %v1647
        %1665 = vmatprep.subr.bf16.mxu0 0
        %1666 = vmatpush2.bf16.xpose.msra.mxu0 0
        %1667 = vmatprep.subr.bf16.mxu0 0
        %1668 = vmatpush2.bf16.xpose.msra.mxu0 0
        %1669 = vmatprep.subr.bf16.mxu0 0
        %1670 = vmatpush2.bf16.xpose.msra.mxu0 0
        %1671 = vmatprep.subr.bf16.mxu0 0
        %1672 = vmatpush2.bf16.xpose.msra.mxu0 0
        %1673 = vmatprep.subr.bf16.mxu0 0
        %1674 = vmatpush2.bf16.xpose.msra.mxu0 0
        %1675 = vmatprep.subr.bf16.mxu0 0
        %1676 = vmatpush2.bf16.xpose.msra.mxu0 0
        %1677 = vmatprep.subr.bf16.mxu0 0
        %1678 = vmatpush2.bf16.xpose.msra.mxu0 0
        %1679 = vmatprep.subr.bf16.mxu0 0
        %1680 = vmatpush2.bf16.xpose.msra.mxu0 0
        %1681 = vmatprep.mubr.bf16.mxu0 0
        %1682 = vmatmul.mubr.bf16.gmra.mxu0 %v1644
        %v1683 = vpop.f32.mrf.mxu0
        %v1684 = vadd.f32 0.0, %v1683
        %v1685 = vpop.f32.mrf.mxu0
        %v1686 = vpop.f32.mrf.mxu0
        %v1687 = vpop.f32.mrf.mxu0
        %1688 = vdwg.mxu0
        %v1689 = vsel %vm1142, %v1634, -1e+30
        %v1690 = vsel %vm1142, %v1684, -1e+30
        %v1691 = vsel %vm1149, %v1689, -inf
        %1692 = vmax.xlane.f32.xlu0 %v1691
        %v1693 = vpop.xlane.xlu0 %1692
        %v1694 = vsel %vm1149, %v1690, -inf
        %1695 = vmax.xlane.f32.xlu0 %v1694
        %v1696 = vpop.xlane.xlu0 %1695
        %v1697 = vsub.f32 %v1689, %v1693
        %v1698 = vsub.f32 %v1690, %v1696
        %v1699 = vmul.f32 %v1697, 1.442695
        %v1700 = vpow.pop %v1699
        %v1701 = vmul.f32 %v1698, 1.442695
        %v1702 = vpow.pop %v1701
        %v1703 = vsel %vm1149, %v1700, 0.0
        %1704 = vadd.xlane.f32.xlu0 %v1703
        %v1705 = vpop.xlane.xlu0 %1704
        %v1706 = vsel %vm1149, %v1702, 0.0
        %1707 = vadd.xlane.f32.xlu0 %v1706
        %v1708 = vpop.xlane.xlu0 %1707
        %v1709 = vrcp.pop %v1705
        %v1710 = vmul.f32 %v1700, %v1709
        %v1711 = vrcp.pop %v1708
        %v1712 = vmul.f32 %v1702, %v1711
        %v1713 = vpack.c.bf16 %v1710, %v1710
        %v1714 = vpack.c.bf16 %v1712, %v1712
        %1715 = vrot.lane.b32.xlu0 %v1147, 112
        %v1716 = vpop.permute.xlu0 %1715
        %v1718 = vsel %vm1149, %v1713, 0
        %v1721 = vsel %vm1271, %v1716, 0
        %1723 = vmatprep.subr.bf16.mxu0 0
        %1724 = vmatpush1.bf16.msra.mxu0 0
        %1725 = vmatprep.subr.bf16.mxu0 0
        %1726 = vmatpush1.bf16.msra.mxu0 0
        %1727 = vmatprep.subr.bf16.mxu0 0
        %1728 = vmatpush1.bf16.msra.mxu0 0
        %1729 = vmatprep.subr.bf16.mxu0 0
        %1730 = vmatpush1.bf16.msra.mxu0 0
        %1731 = vmatprep.subr.bf16.mxu0 0
        %1732 = vmatpush1.bf16.msra.mxu0 0
        %1733 = vmatprep.subr.bf16.mxu0 0
        %1734 = vmatpush1.bf16.msra.mxu0 0
        %1735 = vmatprep.subr.bf16.mxu0 0
        %1736 = vmatpush1.bf16.msra.mxu0 0
        %1737 = vmatprep.subr.bf16.mxu0 0
        %1738 = vmatpush1.bf16.msra.mxu0 %v1721
        %1739 = vmatprep.subr.bf16.mxu0 0
        %1740 = vmatpush2.bf16.msra.mxu0 0
        %1741 = vmatprep.subr.bf16.mxu0 0
        %1742 = vmatpush2.bf16.msra.mxu0 0
        %1743 = vmatprep.subr.bf16.mxu0 0
        %1744 = vmatpush2.bf16.msra.mxu0 0
        %1745 = vmatprep.subr.bf16.mxu0 0
        %1746 = vmatpush2.bf16.msra.mxu0 0
        %1747 = vmatprep.subr.bf16.mxu0 0
        %1748 = vmatpush2.bf16.msra.mxu0 0
        %1749 = vmatprep.subr.bf16.mxu0 0
        %1750 = vmatpush2.bf16.msra.mxu0 0
        %1751 = vmatprep.subr.bf16.mxu0 0
        %1752 = vmatpush2.bf16.msra.mxu0 0
        %1753 = vmatprep.subr.bf16.mxu0 0
        %1754 = vmatpush2.bf16.msra.mxu0 0
        %1755 = vmatprep.mubr.bf16.mxu0 0
        %1756 = vmatmul.mubr.bf16.gmra.mxu0 %v1718
        %v1757 = vpop.f32.mrf.mxu0
        %v1758 = vadd.f32 0.0, %v1757
        %v1759 = vpop.f32.mrf.mxu0
        %v1760 = vpop.f32.mrf.mxu0
        %v1761 = vpop.f32.mrf.mxu0
        %1762 = vdwg.mxu0
        %1763 = vrot.lane.b32.xlu0 %v1148, 112
        %v1764 = vpop.permute.xlu0 %1763
        %v1766 = vsel %vm1149, %v1714, 0
        %v1769 = vsel %vm1271, %v1764, 0
        %1771 = vmatprep.subr.bf16.mxu0 0
        %1772 = vmatpush1.bf16.msra.mxu0 0
        %1773 = vmatprep.subr.bf16.mxu0 0
        %1774 = vmatpush1.bf16.msra.mxu0 0
        %1775 = vmatprep.subr.bf16.mxu0 0
        %1776 = vmatpush1.bf16.msra.mxu0 0
        %1777 = vmatprep.subr.bf16.mxu0 0
        %1778 = vmatpush1.bf16.msra.mxu0 0
        %1779 = vmatprep.subr.bf16.mxu0 0
        %1780 = vmatpush1.bf16.msra.mxu0 0
        %1781 = vmatprep.subr.bf16.mxu0 0
        %1782 = vmatpush1.bf16.msra.mxu0 0
        %1783 = vmatprep.subr.bf16.mxu0 0
        %1784 = vmatpush1.bf16.msra.mxu0 0
        %1785 = vmatprep.subr.bf16.mxu0 0
        %1786 = vmatpush1.bf16.msra.mxu0 %v1769
        %1787 = vmatprep.subr.bf16.mxu0 0
        %1788 = vmatpush2.bf16.msra.mxu0 0
        %1789 = vmatprep.subr.bf16.mxu0 0
        %1790 = vmatpush2.bf16.msra.mxu0 0
        %1791 = vmatprep.subr.bf16.mxu0 0
        %1792 = vmatpush2.bf16.msra.mxu0 0
        %1793 = vmatprep.subr.bf16.mxu0 0
        %1794 = vmatpush2.bf16.msra.mxu0 0
        %1795 = vmatprep.subr.bf16.mxu0 0
        %1796 = vmatpush2.bf16.msra.mxu0 0
        %1797 = vmatprep.subr.bf16.mxu0 0
        %1798 = vmatpush2.bf16.msra.mxu0 0
        %1799 = vmatprep.subr.bf16.mxu0 0
        %1800 = vmatpush2.bf16.msra.mxu0 0
        %1801 = vmatprep.subr.bf16.mxu0 0
        %1802 = vmatpush2.bf16.msra.mxu0 0
        %1803 = vmatprep.mubr.bf16.mxu0 0
        %1804 = vmatmul.mubr.bf16.gmra.mxu0 %v1766
        %v1805 = vpop.f32.mrf.mxu0
        %v1806 = vadd.f32 0.0, %v1805
        %v1807 = vpop.f32.mrf.mxu0
        %v1808 = vpop.f32.mrf.mxu0
        %v1809 = vpop.f32.mrf.mxu0
        %1810 = vdwg.mxu0
        %1811 = vrot.lane.b32.xlu0 %v1143, 104
        %v1812 = vpop.permute.xlu0 %1811
        %1813 = vrot.lane.b32.xlu0 %v1145, 104
        %v1814 = vpop.permute.xlu0 %1813
        %v1816 = vsel %vm1149, %v1812, 0
        %v1819 = vsel %vm1149, %v1814, 0
        %1821 = vmatprep.subr.bf16.mxu0 0
        %1822 = vmatpush1.bf16.xpose.msra.mxu0 0
        %1823 = vmatprep.subr.bf16.mxu0 0
        %1824 = vmatpush1.bf16.xpose.msra.mxu0 0
        %1825 = vmatprep.subr.bf16.mxu0 0
        %1826 = vmatpush1.bf16.xpose.msra.mxu0 0
        %1827 = vmatprep.subr.bf16.mxu0 0
        %1828 = vmatpush1.bf16.xpose.msra.mxu0 0
        %1829 = vmatprep.subr.bf16.mxu0 0
        %1830 = vmatpush1.bf16.xpose.msra.mxu0 0
        %1831 = vmatprep.subr.bf16.mxu0 0
        %1832 = vmatpush1.bf16.xpose.msra.mxu0 0
        %1833 = vmatprep.subr.bf16.mxu0 0
        %1834 = vmatpush1.bf16.xpose.msra.mxu0 0
        %1835 = vmatprep.subr.bf16.mxu0 0
        %1836 = vmatpush1.bf16.xpose.msra.mxu0 %v1819
        %1837 = vmatprep.subr.bf16.mxu0 0
        %1838 = vmatpush2.bf16.xpose.msra.mxu0 0
        %1839 = vmatprep.subr.bf16.mxu0 0
        %1840 = vmatpush2.bf16.xpose.msra.mxu0 0
        %1841 = vmatprep.subr.bf16.mxu0 0
        %1842 = vmatpush2.bf16.xpose.msra.mxu0 0
        %1843 = vmatprep.subr.bf16.mxu0 0
        %1844 = vmatpush2.bf16.xpose.msra.mxu0 0
        %1845 = vmatprep.subr.bf16.mxu0 0
        %1846 = vmatpush2.bf16.xpose.msra.mxu0 0
        %1847 = vmatprep.subr.bf16.mxu0 0
        %1848 = vmatpush2.bf16.xpose.msra.mxu0 0
        %1849 = vmatprep.subr.bf16.mxu0 0
        %1850 = vmatpush2.bf16.xpose.msra.mxu0 0
        %1851 = vmatprep.subr.bf16.mxu0 0
        %1852 = vmatpush2.bf16.xpose.msra.mxu0 0
        %1853 = vmatprep.mubr.bf16.mxu0 0
        %1854 = vmatmul.mubr.bf16.gmra.mxu0 %v1816
        %v1855 = vpop.f32.mrf.mxu0
        %v1856 = vadd.f32 0.0, %v1855
        %v1857 = vpop.f32.mrf.mxu0
        %v1858 = vpop.f32.mrf.mxu0
        %v1859 = vpop.f32.mrf.mxu0
        %1860 = vdwg.mxu0
        %1861 = vrot.lane.b32.xlu0 %v1144, 104
        %v1862 = vpop.permute.xlu0 %1861
        %1863 = vrot.lane.b32.xlu0 %v1146, 104
        %v1864 = vpop.permute.xlu0 %1863
        %v1866 = vsel %vm1149, %v1862, 0
        %v1869 = vsel %vm1149, %v1864, 0
        %1871 = vmatprep.subr.bf16.mxu0 0
        %1872 = vmatpush1.bf16.xpose.msra.mxu0 0
        %1873 = vmatprep.subr.bf16.mxu0 0
        %1874 = vmatpush1.bf16.xpose.msra.mxu0 0
        %1875 = vmatprep.subr.bf16.mxu0 0
        %1876 = vmatpush1.bf16.xpose.msra.mxu0 0
        %1877 = vmatprep.subr.bf16.mxu0 0
        %1878 = vmatpush1.bf16.xpose.msra.mxu0 0
        %1879 = vmatprep.subr.bf16.mxu0 0
        %1880 = vmatpush1.bf16.xpose.msra.mxu0 0
        %1881 = vmatprep.subr.bf16.mxu0 0
        %1882 = vmatpush1.bf16.xpose.msra.mxu0 0
        %1883 = vmatprep.subr.bf16.mxu0 0
        %1884 = vmatpush1.bf16.xpose.msra.mxu0 0
        %1885 = vmatprep.subr.bf16.mxu0 0
        %1886 = vmatpush1.bf16.xpose.msra.mxu0 %v1869
        %1887 = vmatprep.subr.bf16.mxu0 0
        %1888 = vmatpush2.bf16.xpose.msra.mxu0 0
        %1889 = vmatprep.subr.bf16.mxu0 0
        %1890 = vmatpush2.bf16.xpose.msra.mxu0 0
        %1891 = vmatprep.subr.bf16.mxu0 0
        %1892 = vmatpush2.bf16.xpose.msra.mxu0 0
        %1893 = vmatprep.subr.bf16.mxu0 0
        %1894 = vmatpush2.bf16.xpose.msra.mxu0 0
        %1895 = vmatprep.subr.bf16.mxu0 0
        %1896 = vmatpush2.bf16.xpose.msra.mxu0 0
        %1897 = vmatprep.subr.bf16.mxu0 0
        %1898 = vmatpush2.bf16.xpose.msra.mxu0 0
        %1899 = vmatprep.subr.bf16.mxu0 0
        %1900 = vmatpush2.bf16.xpose.msra.mxu0 0
        %1901 = vmatprep.subr.bf16.mxu0 0
        %1902 = vmatpush2.bf16.xpose.msra.mxu0 0
        %1903 = vmatprep.mubr.bf16.mxu0 0
        %1904 = vmatmul.mubr.bf16.gmra.mxu0 %v1866
        %v1905 = vpop.f32.mrf.mxu0
        %v1906 = vadd.f32 0.0, %v1905
        %v1907 = vpop.f32.mrf.mxu0
        %v1908 = vpop.f32.mrf.mxu0
        %v1909 = vpop.f32.mrf.mxu0
        %1910 = vdwg.mxu0
        %v1911 = vsel %vm1142, %v1856, -1e+30
        %v1912 = vsel %vm1142, %v1906, -1e+30
        %v1913 = vsel %vm1149, %v1911, -inf
        %1914 = vmax.xlane.f32.xlu0 %v1913
        %v1915 = vpop.xlane.xlu0 %1914
        %v1916 = vsel %vm1149, %v1912, -inf
        %1917 = vmax.xlane.f32.xlu0 %v1916
        %v1918 = vpop.xlane.xlu0 %1917
        %v1919 = vsub.f32 %v1911, %v1915
        %v1920 = vsub.f32 %v1912, %v1918
        %v1921 = vmul.f32 %v1919, 1.442695
        %v1922 = vpow.pop %v1921
        %v1923 = vmul.f32 %v1920, 1.442695
        %v1924 = vpow.pop %v1923
        %v1925 = vsel %vm1149, %v1922, 0.0
        %1926 = vadd.xlane.f32.xlu0 %v1925
        %v1927 = vpop.xlane.xlu0 %1926
        %v1928 = vsel %vm1149, %v1924, 0.0
        %1929 = vadd.xlane.f32.xlu0 %v1928
        %v1930 = vpop.xlane.xlu0 %1929
        %v1931 = vrcp.pop %v1927
        %v1932 = vmul.f32 %v1922, %v1931
        %v1933 = vrcp.pop %v1930
        %v1934 = vmul.f32 %v1924, %v1933
        %v1935 = vpack.c.bf16 %v1932, %v1932
        %v1936 = vpack.c.bf16 %v1934, %v1934
        %1937 = vrot.lane.b32.xlu0 %v1147, 104
        %v1938 = vpop.permute.xlu0 %1937
        %v1940 = vsel %vm1149, %v1935, 0
        %v1943 = vsel %vm1271, %v1938, 0
        %1945 = vmatprep.subr.bf16.mxu0 0
        %1946 = vmatpush1.bf16.msra.mxu0 0
        %1947 = vmatprep.subr.bf16.mxu0 0
        %1948 = vmatpush1.bf16.msra.mxu0 0
        %1949 = vmatprep.subr.bf16.mxu0 0
        %1950 = vmatpush1.bf16.msra.mxu0 0
        %1951 = vmatprep.subr.bf16.mxu0 0
        %1952 = vmatpush1.bf16.msra.mxu0 0
        %1953 = vmatprep.subr.bf16.mxu0 0
        %1954 = vmatpush1.bf16.msra.mxu0 0
        %1955 = vmatprep.subr.bf16.mxu0 0
        %1956 = vmatpush1.bf16.msra.mxu0 0
        %1957 = vmatprep.subr.bf16.mxu0 0
        %1958 = vmatpush1.bf16.msra.mxu0 0
        %1959 = vmatprep.subr.bf16.mxu0 0
        %1960 = vmatpush1.bf16.msra.mxu0 %v1943
        %1961 = vmatprep.subr.bf16.mxu0 0
        %1962 = vmatpush2.bf16.msra.mxu0 0
        %1963 = vmatprep.subr.bf16.mxu0 0
        %1964 = vmatpush2.bf16.msra.mxu0 0
        %1965 = vmatprep.subr.bf16.mxu0 0
        %1966 = vmatpush2.bf16.msra.mxu0 0
        %1967 = vmatprep.subr.bf16.mxu0 0
        %1968 = vmatpush2.bf16.msra.mxu0 0
        %1969 = vmatprep.subr.bf16.mxu0 0
        %1970 = vmatpush2.bf16.msra.mxu0 0
        %1971 = vmatprep.subr.bf16.mxu0 0
        %1972 = vmatpush2.bf16.msra.mxu0 0
        %1973 = vmatprep.subr.bf16.mxu0 0
        %1974 = vmatpush2.bf16.msra.mxu0 0
        %1975 = vmatprep.subr.bf16.mxu0 0
        %1976 = vmatpush2.bf16.msra.mxu0 0
        %1977 = vmatprep.mubr.bf16.mxu0 0
        %1978 = vmatmul.mubr.bf16.gmra.mxu0 %v1940
        %v1979 = vpop.f32.mrf.mxu0
        %v1980 = vadd.f32 0.0, %v1979
        %v1981 = vpop.f32.mrf.mxu0
        %v1982 = vpop.f32.mrf.mxu0
        %v1983 = vpop.f32.mrf.mxu0
        %1984 = vdwg.mxu0
        %1985 = vrot.lane.b32.xlu0 %v1148, 104
        %v1986 = vpop.permute.xlu0 %1985
        %v1988 = vsel %vm1149, %v1936, 0
        %v1991 = vsel %vm1271, %v1986, 0
        %1993 = vmatprep.subr.bf16.mxu0 0
        %1994 = vmatpush1.bf16.msra.mxu0 0
        %1995 = vmatprep.subr.bf16.mxu0 0
        %1996 = vmatpush1.bf16.msra.mxu0 0
        %1997 = vmatprep.subr.bf16.mxu0 0
        %1998 = vmatpush1.bf16.msra.mxu0 0
        %1999 = vmatprep.subr.bf16.mxu0 0
        %2000 = vmatpush1.bf16.msra.mxu0 0
        %2001 = vmatprep.subr.bf16.mxu0 0
        %2002 = vmatpush1.bf16.msra.mxu0 0
        %2003 = vmatprep.subr.bf16.mxu0 0
        %2004 = vmatpush1.bf16.msra.mxu0 0
        %2005 = vmatprep.subr.bf16.mxu0 0
        %2006 = vmatpush1.bf16.msra.mxu0 0
        %2007 = vmatprep.subr.bf16.mxu0 0
        %2008 = vmatpush1.bf16.msra.mxu0 %v1991
        %2009 = vmatprep.subr.bf16.mxu0 0
        %2010 = vmatpush2.bf16.msra.mxu0 0
        %2011 = vmatprep.subr.bf16.mxu0 0
        %2012 = vmatpush2.bf16.msra.mxu0 0
        %2013 = vmatprep.subr.bf16.mxu0 0
        %2014 = vmatpush2.bf16.msra.mxu0 0
        %2015 = vmatprep.subr.bf16.mxu0 0
        %2016 = vmatpush2.bf16.msra.mxu0 0
        %2017 = vmatprep.subr.bf16.mxu0 0
        %2018 = vmatpush2.bf16.msra.mxu0 0
        %2019 = vmatprep.subr.bf16.mxu0 0
        %2020 = vmatpush2.bf16.msra.mxu0 0
        %2021 = vmatprep.subr.bf16.mxu0 0
        %2022 = vmatpush2.bf16.msra.mxu0 0
        %2023 = vmatprep.subr.bf16.mxu0 0
        %2024 = vmatpush2.bf16.msra.mxu0 0
        %2025 = vmatprep.mubr.bf16.mxu0 0
        %2026 = vmatmul.mubr.bf16.gmra.mxu0 %v1988
        %v2027 = vpop.f32.mrf.mxu0
        %v2028 = vadd.f32 0.0, %v2027
        %v2029 = vpop.f32.mrf.mxu0
        %v2030 = vpop.f32.mrf.mxu0
        %v2031 = vpop.f32.mrf.mxu0
        %2032 = vdwg.mxu0
        %2035 = vrot.lane.b32.xlu0 %v1535, 8
        %v2036 = vpop.permute.xlu0 %2035
        %2037 = vrot.lane.b32.xlu0 %v1584, 8
        %v2038 = vpop.permute.xlu0 %2037
        %2043 = vrot.lane.b32.xlu0 %v1758, 16
        %v2044 = vpop.permute.xlu0 %2043
        %2045 = vrot.lane.b32.xlu0 %v1806, 16
        %v2046 = vpop.permute.xlu0 %2045
        %2051 = vrot.lane.b32.xlu0 %v1980, 24
        %v2052 = vpop.permute.xlu0 %2051
        %2053 = vrot.lane.b32.xlu0 %v2028, 24
        %v2054 = vpop.permute.xlu0 %2053
        %v2057 = vsel %vm1149, %v1310, %v2036
        %v2058 = vsel %vm1149, %v1356, %v2038
        %vm2059 = vcmask 130048
        %v2060 = vsel %vm2059, %v2057, %v2044
        %v2061 = vsel %vm2059, %v2058, %v2046
        %vm2062 = vcmask 195584
        %v2063 = vsel %vm2062, %v2060, %v2052
        %v2064 = vsel %vm2062, %v2061, %v2054
        %v2065 = vld [vmem:[%s736] sm:$0xf]
        %v2066 = vld [vmem:[%s736 + $0x4] sm:$0xf]
        %v2067 = vld [vmem:[%s736 + $0x8] sm:$0xf]
        %v2068 = vld [vmem:[%s736 + $0xc] sm:$0xf]
        %v2069 = vpack.c.bf16 %v2064, %v2063
        %v2074 = vunpack.c.l.b16 %v2065
        %v2075 = vunpack.c.l.b16 %v2066
        %v2076 = vunpack.c.l.b16 %v2067
        %v2077 = vunpack.c.l.b16 %v2068
        %v2078 = vpack.c.b16 %v2075, %v2074
        %v2079 = vpack.c.b16 %v2077, %v2076
        %vm2082 = vcmask 261120
        %v2084 = vsel %vm2082, %v2069, 0
        %2086 = vmatprep.subr.bf16.mxu0 0
        %2087 = vmatpush1.bf16.msra.mxu0 0
        %2088 = vmatprep.subr.bf16.mxu0 0
        %2089 = vmatpush1.bf16.msra.mxu0 0
        %2090 = vmatprep.subr.bf16.mxu0 0
        %2091 = vmatpush1.bf16.msra.mxu0 0
        %2092 = vmatprep.subr.bf16.mxu0 0
        %2093 = vmatpush1.bf16.msra.mxu0 0
        %2094 = vmatprep.subr.bf16.mxu0 0
        %2095 = vmatpush1.bf16.msra.mxu0 0
        %2096 = vmatprep.subr.bf16.mxu0 0
        %2097 = vmatpush1.bf16.msra.mxu0 0
        %2098 = vmatprep.subr.bf16.mxu0 0
        %2099 = vmatpush1.bf16.msra.mxu0 %v2079
        %2100 = vmatprep.subr.bf16.mxu0 0
        %2101 = vmatpush1.bf16.msra.mxu0 %v2078
        %2102 = vmatprep.subr.bf16.mxu0 0
        %2103 = vmatpush2.bf16.msra.mxu0 0
        %2104 = vmatprep.subr.bf16.mxu0 0
        %2105 = vmatpush2.bf16.msra.mxu0 0
        %2106 = vmatprep.subr.bf16.mxu0 0
        %2107 = vmatpush2.bf16.msra.mxu0 0
        %2108 = vmatprep.subr.bf16.mxu0 0
        %2109 = vmatpush2.bf16.msra.mxu0 0
        %2110 = vmatprep.subr.bf16.mxu0 0
        %2111 = vmatpush2.bf16.msra.mxu0 0
        %2112 = vmatprep.subr.bf16.mxu0 0
        %2113 = vmatpush2.bf16.msra.mxu0 0
        %2114 = vmatprep.subr.bf16.mxu0 0
        %2115 = vmatpush2.bf16.msra.mxu0 0
        %2116 = vmatprep.subr.bf16.mxu0 0
        %2117 = vmatpush2.bf16.msra.mxu0 0
        %2118 = vmatprep.mubr.bf16.mxu0 0
        %2119 = vmatmul.mubr.bf16.gmra.mxu0 %v2084
        %v2120 = vpop.f32.mrf.mxu0
        %v2121 = vadd.f32 0.0, %v2120
        %v2122 = vpop.f32.mrf.mxu0
        %v2123 = vpop.f32.mrf.mxu0
        %v2124 = vadd.f32 0.0, %v2123
        %v2125 = vpop.f32.mrf.mxu0
        %2126 = vdwg.mxu0
        %v2127 = vadd.f32 %v777, %v2121
        %v2128 = vadd.f32 %v778, %v2124
        %v2129 = vld [vmem:[%s739] sm:$0x1]
        %v2131 = vlaneseq
        %v2132 = vshrl.u32 %v2131, 7
        %v2133 = vsub.s32 0, %v2132
        %v2134 = vrot.slane %v2129, %v2133
        %v2136 = vadd.f32 %v2127, %v2134
        %v2137 = vadd.f32 %v2128, %v2134
        %v2138 = vld [vmem:[%s742] sm:$0x1]
        %v2139 = vld [vmem:[%s745] sm:$0x1]
        %2140 = vadd.xlane.f32.xlu0 %v2136
        %v2141 = vpop.xlane.xlu0 %2140
        %2142 = vadd.xlane.f32.xlu0 %v2137
        %v2143 = vpop.xlane.xlu0 %2142
        %v2144 = vmul.f32 %v2136, %v2136
        %v2145 = vmul.f32 %v2137, %v2137
        %2146 = vadd.xlane.f32.xlu0 %v2144
        %v2147 = vpop.xlane.xlu0 %2146
        %2148 = vadd.xlane.f32.xlu0 %v2145
        %v2149 = vpop.xlane.xlu0 %2148
        %v2150 = vmul.f32 %v2141, %v791
        %v2151 = vmul.f32 %v2143, %v791
        %v2152 = vmul.f32 %v2147, %v791
        %v2153 = vmul.f32 %v2149, %v791
        %v2154 = vmul.f32 %v2150, %v2150
        %v2155 = vmul.f32 %v2151, %v2151
        %v2156 = vsub.f32 %v2152, %v2154
        %v2157 = vsub.f32 %v2153, %v2155
        %v2158 = vsub.f32 %v2136, %v2150
        %v2159 = vsub.f32 %v2137, %v2151
        %v2160 = vadd.f32 %v2156, 1e-05
        %v2161 = vadd.f32 %v2157, 1e-05
        %v2162 = vrsqrt.pop %v2160
        %v2163 = vrsqrt.pop %v2161
        %v2164 = vmul.f32 %v2158, %v2162
        %v2165 = vmul.f32 %v2159, %v2163
        %v2167 = vlaneseq
        %v2168 = vshrl.u32 %v2167, 7
        %v2169 = vsub.s32 0, %v2168
        %v2170 = vrot.slane %v2138, %v2169
        %v2172 = vmul.f32 %v2164, %v2170
        %v2173 = vmul.f32 %v2165, %v2170
        %v2175 = vlaneseq
        %v2176 = vshrl.u32 %v2175, 7
        %v2177 = vsub.s32 0, %v2176
        %v2178 = vrot.slane %v2139, %v2177
        %v2180 = vadd.f32 %v2172, %v2178
        %v2181 = vadd.f32 %v2173, %v2178
        %v2182 = vpack.c.bf16 %v2181, %v2180
        %v2183 = vld [vmem:[%s750] sm:$0xf]
        %v2184 = vld [vmem:[%s750 + $0x4] sm:$0xf]
        %v2185 = vld [vmem:[%s750 + $0x8] sm:$0xf]
        %v2186 = vld [vmem:[%s750 + $0xc] sm:$0xf]
        %v2187 = vld [vmem:[%s750 + $0x10] sm:$0xf]
        %v2188 = vld [vmem:[%s750 + $0x14] sm:$0xf]
        %v2189 = vld [vmem:[%s750 + $0x18] sm:$0xf]
        %v2190 = vld [vmem:[%s750 + $0x1c] sm:$0xf]
        %v2191 = vld [vmem:[%s750 + $0x20] sm:$0xf]
        %v2192 = vld [vmem:[%s750 + $0x24] sm:$0xf]
        %v2193 = vld [vmem:[%s750 + $0x28] sm:$0xf]
        %v2194 = vld [vmem:[%s750 + $0x2c] sm:$0xf]
        %v2195 = vld [vmem:[%s750 + $0x30] sm:$0xf]
        %v2196 = vld [vmem:[%s750 + $0x34] sm:$0xf]
        %v2197 = vld [vmem:[%s750 + $0x38] sm:$0xf]
        %v2198 = vld [vmem:[%s750 + $0x3c] sm:$0xf]
        %v2199 = vld [vmem:[%s753] sm:$0x1]
        %v2201 = vlaneseq
        %v2202 = vshrl.u32 %v2201, 7
        %v2203 = vsub.s32 0, %v2202
        %v2204 = vrot.slane %v2199, %v2203
        %v2222 = vunpack.c.l.b16 %v2183
        %v2223 = vunpack.c.l.b16 %v2184
        %v2224 = vunpack.c.l.b16 %v2185
        %v2225 = vunpack.c.l.b16 %v2186
        %v2226 = vunpack.c.l.b16 %v2187
        %v2227 = vunpack.c.l.b16 %v2188
        %v2228 = vunpack.c.l.b16 %v2189
        %v2229 = vunpack.c.l.b16 %v2190
        %v2230 = vunpack.c.l.b16 %v2191
        %v2231 = vunpack.c.l.b16 %v2192
        %v2232 = vunpack.c.l.b16 %v2193
        %v2233 = vunpack.c.l.b16 %v2194
        %v2234 = vunpack.c.l.b16 %v2195
        %v2235 = vunpack.c.l.b16 %v2196
        %v2236 = vunpack.c.l.b16 %v2197
        %v2237 = vunpack.c.l.b16 %v2198
        %v2238 = vpack.c.b16 %v2223, %v2222
        %v2239 = vpack.c.b16 %v2225, %v2224
        %v2240 = vpack.c.b16 %v2227, %v2226
        %v2241 = vpack.c.b16 %v2229, %v2228
        %v2242 = vpack.c.b16 %v2231, %v2230
        %v2243 = vpack.c.b16 %v2233, %v2232
        %v2244 = vpack.c.b16 %v2235, %v2234
        %v2245 = vpack.c.b16 %v2237, %v2236
        %2254 = vmatprep.subr.bf16.mxu0 0
        %2255 = vmatpush1.bf16.msra.mxu0 %v2245
        %2256 = vmatprep.subr.bf16.mxu0 0
        %2257 = vmatpush1.bf16.msra.mxu0 %v2244
        %2258 = vmatprep.subr.bf16.mxu0 0
        %2259 = vmatpush1.bf16.msra.mxu0 %v2243
        %2260 = vmatprep.subr.bf16.mxu0 0
        %2261 = vmatpush1.bf16.msra.mxu0 %v2242
        %2262 = vmatprep.subr.bf16.mxu0 0
        %2263 = vmatpush1.bf16.msra.mxu0 %v2241
        %2264 = vmatprep.subr.bf16.mxu0 0
        %2265 = vmatpush1.bf16.msra.mxu0 %v2240
        %2266 = vmatprep.subr.bf16.mxu0 0
        %2267 = vmatpush1.bf16.msra.mxu0 %v2239
        %2268 = vmatprep.subr.bf16.mxu0 0
        %2269 = vmatpush1.bf16.msra.mxu0 %v2238
        %2270 = vmatprep.subr.bf16.mxu0 0
        %2271 = vmatpush2.bf16.msra.mxu0 0
        %2272 = vmatprep.subr.bf16.mxu0 0
        %2273 = vmatpush2.bf16.msra.mxu0 0
        %2274 = vmatprep.subr.bf16.mxu0 0
        %2275 = vmatpush2.bf16.msra.mxu0 0
        %2276 = vmatprep.subr.bf16.mxu0 0
        %2277 = vmatpush2.bf16.msra.mxu0 0
        %2278 = vmatprep.subr.bf16.mxu0 0
        %2279 = vmatpush2.bf16.msra.mxu0 0
        %2280 = vmatprep.subr.bf16.mxu0 0
        %2281 = vmatpush2.bf16.msra.mxu0 0
        %2282 = vmatprep.subr.bf16.mxu0 0
        %2283 = vmatpush2.bf16.msra.mxu0 0
        %2284 = vmatprep.subr.bf16.mxu0 0
        %2285 = vmatpush2.bf16.msra.mxu0 0
        %2286 = vmatprep.mubr.bf16.mxu0 0
        %2287 = vmatmul.mubr.bf16.gmra.mxu0 %v2182
        %v2288 = vpop.f32.mrf.mxu0
        %v2289 = vadd.f32 %v2204, %v2288
        %v2290 = vpop.f32.mrf.mxu0
        %v2291 = vpop.f32.mrf.mxu0
        %v2292 = vadd.f32 %v2204, %v2291
        %v2293 = vpop.f32.mrf.mxu0
        %2294 = vdwg.mxu0
        %v2295 = vmul.f32 %v2289, 0.5
        %v2296 = vmul.f32 %v2292, 0.5
        %v2297 = vmul.f32 %v2289, 0.70710677
        %v2298 = vmul.f32 %v2292, 0.70710677
        %v2299 = verf.f32.pop %v2297
        %v2300 = verf.f32.pop %v2298
        %v2301 = vadd.f32 %v2299, 1.0
        %v2302 = vadd.f32 %v2300, 1.0
        %v2303 = vmul.f32 %v2295, %v2301
        %v2304 = vmul.f32 %v2296, %v2302
        %v2305 = vld [vmem:[%s758] sm:$0xf]
        %v2306 = vld [vmem:[%s758 + $0x4] sm:$0xf]
        %v2307 = vld [vmem:[%s758 + $0x8] sm:$0xf]
        %v2308 = vld [vmem:[%s758 + $0xc] sm:$0xf]
        %v2309 = vld [vmem:[%s758 + $0x10] sm:$0xf]
        %v2310 = vld [vmem:[%s758 + $0x14] sm:$0xf]
        %v2311 = vld [vmem:[%s758 + $0x18] sm:$0xf]
        %v2312 = vld [vmem:[%s758 + $0x1c] sm:$0xf]
        %v2313 = vld [vmem:[%s758 + $0x20] sm:$0xf]
        %v2314 = vld [vmem:[%s758 + $0x24] sm:$0xf]
        %v2315 = vld [vmem:[%s758 + $0x28] sm:$0xf]
        %v2316 = vld [vmem:[%s758 + $0x2c] sm:$0xf]
        %v2317 = vld [vmem:[%s758 + $0x30] sm:$0xf]
        %v2318 = vld [vmem:[%s758 + $0x34] sm:$0xf]
        %v2319 = vld [vmem:[%s758 + $0x38] sm:$0xf]
        %v2320 = vld [vmem:[%s758 + $0x3c] sm:$0xf]
        %v2321 = vpack.c.bf16 %v2304, %v2303
        %v2338 = vunpack.c.l.b16 %v2305
        %v2339 = vunpack.c.l.b16 %v2306
        %v2340 = vunpack.c.l.b16 %v2307
        %v2341 = vunpack.c.l.b16 %v2308
        %v2342 = vunpack.c.l.b16 %v2309
        %v2343 = vunpack.c.l.b16 %v2310
        %v2344 = vunpack.c.l.b16 %v2311
        %v2345 = vunpack.c.l.b16 %v2312
        %v2346 = vunpack.c.l.b16 %v2313
        %v2347 = vunpack.c.l.b16 %v2314
        %v2348 = vunpack.c.l.b16 %v2315
        %v2349 = vunpack.c.l.b16 %v2316
        %v2350 = vunpack.c.l.b16 %v2317
        %v2351 = vunpack.c.l.b16 %v2318
        %v2352 = vunpack.c.l.b16 %v2319
        %v2353 = vunpack.c.l.b16 %v2320
        %v2354 = vpack.c.b16 %v2339, %v2338
        %v2355 = vpack.c.b16 %v2341, %v2340
        %v2356 = vpack.c.b16 %v2343, %v2342
        %v2357 = vpack.c.b16 %v2345, %v2344
        %v2358 = vpack.c.b16 %v2347, %v2346
        %v2359 = vpack.c.b16 %v2349, %v2348
        %v2360 = vpack.c.b16 %v2351, %v2350
        %v2361 = vpack.c.b16 %v2353, %v2352
        %2370 = vmatprep.subr.bf16.mxu0 0
        %2371 = vmatpush1.bf16.msra.mxu0 %v2361
        %2372 = vmatprep.subr.bf16.mxu0 0
        %2373 = vmatpush1.bf16.msra.mxu0 %v2360
        %2374 = vmatprep.subr.bf16.mxu0 0
        %2375 = vmatpush1.bf16.msra.mxu0 %v2359
        %2376 = vmatprep.subr.bf16.mxu0 0
        %2377 = vmatpush1.bf16.msra.mxu0 %v2358
        %2378 = vmatprep.subr.bf16.mxu0 0
        %2379 = vmatpush1.bf16.msra.mxu0 %v2357
        %2380 = vmatprep.subr.bf16.mxu0 0
        %2381 = vmatpush1.bf16.msra.mxu0 %v2356
        %2382 = vmatprep.subr.bf16.mxu0 0
        %2383 = vmatpush1.bf16.msra.mxu0 %v2355
        %2384 = vmatprep.subr.bf16.mxu0 0
        %2385 = vmatpush1.bf16.msra.mxu0 %v2354
        %2386 = vmatprep.subr.bf16.mxu0 0
        %2387 = vmatpush2.bf16.msra.mxu0 0
        %2388 = vmatprep.subr.bf16.mxu0 0
        %2389 = vmatpush2.bf16.msra.mxu0 0
        %2390 = vmatprep.subr.bf16.mxu0 0
        %2391 = vmatpush2.bf16.msra.mxu0 0
        %2392 = vmatprep.subr.bf16.mxu0 0
        %2393 = vmatpush2.bf16.msra.mxu0 0
        %2394 = vmatprep.subr.bf16.mxu0 0
        %2395 = vmatpush2.bf16.msra.mxu0 0
        %2396 = vmatprep.subr.bf16.mxu0 0
        %2397 = vmatpush2.bf16.msra.mxu0 0
        %2398 = vmatprep.subr.bf16.mxu0 0
        %2399 = vmatpush2.bf16.msra.mxu0 0
        %2400 = vmatprep.subr.bf16.mxu0 0
        %2401 = vmatpush2.bf16.msra.mxu0 0
        %2402 = vmatprep.mubr.bf16.mxu0 0
        %2403 = vmatmul.mubr.bf16.gmra.mxu0 %v2321
        %v2404 = vpop.f32.mrf.mxu0
        %v2405 = vadd.f32 0.0, %v2404
        %v2406 = vpop.f32.mrf.mxu0
        %v2407 = vpop.f32.mrf.mxu0
        %v2408 = vadd.f32 0.0, %v2407
        %v2409 = vpop.f32.mrf.mxu0
        %2410 = vdwg.mxu0
        %v2411 = vadd.f32 %v2136, %v2405
        %v2412 = vadd.f32 %v2137, %v2408
        %v2413 = vld [vmem:[%s761] sm:$0x1]
        %v2415 = vlaneseq
        %v2416 = vshrl.u32 %v2415, 7
        %v2417 = vsub.s32 0, %v2416
        %v2418 = vrot.slane %v2413, %v2417
        %v2420 = vadd.f32 %v2411, %v2418
        %v2421 = vadd.f32 %v2412, %v2418
        %p2422 = scmp.lt.s32.totalorder %s33, 1
        // Predicated region
        $region93: #{vivit_model_forward.4} parent=83 // pred_check
          %p2423 = pneg %p2422
        $region94: #{vivit_model_forward.4} parent=83 // pred_check_branch
          %2425 = sbr.rel (%p2423) target = $region96
        $region95: #{vivit_model_forward.4} parent=83 // pred_region
          %2426 = vst [vmem:[%s766] sm:$0xff] %v2420
          %2427 = vst [vmem:[%s766 + $0x8] sm:$0xff] %v2421
        $region96: #{vivit_model_forward.4} parent=83 // pred_fallthru
          _
        %p2428 = scmp.eq.s32.totalorder %s33, 1
        // Predicated region
        $region97: #{vivit_model_forward.4} parent=83 // pred_check
          %p2429 = pneg %p2428
        $region98: #{vivit_model_forward.4} parent=83 // pred_check_branch
          %2431 = sbr.rel (%p2429) target = $region100
        $region99: #{vivit_model_forward.4} parent=83 // pred_region
          %v2432 = vld [vmem:[%s14] sm:$0x1]
          %v2433 = vld [vmem:[#allocation2] sm:$0x1]
          %2434 = vadd.xlane.f32.xlu0 %v2420
          %v2435 = vpop.xlane.xlu0 %2434
          %2436 = vadd.xlane.f32.xlu0 %v2421
          %v2437 = vpop.xlane.xlu0 %2436
          %v2438 = vmul.f32 %v2420, %v2420
          %v2439 = vmul.f32 %v2421, %v2421
          %2440 = vadd.xlane.f32.xlu0 %v2438
          %v2441 = vpop.xlane.xlu0 %2440
          %2442 = vadd.xlane.f32.xlu0 %v2439
          %v2443 = vpop.xlane.xlu0 %2442
          %v2444 = vmul.f32 %v2435, %v791
          %v2445 = vmul.f32 %v2437, %v791
          %v2446 = vmul.f32 %v2441, %v791
          %v2447 = vmul.f32 %v2443, %v791
          %v2448 = vmul.f32 %v2444, %v2444
          %v2449 = vmul.f32 %v2445, %v2445
          %v2450 = vsub.f32 %v2446, %v2448
          %v2451 = vsub.f32 %v2447, %v2449
          %v2452 = vsub.f32 %v2420, %v2444
          %v2453 = vsub.f32 %v2421, %v2445
          %v2454 = vadd.f32 %v2450, 1e-05
          %v2455 = vadd.f32 %v2451, 1e-05
          %v2456 = vrsqrt.pop %v2454
          %v2457 = vrsqrt.pop %v2455
          %v2458 = vmul.f32 %v2452, %v2456
          %v2459 = vmul.f32 %v2453, %v2457
          %v2461 = vlaneseq
          %v2462 = vshrl.u32 %v2461, 7
          %v2463 = vsub.s32 0, %v2462
          %v2464 = vrot.slane %v2432, %v2463
          %v2466 = vmul.f32 %v2458, %v2464
          %v2467 = vmul.f32 %v2459, %v2464
          %v2469 = vlaneseq
          %v2470 = vshrl.u32 %v2469, 7
          %v2471 = vsub.s32 0, %v2470
          %v2472 = vrot.slane %v2433, %v2471
          %v2474 = vadd.f32 %v2466, %v2472
          %v2475 = vadd.f32 %v2467, %v2472
          %2476 = vst [vmem:[%s766] sm:$0xff] %v2474
          %2477 = vst [vmem:[%s766 + $0x8] sm:$0xff] %v2475
        $region100: #{vivit_model_forward.4} parent=83 // pred_fallthru
          _
        %s2478 = smul.u32 2, %s32
        %p2479 = scmp.lt.s32.totalorder %s2478, 3
        %s2480 = scalar_select %p2479, %s2478, 3
        %s2481 = smul.addr %s2480, 8
        %s2482 = scalar_lea.vmem %s16, %s2481
        // Predicated region
        $region101: #{vivit_model_forward.4} parent=83 // pred_check
          %p2483 = pneg %p464
        $region102: #{vivit_model_forward.4} parent=83 // pred_check_branch
          %2485 = sbr.rel (%p2483) target = $region104
        $region103: #{vivit_model_forward.4} parent=83 // pred_region
          %s2486 = smul.u32 2, %s32
        $region104: #{vivit_model_forward.4} parent=83 // pred_fallthru
          _
      $region84: #{vivit_model_forward.4} parent=5 // pred_fallthru
        _
      %p2487 = scmp.le.s32.totalorder 2, %s23
      // Predicated region
      $region105: #{vivit_model_forward.4} parent=5 // pred_check
        %p2488 = pneg %p2487
      $region106: #{vivit_model_forward.4} parent=5 // pred_check_branch
        %2490 = sbr.rel (%p2488) target = $region108
      $region107: #{vivit_model_forward.4} parent=5 // pred_region
        %s2491 = ssub.s32 %s23, 2
        // Predicated region
        $region109: #{vivit_model_forward.4} parent=107 // pred_check
          %p2492 = pneg %p470
        $region110: #{vivit_model_forward.4} parent=107 // pred_check_branch
          %2494 = sbr.rel (%p2492) target = $region112
        $region111: #{vivit_model_forward.4} parent=107 // pred_region
          %s2495 = smul.u32 2, %s34
          %p2496 = scmp.lt.s32.totalorder %s2495, 3
          %s2497 = scalar_select %p2496, %s2495, 3
          %s2498 = smul.addr %s2497, 8
          %s2499 = scalar_lea.vmem %s16, %s2498
        $region112: #{vivit_model_forward.4} parent=107 // pred_fallthru
          _
      $region108: #{vivit_model_forward.4} parent=5 // pred_fallthru
        _
    $region6: #{vivit_model_forward.4} parent=1 // loop_footer
      %s27 = sadd.s32 1, %s23
    $region7: #{vivit_model_forward.4} parent=1 // loop_footer_branch
      %22 = sbr.rel target = $region3
    $region8: #{vivit_model_forward.4} parent=1 // loop_exit
      _
    %2500 = vsyncpa [#allocation3], 1
    %s2501 = scalar_lea.sflag [#allocation3], 1
    %2502 = vsyncpa %s2501, 1

// kernel: vivit_model_forward.5
$region0: #{vivit_model_forward.5}
  #allocation0 [shape = 'u32[]', space=smem, size = 0x4, offset = 0x4, fixed_abs, tag = 'smem constant byte address 0x4 - core index']
  #allocation1 [shape = 'u32[144,128]{1,0:T(1,128)}', space=vmem, size = 0x12000, scoped, tag = 'internal scratch']
  %s0 = inlined_call_operand.vmem [shape: f32[16,128], index: 0, kind: input, shape index: {}]
  %s1 = inlined_call_operand.vmem [shape: f32[2,1,128], index: 1, kind: input, shape index: {}]
  %s2 = inlined_call_operand.vmem [shape: f32[2,1,128], index: 2, kind: input, shape index: {}]
  %s3 = inlined_call_operand.vmem [shape: bf16[2,128,32], index: 3, kind: input, shape index: {}]
  %s4 = inlined_call_operand.vmem [shape: bf16[2,128,32], index: 4, kind: input, shape index: {}]
  %s5 = inlined_call_operand.vmem [shape: bf16[2,128,32], index: 5, kind: input, shape index: {}]
  %s6 = inlined_call_operand.vmem [shape: bf16[2,32,128], index: 6, kind: input, shape index: {}]
  %s7 = inlined_call_operand.vmem [shape: f32[2,1,128], index: 7, kind: input, shape index: {}]
  %s8 = inlined_call_operand.vmem [shape: f32[2,1,128], index: 8, kind: input, shape index: {}]
  %s9 = inlined_call_operand.vmem [shape: f32[2,1,128], index: 9, kind: input, shape index: {}]
  %s10 = inlined_call_operand.vmem [shape: bf16[2,128,128], index: 10, kind: input, shape index: {}]
  %s11 = inlined_call_operand.vmem [shape: f32[2,1,128], index: 11, kind: input, shape index: {}]
  %s12 = inlined_call_operand.vmem [shape: bf16[2,128,128], index: 12, kind: input, shape index: {}]
  %s13 = inlined_call_operand.vmem [shape: f32[2,1,128], index: 13, kind: input, shape index: {}]
  %s14 = inlined_call_operand.vmem [shape: f32[1,128], index: 14, kind: input, shape index: {}]
  %s15 = inlined_call_operand.vmem [shape: f32[1,128], index: 15, kind: input, shape index: {}]
  %s16 = inlined_call_operand.vmem [shape: f32[16,128], index: 16, kind: output, shape index: {}]
  %s17 = sld [smem:[#allocation0]]
  $region109: #{vivit_model_forward.5} parent=0
    _
  %s19 = ssub.s32 1, %s17
  %s20 = scalar_select 0, %s19, %s17
  loop: start=0, step=1, limit=6
  $region2: #{vivit_model_forward.5} parent=0 // loop_pre_header
    _
  $region3: #{vivit_model_forward.5} parent=0 // loop_header
    %s22 = sphi 0, %s26
    %p23 = scmp.ge.s32.totalorder %s22, 6
    %s29 = sphi 0, %s41
    %s30 = sphi 0, %s37
    %s31 = sphi 0, %s29
    %s32 = sphi 0, %s30
    %s33 = sphi 0, %s31
    %s34 = sphi 0, %s32
    %s44 = sphi 0, %s46
    %s47 = sphi 0, %s44
    %s48 = sphi 0, %s47
    %s64 = sphi 0, %s48
    %s70 = sphi 0, %s72
    %s73 = sphi 0, %s70
    %s74 = sphi 0, %s73
    %s90 = sphi 0, %s74
    %s96 = sphi 0, %s98
    %s99 = sphi 0, %s96
    %s100 = sphi 0, %s99
    %s116 = sphi 0, %s100
    %s122 = sphi 0, %s124
    %s125 = sphi 0, %s122
    %s126 = sphi 0, %s125
    %s142 = sphi 0, %s126
    %s148 = sphi 0, %s150
    %s151 = sphi 0, %s148
    %s152 = sphi 0, %s151
    %s168 = sphi 0, %s152
    %s174 = sphi 0, %s176
    %s177 = sphi 0, %s174
    %s178 = sphi 0, %s177
    %s194 = sphi 0, %s178
    %s200 = sphi 0, %s202
    %s203 = sphi 0, %s200
    %s204 = sphi 0, %s203
    %s220 = sphi 0, %s204
    %s226 = sphi 0, %s228
    %s229 = sphi 0, %s226
    %s230 = sphi 0, %s229
    %s246 = sphi 0, %s230
    %s252 = sphi 0, %s254
    %s255 = sphi 0, %s252
    %s256 = sphi 0, %s255
    %s272 = sphi 0, %s256
    %s278 = sphi 0, %s280
    %s281 = sphi 0, %s278
    %s282 = sphi 0, %s281
    %s298 = sphi 0, %s282
    %s304 = sphi 0, %s306
    %s307 = sphi 0, %s304
    %s308 = sphi 0, %s307
    %s324 = sphi 0, %s308
    %s330 = sphi 0, %s332
    %s333 = sphi 0, %s330
    %s334 = sphi 0, %s333
    %s350 = sphi 0, %s334
    %s356 = sphi 0, %s358
    %s359 = sphi 0, %s356
    %s360 = sphi 0, %s359
    %s376 = sphi 0, %s360
    %s382 = sphi 0, %s384
    %s385 = sphi 0, %s382
    %s386 = sphi 0, %s385
    %s402 = sphi 0, %s386
    %s406 = sphi 0, %s406
    %s408 = sphi 0, %s406
    %s409 = sphi 0, %s408
    %s423 = sphi 0, %s409
    %s427 = sphi 0, %s427
    %s429 = sphi 0, %s427
    %s430 = sphi 0, %s429
    %s444 = sphi 0, %s430
    %s450 = sphi 0, %s452
    %s453 = sphi 0, %s450
    %s454 = sphi 0, %s453
    %s470 = sphi 0, %s454
  $region4: #{vivit_model_forward.5} parent=0 // loop_header_branch
    %25 = sbr.rel (%p23) target = $region8
  $region5: #{vivit_model_forward.5} parent=0 // loop_body
    %s27 = ssub.s32 %s22, 1
    %s28 = ssub.s32 %s22, 2
    %s35 = sadd.s32 1, %s30
    %p36 = scmp.ge.s32.totalorder %s35, 2
    %s37 = scalar_select %p36, 0, %s35
    %s38 = sadd.s32 1, %s29
    %s39 = scalar_select %p36, %s38, %s29
    %p40 = scmp.ge.s32.totalorder %s39, 2
    %s41 = scalar_select %p40, 0, %s39
    %s42 = ssub.s32 %s29, %s41
    %p43 = scmp.eq.s32.totalorder %s42, 0
    %s45 = sadd.s32 %s44, 1
    %s46 = scalar_select %p43, %s44, %s45
    %p49 = pneg %p43
    %p50 = scmp.eq.s32.totalorder %s22, 3
    %p51 = por %p49, %p50
    %p52 = scmp.ne.s32.totalorder %s44, %s47
    %p53 = scmp.eq.s32.totalorder %s22, 0
    %p54 = por %p52, %p53
    %p55 = scmp.ne.s32.totalorder %s44, %s47
    %p56 = scmp.eq.s32.totalorder %s27, 3
    %p57 = por %p55, %p56
    %p58 = scmp.ne.s32.totalorder %s47, %s48
    %p59 = scmp.eq.s32.totalorder %s27, 0
    %p60 = por %p58, %p59
    %p61 = scmp.ne.s32.totalorder %s47, %s48
    %p62 = scmp.eq.s32.totalorder %s28, 3
    %p63 = por %p61, %p62
    %p65 = scmp.ne.s32.totalorder %s48, %s64
    %p66 = scmp.eq.s32.totalorder %s28, 0
    %p67 = por %p65, %p66
    %s68 = ssub.s32 %s30, %s37
    %p69 = scmp.eq.s32.totalorder %s68, 0
    %s71 = sadd.s32 %s70, 1
    %s72 = scalar_select %p69, %s70, %s71
    %p75 = pneg %p69
    %p76 = scmp.eq.s32.totalorder %s22, 3
    %p77 = por %p75, %p76
    %p78 = scmp.ne.s32.totalorder %s70, %s73
    %p79 = scmp.eq.s32.totalorder %s22, 0
    %p80 = por %p78, %p79
    %p81 = scmp.ne.s32.totalorder %s70, %s73
    %p82 = scmp.eq.s32.totalorder %s27, 3
    %p83 = por %p81, %p82
    %p84 = scmp.ne.s32.totalorder %s73, %s74
    %p85 = scmp.eq.s32.totalorder %s27, 0
    %p86 = por %p84, %p85
    %p87 = scmp.ne.s32.totalorder %s73, %s74
    %p88 = scmp.eq.s32.totalorder %s28, 3
    %p89 = por %p87, %p88
    %p91 = scmp.ne.s32.totalorder %s74, %s90
    %p92 = scmp.eq.s32.totalorder %s28, 0
    %p93 = por %p91, %p92
    %s94 = ssub.s32 %s30, %s37
    %p95 = scmp.eq.s32.totalorder %s94, 0
    %s97 = sadd.s32 %s96, 1
    %s98 = scalar_select %p95, %s96, %s97
    %p101 = pneg %p95
    %p102 = scmp.eq.s32.totalorder %s22, 3
    %p103 = por %p101, %p102
    %p104 = scmp.ne.s32.totalorder %s96, %s99
    %p105 = scmp.eq.s32.totalorder %s22, 0
    %p106 = por %p104, %p105
    %p107 = scmp.ne.s32.totalorder %s96, %s99
    %p108 = scmp.eq.s32.totalorder %s27, 3
    %p109 = por %p107, %p108
    %p110 = scmp.ne.s32.totalorder %s99, %s100
    %p111 = scmp.eq.s32.totalorder %s27, 0
    %p112 = por %p110, %p111
    %p113 = scmp.ne.s32.totalorder %s99, %s100
    %p114 = scmp.eq.s32.totalorder %s28, 3
    %p115 = por %p113, %p114
    %p117 = scmp.ne.s32.totalorder %s100, %s116
    %p118 = scmp.eq.s32.totalorder %s28, 0
    %p119 = por %p117, %p118
    %s120 = ssub.s32 %s30, %s37
    %p121 = scmp.eq.s32.totalorder %s120, 0
    %s123 = sadd.s32 %s122, 1
    %s124 = scalar_select %p121, %s122, %s123
    %p127 = pneg %p121
    %p128 = scmp.eq.s32.totalorder %s22, 3
    %p129 = por %p127, %p128
    %p130 = scmp.ne.s32.totalorder %s122, %s125
    %p131 = scmp.eq.s32.totalorder %s22, 0
    %p132 = por %p130, %p131
    %p133 = scmp.ne.s32.totalorder %s122, %s125
    %p134 = scmp.eq.s32.totalorder %s27, 3
    %p135 = por %p133, %p134
    %p136 = scmp.ne.s32.totalorder %s125, %s126
    %p137 = scmp.eq.s32.totalorder %s27, 0
    %p138 = por %p136, %p137
    %p139 = scmp.ne.s32.totalorder %s125, %s126
    %p140 = scmp.eq.s32.totalorder %s28, 3
    %p141 = por %p139, %p140
    %p143 = scmp.ne.s32.totalorder %s126, %s142
    %p144 = scmp.eq.s32.totalorder %s28, 0
    %p145 = por %p143, %p144
    %s146 = ssub.s32 %s30, %s37
    %p147 = scmp.eq.s32.totalorder %s146, 0
    %s149 = sadd.s32 %s148, 1
    %s150 = scalar_select %p147, %s148, %s149
    %p153 = pneg %p147
    %p154 = scmp.eq.s32.totalorder %s22, 3
    %p155 = por %p153, %p154
    %p156 = scmp.ne.s32.totalorder %s148, %s151
    %p157 = scmp.eq.s32.totalorder %s22, 0
    %p158 = por %p156, %p157
    %p159 = scmp.ne.s32.totalorder %s148, %s151
    %p160 = scmp.eq.s32.totalorder %s27, 3
    %p161 = por %p159, %p160
    %p162 = scmp.ne.s32.totalorder %s151, %s152
    %p163 = scmp.eq.s32.totalorder %s27, 0
    %p164 = por %p162, %p163
    %p165 = scmp.ne.s32.totalorder %s151, %s152
    %p166 = scmp.eq.s32.totalorder %s28, 3
    %p167 = por %p165, %p166
    %p169 = scmp.ne.s32.totalorder %s152, %s168
    %p170 = scmp.eq.s32.totalorder %s28, 0
    %p171 = por %p169, %p170
    %s172 = ssub.s32 %s30, %s37
    %p173 = scmp.eq.s32.totalorder %s172, 0
    %s175 = sadd.s32 %s174, 1
    %s176 = scalar_select %p173, %s174, %s175
    %p179 = pneg %p173
    %p180 = scmp.eq.s32.totalorder %s22, 3
    %p181 = por %p179, %p180
    %p182 = scmp.ne.s32.totalorder %s174, %s177
    %p183 = scmp.eq.s32.totalorder %s22, 0
    %p184 = por %p182, %p183
    %p185 = scmp.ne.s32.totalorder %s174, %s177
    %p186 = scmp.eq.s32.totalorder %s27, 3
    %p187 = por %p185, %p186
    %p188 = scmp.ne.s32.totalorder %s177, %s178
    %p189 = scmp.eq.s32.totalorder %s27, 0
    %p190 = por %p188, %p189
    %p191 = scmp.ne.s32.totalorder %s177, %s178
    %p192 = scmp.eq.s32.totalorder %s28, 3
    %p193 = por %p191, %p192
    %p195 = scmp.ne.s32.totalorder %s178, %s194
    %p196 = scmp.eq.s32.totalorder %s28, 0
    %p197 = por %p195, %p196
    %s198 = ssub.s32 %s30, %s37
    %p199 = scmp.eq.s32.totalorder %s198, 0
    %s201 = sadd.s32 %s200, 1
    %s202 = scalar_select %p199, %s200, %s201
    %p205 = pneg %p199
    %p206 = scmp.eq.s32.totalorder %s22, 3
    %p207 = por %p205, %p206
    %p208 = scmp.ne.s32.totalorder %s200, %s203
    %p209 = scmp.eq.s32.totalorder %s22, 0
    %p210 = por %p208, %p209
    %p211 = scmp.ne.s32.totalorder %s200, %s203
    %p212 = scmp.eq.s32.totalorder %s27, 3
    %p213 = por %p211, %p212
    %p214 = scmp.ne.s32.totalorder %s203, %s204
    %p215 = scmp.eq.s32.totalorder %s27, 0
    %p216 = por %p214, %p215
    %p217 = scmp.ne.s32.totalorder %s203, %s204
    %p218 = scmp.eq.s32.totalorder %s28, 3
    %p219 = por %p217, %p218
    %p221 = scmp.ne.s32.totalorder %s204, %s220
    %p222 = scmp.eq.s32.totalorder %s28, 0
    %p223 = por %p221, %p222
    %s224 = ssub.s32 %s30, %s37
    %p225 = scmp.eq.s32.totalorder %s224, 0
    %s227 = sadd.s32 %s226, 1
    %s228 = scalar_select %p225, %s226, %s227
    %p231 = pneg %p225
    %p232 = scmp.eq.s32.totalorder %s22, 3
    %p233 = por %p231, %p232
    %p234 = scmp.ne.s32.totalorder %s226, %s229
    %p235 = scmp.eq.s32.totalorder %s22, 0
    %p236 = por %p234, %p235
    %p237 = scmp.ne.s32.totalorder %s226, %s229
    %p238 = scmp.eq.s32.totalorder %s27, 3
    %p239 = por %p237, %p238
    %p240 = scmp.ne.s32.totalorder %s229, %s230
    %p241 = scmp.eq.s32.totalorder %s27, 0
    %p242 = por %p240, %p241
    %p243 = scmp.ne.s32.totalorder %s229, %s230
    %p244 = scmp.eq.s32.totalorder %s28, 3
    %p245 = por %p243, %p244
    %p247 = scmp.ne.s32.totalorder %s230, %s246
    %p248 = scmp.eq.s32.totalorder %s28, 0
    %p249 = por %p247, %p248
    %s250 = ssub.s32 %s30, %s37
    %p251 = scmp.eq.s32.totalorder %s250, 0
    %s253 = sadd.s32 %s252, 1
    %s254 = scalar_select %p251, %s252, %s253
    %p257 = pneg %p251
    %p258 = scmp.eq.s32.totalorder %s22, 3
    %p259 = por %p257, %p258
    %p260 = scmp.ne.s32.totalorder %s252, %s255
    %p261 = scmp.eq.s32.totalorder %s22, 0
    %p262 = por %p260, %p261
    %p263 = scmp.ne.s32.totalorder %s252, %s255
    %p264 = scmp.eq.s32.totalorder %s27, 3
    %p265 = por %p263, %p264
    %p266 = scmp.ne.s32.totalorder %s255, %s256
    %p267 = scmp.eq.s32.totalorder %s27, 0
    %p268 = por %p266, %p267
    %p269 = scmp.ne.s32.totalorder %s255, %s256
    %p270 = scmp.eq.s32.totalorder %s28, 3
    %p271 = por %p269, %p270
    %p273 = scmp.ne.s32.totalorder %s256, %s272
    %p274 = scmp.eq.s32.totalorder %s28, 0
    %p275 = por %p273, %p274
    %s276 = ssub.s32 %s30, %s37
    %p277 = scmp.eq.s32.totalorder %s276, 0
    %s279 = sadd.s32 %s278, 1
    %s280 = scalar_select %p277, %s278, %s279
    %p283 = pneg %p277
    %p284 = scmp.eq.s32.totalorder %s22, 3
    %p285 = por %p283, %p284
    %p286 = scmp.ne.s32.totalorder %s278, %s281
    %p287 = scmp.eq.s32.totalorder %s22, 0
    %p288 = por %p286, %p287
    %p289 = scmp.ne.s32.totalorder %s278, %s281
    %p290 = scmp.eq.s32.totalorder %s27, 3
    %p291 = por %p289, %p290
    %p292 = scmp.ne.s32.totalorder %s281, %s282
    %p293 = scmp.eq.s32.totalorder %s27, 0
    %p294 = por %p292, %p293
    %p295 = scmp.ne.s32.totalorder %s281, %s282
    %p296 = scmp.eq.s32.totalorder %s28, 3
    %p297 = por %p295, %p296
    %p299 = scmp.ne.s32.totalorder %s282, %s298
    %p300 = scmp.eq.s32.totalorder %s28, 0
    %p301 = por %p299, %p300
    %s302 = ssub.s32 %s30, %s37
    %p303 = scmp.eq.s32.totalorder %s302, 0
    %s305 = sadd.s32 %s304, 1
    %s306 = scalar_select %p303, %s304, %s305
    %p309 = pneg %p303
    %p310 = scmp.eq.s32.totalorder %s22, 3
    %p311 = por %p309, %p310
    %p312 = scmp.ne.s32.totalorder %s304, %s307
    %p313 = scmp.eq.s32.totalorder %s22, 0
    %p314 = por %p312, %p313
    %p315 = scmp.ne.s32.totalorder %s304, %s307
    %p316 = scmp.eq.s32.totalorder %s27, 3
    %p317 = por %p315, %p316
    %p318 = scmp.ne.s32.totalorder %s307, %s308
    %p319 = scmp.eq.s32.totalorder %s27, 0
    %p320 = por %p318, %p319
    %p321 = scmp.ne.s32.totalorder %s307, %s308
    %p322 = scmp.eq.s32.totalorder %s28, 3
    %p323 = por %p321, %p322
    %p325 = scmp.ne.s32.totalorder %s308, %s324
    %p326 = scmp.eq.s32.totalorder %s28, 0
    %p327 = por %p325, %p326
    %s328 = ssub.s32 %s30, %s37
    %p329 = scmp.eq.s32.totalorder %s328, 0
    %s331 = sadd.s32 %s330, 1
    %s332 = scalar_select %p329, %s330, %s331
    %p335 = pneg %p329
    %p336 = scmp.eq.s32.totalorder %s22, 3
    %p337 = por %p335, %p336
    %p338 = scmp.ne.s32.totalorder %s330, %s333
    %p339 = scmp.eq.s32.totalorder %s22, 0
    %p340 = por %p338, %p339
    %p341 = scmp.ne.s32.totalorder %s330, %s333
    %p342 = scmp.eq.s32.totalorder %s27, 3
    %p343 = por %p341, %p342
    %p344 = scmp.ne.s32.totalorder %s333, %s334
    %p345 = scmp.eq.s32.totalorder %s27, 0
    %p346 = por %p344, %p345
    %p347 = scmp.ne.s32.totalorder %s333, %s334
    %p348 = scmp.eq.s32.totalorder %s28, 3
    %p349 = por %p347, %p348
    %p351 = scmp.ne.s32.totalorder %s334, %s350
    %p352 = scmp.eq.s32.totalorder %s28, 0
    %p353 = por %p351, %p352
    %s354 = ssub.s32 %s30, %s37
    %p355 = scmp.eq.s32.totalorder %s354, 0
    %s357 = sadd.s32 %s356, 1
    %s358 = scalar_select %p355, %s356, %s357
    %p361 = pneg %p355
    %p362 = scmp.eq.s32.totalorder %s22, 3
    %p363 = por %p361, %p362
    %p364 = scmp.ne.s32.totalorder %s356, %s359
    %p365 = scmp.eq.s32.totalorder %s22, 0
    %p366 = por %p364, %p365
    %p367 = scmp.ne.s32.totalorder %s356, %s359
    %p368 = scmp.eq.s32.totalorder %s27, 3
    %p369 = por %p367, %p368
    %p370 = scmp.ne.s32.totalorder %s359, %s360
    %p371 = scmp.eq.s32.totalorder %s27, 0
    %p372 = por %p370, %p371
    %p373 = scmp.ne.s32.totalorder %s359, %s360
    %p374 = scmp.eq.s32.totalorder %s28, 3
    %p375 = por %p373, %p374
    %p377 = scmp.ne.s32.totalorder %s360, %s376
    %p378 = scmp.eq.s32.totalorder %s28, 0
    %p379 = por %p377, %p378
    %s380 = ssub.s32 %s30, %s37
    %p381 = scmp.eq.s32.totalorder %s380, 0
    %s383 = sadd.s32 %s382, 1
    %s384 = scalar_select %p381, %s382, %s383
    %p387 = pneg %p381
    %p388 = scmp.eq.s32.totalorder %s22, 3
    %p389 = por %p387, %p388
    %p390 = scmp.ne.s32.totalorder %s382, %s385
    %p391 = scmp.eq.s32.totalorder %s22, 0
    %p392 = por %p390, %p391
    %p393 = scmp.ne.s32.totalorder %s382, %s385
    %p394 = scmp.eq.s32.totalorder %s27, 3
    %p395 = por %p393, %p394
    %p396 = scmp.ne.s32.totalorder %s385, %s386
    %p397 = scmp.eq.s32.totalorder %s27, 0
    %p398 = por %p396, %p397
    %p399 = scmp.ne.s32.totalorder %s385, %s386
    %p400 = scmp.eq.s32.totalorder %s28, 3
    %p401 = por %p399, %p400
    %p403 = scmp.ne.s32.totalorder %s386, %s402
    %p404 = scmp.eq.s32.totalorder %s28, 0
    %p405 = por %p403, %p404
    %s407 = sadd.s32 %s406, 1
    %p410 = scmp.eq.s32.totalorder %s22, 3
    %p411 = scmp.ne.s32.totalorder %s406, %s408
    %p412 = scmp.eq.s32.totalorder %s22, 0
    %p413 = por %p411, %p412
    %p414 = scmp.ne.s32.totalorder %s406, %s408
    %p415 = scmp.eq.s32.totalorder %s27, 3
    %p416 = por %p414, %p415
    %p417 = scmp.ne.s32.totalorder %s408, %s409
    %p418 = scmp.eq.s32.totalorder %s27, 0
    %p419 = por %p417, %p418
    %p420 = scmp.ne.s32.totalorder %s408, %s409
    %p421 = scmp.eq.s32.totalorder %s28, 3
    %p422 = por %p420, %p421
    %p424 = scmp.ne.s32.totalorder %s409, %s423
    %p425 = scmp.eq.s32.totalorder %s28, 0
    %p426 = por %p424, %p425
    %s428 = sadd.s32 %s427, 1
    %p431 = scmp.eq.s32.totalorder %s22, 3
    %p432 = scmp.ne.s32.totalorder %s427, %s429
    %p433 = scmp.eq.s32.totalorder %s22, 0
    %p434 = por %p432, %p433
    %p435 = scmp.ne.s32.totalorder %s427, %s429
    %p436 = scmp.eq.s32.totalorder %s27, 3
    %p437 = por %p435, %p436
    %p438 = scmp.ne.s32.totalorder %s429, %s430
    %p439 = scmp.eq.s32.totalorder %s27, 0
    %p440 = por %p438, %p439
    %p441 = scmp.ne.s32.totalorder %s429, %s430
    %p442 = scmp.eq.s32.totalorder %s28, 3
    %p443 = por %p441, %p442
    %p445 = scmp.ne.s32.totalorder %s430, %s444
    %p446 = scmp.eq.s32.totalorder %s28, 0
    %p447 = por %p445, %p446
    %s448 = ssub.s32 %s29, %s41
    %p449 = scmp.eq.s32.totalorder %s448, 0
    %s451 = sadd.s32 %s450, 1
    %s452 = scalar_select %p449, %s450, %s451
    %p455 = pneg %p449
    %p456 = scmp.eq.s32.totalorder %s22, 3
    %p457 = por %p455, %p456
    %p458 = scmp.ne.s32.totalorder %s450, %s453
    %p459 = scmp.eq.s32.totalorder %s22, 0
    %p460 = por %p458, %p459
    %p461 = scmp.ne.s32.totalorder %s450, %s453
    %p462 = scmp.eq.s32.totalorder %s27, 3
    %p463 = por %p461, %p462
    %p464 = scmp.ne.s32.totalorder %s453, %s454
    %p465 = scmp.eq.s32.totalorder %s27, 0
    %p466 = por %p464, %p465
    %p467 = scmp.ne.s32.totalorder %s453, %s454
    %p468 = scmp.eq.s32.totalorder %s28, 3
    %p469 = por %p467, %p468
    %p471 = scmp.ne.s32.totalorder %s454, %s470
    %p472 = scmp.eq.s32.totalorder %s28, 0
    %p473 = por %p471, %p472
    %p474 = scmp.le.s32.totalorder 1, %s22
    %p475 = scmp.lt.s32.totalorder %s22, 5
    %p476 = pnand %p474, %p475
    %p477 = pneg %p476
    // Predicated region
    $region9: #{vivit_model_forward.5} parent=5 // pred_check
      _
    $region10: #{vivit_model_forward.5} parent=5 // pred_check_branch
      %479 = sbr.rel (%p476) target = $region12
    $region11: #{vivit_model_forward.5} parent=5 // pred_region
      %s480 = ssub.s32 %s22, 1
      // Predicated region
      $region13: #{vivit_model_forward.5} parent=11 // pred_check
        %p481 = pneg %p419
      $region14: #{vivit_model_forward.5} parent=11 // pred_check_branch
        %483 = sbr.rel (%p481) target = $region16
      $region15: #{vivit_model_forward.5} parent=11 // pred_region
        _
      $region16: #{vivit_model_forward.5} parent=11 // pred_fallthru
        _
      // Predicated region
      $region17: #{vivit_model_forward.5} parent=11 // pred_check
        %p484 = pneg %p440
      $region18: #{vivit_model_forward.5} parent=11 // pred_check_branch
        %486 = sbr.rel (%p484) target = $region20
      $region19: #{vivit_model_forward.5} parent=11 // pred_region
        _
      $region20: #{vivit_model_forward.5} parent=11 // pred_fallthru
        _
    $region12: #{vivit_model_forward.5} parent=5 // pred_fallthru
      _
    %p487 = scmp.lt.s32.totalorder %s22, 4
    // Predicated region
    $region21: #{vivit_model_forward.5} parent=5 // pred_check
      %p488 = pneg %p487
    $region22: #{vivit_model_forward.5} parent=5 // pred_check_branch
      %490 = sbr.rel (%p488) target = $region24
    $region23: #{vivit_model_forward.5} parent=5 // pred_region
      // Predicated region
      $region25: #{vivit_model_forward.5} parent=23 // pred_check
        %p491 = pneg %p54
      $region26: #{vivit_model_forward.5} parent=23 // pred_check_branch
        %493 = sbr.rel (%p491) target = $region28
      $region27: #{vivit_model_forward.5} parent=23 // pred_region
        %p494 = scmp.lt.s32.totalorder %s29, 1
        %s495 = scalar_select %p494, %s29, 1
        %s496 = smul.addr %s495, 8
        %s497 = scalar_lea.vmem %s0, %s496
      $region28: #{vivit_model_forward.5} parent=23 // pred_fallthru
        _
      // Predicated region
      $region29: #{vivit_model_forward.5} parent=23 // pred_check
        %p498 = pneg %p80
      $region30: #{vivit_model_forward.5} parent=23 // pred_check_branch
        %500 = sbr.rel (%p498) target = $region32
      $region31: #{vivit_model_forward.5} parent=23 // pred_region
        %p501 = scmp.lt.s32.totalorder %s30, 1
        %s502 = scalar_select %p501, %s30, 1
        %s503 = scalar_lea.vmem %s1, %s502
      $region32: #{vivit_model_forward.5} parent=23 // pred_fallthru
        _
      // Predicated region
      $region33: #{vivit_model_forward.5} parent=23 // pred_check
        %p504 = pneg %p106
      $region34: #{vivit_model_forward.5} parent=23 // pred_check_branch
        %506 = sbr.rel (%p504) target = $region36
      $region35: #{vivit_model_forward.5} parent=23 // pred_region
        %p507 = scmp.lt.s32.totalorder %s30, 1
        %s508 = scalar_select %p507, %s30, 1
        %s509 = scalar_lea.vmem %s2, %s508
      $region36: #{vivit_model_forward.5} parent=23 // pred_fallthru
        _
      // Predicated region
      $region37: #{vivit_model_forward.5} parent=23 // pred_check
        %p510 = pneg %p132
      $region38: #{vivit_model_forward.5} parent=23 // pred_check_branch
        %512 = sbr.rel (%p510) target = $region40
      $region39: #{vivit_model_forward.5} parent=23 // pred_region
        %p513 = scmp.lt.s32.totalorder %s30, 1
        %s514 = scalar_select %p513, %s30, 1
        %s515 = smul.addr %s514, 16
        %s516 = smul.addr %s515, 4
        %s517 = scalar_lea.vmem %s3, %s516
      $region40: #{vivit_model_forward.5} parent=23 // pred_fallthru
        _
      // Predicated region
      $region41: #{vivit_model_forward.5} parent=23 // pred_check
        %p518 = pneg %p158
      $region42: #{vivit_model_forward.5} parent=23 // pred_check_branch
        %520 = sbr.rel (%p518) target = $region44
      $region43: #{vivit_model_forward.5} parent=23 // pred_region
        %p521 = scmp.lt.s32.totalorder %s30, 1
        %s522 = scalar_select %p521, %s30, 1
        %s523 = smul.addr %s522, 16
        %s524 = smul.addr %s523, 4
        %s525 = scalar_lea.vmem %s4, %s524
      $region44: #{vivit_model_forward.5} parent=23 // pred_fallthru
        _
      // Predicated region
      $region45: #{vivit_model_forward.5} parent=23 // pred_check
        %p526 = pneg %p184
      $region46: #{vivit_model_forward.5} parent=23 // pred_check_branch
        %528 = sbr.rel (%p526) target = $region48
      $region47: #{vivit_model_forward.5} parent=23 // pred_region
        %p529 = scmp.lt.s32.totalorder %s30, 1
        %s530 = scalar_select %p529, %s30, 1
        %s531 = smul.addr %s530, 16
        %s532 = smul.addr %s531, 4
        %s533 = scalar_lea.vmem %s5, %s532
      $region48: #{vivit_model_forward.5} parent=23 // pred_fallthru
        _
      // Predicated region
      $region49: #{vivit_model_forward.5} parent=23 // pred_check
        %p534 = pneg %p210
      $region50: #{vivit_model_forward.5} parent=23 // pred_check_branch
        %536 = sbr.rel (%p534) target = $region52
      $region51: #{vivit_model_forward.5} parent=23 // pred_region
        %p537 = scmp.lt.s32.totalorder %s30, 1
        %s538 = scalar_select %p537, %s30, 1
        %s539 = smul.addr %s538, 4
        %s540 = smul.addr %s539, 4
        %s541 = scalar_lea.vmem %s6, %s540
      $region52: #{vivit_model_forward.5} parent=23 // pred_fallthru
        _
      // Predicated region
      $region53: #{vivit_model_forward.5} parent=23 // pred_check
        %p542 = pneg %p236
      $region54: #{vivit_model_forward.5} parent=23 // pred_check_branch
        %544 = sbr.rel (%p542) target = $region56
      $region55: #{vivit_model_forward.5} parent=23 // pred_region
        %p545 = scmp.lt.s32.totalorder %s30, 1
        %s546 = scalar_select %p545, %s30, 1
        %s547 = scalar_lea.vmem %s7, %s546
      $region56: #{vivit_model_forward.5} parent=23 // pred_fallthru
        _
      // Predicated region
      $region57: #{vivit_model_forward.5} parent=23 // pred_check
        %p548 = pneg %p262
      $region58: #{vivit_model_forward.5} parent=23 // pred_check_branch
        %550 = sbr.rel (%p548) target = $region60
      $region59: #{vivit_model_forward.5} parent=23 // pred_region
        %p551 = scmp.lt.s32.totalorder %s30, 1
        %s552 = scalar_select %p551, %s30, 1
        %s553 = scalar_lea.vmem %s8, %s552
      $region60: #{vivit_model_forward.5} parent=23 // pred_fallthru
        _
      // Predicated region
      $region61: #{vivit_model_forward.5} parent=23 // pred_check
        %p554 = pneg %p288
      $region62: #{vivit_model_forward.5} parent=23 // pred_check_branch
        %556 = sbr.rel (%p554) target = $region64
      $region63: #{vivit_model_forward.5} parent=23 // pred_region
        %p557 = scmp.lt.s32.totalorder %s30, 1
        %s558 = scalar_select %p557, %s30, 1
        %s559 = scalar_lea.vmem %s9, %s558
      $region64: #{vivit_model_forward.5} parent=23 // pred_fallthru
        _
      // Predicated region
      $region65: #{vivit_model_forward.5} parent=23 // pred_check
        %p560 = pneg %p314
      $region66: #{vivit_model_forward.5} parent=23 // pred_check_branch
        %562 = sbr.rel (%p560) target = $region68
      $region67: #{vivit_model_forward.5} parent=23 // pred_region
        %p563 = scmp.lt.s32.totalorder %s30, 1
        %s564 = scalar_select %p563, %s30, 1
        %s565 = smul.addr %s564, 16
        %s566 = smul.addr %s565, 4
        %s567 = scalar_lea.vmem %s10, %s566
      $region68: #{vivit_model_forward.5} parent=23 // pred_fallthru
        _
      // Predicated region
      $region69: #{vivit_model_forward.5} parent=23 // pred_check
        %p568 = pneg %p340
      $region70: #{vivit_model_forward.5} parent=23 // pred_check_branch
        %570 = sbr.rel (%p568) target = $region72
      $region71: #{vivit_model_forward.5} parent=23 // pred_region
        %p571 = scmp.lt.s32.totalorder %s30, 1
        %s572 = scalar_select %p571, %s30, 1
        %s573 = scalar_lea.vmem %s11, %s572
      $region72: #{vivit_model_forward.5} parent=23 // pred_fallthru
        _
      // Predicated region
      $region73: #{vivit_model_forward.5} parent=23 // pred_check
        %p574 = pneg %p366
      $region74: #{vivit_model_forward.5} parent=23 // pred_check_branch
        %576 = sbr.rel (%p574) target = $region76
      $region75: #{vivit_model_forward.5} parent=23 // pred_region
        %p577 = scmp.lt.s32.totalorder %s30, 1
        %s578 = scalar_select %p577, %s30, 1
        %s579 = smul.addr %s578, 16
        %s580 = smul.addr %s579, 4
        %s581 = scalar_lea.vmem %s12, %s580
      $region76: #{vivit_model_forward.5} parent=23 // pred_fallthru
        _
      // Predicated region
      $region77: #{vivit_model_forward.5} parent=23 // pred_check
        %p582 = pneg %p392
      $region78: #{vivit_model_forward.5} parent=23 // pred_check_branch
        %584 = sbr.rel (%p582) target = $region80
      $region79: #{vivit_model_forward.5} parent=23 // pred_region
        %p585 = scmp.lt.s32.totalorder %s30, 1
        %s586 = scalar_select %p585, %s30, 1
        %s587 = scalar_lea.vmem %s13, %s586
      $region80: #{vivit_model_forward.5} parent=23 // pred_fallthru
        _
    $region24: #{vivit_model_forward.5} parent=5 // pred_fallthru
      _
    %p588 = scmp.le.s32.totalorder 1, %s22
    %p589 = scmp.lt.s32.totalorder %s22, 5
    %p590 = pnand %p588, %p589
    %p591 = pneg %p590
    // Predicated region
    $region81: #{vivit_model_forward.5} parent=5 // pred_check
      _
    $region82: #{vivit_model_forward.5} parent=5 // pred_check_branch
      %593 = sbr.rel (%p590) target = $region84
    $region83: #{vivit_model_forward.5} parent=5 // pred_region
      %s594 = ssub.s32 %s22, 1
      %p595 = scmp.lt.s32.totalorder %s31, 1
      %s596 = scalar_select %p595, %s31, 1
      %s597 = smul.addr %s596, 8
      %s598 = scalar_lea.vmem %s0, %s597
      %p599 = pneg %p60
      %p600 = pneg %p57
      %p601 = scmp.lt.s32.totalorder %s32, 1
      %s602 = scalar_select %p601, %s32, 1
      %s603 = scalar_lea.vmem %s1, %s602
      %p604 = pneg %p86
      %p605 = pneg %p83
      %p606 = scmp.lt.s32.totalorder %s32, 1
      %s607 = scalar_select %p606, %s32, 1
      %s608 = scalar_lea.vmem %s2, %s607
      %p609 = pneg %p112
      %p610 = pneg %p109
      %p611 = scmp.lt.s32.totalorder %s32, 1
      %s612 = scalar_select %p611, %s32, 1
      %s613 = smul.addr %s612, 16
      %s614 = smul.addr %s613, 4
      %s615 = scalar_lea.vmem %s3, %s614
      %p616 = pneg %p138
      %p617 = pneg %p135
      %p618 = scmp.lt.s32.totalorder %s32, 1
      %s619 = scalar_select %p618, %s32, 1
      %s620 = smul.addr %s619, 16
      %s621 = smul.addr %s620, 4
      %s622 = scalar_lea.vmem %s4, %s621
      %p623 = pneg %p164
      %p624 = pneg %p161
      %p625 = scmp.lt.s32.totalorder %s32, 1
      %s626 = scalar_select %p625, %s32, 1
      %s627 = smul.addr %s626, 16
      %s628 = smul.addr %s627, 4
      %s629 = scalar_lea.vmem %s5, %s628
      %p630 = pneg %p190
      %p631 = pneg %p187
      %p632 = scmp.lt.s32.totalorder %s32, 1
      %s633 = scalar_select %p632, %s32, 1
      %s634 = smul.addr %s633, 4
      %s635 = smul.addr %s634, 4
      %s636 = scalar_lea.vmem %s6, %s635
      %p637 = pneg %p216
      %p638 = pneg %p213
      %p639 = scmp.lt.s32.totalorder %s32, 1
      %s640 = scalar_select %p639, %s32, 1
      %s641 = scalar_lea.vmem %s7, %s640
      %p642 = pneg %p242
      %p643 = pneg %p239
      %p644 = scmp.lt.s32.totalorder %s32, 1
      %s645 = scalar_select %p644, %s32, 1
      %s646 = scalar_lea.vmem %s8, %s645
      %p647 = pneg %p268
      %p648 = pneg %p265
      %p649 = scmp.lt.s32.totalorder %s32, 1
      %s650 = scalar_select %p649, %s32, 1
      %s651 = scalar_lea.vmem %s9, %s650
      %p652 = pneg %p294
      %p653 = pneg %p291
      %p654 = scmp.lt.s32.totalorder %s32, 1
      %s655 = scalar_select %p654, %s32, 1
      %s656 = smul.addr %s655, 16
      %s657 = smul.addr %s656, 4
      %s658 = scalar_lea.vmem %s10, %s657
      %p659 = pneg %p320
      %p660 = pneg %p317
      %p661 = scmp.lt.s32.totalorder %s32, 1
      %s662 = scalar_select %p661, %s32, 1
      %s663 = scalar_lea.vmem %s11, %s662
      %p664 = pneg %p346
      %p665 = pneg %p343
      %p666 = scmp.lt.s32.totalorder %s32, 1
      %s667 = scalar_select %p666, %s32, 1
      %s668 = smul.addr %s667, 16
      %s669 = smul.addr %s668, 4
      %s670 = scalar_lea.vmem %s12, %s669
      %p671 = pneg %p372
      %p672 = pneg %p369
      %p673 = scmp.lt.s32.totalorder %s32, 1
      %s674 = scalar_select %p673, %s32, 1
      %s675 = scalar_lea.vmem %s13, %s674
      %p676 = pneg %p398
      %p677 = pneg %p395
      %p678 = pneg %p419
      %p679 = pneg %p416
      %p680 = pneg %p440
      %p681 = pneg %p437
      %p682 = pneg %p466
      %p683 = pneg %p463
      %p684 = scmp.lt.s32.totalorder %s31, 1
      %s685 = scalar_select %p684, %s31, 1
      %s686 = smul.addr %s685, 8
      %s687 = scalar_lea.vmem %s16, %s686
      %p688 = scmp.lt.s32.totalorder %s31, 1
      %s689 = scalar_select %p688, %s31, 1
      %s690 = smul.addr %s689, 8
      %s691 = scalar_lea.vmem %s0, %s690
      %p692 = scmp.lt.s32.totalorder %s32, 1
      %s693 = scalar_select %p692, %s32, 1
      %s694 = scalar_lea.vmem %s1, %s693
      %p695 = scmp.lt.s32.totalorder %s32, 1
      %s696 = scalar_select %p695, %s32, 1
      %s697 = scalar_lea.vmem %s2, %s696
      %p698 = scmp.lt.s32.totalorder %s32, 1
      %s699 = scalar_select %p698, %s32, 1
      %s700 = smul.addr %s699, 16
      %s701 = smul.addr %s700, 4
      %s702 = scalar_lea.vmem %s3, %s701
      %p703 = scmp.lt.s32.totalorder %s32, 1
      %s704 = scalar_select %p703, %s32, 1
      %s705 = smul.addr %s704, 16
      %s706 = smul.addr %s705, 4
      %s707 = scalar_lea.vmem %s4, %s706
      %p708 = scmp.lt.s32.totalorder %s32, 1
      %s709 = scalar_select %p708, %s32, 1
      %s710 = smul.addr %s709, 16
      %s711 = smul.addr %s710, 4
      %s712 = scalar_lea.vmem %s5, %s711
      %p713 = scmp.lt.s32.totalorder %s32, 1
      %s714 = scalar_select %p713, %s32, 1
      %s715 = smul.addr %s714, 4
      %s716 = smul.addr %s715, 4
      %s717 = scalar_lea.vmem %s6, %s716
      %p718 = scmp.lt.s32.totalorder %s32, 1
      %s719 = scalar_select %p718, %s32, 1
      %s720 = scalar_lea.vmem %s7, %s719
      %p721 = scmp.lt.s32.totalorder %s32, 1
      %s722 = scalar_select %p721, %s32, 1
      %s723 = scalar_lea.vmem %s8, %s722
      %p724 = scmp.lt.s32.totalorder %s32, 1
      %s725 = scalar_select %p724, %s32, 1
      %s726 = scalar_lea.vmem %s9, %s725
      %p727 = scmp.lt.s32.totalorder %s32, 1
      %s728 = scalar_select %p727, %s32, 1
      %s729 = smul.addr %s728, 16
      %s730 = smul.addr %s729, 4
      %s731 = scalar_lea.vmem %s10, %s730
      %p732 = scmp.lt.s32.totalorder %s32, 1
      %s733 = scalar_select %p732, %s32, 1
      %s734 = scalar_lea.vmem %s11, %s733
      %p735 = scmp.lt.s32.totalorder %s32, 1
      %s736 = scalar_select %p735, %s32, 1
      %s737 = smul.addr %s736, 16
      %s738 = smul.addr %s737, 4
      %s739 = scalar_lea.vmem %s12, %s738
      %p740 = scmp.lt.s32.totalorder %s32, 1
      %s741 = scalar_select %p740, %s32, 1
      %s742 = scalar_lea.vmem %s13, %s741
      %p743 = scmp.lt.s32.totalorder %s31, 1
      %s744 = scalar_select %p743, %s31, 1
      %s745 = smul.addr %s744, 8
      %s746 = scalar_lea.vmem %s16, %s745
      %p748 = scmp.eq.s32.totalorder %s32, 0
      // Predicated region
      $region85: #{vivit_model_forward.5} parent=83 // pred_check
        %p749 = pneg %p748
      $region86: #{vivit_model_forward.5} parent=83 // pred_check_branch
        %751 = sbr.rel (%p749) target = $region88
      $region87: #{vivit_model_forward.5} parent=83 // pred_region
        %v752 = vld [vmem:[%s691] sm:$0xff]
        %753 = vst [vmem:[%s746] sm:$0xff] %v752
      $region88: #{vivit_model_forward.5} parent=83 // pred_fallthru
        _
      %v754 = vld [vmem:[%s746] sm:$0xff]
      %v755 = vld [vmem:[%s694] sm:$0x1]
      %v756 = vld [vmem:[%s697] sm:$0x1]
      %757 = vadd.xlane.f32.xlu0 %v754
      %v758 = vpop.xlane.xlu0 %757
      %v759 = vmul.f32 %v754, %v754
      %760 = vadd.xlane.f32.xlu0 %v759
      %v761 = vpop.xlane.xlu0 %760
      %v762 = vrcp.pop 32.0
      %v763 = vmul.f32 %v758, %v762
      %v764 = vmul.f32 %v761, %v762
      %v765 = vmul.f32 %v763, %v763
      %v766 = vsub.f32 %v764, %v765
      %v767 = vsub.f32 %v754, %v763
      %v768 = vadd.f32 %v766, 1e-05
      %v769 = vrsqrt.pop %v768
      %v770 = vmul.f32 %v767, %v769
      %v772 = vlaneseq
      %v773 = vshrl.u32 %v772, 7
      %v774 = vsub.s32 0, %v773
      %v775 = vrot.slane %v755, %v774
      %v777 = vmul.f32 %v770, %v775
      %v779 = vlaneseq
      %v780 = vshrl.u32 %v779, 7
      %v781 = vsub.s32 0, %v780
      %v782 = vrot.slane %v756, %v781
      %v784 = vadd.f32 %v777, %v782
      %v785 = vpack.c.bf16 %v784, %v784
      %v786 = vld [vmem:[%s702] sm:$0xf]
      %v787 = vld [vmem:[%s702 + $0x4] sm:$0xf]
      %v788 = vld [vmem:[%s702 + $0x8] sm:$0xf]
      %v789 = vld [vmem:[%s702 + $0xc] sm:$0xf]
      %v790 = vld [vmem:[%s702 + $0x10] sm:$0xf]
      %v791 = vld [vmem:[%s702 + $0x14] sm:$0xf]
      %v792 = vld [vmem:[%s702 + $0x18] sm:$0xf]
      %v793 = vld [vmem:[%s702 + $0x1c] sm:$0xf]
      %v794 = vld [vmem:[%s702 + $0x20] sm:$0xf]
      %v795 = vld [vmem:[%s702 + $0x24] sm:$0xf]
      %v796 = vld [vmem:[%s702 + $0x28] sm:$0xf]
      %v797 = vld [vmem:[%s702 + $0x2c] sm:$0xf]
      %v798 = vld [vmem:[%s702 + $0x30] sm:$0xf]
      %v799 = vld [vmem:[%s702 + $0x34] sm:$0xf]
      %v800 = vld [vmem:[%s702 + $0x38] sm:$0xf]
      %v801 = vld [vmem:[%s702 + $0x3c] sm:$0xf]
      %v818 = vunpack.c.l.b16 %v786
      %v819 = vunpack.c.l.b16 %v787
      %v820 = vunpack.c.l.b16 %v788
      %v821 = vunpack.c.l.b16 %v789
      %v822 = vunpack.c.l.b16 %v790
      %v823 = vunpack.c.l.b16 %v791
      %v824 = vunpack.c.l.b16 %v792
      %v825 = vunpack.c.l.b16 %v793
      %v826 = vunpack.c.l.b16 %v794
      %v827 = vunpack.c.l.b16 %v795
      %v828 = vunpack.c.l.b16 %v796
      %v829 = vunpack.c.l.b16 %v797
      %v830 = vunpack.c.l.b16 %v798
      %v831 = vunpack.c.l.b16 %v799
      %v832 = vunpack.c.l.b16 %v800
      %v833 = vunpack.c.l.b16 %v801
      %v834 = vpack.c.b16 %v819, %v818
      %v835 = vpack.c.b16 %v821, %v820
      %v836 = vpack.c.b16 %v823, %v822
      %v837 = vpack.c.b16 %v825, %v824
      %v838 = vpack.c.b16 %v827, %v826
      %v839 = vpack.c.b16 %v829, %v828
      %v840 = vpack.c.b16 %v831, %v830
      %v841 = vpack.c.b16 %v833, %v832
      %850 = vmatprep.subr.bf16.mxu0 0
      %851 = vmatpush1.bf16.msra.mxu0 %v841
      %852 = vmatprep.subr.bf16.mxu0 0
      %853 = vmatpush1.bf16.msra.mxu0 %v840
      %854 = vmatprep.subr.bf16.mxu0 0
      %855 = vmatpush1.bf16.msra.mxu0 %v839
      %856 = vmatprep.subr.bf16.mxu0 0
      %857 = vmatpush1.bf16.msra.mxu0 %v838
      %858 = vmatprep.subr.bf16.mxu0 0
      %859 = vmatpush1.bf16.msra.mxu0 %v837
      %860 = vmatprep.subr.bf16.mxu0 0
      %861 = vmatpush1.bf16.msra.mxu0 %v836
      %862 = vmatprep.subr.bf16.mxu0 0
      %863 = vmatpush1.bf16.msra.mxu0 %v835
      %864 = vmatprep.subr.bf16.mxu0 0
      %865 = vmatpush1.bf16.msra.mxu0 %v834
      %866 = vmatprep.subr.bf16.mxu0 0
      %867 = vmatpush2.bf16.msra.mxu0 0
      %868 = vmatprep.subr.bf16.mxu0 0
      %869 = vmatpush2.bf16.msra.mxu0 0
      %870 = vmatprep.subr.bf16.mxu0 0
      %871 = vmatpush2.bf16.msra.mxu0 0
      %872 = vmatprep.subr.bf16.mxu0 0
      %873 = vmatpush2.bf16.msra.mxu0 0
      %874 = vmatprep.subr.bf16.mxu0 0
      %875 = vmatpush2.bf16.msra.mxu0 0
      %876 = vmatprep.subr.bf16.mxu0 0
      %877 = vmatpush2.bf16.msra.mxu0 0
      %878 = vmatprep.subr.bf16.mxu0 0
      %879 = vmatpush2.bf16.msra.mxu0 0
      %880 = vmatprep.subr.bf16.mxu0 0
      %881 = vmatpush2.bf16.msra.mxu0 0
      %882 = vmatprep.mubr.bf16.mxu0 0
      %883 = vmatmul.mubr.bf16.gmra.mxu0 %v785
      %v884 = vpop.f32.mrf.mxu0
      %v885 = vadd.f32 0.0, %v884
      %v886 = vpop.f32.mrf.mxu0
      %v887 = vpop.f32.mrf.mxu0
      %v888 = vpop.f32.mrf.mxu0
      %889 = vdwg.mxu0
      %v890 = vld [vmem:[%s707] sm:$0xf]
      %v891 = vld [vmem:[%s707 + $0x4] sm:$0xf]
      %v892 = vld [vmem:[%s707 + $0x8] sm:$0xf]
      %v893 = vld [vmem:[%s707 + $0xc] sm:$0xf]
      %v894 = vld [vmem:[%s707 + $0x10] sm:$0xf]
      %v895 = vld [vmem:[%s707 + $0x14] sm:$0xf]
      %v896 = vld [vmem:[%s707 + $0x18] sm:$0xf]
      %v897 = vld [vmem:[%s707 + $0x1c] sm:$0xf]
      %v898 = vld [vmem:[%s707 + $0x20] sm:$0xf]
      %v899 = vld [vmem:[%s707 + $0x24] sm:$0xf]
      %v900 = vld [vmem:[%s707 + $0x28] sm:$0xf]
      %v901 = vld [vmem:[%s707 + $0x2c] sm:$0xf]
      %v902 = vld [vmem:[%s707 + $0x30] sm:$0xf]
      %v903 = vld [vmem:[%s707 + $0x34] sm:$0xf]
      %v904 = vld [vmem:[%s707 + $0x38] sm:$0xf]
      %v905 = vld [vmem:[%s707 + $0x3c] sm:$0xf]
      %v922 = vunpack.c.l.b16 %v890
      %v923 = vunpack.c.l.b16 %v891
      %v924 = vunpack.c.l.b16 %v892
      %v925 = vunpack.c.l.b16 %v893
      %v926 = vunpack.c.l.b16 %v894
      %v927 = vunpack.c.l.b16 %v895
      %v928 = vunpack.c.l.b16 %v896
      %v929 = vunpack.c.l.b16 %v897
      %v930 = vunpack.c.l.b16 %v898
      %v931 = vunpack.c.l.b16 %v899
      %v932 = vunpack.c.l.b16 %v900
      %v933 = vunpack.c.l.b16 %v901
      %v934 = vunpack.c.l.b16 %v902
      %v935 = vunpack.c.l.b16 %v903
      %v936 = vunpack.c.l.b16 %v904
      %v937 = vunpack.c.l.b16 %v905
      %v938 = vpack.c.b16 %v923, %v922
      %v939 = vpack.c.b16 %v925, %v924
      %v940 = vpack.c.b16 %v927, %v926
      %v941 = vpack.c.b16 %v929, %v928
      %v942 = vpack.c.b16 %v931, %v930
      %v943 = vpack.c.b16 %v933, %v932
      %v944 = vpack.c.b16 %v935, %v934
      %v945 = vpack.c.b16 %v937, %v936
      %954 = vmatprep.subr.bf16.mxu0 0
      %955 = vmatpush1.bf16.msra.mxu0 %v945
      %956 = vmatprep.subr.bf16.mxu0 0
      %957 = vmatpush1.bf16.msra.mxu0 %v944
      %958 = vmatprep.subr.bf16.mxu0 0
      %959 = vmatpush1.bf16.msra.mxu0 %v943
      %960 = vmatprep.subr.bf16.mxu0 0
      %961 = vmatpush1.bf16.msra.mxu0 %v942
      %962 = vmatprep.subr.bf16.mxu0 0
      %963 = vmatpush1.bf16.msra.mxu0 %v941
      %964 = vmatprep.subr.bf16.mxu0 0
      %965 = vmatpush1.bf16.msra.mxu0 %v940
      %966 = vmatprep.subr.bf16.mxu0 0
      %967 = vmatpush1.bf16.msra.mxu0 %v939
      %968 = vmatprep.subr.bf16.mxu0 0
      %969 = vmatpush1.bf16.msra.mxu0 %v938
      %970 = vmatprep.subr.bf16.mxu0 0
      %971 = vmatpush2.bf16.msra.mxu0 0
      %972 = vmatprep.subr.bf16.mxu0 0
      %973 = vmatpush2.bf16.msra.mxu0 0
      %974 = vmatprep.subr.bf16.mxu0 0
      %975 = vmatpush2.bf16.msra.mxu0 0
      %976 = vmatprep.subr.bf16.mxu0 0
      %977 = vmatpush2.bf16.msra.mxu0 0
      %978 = vmatprep.subr.bf16.mxu0 0
      %979 = vmatpush2.bf16.msra.mxu0 0
      %980 = vmatprep.subr.bf16.mxu0 0
      %981 = vmatpush2.bf16.msra.mxu0 0
      %982 = vmatprep.subr.bf16.mxu0 0
      %983 = vmatpush2.bf16.msra.mxu0 0
      %984 = vmatprep.subr.bf16.mxu0 0
      %985 = vmatpush2.bf16.msra.mxu0 0
      %986 = vmatprep.mubr.bf16.mxu0 0
      %987 = vmatmul.mubr.bf16.gmra.mxu0 %v785
      %v988 = vpop.f32.mrf.mxu0
      %v989 = vadd.f32 0.0, %v988
      %v990 = vpop.f32.mrf.mxu0
      %v991 = vpop.f32.mrf.mxu0
      %v992 = vpop.f32.mrf.mxu0
      %993 = vdwg.mxu0
      %v994 = vld [vmem:[%s712] sm:$0xf]
      %v995 = vld [vmem:[%s712 + $0x4] sm:$0xf]
      %v996 = vld [vmem:[%s712 + $0x8] sm:$0xf]
      %v997 = vld [vmem:[%s712 + $0xc] sm:$0xf]
      %v998 = vld [vmem:[%s712 + $0x10] sm:$0xf]
      %v999 = vld [vmem:[%s712 + $0x14] sm:$0xf]
      %v1000 = vld [vmem:[%s712 + $0x18] sm:$0xf]
      %v1001 = vld [vmem:[%s712 + $0x1c] sm:$0xf]
      %v1002 = vld [vmem:[%s712 + $0x20] sm:$0xf]
      %v1003 = vld [vmem:[%s712 + $0x24] sm:$0xf]
      %v1004 = vld [vmem:[%s712 + $0x28] sm:$0xf]
      %v1005 = vld [vmem:[%s712 + $0x2c] sm:$0xf]
      %v1006 = vld [vmem:[%s712 + $0x30] sm:$0xf]
      %v1007 = vld [vmem:[%s712 + $0x34] sm:$0xf]
      %v1008 = vld [vmem:[%s712 + $0x38] sm:$0xf]
      %v1009 = vld [vmem:[%s712 + $0x3c] sm:$0xf]
      %v1026 = vunpack.c.l.b16 %v994
      %v1027 = vunpack.c.l.b16 %v995
      %v1028 = vunpack.c.l.b16 %v996
      %v1029 = vunpack.c.l.b16 %v997
      %v1030 = vunpack.c.l.b16 %v998
      %v1031 = vunpack.c.l.b16 %v999
      %v1032 = vunpack.c.l.b16 %v1000
      %v1033 = vunpack.c.l.b16 %v1001
      %v1034 = vunpack.c.l.b16 %v1002
      %v1035 = vunpack.c.l.b16 %v1003
      %v1036 = vunpack.c.l.b16 %v1004
      %v1037 = vunpack.c.l.b16 %v1005
      %v1038 = vunpack.c.l.b16 %v1006
      %v1039 = vunpack.c.l.b16 %v1007
      %v1040 = vunpack.c.l.b16 %v1008
      %v1041 = vunpack.c.l.b16 %v1009
      %v1042 = vpack.c.b16 %v1027, %v1026
      %v1043 = vpack.c.b16 %v1029, %v1028
      %v1044 = vpack.c.b16 %v1031, %v1030
      %v1045 = vpack.c.b16 %v1033, %v1032
      %v1046 = vpack.c.b16 %v1035, %v1034
      %v1047 = vpack.c.b16 %v1037, %v1036
      %v1048 = vpack.c.b16 %v1039, %v1038
      %v1049 = vpack.c.b16 %v1041, %v1040
      %1058 = vmatprep.subr.bf16.mxu0 0
      %1059 = vmatpush1.bf16.msra.mxu0 %v1049
      %1060 = vmatprep.subr.bf16.mxu0 0
      %1061 = vmatpush1.bf16.msra.mxu0 %v1048
      %1062 = vmatprep.subr.bf16.mxu0 0
      %1063 = vmatpush1.bf16.msra.mxu0 %v1047
      %1064 = vmatprep.subr.bf16.mxu0 0
      %1065 = vmatpush1.bf16.msra.mxu0 %v1046
      %1066 = vmatprep.subr.bf16.mxu0 0
      %1067 = vmatpush1.bf16.msra.mxu0 %v1045
      %1068 = vmatprep.subr.bf16.mxu0 0
      %1069 = vmatpush1.bf16.msra.mxu0 %v1044
      %1070 = vmatprep.subr.bf16.mxu0 0
      %1071 = vmatpush1.bf16.msra.mxu0 %v1043
      %1072 = vmatprep.subr.bf16.mxu0 0
      %1073 = vmatpush1.bf16.msra.mxu0 %v1042
      %1074 = vmatprep.subr.bf16.mxu0 0
      %1075 = vmatpush2.bf16.msra.mxu0 0
      %1076 = vmatprep.subr.bf16.mxu0 0
      %1077 = vmatpush2.bf16.msra.mxu0 0
      %1078 = vmatprep.subr.bf16.mxu0 0
      %1079 = vmatpush2.bf16.msra.mxu0 0
      %1080 = vmatprep.subr.bf16.mxu0 0
      %1081 = vmatpush2.bf16.msra.mxu0 0
      %1082 = vmatprep.subr.bf16.mxu0 0
      %1083 = vmatpush2.bf16.msra.mxu0 0
      %1084 = vmatprep.subr.bf16.mxu0 0
      %1085 = vmatpush2.bf16.msra.mxu0 0
      %1086 = vmatprep.subr.bf16.mxu0 0
      %1087 = vmatpush2.bf16.msra.mxu0 0
      %1088 = vmatprep.subr.bf16.mxu0 0
      %1089 = vmatpush2.bf16.msra.mxu0 0
      %1090 = vmatprep.mubr.bf16.mxu0 0
      %1091 = vmatmul.mubr.bf16.gmra.mxu0 %v785
      %v1092 = vpop.f32.mrf.mxu0
      %v1093 = vadd.f32 0.0, %v1092
      %v1094 = vpop.f32.mrf.mxu0
      %v1095 = vpop.f32.mrf.mxu0
      %v1096 = vpop.f32.mrf.mxu0
      %1097 = vdwg.mxu0
      %v1098 = vlaneseq
      %v1099 = vand.u32 %v1098, 127
      %vm1100 = vcmp.lt.s32.totalorder %v1099, 3
      %v1101 = vpack.c.bf16 %v885, %v885
      %v1102 = vpack.c.bf16 %v989, %v989
      %v1103 = vpack.c.bf16 %v1093, %v1093
      %vm1104 = vcmask 64512
      %v1106 = vsel %vm1104, %v1101, 0
      %v1109 = vsel %vm1104, %v1102, 0
      %1111 = vmatprep.subr.bf16.mxu0 0
      %1112 = vmatpush1.bf16.xpose.msra.mxu0 0
      %1113 = vmatprep.subr.bf16.mxu0 0
      %1114 = vmatpush1.bf16.xpose.msra.mxu0 0
      %1115 = vmatprep.subr.bf16.mxu0 0
      %1116 = vmatpush1.bf16.xpose.msra.mxu0 0
      %1117 = vmatprep.subr.bf16.mxu0 0
      %1118 = vmatpush1.bf16.xpose.msra.mxu0 0
      %1119 = vmatprep.subr.bf16.mxu0 0
      %1120 = vmatpush1.bf16.xpose.msra.mxu0 0
      %1121 = vmatprep.subr.bf16.mxu0 0
      %1122 = vmatpush1.bf16.xpose.msra.mxu0 0
      %1123 = vmatprep.subr.bf16.mxu0 0
      %1124 = vmatpush1.bf16.xpose.msra.mxu0 0
      %1125 = vmatprep.subr.bf16.mxu0 0
      %1126 = vmatpush1.bf16.xpose.msra.mxu0 %v1109
      %1127 = vmatprep.subr.bf16.mxu0 0
      %1128 = vmatpush2.bf16.xpose.msra.mxu0 0
      %1129 = vmatprep.subr.bf16.mxu0 0
      %1130 = vmatpush2.bf16.xpose.msra.mxu0 0
      %1131 = vmatprep.subr.bf16.mxu0 0
      %1132 = vmatpush2.bf16.xpose.msra.mxu0 0
      %1133 = vmatprep.subr.bf16.mxu0 0
      %1134 = vmatpush2.bf16.xpose.msra.mxu0 0
      %1135 = vmatprep.subr.bf16.mxu0 0
      %1136 = vmatpush2.bf16.xpose.msra.mxu0 0
      %1137 = vmatprep.subr.bf16.mxu0 0
      %1138 = vmatpush2.bf16.xpose.msra.mxu0 0
      %1139 = vmatprep.subr.bf16.mxu0 0
      %1140 = vmatpush2.bf16.xpose.msra.mxu0 0
      %1141 = vmatprep.subr.bf16.mxu0 0
      %1142 = vmatpush2.bf16.xpose.msra.mxu0 0
      %1143 = vmatprep.mubr.bf16.mxu0 0
      %1144 = vmatmul.mubr.bf16.gmra.mxu0 %v1106
      %v1145 = vpop.f32.mrf.mxu0
      %v1146 = vadd.f32 0.0, %v1145
      %v1147 = vpop.f32.mrf.mxu0
      %v1148 = vpop.f32.mrf.mxu0
      %v1149 = vpop.f32.mrf.mxu0
      %1150 = vdwg.mxu0
      %v1151 = vsel %vm1100, %v1146, -1e+30
      %v1152 = vsel %vm1104, %v1151, -inf
      %1153 = vmax.xlane.f32.xlu0 %v1152
      %v1154 = vpop.xlane.xlu0 %1153
      %v1155 = vsub.f32 %v1151, %v1154
      %v1156 = vmul.f32 %v1155, 1.442695
      %v1157 = vpow.pop %v1156
      %v1158 = vsel %vm1104, %v1157, 0.0
      %1159 = vadd.xlane.f32.xlu0 %v1158
      %v1160 = vpop.xlane.xlu0 %1159
      %v1161 = vrcp.pop %v1160
      %v1162 = vmul.f32 %v1157, %v1161
      %v1163 = vpack.c.bf16 %v1162, %v1162
      %v1165 = vsel %vm1104, %v1163, 0
      %vm1167 = vcmask 1043456
      %v1169 = vsel %vm1167, %v1103, 0
      %1171 = vmatprep.subr.bf16.mxu0 0
      %1172 = vmatpush1.bf16.msra.mxu0 0
      %1173 = vmatprep.subr.bf16.mxu0 0
      %1174 = vmatpush1.bf16.msra.mxu0 0
      %1175 = vmatprep.subr.bf16.mxu0 0
      %1176 = vmatpush1.bf16.msra.mxu0 0
      %1177 = vmatprep.subr.bf16.mxu0 0
      %1178 = vmatpush1.bf16.msra.mxu0 0
      %1179 = vmatprep.subr.bf16.mxu0 0
      %1180 = vmatpush1.bf16.msra.mxu0 0
      %1181 = vmatprep.subr.bf16.mxu0 0
      %1182 = vmatpush1.bf16.msra.mxu0 0
      %1183 = vmatprep.subr.bf16.mxu0 0
      %1184 = vmatpush1.bf16.msra.mxu0 0
      %1185 = vmatprep.subr.bf16.mxu0 0
      %1186 = vmatpush1.bf16.msra.mxu0 %v1169
      %1187 = vmatprep.subr.bf16.mxu0 0
      %1188 = vmatpush2.bf16.msra.mxu0 0
      %1189 = vmatprep.subr.bf16.mxu0 0
      %1190 = vmatpush2.bf16.msra.mxu0 0
      %1191 = vmatprep.subr.bf16.mxu0 0
      %1192 = vmatpush2.bf16.msra.mxu0 0
      %1193 = vmatprep.subr.bf16.mxu0 0
      %1194 = vmatpush2.bf16.msra.mxu0 0
      %1195 = vmatprep.subr.bf16.mxu0 0
      %1196 = vmatpush2.bf16.msra.mxu0 0
      %1197 = vmatprep.subr.bf16.mxu0 0
      %1198 = vmatpush2.bf16.msra.mxu0 0
      %1199 = vmatprep.subr.bf16.mxu0 0
      %1200 = vmatpush2.bf16.msra.mxu0 0
      %1201 = vmatprep.subr.bf16.mxu0 0
      %1202 = vmatpush2.bf16.msra.mxu0 0
      %1203 = vmatprep.mubr.bf16.mxu0 0
      %1204 = vmatmul.mubr.bf16.gmra.mxu0 %v1165
      %v1205 = vpop.f32.mrf.mxu0
      %v1206 = vadd.f32 0.0, %v1205
      %v1207 = vpop.f32.mrf.mxu0
      %v1208 = vpop.f32.mrf.mxu0
      %v1209 = vpop.f32.mrf.mxu0
      %1210 = vdwg.mxu0
      %1212 = vrot.lane.b32.xlu0 %v1101, 120
      %v1213 = vpop.permute.xlu0 %1212
      %1215 = vrot.lane.b32.xlu0 %v1102, 120
      %v1216 = vpop.permute.xlu0 %1215
      %v1218 = vsel %vm1104, %v1213, 0
      %v1221 = vsel %vm1104, %v1216, 0
      %1223 = vmatprep.subr.bf16.mxu0 0
      %1224 = vmatpush1.bf16.xpose.msra.mxu0 0
      %1225 = vmatprep.subr.bf16.mxu0 0
      %1226 = vmatpush1.bf16.xpose.msra.mxu0 0
      %1227 = vmatprep.subr.bf16.mxu0 0
      %1228 = vmatpush1.bf16.xpose.msra.mxu0 0
      %1229 = vmatprep.subr.bf16.mxu0 0
      %1230 = vmatpush1.bf16.xpose.msra.mxu0 0
      %1231 = vmatprep.subr.bf16.mxu0 0
      %1232 = vmatpush1.bf16.xpose.msra.mxu0 0
      %1233 = vmatprep.subr.bf16.mxu0 0
      %1234 = vmatpush1.bf16.xpose.msra.mxu0 0
      %1235 = vmatprep.subr.bf16.mxu0 0
      %1236 = vmatpush1.bf16.xpose.msra.mxu0 0
      %1237 = vmatprep.subr.bf16.mxu0 0
      %1238 = vmatpush1.bf16.xpose.msra.mxu0 %v1221
      %1239 = vmatprep.subr.bf16.mxu0 0
      %1240 = vmatpush2.bf16.xpose.msra.mxu0 0
      %1241 = vmatprep.subr.bf16.mxu0 0
      %1242 = vmatpush2.bf16.xpose.msra.mxu0 0
      %1243 = vmatprep.subr.bf16.mxu0 0
      %1244 = vmatpush2.bf16.xpose.msra.mxu0 0
      %1245 = vmatprep.subr.bf16.mxu0 0
      %1246 = vmatpush2.bf16.xpose.msra.mxu0 0
      %1247 = vmatprep.subr.bf16.mxu0 0
      %1248 = vmatpush2.bf16.xpose.msra.mxu0 0
      %1249 = vmatprep.subr.bf16.mxu0 0
      %1250 = vmatpush2.bf16.xpose.msra.mxu0 0
      %1251 = vmatprep.subr.bf16.mxu0 0
      %1252 = vmatpush2.bf16.xpose.msra.mxu0 0
      %1253 = vmatprep.subr.bf16.mxu0 0
      %1254 = vmatpush2.bf16.xpose.msra.mxu0 0
      %1255 = vmatprep.mubr.bf16.mxu0 0
      %1256 = vmatmul.mubr.bf16.gmra.mxu0 %v1218
      %v1257 = vpop.f32.mrf.mxu0
      %v1258 = vadd.f32 0.0, %v1257
      %v1259 = vpop.f32.mrf.mxu0
      %v1260 = vpop.f32.mrf.mxu0
      %v1261 = vpop.f32.mrf.mxu0
      %1262 = vdwg.mxu0
      %v1263 = vsel %vm1100, %v1258, -1e+30
      %v1264 = vsel %vm1104, %v1263, -inf
      %1265 = vmax.xlane.f32.xlu0 %v1264
      %v1266 = vpop.xlane.xlu0 %1265
      %v1267 = vsub.f32 %v1263, %v1266
      %v1268 = vmul.f32 %v1267, 1.442695
      %v1269 = vpow.pop %v1268
      %v1270 = vsel %vm1104, %v1269, 0.0
      %1271 = vadd.xlane.f32.xlu0 %v1270
      %v1272 = vpop.xlane.xlu0 %1271
      %v1273 = vrcp.pop %v1272
      %v1274 = vmul.f32 %v1269, %v1273
      %v1275 = vpack.c.bf16 %v1274, %v1274
      %1277 = vrot.lane.b32.xlu0 %v1103, 120
      %v1278 = vpop.permute.xlu0 %1277
      %v1280 = vsel %vm1104, %v1275, 0
      %v1283 = vsel %vm1167, %v1278, 0
      %1285 = vmatprep.subr.bf16.mxu0 0
      %1286 = vmatpush1.bf16.msra.mxu0 0
      %1287 = vmatprep.subr.bf16.mxu0 0
      %1288 = vmatpush1.bf16.msra.mxu0 0
      %1289 = vmatprep.subr.bf16.mxu0 0
      %1290 = vmatpush1.bf16.msra.mxu0 0
      %1291 = vmatprep.subr.bf16.mxu0 0
      %1292 = vmatpush1.bf16.msra.mxu0 0
      %1293 = vmatprep.subr.bf16.mxu0 0
      %1294 = vmatpush1.bf16.msra.mxu0 0
      %1295 = vmatprep.subr.bf16.mxu0 0
      %1296 = vmatpush1.bf16.msra.mxu0 0
      %1297 = vmatprep.subr.bf16.mxu0 0
      %1298 = vmatpush1.bf16.msra.mxu0 0
      %1299 = vmatprep.subr.bf16.mxu0 0
      %1300 = vmatpush1.bf16.msra.mxu0 %v1283
      %1301 = vmatprep.subr.bf16.mxu0 0
      %1302 = vmatpush2.bf16.msra.mxu0 0
      %1303 = vmatprep.subr.bf16.mxu0 0
      %1304 = vmatpush2.bf16.msra.mxu0 0
      %1305 = vmatprep.subr.bf16.mxu0 0
      %1306 = vmatpush2.bf16.msra.mxu0 0
      %1307 = vmatprep.subr.bf16.mxu0 0
      %1308 = vmatpush2.bf16.msra.mxu0 0
      %1309 = vmatprep.subr.bf16.mxu0 0
      %1310 = vmatpush2.bf16.msra.mxu0 0
      %1311 = vmatprep.subr.bf16.mxu0 0
      %1312 = vmatpush2.bf16.msra.mxu0 0
      %1313 = vmatprep.subr.bf16.mxu0 0
      %1314 = vmatpush2.bf16.msra.mxu0 0
      %1315 = vmatprep.subr.bf16.mxu0 0
      %1316 = vmatpush2.bf16.msra.mxu0 0
      %1317 = vmatprep.mubr.bf16.mxu0 0
      %1318 = vmatmul.mubr.bf16.gmra.mxu0 %v1280
      %v1319 = vpop.f32.mrf.mxu0
      %v1320 = vadd.f32 0.0, %v1319
      %v1321 = vpop.f32.mrf.mxu0
      %v1322 = vpop.f32.mrf.mxu0
      %v1323 = vpop.f32.mrf.mxu0
      %1324 = vdwg.mxu0
      %1325 = vrot.lane.b32.xlu0 %v1101, 112
      %v1326 = vpop.permute.xlu0 %1325
      %1327 = vrot.lane.b32.xlu0 %v1102, 112
      %v1328 = vpop.permute.xlu0 %1327
      %v1330 = vsel %vm1104, %v1326, 0
      %v1333 = vsel %vm1104, %v1328, 0
      %1335 = vmatprep.subr.bf16.mxu0 0
      %1336 = vmatpush1.bf16.xpose.msra.mxu0 0
      %1337 = vmatprep.subr.bf16.mxu0 0
      %1338 = vmatpush1.bf16.xpose.msra.mxu0 0
      %1339 = vmatprep.subr.bf16.mxu0 0
      %1340 = vmatpush1.bf16.xpose.msra.mxu0 0
      %1341 = vmatprep.subr.bf16.mxu0 0
      %1342 = vmatpush1.bf16.xpose.msra.mxu0 0
      %1343 = vmatprep.subr.bf16.mxu0 0
      %1344 = vmatpush1.bf16.xpose.msra.mxu0 0
      %1345 = vmatprep.subr.bf16.mxu0 0
      %1346 = vmatpush1.bf16.xpose.msra.mxu0 0
      %1347 = vmatprep.subr.bf16.mxu0 0
      %1348 = vmatpush1.bf16.xpose.msra.mxu0 0
      %1349 = vmatprep.subr.bf16.mxu0 0
      %1350 = vmatpush1.bf16.xpose.msra.mxu0 %v1333
      %1351 = vmatprep.subr.bf16.mxu0 0
      %1352 = vmatpush2.bf16.xpose.msra.mxu0 0
      %1353 = vmatprep.subr.bf16.mxu0 0
      %1354 = vmatpush2.bf16.xpose.msra.mxu0 0
      %1355 = vmatprep.subr.bf16.mxu0 0
      %1356 = vmatpush2.bf16.xpose.msra.mxu0 0
      %1357 = vmatprep.subr.bf16.mxu0 0
      %1358 = vmatpush2.bf16.xpose.msra.mxu0 0
      %1359 = vmatprep.subr.bf16.mxu0 0
      %1360 = vmatpush2.bf16.xpose.msra.mxu0 0
      %1361 = vmatprep.subr.bf16.mxu0 0
      %1362 = vmatpush2.bf16.xpose.msra.mxu0 0
      %1363 = vmatprep.subr.bf16.mxu0 0
      %1364 = vmatpush2.bf16.xpose.msra.mxu0 0
      %1365 = vmatprep.subr.bf16.mxu0 0
      %1366 = vmatpush2.bf16.xpose.msra.mxu0 0
      %1367 = vmatprep.mubr.bf16.mxu0 0
      %1368 = vmatmul.mubr.bf16.gmra.mxu0 %v1330
      %v1369 = vpop.f32.mrf.mxu0
      %v1370 = vadd.f32 0.0, %v1369
      %v1371 = vpop.f32.mrf.mxu0
      %v1372 = vpop.f32.mrf.mxu0
      %v1373 = vpop.f32.mrf.mxu0
      %1374 = vdwg.mxu0
      %v1375 = vsel %vm1100, %v1370, -1e+30
      %v1376 = vsel %vm1104, %v1375, -inf
      %1377 = vmax.xlane.f32.xlu0 %v1376
      %v1378 = vpop.xlane.xlu0 %1377
      %v1379 = vsub.f32 %v1375, %v1378
      %v1380 = vmul.f32 %v1379, 1.442695
      %v1381 = vpow.pop %v1380
      %v1382 = vsel %vm1104, %v1381, 0.0
      %1383 = vadd.xlane.f32.xlu0 %v1382
      %v1384 = vpop.xlane.xlu0 %1383
      %v1385 = vrcp.pop %v1384
      %v1386 = vmul.f32 %v1381, %v1385
      %v1387 = vpack.c.bf16 %v1386, %v1386
      %1388 = vrot.lane.b32.xlu0 %v1103, 112
      %v1389 = vpop.permute.xlu0 %1388
      %v1391 = vsel %vm1104, %v1387, 0
      %v1394 = vsel %vm1167, %v1389, 0
      %1396 = vmatprep.subr.bf16.mxu0 0
      %1397 = vmatpush1.bf16.msra.mxu0 0
      %1398 = vmatprep.subr.bf16.mxu0 0
      %1399 = vmatpush1.bf16.msra.mxu0 0
      %1400 = vmatprep.subr.bf16.mxu0 0
      %1401 = vmatpush1.bf16.msra.mxu0 0
      %1402 = vmatprep.subr.bf16.mxu0 0
      %1403 = vmatpush1.bf16.msra.mxu0 0
      %1404 = vmatprep.subr.bf16.mxu0 0
      %1405 = vmatpush1.bf16.msra.mxu0 0
      %1406 = vmatprep.subr.bf16.mxu0 0
      %1407 = vmatpush1.bf16.msra.mxu0 0
      %1408 = vmatprep.subr.bf16.mxu0 0
      %1409 = vmatpush1.bf16.msra.mxu0 0
      %1410 = vmatprep.subr.bf16.mxu0 0
      %1411 = vmatpush1.bf16.msra.mxu0 %v1394
      %1412 = vmatprep.subr.bf16.mxu0 0
      %1413 = vmatpush2.bf16.msra.mxu0 0
      %1414 = vmatprep.subr.bf16.mxu0 0
      %1415 = vmatpush2.bf16.msra.mxu0 0
      %1416 = vmatprep.subr.bf16.mxu0 0
      %1417 = vmatpush2.bf16.msra.mxu0 0
      %1418 = vmatprep.subr.bf16.mxu0 0
      %1419 = vmatpush2.bf16.msra.mxu0 0
      %1420 = vmatprep.subr.bf16.mxu0 0
      %1421 = vmatpush2.bf16.msra.mxu0 0
      %1422 = vmatprep.subr.bf16.mxu0 0
      %1423 = vmatpush2.bf16.msra.mxu0 0
      %1424 = vmatprep.subr.bf16.mxu0 0
      %1425 = vmatpush2.bf16.msra.mxu0 0
      %1426 = vmatprep.subr.bf16.mxu0 0
      %1427 = vmatpush2.bf16.msra.mxu0 0
      %1428 = vmatprep.mubr.bf16.mxu0 0
      %1429 = vmatmul.mubr.bf16.gmra.mxu0 %v1391
      %v1430 = vpop.f32.mrf.mxu0
      %v1431 = vadd.f32 0.0, %v1430
      %v1432 = vpop.f32.mrf.mxu0
      %v1433 = vpop.f32.mrf.mxu0
      %v1434 = vpop.f32.mrf.mxu0
      %1435 = vdwg.mxu0
      %1436 = vrot.lane.b32.xlu0 %v1101, 104
      %v1437 = vpop.permute.xlu0 %1436
      %1438 = vrot.lane.b32.xlu0 %v1102, 104
      %v1439 = vpop.permute.xlu0 %1438
      %v1441 = vsel %vm1104, %v1437, 0
      %v1444 = vsel %vm1104, %v1439, 0
      %1446 = vmatprep.subr.bf16.mxu0 0
      %1447 = vmatpush1.bf16.xpose.msra.mxu0 0
      %1448 = vmatprep.subr.bf16.mxu0 0
      %1449 = vmatpush1.bf16.xpose.msra.mxu0 0
      %1450 = vmatprep.subr.bf16.mxu0 0
      %1451 = vmatpush1.bf16.xpose.msra.mxu0 0
      %1452 = vmatprep.subr.bf16.mxu0 0
      %1453 = vmatpush1.bf16.xpose.msra.mxu0 0
      %1454 = vmatprep.subr.bf16.mxu0 0
      %1455 = vmatpush1.bf16.xpose.msra.mxu0 0
      %1456 = vmatprep.subr.bf16.mxu0 0
      %1457 = vmatpush1.bf16.xpose.msra.mxu0 0
      %1458 = vmatprep.subr.bf16.mxu0 0
      %1459 = vmatpush1.bf16.xpose.msra.mxu0 0
      %1460 = vmatprep.subr.bf16.mxu0 0
      %1461 = vmatpush1.bf16.xpose.msra.mxu0 %v1444
      %1462 = vmatprep.subr.bf16.mxu0 0
      %1463 = vmatpush2.bf16.xpose.msra.mxu0 0
      %1464 = vmatprep.subr.bf16.mxu0 0
      %1465 = vmatpush2.bf16.xpose.msra.mxu0 0
      %1466 = vmatprep.subr.bf16.mxu0 0
      %1467 = vmatpush2.bf16.xpose.msra.mxu0 0
      %1468 = vmatprep.subr.bf16.mxu0 0
      %1469 = vmatpush2.bf16.xpose.msra.mxu0 0
      %1470 = vmatprep.subr.bf16.mxu0 0
      %1471 = vmatpush2.bf16.xpose.msra.mxu0 0
      %1472 = vmatprep.subr.bf16.mxu0 0
      %1473 = vmatpush2.bf16.xpose.msra.mxu0 0
      %1474 = vmatprep.subr.bf16.mxu0 0
      %1475 = vmatpush2.bf16.xpose.msra.mxu0 0
      %1476 = vmatprep.subr.bf16.mxu0 0
      %1477 = vmatpush2.bf16.xpose.msra.mxu0 0
      %1478 = vmatprep.mubr.bf16.mxu0 0
      %1479 = vmatmul.mubr.bf16.gmra.mxu0 %v1441
      %v1480 = vpop.f32.mrf.mxu0
      %v1481 = vadd.f32 0.0, %v1480
      %v1482 = vpop.f32.mrf.mxu0
      %v1483 = vpop.f32.mrf.mxu0
      %v1484 = vpop.f32.mrf.mxu0
      %1485 = vdwg.mxu0
      %v1486 = vsel %vm1100, %v1481, -1e+30
      %v1487 = vsel %vm1104, %v1486, -inf
      %1488 = vmax.xlane.f32.xlu0 %v1487
      %v1489 = vpop.xlane.xlu0 %1488
      %v1490 = vsub.f32 %v1486, %v1489
      %v1491 = vmul.f32 %v1490, 1.442695
      %v1492 = vpow.pop %v1491
      %v1493 = vsel %vm1104, %v1492, 0.0
      %1494 = vadd.xlane.f32.xlu0 %v1493
      %v1495 = vpop.xlane.xlu0 %1494
      %v1496 = vrcp.pop %v1495
      %v1497 = vmul.f32 %v1492, %v1496
      %v1498 = vpack.c.bf16 %v1497, %v1497
      %1499 = vrot.lane.b32.xlu0 %v1103, 104
      %v1500 = vpop.permute.xlu0 %1499
      %v1502 = vsel %vm1104, %v1498, 0
      %v1505 = vsel %vm1167, %v1500, 0
      %1507 = vmatprep.subr.bf16.mxu0 0
      %1508 = vmatpush1.bf16.msra.mxu0 0
      %1509 = vmatprep.subr.bf16.mxu0 0
      %1510 = vmatpush1.bf16.msra.mxu0 0
      %1511 = vmatprep.subr.bf16.mxu0 0
      %1512 = vmatpush1.bf16.msra.mxu0 0
      %1513 = vmatprep.subr.bf16.mxu0 0
      %1514 = vmatpush1.bf16.msra.mxu0 0
      %1515 = vmatprep.subr.bf16.mxu0 0
      %1516 = vmatpush1.bf16.msra.mxu0 0
      %1517 = vmatprep.subr.bf16.mxu0 0
      %1518 = vmatpush1.bf16.msra.mxu0 0
      %1519 = vmatprep.subr.bf16.mxu0 0
      %1520 = vmatpush1.bf16.msra.mxu0 0
      %1521 = vmatprep.subr.bf16.mxu0 0
      %1522 = vmatpush1.bf16.msra.mxu0 %v1505
      %1523 = vmatprep.subr.bf16.mxu0 0
      %1524 = vmatpush2.bf16.msra.mxu0 0
      %1525 = vmatprep.subr.bf16.mxu0 0
      %1526 = vmatpush2.bf16.msra.mxu0 0
      %1527 = vmatprep.subr.bf16.mxu0 0
      %1528 = vmatpush2.bf16.msra.mxu0 0
      %1529 = vmatprep.subr.bf16.mxu0 0
      %1530 = vmatpush2.bf16.msra.mxu0 0
      %1531 = vmatprep.subr.bf16.mxu0 0
      %1532 = vmatpush2.bf16.msra.mxu0 0
      %1533 = vmatprep.subr.bf16.mxu0 0
      %1534 = vmatpush2.bf16.msra.mxu0 0
      %1535 = vmatprep.subr.bf16.mxu0 0
      %1536 = vmatpush2.bf16.msra.mxu0 0
      %1537 = vmatprep.subr.bf16.mxu0 0
      %1538 = vmatpush2.bf16.msra.mxu0 0
      %1539 = vmatprep.mubr.bf16.mxu0 0
      %1540 = vmatmul.mubr.bf16.gmra.mxu0 %v1502
      %v1541 = vpop.f32.mrf.mxu0
      %v1542 = vadd.f32 0.0, %v1541
      %v1543 = vpop.f32.mrf.mxu0
      %v1544 = vpop.f32.mrf.mxu0
      %v1545 = vpop.f32.mrf.mxu0
      %1546 = vdwg.mxu0
      %1548 = vrot.lane.b32.xlu0 %v1320, 8
      %v1549 = vpop.permute.xlu0 %1548
      %1552 = vrot.lane.b32.xlu0 %v1431, 16
      %v1553 = vpop.permute.xlu0 %1552
      %1556 = vrot.lane.b32.xlu0 %v1542, 24
      %v1557 = vpop.permute.xlu0 %1556
      %v1559 = vsel %vm1104, %v1206, %v1549
      %vm1560 = vcmask 130048
      %v1561 = vsel %vm1560, %v1559, %v1553
      %vm1562 = vcmask 195584
      %v1563 = vsel %vm1562, %v1561, %v1557
      %v1564 = vld [vmem:[%s717] sm:$0xf]
      %v1565 = vld [vmem:[%s717 + $0x4] sm:$0xf]
      %v1566 = vld [vmem:[%s717 + $0x8] sm:$0xf]
      %v1567 = vld [vmem:[%s717 + $0xc] sm:$0xf]
      %v1568 = vpack.c.bf16 %v1563, %v1563
      %v1573 = vunpack.c.l.b16 %v1564
      %v1574 = vunpack.c.l.b16 %v1565
      %v1575 = vunpack.c.l.b16 %v1566
      %v1576 = vunpack.c.l.b16 %v1567
      %v1577 = vpack.c.b16 %v1574, %v1573
      %v1578 = vpack.c.b16 %v1576, %v1575
      %vm1581 = vcmask 261120
      %v1583 = vsel %vm1581, %v1568, 0
      %1585 = vmatprep.subr.bf16.mxu0 0
      %1586 = vmatpush1.bf16.msra.mxu0 0
      %1587 = vmatprep.subr.bf16.mxu0 0
      %1588 = vmatpush1.bf16.msra.mxu0 0
      %1589 = vmatprep.subr.bf16.mxu0 0
      %1590 = vmatpush1.bf16.msra.mxu0 0
      %1591 = vmatprep.subr.bf16.mxu0 0
      %1592 = vmatpush1.bf16.msra.mxu0 0
      %1593 = vmatprep.subr.bf16.mxu0 0
      %1594 = vmatpush1.bf16.msra.mxu0 0
      %1595 = vmatprep.subr.bf16.mxu0 0
      %1596 = vmatpush1.bf16.msra.mxu0 0
      %1597 = vmatprep.subr.bf16.mxu0 0
      %1598 = vmatpush1.bf16.msra.mxu0 %v1578
      %1599 = vmatprep.subr.bf16.mxu0 0
      %1600 = vmatpush1.bf16.msra.mxu0 %v1577
      %1601 = vmatprep.subr.bf16.mxu0 0
      %1602 = vmatpush2.bf16.msra.mxu0 0
      %1603 = vmatprep.subr.bf16.mxu0 0
      %1604 = vmatpush2.bf16.msra.mxu0 0
      %1605 = vmatprep.subr.bf16.mxu0 0
      %1606 = vmatpush2.bf16.msra.mxu0 0
      %1607 = vmatprep.subr.bf16.mxu0 0
      %1608 = vmatpush2.bf16.msra.mxu0 0
      %1609 = vmatprep.subr.bf16.mxu0 0
      %1610 = vmatpush2.bf16.msra.mxu0 0
      %1611 = vmatprep.subr.bf16.mxu0 0
      %1612 = vmatpush2.bf16.msra.mxu0 0
      %1613 = vmatprep.subr.bf16.mxu0 0
      %1614 = vmatpush2.bf16.msra.mxu0 0
      %1615 = vmatprep.subr.bf16.mxu0 0
      %1616 = vmatpush2.bf16.msra.mxu0 0
      %1617 = vmatprep.mubr.bf16.mxu0 0
      %1618 = vmatmul.mubr.bf16.gmra.mxu0 %v1583
      %v1619 = vpop.f32.mrf.mxu0
      %v1620 = vadd.f32 0.0, %v1619
      %v1621 = vpop.f32.mrf.mxu0
      %v1622 = vpop.f32.mrf.mxu0
      %v1623 = vpop.f32.mrf.mxu0
      %1624 = vdwg.mxu0
      %v1625 = vadd.f32 %v754, %v1620
      %v1626 = vld [vmem:[%s720] sm:$0x1]
      %v1628 = vlaneseq
      %v1629 = vshrl.u32 %v1628, 7
      %v1630 = vsub.s32 0, %v1629
      %v1631 = vrot.slane %v1626, %v1630
      %v1633 = vadd.f32 %v1625, %v1631
      %v1634 = vld [vmem:[%s723] sm:$0x1]
      %v1635 = vld [vmem:[%s726] sm:$0x1]
      %1636 = vadd.xlane.f32.xlu0 %v1633
      %v1637 = vpop.xlane.xlu0 %1636
      %v1638 = vmul.f32 %v1633, %v1633
      %1639 = vadd.xlane.f32.xlu0 %v1638
      %v1640 = vpop.xlane.xlu0 %1639
      %v1641 = vmul.f32 %v1637, %v762
      %v1642 = vmul.f32 %v1640, %v762
      %v1643 = vmul.f32 %v1641, %v1641
      %v1644 = vsub.f32 %v1642, %v1643
      %v1645 = vsub.f32 %v1633, %v1641
      %v1646 = vadd.f32 %v1644, 1e-05
      %v1647 = vrsqrt.pop %v1646
      %v1648 = vmul.f32 %v1645, %v1647
      %v1650 = vlaneseq
      %v1651 = vshrl.u32 %v1650, 7
      %v1652 = vsub.s32 0, %v1651
      %v1653 = vrot.slane %v1634, %v1652
      %v1655 = vmul.f32 %v1648, %v1653
      %v1657 = vlaneseq
      %v1658 = vshrl.u32 %v1657, 7
      %v1659 = vsub.s32 0, %v1658
      %v1660 = vrot.slane %v1635, %v1659
      %v1662 = vadd.f32 %v1655, %v1660
      %v1663 = vpack.c.bf16 %v1662, %v1662
      %v1664 = vld [vmem:[%s731] sm:$0xf]
      %v1665 = vld [vmem:[%s731 + $0x4] sm:$0xf]
      %v1666 = vld [vmem:[%s731 + $0x8] sm:$0xf]
      %v1667 = vld [vmem:[%s731 + $0xc] sm:$0xf]
      %v1668 = vld [vmem:[%s731 + $0x10] sm:$0xf]
      %v1669 = vld [vmem:[%s731 + $0x14] sm:$0xf]
      %v1670 = vld [vmem:[%s731 + $0x18] sm:$0xf]
      %v1671 = vld [vmem:[%s731 + $0x1c] sm:$0xf]
      %v1672 = vld [vmem:[%s731 + $0x20] sm:$0xf]
      %v1673 = vld [vmem:[%s731 + $0x24] sm:$0xf]
      %v1674 = vld [vmem:[%s731 + $0x28] sm:$0xf]
      %v1675 = vld [vmem:[%s731 + $0x2c] sm:$0xf]
      %v1676 = vld [vmem:[%s731 + $0x30] sm:$0xf]
      %v1677 = vld [vmem:[%s731 + $0x34] sm:$0xf]
      %v1678 = vld [vmem:[%s731 + $0x38] sm:$0xf]
      %v1679 = vld [vmem:[%s731 + $0x3c] sm:$0xf]
      %v1680 = vld [vmem:[%s734] sm:$0x1]
      %v1682 = vlaneseq
      %v1683 = vshrl.u32 %v1682, 7
      %v1684 = vsub.s32 0, %v1683
      %v1685 = vrot.slane %v1680, %v1684
      %v1703 = vunpack.c.l.b16 %v1664
      %v1704 = vunpack.c.l.b16 %v1665
      %v1705 = vunpack.c.l.b16 %v1666
      %v1706 = vunpack.c.l.b16 %v1667
      %v1707 = vunpack.c.l.b16 %v1668
      %v1708 = vunpack.c.l.b16 %v1669
      %v1709 = vunpack.c.l.b16 %v1670
      %v1710 = vunpack.c.l.b16 %v1671
      %v1711 = vunpack.c.l.b16 %v1672
      %v1712 = vunpack.c.l.b16 %v1673
      %v1713 = vunpack.c.l.b16 %v1674
      %v1714 = vunpack.c.l.b16 %v1675
      %v1715 = vunpack.c.l.b16 %v1676
      %v1716 = vunpack.c.l.b16 %v1677
      %v1717 = vunpack.c.l.b16 %v1678
      %v1718 = vunpack.c.l.b16 %v1679
      %v1719 = vpack.c.b16 %v1704, %v1703
      %v1720 = vpack.c.b16 %v1706, %v1705
      %v1721 = vpack.c.b16 %v1708, %v1707
      %v1722 = vpack.c.b16 %v1710, %v1709
      %v1723 = vpack.c.b16 %v1712, %v1711
      %v1724 = vpack.c.b16 %v1714, %v1713
      %v1725 = vpack.c.b16 %v1716, %v1715
      %v1726 = vpack.c.b16 %v1718, %v1717
      %1735 = vmatprep.subr.bf16.mxu0 0
      %1736 = vmatpush1.bf16.msra.mxu0 %v1726
      %1737 = vmatprep.subr.bf16.mxu0 0
      %1738 = vmatpush1.bf16.msra.mxu0 %v1725
      %1739 = vmatprep.subr.bf16.mxu0 0
      %1740 = vmatpush1.bf16.msra.mxu0 %v1724
      %1741 = vmatprep.subr.bf16.mxu0 0
      %1742 = vmatpush1.bf16.msra.mxu0 %v1723
      %1743 = vmatprep.subr.bf16.mxu0 0
      %1744 = vmatpush1.bf16.msra.mxu0 %v1722
      %1745 = vmatprep.subr.bf16.mxu0 0
      %1746 = vmatpush1.bf16.msra.mxu0 %v1721
      %1747 = vmatprep.subr.bf16.mxu0 0
      %1748 = vmatpush1.bf16.msra.mxu0 %v1720
      %1749 = vmatprep.subr.bf16.mxu0 0
      %1750 = vmatpush1.bf16.msra.mxu0 %v1719
      %1751 = vmatprep.subr.bf16.mxu0 0
      %1752 = vmatpush2.bf16.msra.mxu0 0
      %1753 = vmatprep.subr.bf16.mxu0 0
      %1754 = vmatpush2.bf16.msra.mxu0 0
      %1755 = vmatprep.subr.bf16.mxu0 0
      %1756 = vmatpush2.bf16.msra.mxu0 0
      %1757 = vmatprep.subr.bf16.mxu0 0
      %1758 = vmatpush2.bf16.msra.mxu0 0
      %1759 = vmatprep.subr.bf16.mxu0 0
      %1760 = vmatpush2.bf16.msra.mxu0 0
      %1761 = vmatprep.subr.bf16.mxu0 0
      %1762 = vmatpush2.bf16.msra.mxu0 0
      %1763 = vmatprep.subr.bf16.mxu0 0
      %1764 = vmatpush2.bf16.msra.mxu0 0
      %1765 = vmatprep.subr.bf16.mxu0 0
      %1766 = vmatpush2.bf16.msra.mxu0 0
      %1767 = vmatprep.mubr.bf16.mxu0 0
      %1768 = vmatmul.mubr.bf16.gmra.mxu0 %v1663
      %v1769 = vpop.f32.mrf.mxu0
      %v1770 = vadd.f32 %v1685, %v1769
      %v1771 = vpop.f32.mrf.mxu0
      %v1772 = vpop.f32.mrf.mxu0
      %v1773 = vpop.f32.mrf.mxu0
      %1774 = vdwg.mxu0
      %v1775 = vmul.f32 %v1770, 0.5
      %v1776 = vmul.f32 %v1770, 0.70710677
      %v1777 = verf.f32.pop %v1776
      %v1778 = vadd.f32 %v1777, 1.0
      %v1779 = vmul.f32 %v1775, %v1778
      %v1780 = vld [vmem:[%s739] sm:$0xf]
      %v1781 = vld [vmem:[%s739 + $0x4] sm:$0xf]
      %v1782 = vld [vmem:[%s739 + $0x8] sm:$0xf]
      %v1783 = vld [vmem:[%s739 + $0xc] sm:$0xf]
      %v1784 = vld [vmem:[%s739 + $0x10] sm:$0xf]
      %v1785 = vld [vmem:[%s739 + $0x14] sm:$0xf]
      %v1786 = vld [vmem:[%s739 + $0x18] sm:$0xf]
      %v1787 = vld [vmem:[%s739 + $0x1c] sm:$0xf]
      %v1788 = vld [vmem:[%s739 + $0x20] sm:$0xf]
      %v1789 = vld [vmem:[%s739 + $0x24] sm:$0xf]
      %v1790 = vld [vmem:[%s739 + $0x28] sm:$0xf]
      %v1791 = vld [vmem:[%s739 + $0x2c] sm:$0xf]
      %v1792 = vld [vmem:[%s739 + $0x30] sm:$0xf]
      %v1793 = vld [vmem:[%s739 + $0x34] sm:$0xf]
      %v1794 = vld [vmem:[%s739 + $0x38] sm:$0xf]
      %v1795 = vld [vmem:[%s739 + $0x3c] sm:$0xf]
      %v1796 = vpack.c.bf16 %v1779, %v1779
      %v1813 = vunpack.c.l.b16 %v1780
      %v1814 = vunpack.c.l.b16 %v1781
      %v1815 = vunpack.c.l.b16 %v1782
      %v1816 = vunpack.c.l.b16 %v1783
      %v1817 = vunpack.c.l.b16 %v1784
      %v1818 = vunpack.c.l.b16 %v1785
      %v1819 = vunpack.c.l.b16 %v1786
      %v1820 = vunpack.c.l.b16 %v1787
      %v1821 = vunpack.c.l.b16 %v1788
      %v1822 = vunpack.c.l.b16 %v1789
      %v1823 = vunpack.c.l.b16 %v1790
      %v1824 = vunpack.c.l.b16 %v1791
      %v1825 = vunpack.c.l.b16 %v1792
      %v1826 = vunpack.c.l.b16 %v1793
      %v1827 = vunpack.c.l.b16 %v1794
      %v1828 = vunpack.c.l.b16 %v1795
      %v1829 = vpack.c.b16 %v1814, %v1813
      %v1830 = vpack.c.b16 %v1816, %v1815
      %v1831 = vpack.c.b16 %v1818, %v1817
      %v1832 = vpack.c.b16 %v1820, %v1819
      %v1833 = vpack.c.b16 %v1822, %v1821
      %v1834 = vpack.c.b16 %v1824, %v1823
      %v1835 = vpack.c.b16 %v1826, %v1825
      %v1836 = vpack.c.b16 %v1828, %v1827
      %1845 = vmatprep.subr.bf16.mxu0 0
      %1846 = vmatpush1.bf16.msra.mxu0 %v1836
      %1847 = vmatprep.subr.bf16.mxu0 0
      %1848 = vmatpush1.bf16.msra.mxu0 %v1835
      %1849 = vmatprep.subr.bf16.mxu0 0
      %1850 = vmatpush1.bf16.msra.mxu0 %v1834
      %1851 = vmatprep.subr.bf16.mxu0 0
      %1852 = vmatpush1.bf16.msra.mxu0 %v1833
      %1853 = vmatprep.subr.bf16.mxu0 0
      %1854 = vmatpush1.bf16.msra.mxu0 %v1832
      %1855 = vmatprep.subr.bf16.mxu0 0
      %1856 = vmatpush1.bf16.msra.mxu0 %v1831
      %1857 = vmatprep.subr.bf16.mxu0 0
      %1858 = vmatpush1.bf16.msra.mxu0 %v1830
      %1859 = vmatprep.subr.bf16.mxu0 0
      %1860 = vmatpush1.bf16.msra.mxu0 %v1829
      %1861 = vmatprep.subr.bf16.mxu0 0
      %1862 = vmatpush2.bf16.msra.mxu0 0
      %1863 = vmatprep.subr.bf16.mxu0 0
      %1864 = vmatpush2.bf16.msra.mxu0 0
      %1865 = vmatprep.subr.bf16.mxu0 0
      %1866 = vmatpush2.bf16.msra.mxu0 0
      %1867 = vmatprep.subr.bf16.mxu0 0
      %1868 = vmatpush2.bf16.msra.mxu0 0
      %1869 = vmatprep.subr.bf16.mxu0 0
      %1870 = vmatpush2.bf16.msra.mxu0 0
      %1871 = vmatprep.subr.bf16.mxu0 0
      %1872 = vmatpush2.bf16.msra.mxu0 0
      %1873 = vmatprep.subr.bf16.mxu0 0
      %1874 = vmatpush2.bf16.msra.mxu0 0
      %1875 = vmatprep.subr.bf16.mxu0 0
      %1876 = vmatpush2.bf16.msra.mxu0 0
      %1877 = vmatprep.mubr.bf16.mxu0 0
      %1878 = vmatmul.mubr.bf16.gmra.mxu0 %v1796
      %v1879 = vpop.f32.mrf.mxu0
      %v1880 = vadd.f32 0.0, %v1879
      %v1881 = vpop.f32.mrf.mxu0
      %v1882 = vpop.f32.mrf.mxu0
      %v1883 = vpop.f32.mrf.mxu0
      %1884 = vdwg.mxu0
      %v1885 = vadd.f32 %v1633, %v1880
      %v1886 = vld [vmem:[%s742] sm:$0x1]
      %v1888 = vlaneseq
      %v1889 = vshrl.u32 %v1888, 7
      %v1890 = vsub.s32 0, %v1889
      %v1891 = vrot.slane %v1886, %v1890
      %v1893 = vadd.f32 %v1885, %v1891
      %p1894 = scmp.lt.s32.totalorder %s32, 1
      // Predicated region
      $region89: #{vivit_model_forward.5} parent=83 // pred_check
        %p1895 = pneg %p1894
      $region90: #{vivit_model_forward.5} parent=83 // pred_check_branch
        %1897 = sbr.rel (%p1895) target = $region92
      $region91: #{vivit_model_forward.5} parent=83 // pred_region
        %1898 = vst [vmem:[%s746] sm:$0xff] %v1893
      $region92: #{vivit_model_forward.5} parent=83 // pred_fallthru
        _
      %p1899 = scmp.eq.s32.totalorder %s32, 1
      // Predicated region
      $region93: #{vivit_model_forward.5} parent=83 // pred_check
        %p1900 = pneg %p1899
      $region94: #{vivit_model_forward.5} parent=83 // pred_check_branch
        %1902 = sbr.rel (%p1900) target = $region96
      $region95: #{vivit_model_forward.5} parent=83 // pred_region
        %v1903 = vld [vmem:[%s14] sm:$0x1]
        %v1904 = vld [vmem:[%s15] sm:$0x1]
        %1905 = vadd.xlane.f32.xlu0 %v1893
        %v1906 = vpop.xlane.xlu0 %1905
        %v1907 = vmul.f32 %v1893, %v1893
        %1908 = vadd.xlane.f32.xlu0 %v1907
        %v1909 = vpop.xlane.xlu0 %1908
        %v1910 = vmul.f32 %v1906, %v762
        %v1911 = vmul.f32 %v1909, %v762
        %v1912 = vmul.f32 %v1910, %v1910
        %v1913 = vsub.f32 %v1911, %v1912
        %v1914 = vsub.f32 %v1893, %v1910
        %v1915 = vadd.f32 %v1913, 1e-05
        %v1916 = vrsqrt.pop %v1915
        %v1917 = vmul.f32 %v1914, %v1916
        %v1919 = vlaneseq
        %v1920 = vshrl.u32 %v1919, 7
        %v1921 = vsub.s32 0, %v1920
        %v1922 = vrot.slane %v1903, %v1921
        %v1924 = vmul.f32 %v1917, %v1922
        %v1926 = vlaneseq
        %v1927 = vshrl.u32 %v1926, 7
        %v1928 = vsub.s32 0, %v1927
        %v1929 = vrot.slane %v1904, %v1928
        %v1931 = vadd.f32 %v1924, %v1929
        %1932 = vst [vmem:[%s746] sm:$0xff] %v1931
      $region96: #{vivit_model_forward.5} parent=83 // pred_fallthru
        _
      %p1933 = scmp.lt.s32.totalorder %s31, 1
      %s1934 = scalar_select %p1933, %s31, 1
      %s1935 = smul.addr %s1934, 8
      %s1936 = scalar_lea.vmem %s16, %s1935
      // Predicated region
      $region97: #{vivit_model_forward.5} parent=83 // pred_check
        %p1937 = pneg %p463
      $region98: #{vivit_model_forward.5} parent=83 // pred_check_branch
        %1939 = sbr.rel (%p1937) target = $region100
      $region99: #{vivit_model_forward.5} parent=83 // pred_region
        _
      $region100: #{vivit_model_forward.5} parent=83 // pred_fallthru
        _
    $region84: #{vivit_model_forward.5} parent=5 // pred_fallthru
      _
    %p1940 = scmp.le.s32.totalorder 2, %s22
    // Predicated region
    $region101: #{vivit_model_forward.5} parent=5 // pred_check
      %p1941 = pneg %p1940
    $region102: #{vivit_model_forward.5} parent=5 // pred_check_branch
      %1943 = sbr.rel (%p1941) target = $region104
    $region103: #{vivit_model_forward.5} parent=5 // pred_region
      %s1944 = ssub.s32 %s22, 2
      // Predicated region
      $region105: #{vivit_model_forward.5} parent=103 // pred_check
        %p1945 = pneg %p469
      $region106: #{vivit_model_forward.5} parent=103 // pred_check_branch
        %1947 = sbr.rel (%p1945) target = $region108
      $region107: #{vivit_model_forward.5} parent=103 // pred_region
        %p1948 = scmp.lt.s32.totalorder %s33, 1
        %s1949 = scalar_select %p1948, %s33, 1
        %s1950 = smul.addr %s1949, 8
        %s1951 = scalar_lea.vmem %s16, %s1950
      $region108: #{vivit_model_forward.5} parent=103 // pred_fallthru
        _
    $region104: #{vivit_model_forward.5} parent=5 // pred_fallthru
      _
  $region6: #{vivit_model_forward.5} parent=0 // loop_footer
    %s26 = sadd.s32 1, %s22
  $region7: #{vivit_model_forward.5} parent=0 // loop_footer_branch
    %21 = sbr.rel target = $region3
  $region8: #{vivit_model_forward.5} parent=0 // loop_exit
    _

</llo_original>
